<compile_context>
chip_gen: v5e
topology: v5e:2x2
jax: 0.10.0
libtpu: 0.0.40
codegen_flags: <defaults>
</compile_context>

<pallas_src>
import jax
import jax.numpy as jnp
from jax.experimental import pallas as pl
from jax.experimental.pallas import tpu as pltpu

LANE = 128
_VMEM = pl.BlockSpec(memory_space=pltpu.MemorySpace.VMEM)


def _mxu(a_bf16, b_bf16):
    """MXU matmul: bf16 operands (already cast), f32 accumulation."""
    return jnp.dot(a_bf16, b_bf16, preferred_element_type=jnp.float32)


# ----------------------------------------------------------------------------
# Fused forward kernel (structure unrolled at trace time from static config)
# ----------------------------------------------------------------------------
def _build_kernel(n_layers, n_in):
    def kernel(*refs):
        assert len(refs) == n_in + 3
        in_refs, out_refs = refs[:n_in], refs[n_in:]
        out_ref, xt_slab, xs_slab = out_refs
        it = iter(in_refs)

        x_t_in = next(it)[...]                      # [N, 128] f32 (lane-padded)
        x_s_in = next(it)[...]                      # [E, 128] f32
        l_t = next(it)[...]                         # [N, N] bf16
        l_s = next(it)[...]                         # [E, E] bf16
        b_bf = next(it)[...]                        # [N, E] bf16 (|par_1|)
        dinv = next(it)[...]                        # [N, 1] f32 (1/deg)

        # |par_1|^T transposed once on the XLU, reused by every layer+readout.
        bt_bf = b_bf.T                              # [E, N] bf16

        def conv_bn_relu(x_f32, lap_bf):
            """HodgeLaguerreConv(K=2) + BatchNorm(batch stats) + ReLU."""
            w0 = next(it)[...]; w1 = next(it)[...]            # bf16 slabs
            b = next(it)[...]; g = next(it)[...]; beta = next(it)[...]  # f32
            x_bf = x_f32.astype(jnp.bfloat16)                 # cast once
            lx = _mxu(lap_bf, x_bf)                           # L x    (f32)
            z = (_mxu(x_bf, w0)
                 + _mxu((x_f32 - lx).astype(jnp.bfloat16), w1)
                 + b)                                         # x W0+(I-L)x W1+b
            m = z.shape[0]
            inv_m = 1.0 / m                                   # trace-time const
            mean = jnp.sum(z, axis=0, keepdims=True) * inv_m
            var = jnp.maximum(
                jnp.sum(z * z, axis=0, keepdims=True) * inv_m - mean * mean,
                0.0)                                          # biased, like torch
            zn = (z - mean) * jax.lax.rsqrt(var + 1e-5) * g + beta
            return jnp.maximum(zn, 0.0)

        # ------------------------ HL_init_conv --------------------------
        x_t = conv_bn_relu(x_t_in, l_t)
        x_s = conv_bn_relu(x_s_in, l_s)
        xt_slab[:, 0:LANE] = x_t                    # x_t0 slab, block 0
        xs_slab[:, 0:LANE] = x_s                    # x_s0 slab, block 0

        # ------------------ NodeEdgeInt + NEConv layers ------------------
        for s in range(n_layers):
            width = (s + 1) * LANE
            wt = next(it)[...]; ws = next(it)[...]  # bf16 block-padded weights
            xt0 = xt_slab[:, 0:width].astype(jnp.bfloat16)    # concat slab so far
            xs0 = xs_slab[:, 0:width].astype(jnp.bfloat16)
            xt_p = _mxu(xt0, wt)                    # node projection   (f32)
            xs_p = _mxu(xs0, ws)                    # edge projection   (f32)
            s2t = _mxu(b_bf, xs_p.astype(jnp.bfloat16)) * dinv   # edge->node
            t2s = _mxu(bt_bf, xt_p.astype(jnp.bfloat16)) * 0.5   # node->edge
            x_t = jnp.maximum(xt_p + s2t, 0.0)
            x_s = jnp.maximum(xs_p + t2s, 0.0)
            # NEConv: Laguerre conv + BN + ReLU on nodes and edges
            x_t = conv_bn_relu(x_t, l_t)
            x_s = conv_bn_relu(x_s, l_s)
            xt_slab[:, width:width + LANE] = x_t    # torch.cat([x_t0, x_t])
            xs_slab[:, width:width + LANE] = x_s    # torch.cat([x_s0, x_s])

        # --------------------------- readout -----------------------------
        # x_t2s = |par_1|^T x_t / 2 ; out = [x_s, x_t2s] @ W + b  (K=1 conv)
        ws_out = next(it)[...]; wt_out = next(it)[...]; b_out = next(it)[...]
        t2s = _mxu(bt_bf, x_t.astype(jnp.bfloat16)) * 0.5
        out_ref[...] = (_mxu(x_s.astype(jnp.bfloat16), ws_out)
                        + _mxu(t2s.astype(jnp.bfloat16), wt_out)
                        + b_out)

    return kernel


# ----------------------------------------------------------------------------
# Parameter construction (real shapes, mirroring the torch module)
# ----------------------------------------------------------------------------
def make_params(key, channels, filters, node_dim, edge_dim):
    keys = iter(jax.random.split(key, 128))

    def glorot(cin, cout):
        s = (6.0 / (cin + cout)) ** 0.5
        return jax.random.uniform(next(keys), (cin, cout), jnp.float32, -s, s)

    def conv_bn(cin, cout):
        return dict(w0=glorot(cin, cout), w1=glorot(cin, cout),
                    b=jnp.zeros((cout,), jnp.float32),
                    g=jnp.ones((cout,), jnp.float32),
                    beta=jnp.zeros((cout,), jnp.float32))

    p = {}
    f0 = filters[0]
    p['init_t'] = conv_bn(node_dim, f0)
    p['init_s'] = conv_bn(edge_dim, f0)
    p['layers'] = []
    insize = f0
    for i, fout in enumerate(filters):
        for _ in range(channels[i]):
            p['layers'].append(dict(
                wt=glorot(insize, fout), ws=glorot(insize, fout),
                conv_t=conv_bn(fout, fout), conv_s=conv_bn(fout, fout)))
            insize = fout + insize
    flast = filters[-1]
    p['out'] = dict(ws=glorot(flast, 1), wt=glorot(flast, 1),
                    b=jnp.zeros((1,), jnp.float32))
    return p


# ----------------------------------------------------------------------------
# Pack parameters into lane-padded (128-wide) bf16 slabs for the fused kernel
# ----------------------------------------------------------------------------
def _place_blocks(w, in_widths):
    """Scatter the rows of a real [sum(in_widths), cout] weight into a padded
    [len(in_widths)*LANE, LANE] slab (block k starts at row k*LANE)."""
    cout = w.shape[1]
    out = jnp.zeros((len(in_widths) * LANE, LANE), jnp.float32)
    r = 0
    for k, wk in enumerate(in_widths):
        out = out.at[k * LANE:k * LANE + wk, :cout].set(w[r:r + wk])
        r += wk
    return out.astype(jnp.bfloat16)


def _pad_vec(v):
    return jnp.pad(v, (0, LANE - v.shape[0])).reshape(1, LANE).astype(jnp.float32)


def pack_params(p, channels, filters):
    def pack_conv(c):
        cin = c['w0'].shape[0]
        return [_place_blocks(c['w0'], [cin]), _place_blocks(c['w1'], [cin]),
                _pad_vec(c['b']), _pad_vec(c['g']), _pad_vec(c['beta'])]

    flat = []
    flat += pack_conv(p['init_t'])
    flat += pack_conv(p['init_s'])
    real_widths = [filters[0]]
    li = 0
    for i, fout in enumerate(filters):
        for _ in range(channels[i]):
            lp = p['layers'][li]; li += 1
            flat += [_place_blocks(lp['wt'], real_widths),
                     _place_blocks(lp['ws'], real_widths)]
            flat += pack_conv(lp['conv_t'])
            flat += pack_conv(lp['conv_s'])
            real_widths = real_widths + [fout]
    flat += [_place_blocks(p['out']['ws'], [filters[-1]]),
             _place_blocks(p['out']['wt'], [filters[-1]]),
             _pad_vec(p['out']['b'])]
    return flat, real_widths


# ----------------------------------------------------------------------------
# Full forward: one fused pallas_call, tiny slicing outside
# ----------------------------------------------------------------------------
def hl_hgcnn_forward(flat_params, real_widths, x_t, x_s, L_t, L_s, B_abs, D,
                     channels):
    n_layers = sum(channels)
    N_tot, E_tot = L_t.shape[0], L_s.shape[0]
    slab_w = LANE * (n_layers + 1)

    # lane-pad the raw node/edge features (f32; cast to bf16 inside kernel)
    x_t = jnp.pad(x_t.astype(jnp.float32), ((0, 0), (0, LANE - x_t.shape[1])))
    x_s = jnp.pad(x_s.astype(jnp.float32), ((0, 0), (0, LANE - x_s.shape[1])))
    dinv = (1.0 / D).reshape(-1, 1).astype(jnp.float32)

    inputs = [x_t, x_s,
              L_t.astype(jnp.bfloat16), L_s.astype(jnp.bfloat16),
              B_abs.astype(jnp.bfloat16), dinv] + list(flat_params)
    n_in = len(inputs)

    out_pad, xt_slab, xs_slab = pl.pallas_call(
        _build_kernel(n_layers, n_in),
        out_shape=(jax.ShapeDtypeStruct((E_tot, LANE), jnp.float32),    # readout
                   jax.ShapeDtypeStruct((N_tot, slab_w), jnp.float32),  # x_t0 slab
                   jax.ShapeDtypeStruct((E_tot, slab_w), jnp.float32)),  # x_s0 slab
        in_specs=[_VMEM] * n_in,
        out_specs=(_VMEM, _VMEM, _VMEM),
    )(*inputs)

    # sout/tout = intermediates fed to each NodeEdgeInt (slab blocks 0..L-1)
    tout = [xt_slab[:, k * LANE:k * LANE + real_widths[k]] for k in range(n_layers)]
    sout = [xs_slab[:, k * LANE:k * LANE + real_widths[k]] for k in range(n_layers)]
    out = out_pad[:, :1]
    return sout, tout, out


# ----------------------------------------------------------------------------
if __name__ == "__main__":
    # Small configuration consistent with the module constructor.
    CHANNELS = [1, 1]
    FILTERS = [32, 64]
    NODE_DIM, EDGE_DIM = 2, 1

    # One graph: ring of 16 nodes + a chord from every node -> 32 edges.
    N1 = 16
    src_l = list(range(N1)) + list(range(N1))
    dst_l = [(i + 1) % N1 for i in range(N1)] + [(i + 5) % N1 for i in range(N1)]
    E1 = len(src_l)                                  # 32
    src = jnp.array(src_l, jnp.int32)
    dst = jnp.array(dst_l, jnp.int32)
    eidx = jnp.arange(E1)
    par1 = (jnp.zeros((N1, E1), jnp.float32)
            .at[src, eidx].add(-1.0)
            .at[dst, eidx].add(1.0))                 # signed incidence [N1,E1]

    # Batch B identical graphs as one block-diagonal disconnected graph so
    # that every matmul row dimension is >= 128 (N_tot=128, E_tot=256).
    B = 8
    eyeB = jnp.eye(B, dtype=jnp.float32)
    L_t = jnp.kron(eyeB, par1 @ par1.T)              # node Hodge Laplacian
    L_s = jnp.kron(eyeB, par1.T @ par1)              # edge Hodge Laplacian
    B_abs = jnp.kron(eyeB, jnp.abs(par1))            # |par_1|
    D = B_abs.sum(axis=1) + 1e-6                     # degree + 1e-6

    key = jax.random.PRNGKey(0)
    k_xt, k_xs, k_par = jax.random.split(key, 3)
    x_t = jax.random.normal(k_xt, (B * N1, NODE_DIM), jnp.float32)
    x_s = jax.random.normal(k_xs, (B * E1, EDGE_DIM), jnp.float32)

    params = make_params(k_par, CHANNELS, FILTERS, NODE_DIM, EDGE_DIM)
    flat, real_widths = pack_params(params, CHANNELS, FILTERS)

    sout, tout, out = hl_hgcnn_forward(flat, real_widths, x_t, x_s,
                                       L_t, L_s, B_abs, D, CHANNELS)
    out = jax.block_until_ready(out)
    assert out.shape == (B * E1, 1)
    assert len(sout) == sum(CHANNELS) and len(tout) == sum(CHANNELS)
    assert bool(jnp.all(jnp.isfinite(out)))
    print("KERNEL_OK")
</pallas_src>

<mosaic_0001>
module attributes {stable_mosaic.version = 11 : i64} {
  func.func @kernel(%arg0: memref<128x128xf32, #tpu.memory_space<vmem>>, %arg1: memref<256x128xf32, #tpu.memory_space<vmem>>, %arg2: memref<128x128xbf16, #tpu.memory_space<vmem>>, %arg3: memref<256x256xbf16, #tpu.memory_space<vmem>>, %arg4: memref<128x256xbf16, #tpu.memory_space<vmem>>, %arg5: memref<128x1xf32, #tpu.memory_space<vmem>>, %arg6: memref<128x128xbf16, #tpu.memory_space<vmem>>, %arg7: memref<128x128xbf16, #tpu.memory_space<vmem>>, %arg8: memref<1x128xf32, #tpu.memory_space<vmem>>, %arg9: memref<1x128xf32, #tpu.memory_space<vmem>>, %arg10: memref<1x128xf32, #tpu.memory_space<vmem>>, %arg11: memref<128x128xbf16, #tpu.memory_space<vmem>>, %arg12: memref<128x128xbf16, #tpu.memory_space<vmem>>, %arg13: memref<1x128xf32, #tpu.memory_space<vmem>>, %arg14: memref<1x128xf32, #tpu.memory_space<vmem>>, %arg15: memref<1x128xf32, #tpu.memory_space<vmem>>, %arg16: memref<128x128xbf16, #tpu.memory_space<vmem>>, %arg17: memref<128x128xbf16, #tpu.memory_space<vmem>>, %arg18: memref<128x128xbf16, #tpu.memory_space<vmem>>, %arg19: memref<128x128xbf16, #tpu.memory_space<vmem>>, %arg20: memref<1x128xf32, #tpu.memory_space<vmem>>, %arg21: memref<1x128xf32, #tpu.memory_space<vmem>>, %arg22: memref<1x128xf32, #tpu.memory_space<vmem>>, %arg23: memref<128x128xbf16, #tpu.memory_space<vmem>>, %arg24: memref<128x128xbf16, #tpu.memory_space<vmem>>, %arg25: memref<1x128xf32, #tpu.memory_space<vmem>>, %arg26: memref<1x128xf32, #tpu.memory_space<vmem>>, %arg27: memref<1x128xf32, #tpu.memory_space<vmem>>, %arg28: memref<256x128xbf16, #tpu.memory_space<vmem>>, %arg29: memref<256x128xbf16, #tpu.memory_space<vmem>>, %arg30: memref<128x128xbf16, #tpu.memory_space<vmem>>, %arg31: memref<128x128xbf16, #tpu.memory_space<vmem>>, %arg32: memref<1x128xf32, #tpu.memory_space<vmem>>, %arg33: memref<1x128xf32, #tpu.memory_space<vmem>>, %arg34: memref<1x128xf32, #tpu.memory_space<vmem>>, %arg35: memref<128x128xbf16, #tpu.memory_space<vmem>>, %arg36: memref<128x128xbf16, #tpu.memory_space<vmem>>, %arg37: memref<1x128xf32, #tpu.memory_space<vmem>>, %arg38: memref<1x128xf32, #tpu.memory_space<vmem>>, %arg39: memref<1x128xf32, #tpu.memory_space<vmem>>, %arg40: memref<128x128xbf16, #tpu.memory_space<vmem>>, %arg41: memref<128x128xbf16, #tpu.memory_space<vmem>>, %arg42: memref<1x128xf32, #tpu.memory_space<vmem>>, %arg43: memref<256x128xf32, #tpu.memory_space<vmem>>, %arg44: memref<128x384xf32, #tpu.memory_space<vmem>>, %arg45: memref<256x384xf32, #tpu.memory_space<vmem>>) attributes {dimension_semantics = [], scalar_prefetch = 0 : i64, scratch_operands = 0 : i64, tpu.core_type = #tpu.core_type<tc>} {
    %c0 = arith.constant 0 : index
    %c0_0 = arith.constant 0 : index
    %0 = vector.load %arg0[%c0, %c0_0] : memref<128x128xf32, #tpu.memory_space<vmem>>, vector<128x128xf32>
    %c0_1 = arith.constant 0 : index
    %c0_2 = arith.constant 0 : index
    %1 = vector.load %arg1[%c0_1, %c0_2] : memref<256x128xf32, #tpu.memory_space<vmem>>, vector<256x128xf32>
    %c0_3 = arith.constant 0 : index
    %c0_4 = arith.constant 0 : index
    %2 = vector.load %arg2[%c0_3, %c0_4] : memref<128x128xbf16, #tpu.memory_space<vmem>>, vector<128x128xbf16>
    %c0_5 = arith.constant 0 : index
    %c0_6 = arith.constant 0 : index
    %3 = vector.load %arg3[%c0_5, %c0_6] : memref<256x256xbf16, #tpu.memory_space<vmem>>, vector<256x256xbf16>
    %c0_7 = arith.constant 0 : index
    %c0_8 = arith.constant 0 : index
    %4 = vector.load %arg4[%c0_7, %c0_8] : memref<128x256xbf16, #tpu.memory_space<vmem>>, vector<128x256xbf16>
    %c0_9 = arith.constant 0 : index
    %c0_10 = arith.constant 0 : index
    %5 = vector.load %arg5[%c0_9, %c0_10] : memref<128x1xf32, #tpu.memory_space<vmem>>, vector<128x1xf32>
    %6 = tpu.transpose %4, [1, 0] : vector<128x256xbf16> -> vector<256x128xbf16>
    %c0_11 = arith.constant 0 : index
    %c0_12 = arith.constant 0 : index
    %7 = vector.load %arg6[%c0_11, %c0_12] : memref<128x128xbf16, #tpu.memory_space<vmem>>, vector<128x128xbf16>
    %c0_13 = arith.constant 0 : index
    %c0_14 = arith.constant 0 : index
    %8 = vector.load %arg7[%c0_13, %c0_14] : memref<128x128xbf16, #tpu.memory_space<vmem>>, vector<128x128xbf16>
    %c0_15 = arith.constant 0 : index
    %c0_16 = arith.constant 0 : index
    %9 = vector.load %arg8[%c0_15, %c0_16] : memref<1x128xf32, #tpu.memory_space<vmem>>, vector<1x128xf32>
    %c0_17 = arith.constant 0 : index
    %c0_18 = arith.constant 0 : index
    %10 = vector.load %arg9[%c0_17, %c0_18] : memref<1x128xf32, #tpu.memory_space<vmem>>, vector<1x128xf32>
    %c0_19 = arith.constant 0 : index
    %c0_20 = arith.constant 0 : index
    %11 = vector.load %arg10[%c0_19, %c0_20] : memref<1x128xf32, #tpu.memory_space<vmem>>, vector<1x128xf32>
    %12 = arith.truncf %0 : vector<128x128xf32> to vector<128x128xbf16>
    %cst = arith.constant dense<0.000000e+00> : vector<128x128xf32>
    %13 = tpu.matmul %2, %12, %cst {dimension_numbers = #tpu.dot_dimension_numbers<[1], [0], [0], [1], [0, 0, 1, 1], [], []>} : vector<128x128xbf16>, vector<128x128xbf16>, vector<128x128xf32> -> vector<128x128xf32>
    %cst_21 = arith.constant dense<0.000000e+00> : vector<128x128xf32>
    %14 = tpu.matmul %12, %7, %cst_21 {dimension_numbers = #tpu.dot_dimension_numbers<[1], [0], [0], [1], [0, 0, 1, 1], [], []>} : vector<128x128xbf16>, vector<128x128xbf16>, vector<128x128xf32> -> vector<128x128xf32>
    %15 = arith.subf %0, %13 : vector<128x128xf32>
    %16 = arith.truncf %15 : vector<128x128xf32> to vector<128x128xbf16>
    %cst_22 = arith.constant dense<0.000000e+00> : vector<128x128xf32>
    %17 = tpu.matmul %16, %8, %cst_22 {dimension_numbers = #tpu.dot_dimension_numbers<[1], [0], [0], [1], [0, 0, 1, 1], [], []>} : vector<128x128xbf16>, vector<128x128xbf16>, vector<128x128xf32> -> vector<128x128xf32>
    %18 = arith.addf %14, %17 : vector<128x128xf32>
    %19 = vector.broadcast %9 : vector<1x128xf32> to vector<128x128xf32>
    %20 = arith.addf %18, %19 : vector<128x128xf32>
    %cst_23 = arith.constant dense<0.000000e+00> : vector<128xf32>
    %21 = vector.multi_reduction <add>, %20, %cst_23 [0] : vector<128x128xf32> to vector<128xf32>
    %22 = vector.shape_cast %21 : vector<128xf32> to vector<1x128xf32>
    %cst_24 = arith.constant 7.812500e-03 : f32
    %23 = vector.broadcast %cst_24 : f32 to vector<1x128xf32>
    %24 = arith.mulf %22, %23 : vector<1x128xf32>
    %25 = arith.mulf %20, %20 : vector<128x128xf32>
    %cst_25 = arith.constant dense<0.000000e+00> : vector<128xf32>
    %26 = vector.multi_reduction <add>, %25, %cst_25 [0] : vector<128x128xf32> to vector<128xf32>
    %27 = vector.shape_cast %26 : vector<128xf32> to vector<1x128xf32>
    %cst_26 = arith.constant 7.812500e-03 : f32
    %28 = vector.broadcast %cst_26 : f32 to vector<1x128xf32>
    %29 = arith.mulf %27, %28 : vector<1x128xf32>
    %30 = arith.mulf %24, %24 : vector<1x128xf32>
    %31 = arith.subf %29, %30 : vector<1x128xf32>
    %cst_27 = arith.constant 0.000000e+00 : f32
    %32 = vector.broadcast %cst_27 : f32 to vector<1x128xf32>
    %33 = arith.maximumf %31, %32 : vector<1x128xf32>
    %34 = vector.broadcast %24 : vector<1x128xf32> to vector<128x128xf32>
    %35 = arith.subf %20, %34 : vector<128x128xf32>
    %cst_28 = arith.constant 9.99999974E-6 : f32
    %36 = vector.broadcast %cst_28 : f32 to vector<1x128xf32>
    %37 = arith.addf %33, %36 : vector<1x128xf32>
    %38 = math.rsqrt %37 : vector<1x128xf32>
    %39 = vector.broadcast %38 : vector<1x128xf32> to vector<128x128xf32>
    %40 = arith.mulf %35, %39 : vector<128x128xf32>
    %41 = vector.broadcast %10 : vector<1x128xf32> to vector<128x128xf32>
    %42 = arith.mulf %40, %41 : vector<128x128xf32>
    %43 = vector.broadcast %11 : vector<1x128xf32> to vector<128x128xf32>
    %44 = arith.addf %42, %43 : vector<128x128xf32>
    %cst_29 = arith.constant 0.000000e+00 : f32
    %45 = vector.broadcast %cst_29 : f32 to vector<128x128xf32>
    %46 = arith.maximumf %44, %45 : vector<128x128xf32>
    %c0_30 = arith.constant 0 : index
    %c0_31 = arith.constant 0 : index
    %47 = vector.load %arg11[%c0_30, %c0_31] : memref<128x128xbf16, #tpu.memory_space<vmem>>, vector<128x128xbf16>
    %c0_32 = arith.constant 0 : index
    %c0_33 = arith.constant 0 : index
    %48 = vector.load %arg12[%c0_32, %c0_33] : memref<128x128xbf16, #tpu.memory_space<vmem>>, vector<128x128xbf16>
    %c0_34 = arith.constant 0 : index
    %c0_35 = arith.constant 0 : index
    %49 = vector.load %arg13[%c0_34, %c0_35] : memref<1x128xf32, #tpu.memory_space<vmem>>, vector<1x128xf32>
    %c0_36 = arith.constant 0 : index
    %c0_37 = arith.constant 0 : index
    %50 = vector.load %arg14[%c0_36, %c0_37] : memref<1x128xf32, #tpu.memory_space<vmem>>, vector<1x128xf32>
    %c0_38 = arith.constant 0 : index
    %c0_39 = arith.constant 0 : index
    %51 = vector.load %arg15[%c0_38, %c0_39] : memref<1x128xf32, #tpu.memory_space<vmem>>, vector<1x128xf32>
    %52 = arith.truncf %1 : vector<256x128xf32> to vector<256x128xbf16>
    %cst_40 = arith.constant dense<0.000000e+00> : vector<256x128xf32>
    %53 = tpu.matmul %3, %52, %cst_40 {dimension_numbers = #tpu.dot_dimension_numbers<[1], [0], [0], [1], [0, 0, 1, 1], [], []>} : vector<256x256xbf16>, vector<256x128xbf16>, vector<256x128xf32> -> vector<256x128xf32>
    %cst_41 = arith.constant dense<0.000000e+00> : vector<256x128xf32>
    %54 = tpu.matmul %52, %47, %cst_41 {dimension_numbers = #tpu.dot_dimension_numbers<[1], [0], [0], [1], [0, 0, 1, 1], [], []>} : vector<256x128xbf16>, vector<128x128xbf16>, vector<256x128xf32> -> vector<256x128xf32>
    %55 = arith.subf %1, %53 : vector<256x128xf32>
    %56 = arith.truncf %55 : vector<256x128xf32> to vector<256x128xbf16>
    %cst_42 = arith.constant dense<0.000000e+00> : vector<256x128xf32>
    %57 = tpu.matmul %56, %48, %cst_42 {dimension_numbers = #tpu.dot_dimension_numbers<[1], [0], [0], [1], [0, 0, 1, 1], [], []>} : vector<256x128xbf16>, vector<128x128xbf16>, vector<256x128xf32> -> vector<256x128xf32>
    %58 = arith.addf %54, %57 : vector<256x128xf32>
    %59 = vector.broadcast %49 : vector<1x128xf32> to vector<256x128xf32>
    %60 = arith.addf %58, %59 : vector<256x128xf32>
    %cst_43 = arith.constant dense<0.000000e+00> : vector<128xf32>
    %61 = vector.multi_reduction <add>, %60, %cst_43 [0] : vector<256x128xf32> to vector<128xf32>
    %62 = vector.shape_cast %61 : vector<128xf32> to vector<1x128xf32>
    %cst_44 = arith.constant 3.906250e-03 : f32
    %63 = vector.broadcast %cst_44 : f32 to vector<1x128xf32>
    %64 = arith.mulf %62, %63 : vector<1x128xf32>
    %65 = arith.mulf %60, %60 : vector<256x128xf32>
    %cst_45 = arith.constant dense<0.000000e+00> : vector<128xf32>
    %66 = vector.multi_reduction <add>, %65, %cst_45 [0] : vector<256x128xf32> to vector<128xf32>
    %67 = vector.shape_cast %66 : vector<128xf32> to vector<1x128xf32>
    %cst_46 = arith.constant 3.906250e-03 : f32
    %68 = vector.broadcast %cst_46 : f32 to vector<1x128xf32>
    %69 = arith.mulf %67, %68 : vector<1x128xf32>
    %70 = arith.mulf %64, %64 : vector<1x128xf32>
    %71 = arith.subf %69, %70 : vector<1x128xf32>
    %cst_47 = arith.constant 0.000000e+00 : f32
    %72 = vector.broadcast %cst_47 : f32 to vector<1x128xf32>
    %73 = arith.maximumf %71, %72 : vector<1x128xf32>
    %74 = vector.broadcast %64 : vector<1x128xf32> to vector<256x128xf32>
    %75 = arith.subf %60, %74 : vector<256x128xf32>
    %cst_48 = arith.constant 9.99999974E-6 : f32
    %76 = vector.broadcast %cst_48 : f32 to vector<1x128xf32>
    %77 = arith.addf %73, %76 : vector<1x128xf32>
    %78 = math.rsqrt %77 : vector<1x128xf32>
    %79 = vector.broadcast %78 : vector<1x128xf32> to vector<256x128xf32>
    %80 = arith.mulf %75, %79 : vector<256x128xf32>
    %81 = vector.broadcast %50 : vector<1x128xf32> to vector<256x128xf32>
    %82 = arith.mulf %80, %81 : vector<256x128xf32>
    %83 = vector.broadcast %51 : vector<1x128xf32> to vector<256x128xf32>
    %84 = arith.addf %82, %83 : vector<256x128xf32>
    %cst_49 = arith.constant 0.000000e+00 : f32
    %85 = vector.broadcast %cst_49 : f32 to vector<256x128xf32>
    %86 = arith.maximumf %84, %85 : vector<256x128xf32>
    %c0_50 = arith.constant 0 : index
    %c0_51 = arith.constant 0 : index
    %87 = vector.load %arg44[%c0_50, %c0_51] : memref<128x384xf32, #tpu.memory_space<vmem>>, vector<128x128xf32>
    tpu.vector_store %arg44[%c0_50, %c0_51], %46 {strides = array<i32>} : memref<128x384xf32, #tpu.memory_space<vmem>>, vector<128x128xf32>,
    %c0_52 = arith.constant 0 : index
    %c0_53 = arith.constant 0 : index
    %88 = vector.load %arg45[%c0_52, %c0_53] : memref<256x384xf32, #tpu.memory_space<vmem>>, vector<256x128xf32>
    tpu.vector_store %arg45[%c0_52, %c0_53], %86 {strides = array<i32>} : memref<256x384xf32, #tpu.memory_space<vmem>>, vector<256x128xf32>,
    %c0_54 = arith.constant 0 : index
    %c0_55 = arith.constant 0 : index
    %89 = vector.load %arg16[%c0_54, %c0_55] : memref<128x128xbf16, #tpu.memory_space<vmem>>, vector<128x128xbf16>
    %c0_56 = arith.constant 0 : index
    %c0_57 = arith.constant 0 : index
    %90 = vector.load %arg17[%c0_56, %c0_57] : memref<128x128xbf16, #tpu.memory_space<vmem>>, vector<128x128xbf16>
    %c0_58 = arith.constant 0 : index
    %c0_59 = arith.constant 0 : index
    %91 = vector.load %arg44[%c0_58, %c0_59] : memref<128x384xf32, #tpu.memory_space<vmem>>, vector<128x128xf32>
    %92 = arith.truncf %91 : vector<128x128xf32> to vector<128x128xbf16>
    %c0_60 = arith.constant 0 : index
    %c0_61 = arith.constant 0 : index
    %93 = vector.load %arg45[%c0_60, %c0_61] : memref<256x384xf32, #tpu.memory_space<vmem>>, vector<256x128xf32>
    %94 = arith.truncf %93 : vector<256x128xf32> to vector<256x128xbf16>
    %cst_62 = arith.constant dense<0.000000e+00> : vector<128x128xf32>
    %95 = tpu.matmul %92, %89, %cst_62 {dimension_numbers = #tpu.dot_dimension_numbers<[1], [0], [0], [1], [0, 0, 1, 1], [], []>} : vector<128x128xbf16>, vector<128x128xbf16>, vector<128x128xf32> -> vector<128x128xf32>
    %cst_63 = arith.constant dense<0.000000e+00> : vector<256x128xf32>
    %96 = tpu.matmul %94, %90, %cst_63 {dimension_numbers = #tpu.dot_dimension_numbers<[1], [0], [0], [1], [0, 0, 1, 1], [], []>} : vector<256x128xbf16>, vector<128x128xbf16>, vector<256x128xf32> -> vector<256x128xf32>
    %97 = arith.truncf %96 : vector<256x128xf32> to vector<256x128xbf16>
    %cst_64 = arith.constant dense<0.000000e+00> : vector<128x128xf32>
    %98 = tpu.matmul %4, %97, %cst_64 {dimension_numbers = #tpu.dot_dimension_numbers<[1], [0], [0], [1], [0, 0, 1, 1], [], []>} : vector<128x256xbf16>, vector<256x128xbf16>, vector<128x128xf32> -> vector<128x128xf32>
    %99 = vector.broadcast %5 : vector<128x1xf32> to vector<128x128xf32>
    %100 = arith.mulf %98, %99 : vector<128x128xf32>
    %101 = arith.truncf %95 : vector<128x128xf32> to vector<128x128xbf16>
    %cst_65 = arith.constant dense<0.000000e+00> : vector<256x128xf32>
    %102 = tpu.matmul %6, %101, %cst_65 {dimension_numbers = #tpu.dot_dimension_numbers<[1], [0], [0], [1], [0, 0, 1, 1], [], []>} : vector<256x128xbf16>, vector<128x128xbf16>, vector<256x128xf32> -> vector<256x128xf32>
    %cst_66 = arith.constant 5.000000e-01 : f32
    %103 = vector.broadcast %cst_66 : f32 to vector<256x128xf32>
    %104 = arith.mulf %102, %103 : vector<256x128xf32>
    %105 = arith.addf %95, %100 : vector<128x128xf32>
    %cst_67 = arith.constant 0.000000e+00 : f32
    %106 = vector.broadcast %cst_67 : f32 to vector<128x128xf32>
    %107 = arith.maximumf %105, %106 : vector<128x128xf32>
    %108 = arith.addf %96, %104 : vector<256x128xf32>
    %cst_68 = arith.constant 0.000000e+00 : f32
    %109 = vector.broadcast %cst_68 : f32 to vector<256x128xf32>
    %110 = arith.maximumf %108, %109 : vector<256x128xf32>
    %c0_69 = arith.constant 0 : index
    %c0_70 = arith.constant 0 : index
    %111 = vector.load %arg18[%c0_69, %c0_70] : memref<128x128xbf16, #tpu.memory_space<vmem>>, vector<128x128xbf16>
    %c0_71 = arith.constant 0 : index
    %c0_72 = arith.constant 0 : index
    %112 = vector.load %arg19[%c0_71, %c0_72] : memref<128x128xbf16, #tpu.memory_space<vmem>>, vector<128x128xbf16>
    %c0_73 = arith.constant 0 : index
    %c0_74 = arith.constant 0 : index
    %113 = vector.load %arg20[%c0_73, %c0_74] : memref<1x128xf32, #tpu.memory_space<vmem>>, vector<1x128xf32>
    %c0_75 = arith.constant 0 : index
    %c0_76 = arith.constant 0 : index
    %114 = vector.load %arg21[%c0_75, %c0_76] : memref<1x128xf32, #tpu.memory_space<vmem>>, vector<1x128xf32>
    %c0_77 = arith.constant 0 : index
    %c0_78 = arith.constant 0 : index
    %115 = vector.load %arg22[%c0_77, %c0_78] : memref<1x128xf32, #tpu.memory_space<vmem>>, vector<1x128xf32>
    %116 = arith.truncf %107 : vector<128x128xf32> to vector<128x128xbf16>
    %cst_79 = arith.constant dense<0.000000e+00> : vector<128x128xf32>
    %117 = tpu.matmul %2, %116, %cst_79 {dimension_numbers = #tpu.dot_dimension_numbers<[1], [0], [0], [1], [0, 0, 1, 1], [], []>} : vector<128x128xbf16>, vector<128x128xbf16>, vector<128x128xf32> -> vector<128x128xf32>
    %cst_80 = arith.constant dense<0.000000e+00> : vector<128x128xf32>
    %118 = tpu.matmul %116, %111, %cst_80 {dimension_numbers = #tpu.dot_dimension_numbers<[1], [0], [0], [1], [0, 0, 1, 1], [], []>} : vector<128x128xbf16>, vector<128x128xbf16>, vector<128x128xf32> -> vector<128x128xf32>
    %119 = arith.subf %107, %117 : vector<128x128xf32>
    %120 = arith.truncf %119 : vector<128x128xf32> to vector<128x128xbf16>
    %cst_81 = arith.constant dense<0.000000e+00> : vector<128x128xf32>
    %121 = tpu.matmul %120, %112, %cst_81 {dimension_numbers = #tpu.dot_dimension_numbers<[1], [0], [0], [1], [0, 0, 1, 1], [], []>} : vector<128x128xbf16>, vector<128x128xbf16>, vector<128x128xf32> -> vector<128x128xf32>
    %122 = arith.addf %118, %121 : vector<128x128xf32>
    %123 = vector.broadcast %113 : vector<1x128xf32> to vector<128x128xf32>
    %124 = arith.addf %122, %123 : vector<128x128xf32>
    %cst_82 = arith.constant dense<0.000000e+00> : vector<128xf32>
    %125 = vector.multi_reduction <add>, %124, %cst_82 [0] : vector<128x128xf32> to vector<128xf32>
    %126 = vector.shape_cast %125 : vector<128xf32> to vector<1x128xf32>
    %cst_83 = arith.constant 7.812500e-03 : f32
    %127 = vector.broadcast %cst_83 : f32 to vector<1x128xf32>
    %128 = arith.mulf %126, %127 : vector<1x128xf32>
    %129 = arith.mulf %124, %124 : vector<128x128xf32>
    %cst_84 = arith.constant dense<0.000000e+00> : vector<128xf32>
    %130 = vector.multi_reduction <add>, %129, %cst_84 [0] : vector<128x128xf32> to vector<128xf32>
    %131 = vector.shape_cast %130 : vector<128xf32> to vector<1x128xf32>
    %cst_85 = arith.constant 7.812500e-03 : f32
    %132 = vector.broadcast %cst_85 : f32 to vector<1x128xf32>
    %133 = arith.mulf %131, %132 : vector<1x128xf32>
    %134 = arith.mulf %128, %128 : vector<1x128xf32>
    %135 = arith.subf %133, %134 : vector<1x128xf32>
    %cst_86 = arith.constant 0.000000e+00 : f32
    %136 = vector.broadcast %cst_86 : f32 to vector<1x128xf32>
    %137 = arith.maximumf %135, %136 : vector<1x128xf32>
    %138 = vector.broadcast %128 : vector<1x128xf32> to vector<128x128xf32>
    %139 = arith.subf %124, %138 : vector<128x128xf32>
    %cst_87 = arith.constant 9.99999974E-6 : f32
    %140 = vector.broadcast %cst_87 : f32 to vector<1x128xf32>
    %141 = arith.addf %137, %140 : vector<1x128xf32>
    %142 = math.rsqrt %141 : vector<1x128xf32>
    %143 = vector.broadcast %142 : vector<1x128xf32> to vector<128x128xf32>
    %144 = arith.mulf %139, %143 : vector<128x128xf32>
    %145 = vector.broadcast %114 : vector<1x128xf32> to vector<128x128xf32>
    %146 = arith.mulf %144, %145 : vector<128x128xf32>
    %147 = vector.broadcast %115 : vector<1x128xf32> to vector<128x128xf32>
    %148 = arith.addf %146, %147 : vector<128x128xf32>
    %cst_88 = arith.constant 0.000000e+00 : f32
    %149 = vector.broadcast %cst_88 : f32 to vector<128x128xf32>
    %150 = arith.maximumf %148, %149 : vector<128x128xf32>
    %c0_89 = arith.constant 0 : index
    %c0_90 = arith.constant 0 : index
    %151 = vector.load %arg23[%c0_89, %c0_90] : memref<128x128xbf16, #tpu.memory_space<vmem>>, vector<128x128xbf16>
    %c0_91 = arith.constant 0 : index
    %c0_92 = arith.constant 0 : index
    %152 = vector.load %arg24[%c0_91, %c0_92] : memref<128x128xbf16, #tpu.memory_space<vmem>>, vector<128x128xbf16>
    %c0_93 = arith.constant 0 : index
    %c0_94 = arith.constant 0 : index
    %153 = vector.load %arg25[%c0_93, %c0_94] : memref<1x128xf32, #tpu.memory_space<vmem>>, vector<1x128xf32>
    %c0_95 = arith.constant 0 : index
    %c0_96 = arith.constant 0 : index
    %154 = vector.load %arg26[%c0_95, %c0_96] : memref<1x128xf32, #tpu.memory_space<vmem>>, vector<1x128xf32>
    %c0_97 = arith.constant 0 : index
    %c0_98 = arith.constant 0 : index
    %155 = vector.load %arg27[%c0_97, %c0_98] : memref<1x128xf32, #tpu.memory_space<vmem>>, vector<1x128xf32>
    %156 = arith.truncf %110 : vector<256x128xf32> to vector<256x128xbf16>
    %cst_99 = arith.constant dense<0.000000e+00> : vector<256x128xf32>
    %157 = tpu.matmul %3, %156, %cst_99 {dimension_numbers = #tpu.dot_dimension_numbers<[1], [0], [0], [1], [0, 0, 1, 1], [], []>} : vector<256x256xbf16>, vector<256x128xbf16>, vector<256x128xf32> -> vector<256x128xf32>
    %cst_100 = arith.constant dense<0.000000e+00> : vector<256x128xf32>
    %158 = tpu.matmul %156, %151, %cst_100 {dimension_numbers = #tpu.dot_dimension_numbers<[1], [0], [0], [1], [0, 0, 1, 1], [], []>} : vector<256x128xbf16>, vector<128x128xbf16>, vector<256x128xf32> -> vector<256x128xf32>
    %159 = arith.subf %110, %157 : vector<256x128xf32>
    %160 = arith.truncf %159 : vector<256x128xf32> to vector<256x128xbf16>
    %cst_101 = arith.constant dense<0.000000e+00> : vector<256x128xf32>
    %161 = tpu.matmul %160, %152, %cst_101 {dimension_numbers = #tpu.dot_dimension_numbers<[1], [0], [0], [1], [0, 0, 1, 1], [], []>} : vector<256x128xbf16>, vector<128x128xbf16>, vector<256x128xf32> -> vector<256x128xf32>
    %162 = arith.addf %158, %161 : vector<256x128xf32>
    %163 = vector.broadcast %153 : vector<1x128xf32> to vector<256x128xf32>
    %164 = arith.addf %162, %163 : vector<256x128xf32>
    %cst_102 = arith.constant dense<0.000000e+00> : vector<128xf32>
    %165 = vector.multi_reduction <add>, %164, %cst_102 [0] : vector<256x128xf32> to vector<128xf32>
    %166 = vector.shape_cast %165 : vector<128xf32> to vector<1x128xf32>
    %cst_103 = arith.constant 3.906250e-03 : f32
    %167 = vector.broadcast %cst_103 : f32 to vector<1x128xf32>
    %168 = arith.mulf %166, %167 : vector<1x128xf32>
    %169 = arith.mulf %164, %164 : vector<256x128xf32>
    %cst_104 = arith.constant dense<0.000000e+00> : vector<128xf32>
    %170 = vector.multi_reduction <add>, %169, %cst_104 [0] : vector<256x128xf32> to vector<128xf32>
    %171 = vector.shape_cast %170 : vector<128xf32> to vector<1x128xf32>
    %cst_105 = arith.constant 3.906250e-03 : f32
    %172 = vector.broadcast %cst_105 : f32 to vector<1x128xf32>
    %173 = arith.mulf %171, %172 : vector<1x128xf32>
    %174 = arith.mulf %168, %168 : vector<1x128xf32>
    %175 = arith.subf %173, %174 : vector<1x128xf32>
    %cst_106 = arith.constant 0.000000e+00 : f32
    %176 = vector.broadcast %cst_106 : f32 to vector<1x128xf32>
    %177 = arith.maximumf %175, %176 : vector<1x128xf32>
    %178 = vector.broadcast %168 : vector<1x128xf32> to vector<256x128xf32>
    %179 = arith.subf %164, %178 : vector<256x128xf32>
    %cst_107 = arith.constant 9.99999974E-6 : f32
    %180 = vector.broadcast %cst_107 : f32 to vector<1x128xf32>
    %181 = arith.addf %177, %180 : vector<1x128xf32>
    %182 = math.rsqrt %181 : vector<1x128xf32>
    %183 = vector.broadcast %182 : vector<1x128xf32> to vector<256x128xf32>
    %184 = arith.mulf %179, %183 : vector<256x128xf32>
    %185 = vector.broadcast %154 : vector<1x128xf32> to vector<256x128xf32>
    %186 = arith.mulf %184, %185 : vector<256x128xf32>
    %187 = vector.broadcast %155 : vector<1x128xf32> to vector<256x128xf32>
    %188 = arith.addf %186, %187 : vector<256x128xf32>
    %cst_108 = arith.constant 0.000000e+00 : f32
    %189 = vector.broadcast %cst_108 : f32 to vector<256x128xf32>
    %190 = arith.maximumf %188, %189 : vector<256x128xf32>
    %c0_109 = arith.constant 0 : index
    %c128 = arith.constant 128 : index
    %191 = vector.load %arg44[%c0_109, %c128] : memref<128x384xf32, #tpu.memory_space<vmem>>, vector<128x128xf32>
    tpu.vector_store %arg44[%c0_109, %c128], %150 {strides = array<i32>} : memref<128x384xf32, #tpu.memory_space<vmem>>, vector<128x128xf32>,
    %c0_110 = arith.constant 0 : index
    %c128_111 = arith.constant 128 : index
    %192 = vector.load %arg45[%c0_110, %c128_111] : memref<256x384xf32, #tpu.memory_space<vmem>>, vector<256x128xf32>
    tpu.vector_store %arg45[%c0_110, %c128_111], %190 {strides = array<i32>} : memref<256x384xf32, #tpu.memory_space<vmem>>, vector<256x128xf32>,
    %c0_112 = arith.constant 0 : index
    %c0_113 = arith.constant 0 : index
    %193 = vector.load %arg28[%c0_112, %c0_113] : memref<256x128xbf16, #tpu.memory_space<vmem>>, vector<256x128xbf16>
    %c0_114 = arith.constant 0 : index
    %c0_115 = arith.constant 0 : index
    %194 = vector.load %arg29[%c0_114, %c0_115] : memref<256x128xbf16, #tpu.memory_space<vmem>>, vector<256x128xbf16>
    %c0_116 = arith.constant 0 : index
    %c0_117 = arith.constant 0 : index
    %195 = vector.load %arg44[%c0_116, %c0_117] : memref<128x384xf32, #tpu.memory_space<vmem>>, vector<128x256xf32>
    %196 = arith.truncf %195 : vector<128x256xf32> to vector<128x256xbf16>
    %c0_118 = arith.constant 0 : index
    %c0_119 = arith.constant 0 : index
    %197 = vector.load %arg45[%c0_118, %c0_119] : memref<256x384xf32, #tpu.memory_space<vmem>>, vector<256x256xf32>
    %198 = arith.truncf %197 : vector<256x256xf32> to vector<256x256xbf16>
    %cst_120 = arith.constant dense<0.000000e+00> : vector<128x128xf32>
    %199 = tpu.matmul %196, %193, %cst_120 {dimension_numbers = #tpu.dot_dimension_numbers<[1], [0], [0], [1], [0, 0, 1, 1], [], []>} : vector<128x256xbf16>, vector<256x128xbf16>, vector<128x128xf32> -> vector<128x128xf32>
    %cst_121 = arith.constant dense<0.000000e+00> : vector<256x128xf32>
    %200 = tpu.matmul %198, %194, %cst_121 {dimension_numbers = #tpu.dot_dimension_numbers<[1], [0], [0], [1], [0, 0, 1, 1], [], []>} : vector<256x256xbf16>, vector<256x128xbf16>, vector<256x128xf32> -> vector<256x128xf32>
    %201 = arith.truncf %200 : vector<256x128xf32> to vector<256x128xbf16>
    %cst_122 = arith.constant dense<0.000000e+00> : vector<128x128xf32>
    %202 = tpu.matmul %4, %201, %cst_122 {dimension_numbers = #tpu.dot_dimension_numbers<[1], [0], [0], [1], [0, 0, 1, 1], [], []>} : vector<128x256xbf16>, vector<256x128xbf16>, vector<128x128xf32> -> vector<128x128xf32>
    %203 = vector.broadcast %5 : vector<128x1xf32> to vector<128x128xf32>
    %204 = arith.mulf %202, %203 : vector<128x128xf32>
    %205 = arith.truncf %199 : vector<128x128xf32> to vector<128x128xbf16>
    %cst_123 = arith.constant dense<0.000000e+00> : vector<256x128xf32>
    %206 = tpu.matmul %6, %205, %cst_123 {dimension_numbers = #tpu.dot_dimension_numbers<[1], [0], [0], [1], [0, 0, 1, 1], [], []>} : vector<256x128xbf16>, vector<128x128xbf16>, vector<256x128xf32> -> vector<256x128xf32>
    %cst_124 = arith.constant 5.000000e-01 : f32
    %207 = vector.broadcast %cst_124 : f32 to vector<256x128xf32>
    %208 = arith.mulf %206, %207 : vector<256x128xf32>
    %209 = arith.addf %199, %204 : vector<128x128xf32>
    %cst_125 = arith.constant 0.000000e+00 : f32
    %210 = vector.broadcast %cst_125 : f32 to vector<128x128xf32>
    %211 = arith.maximumf %209, %210 : vector<128x128xf32>
    %212 = arith.addf %200, %208 : vector<256x128xf32>
    %cst_126 = arith.constant 0.000000e+00 : f32
    %213 = vector.broadcast %cst_126 : f32 to vector<256x128xf32>
    %214 = arith.maximumf %212, %213 : vector<256x128xf32>
    %c0_127 = arith.constant 0 : index
    %c0_128 = arith.constant 0 : index
    %215 = vector.load %arg30[%c0_127, %c0_128] : memref<128x128xbf16, #tpu.memory_space<vmem>>, vector<128x128xbf16>
    %c0_129 = arith.constant 0 : index
    %c0_130 = arith.constant 0 : index
    %216 = vector.load %arg31[%c0_129, %c0_130] : memref<128x128xbf16, #tpu.memory_space<vmem>>, vector<128x128xbf16>
    %c0_131 = arith.constant 0 : index
    %c0_132 = arith.constant 0 : index
    %217 = vector.load %arg32[%c0_131, %c0_132] : memref<1x128xf32, #tpu.memory_space<vmem>>, vector<1x128xf32>
    %c0_133 = arith.constant 0 : index
    %c0_134 = arith.constant 0 : index
    %218 = vector.load %arg33[%c0_133, %c0_134] : memref<1x128xf32, #tpu.memory_space<vmem>>, vector<1x128xf32>
    %c0_135 = arith.constant 0 : index
    %c0_136 = arith.constant 0 : index
    %219 = vector.load %arg34[%c0_135, %c0_136] : memref<1x128xf32, #tpu.memory_space<vmem>>, vector<1x128xf32>
    %220 = arith.truncf %211 : vector<128x128xf32> to vector<128x128xbf16>
    %cst_137 = arith.constant dense<0.000000e+00> : vector<128x128xf32>
    %221 = tpu.matmul %2, %220, %cst_137 {dimension_numbers = #tpu.dot_dimension_numbers<[1], [0], [0], [1], [0, 0, 1, 1], [], []>} : vector<128x128xbf16>, vector<128x128xbf16>, vector<128x128xf32> -> vector<128x128xf32>
    %cst_138 = arith.constant dense<0.000000e+00> : vector<128x128xf32>
    %222 = tpu.matmul %220, %215, %cst_138 {dimension_numbers = #tpu.dot_dimension_numbers<[1], [0], [0], [1], [0, 0, 1, 1], [], []>} : vector<128x128xbf16>, vector<128x128xbf16>, vector<128x128xf32> -> vector<128x128xf32>
    %223 = arith.subf %211, %221 : vector<128x128xf32>
    %224 = arith.truncf %223 : vector<128x128xf32> to vector<128x128xbf16>
    %cst_139 = arith.constant dense<0.000000e+00> : vector<128x128xf32>
    %225 = tpu.matmul %224, %216, %cst_139 {dimension_numbers = #tpu.dot_dimension_numbers<[1], [0], [0], [1], [0, 0, 1, 1], [], []>} : vector<128x128xbf16>, vector<128x128xbf16>, vector<128x128xf32> -> vector<128x128xf32>
    %226 = arith.addf %222, %225 : vector<128x128xf32>
    %227 = vector.broadcast %217 : vector<1x128xf32> to vector<128x128xf32>
    %228 = arith.addf %226, %227 : vector<128x128xf32>
    %cst_140 = arith.constant dense<0.000000e+00> : vector<128xf32>
    %229 = vector.multi_reduction <add>, %228, %cst_140 [0] : vector<128x128xf32> to vector<128xf32>
    %230 = vector.shape_cast %229 : vector<128xf32> to vector<1x128xf32>
    %cst_141 = arith.constant 7.812500e-03 : f32
    %231 = vector.broadcast %cst_141 : f32 to vector<1x128xf32>
    %232 = arith.mulf %230, %231 : vector<1x128xf32>
    %233 = arith.mulf %228, %228 : vector<128x128xf32>
    %cst_142 = arith.constant dense<0.000000e+00> : vector<128xf32>
    %234 = vector.multi_reduction <add>, %233, %cst_142 [0] : vector<128x128xf32> to vector<128xf32>
    %235 = vector.shape_cast %234 : vector<128xf32> to vector<1x128xf32>
    %cst_143 = arith.constant 7.812500e-03 : f32
    %236 = vector.broadcast %cst_143 : f32 to vector<1x128xf32>
    %237 = arith.mulf %235, %236 : vector<1x128xf32>
    %238 = arith.mulf %232, %232 : vector<1x128xf32>
    %239 = arith.subf %237, %238 : vector<1x128xf32>
    %cst_144 = arith.constant 0.000000e+00 : f32
    %240 = vector.broadcast %cst_144 : f32 to vector<1x128xf32>
    %241 = arith.maximumf %239, %240 : vector<1x128xf32>
    %242 = vector.broadcast %232 : vector<1x128xf32> to vector<128x128xf32>
    %243 = arith.subf %228, %242 : vector<128x128xf32>
    %cst_145 = arith.constant 9.99999974E-6 : f32
    %244 = vector.broadcast %cst_145 : f32 to vector<1x128xf32>
    %245 = arith.addf %241, %244 : vector<1x128xf32>
    %246 = math.rsqrt %245 : vector<1x128xf32>
    %247 = vector.broadcast %246 : vector<1x128xf32> to vector<128x128xf32>
    %248 = arith.mulf %243, %247 : vector<128x128xf32>
    %249 = vector.broadcast %218 : vector<1x128xf32> to vector<128x128xf32>
    %250 = arith.mulf %248, %249 : vector<128x128xf32>
    %251 = vector.broadcast %219 : vector<1x128xf32> to vector<128x128xf32>
    %252 = arith.addf %250, %251 : vector<128x128xf32>
    %cst_146 = arith.constant 0.000000e+00 : f32
    %253 = vector.broadcast %cst_146 : f32 to vector<128x128xf32>
    %254 = arith.maximumf %252, %253 : vector<128x128xf32>
    %c0_147 = arith.constant 0 : index
    %c0_148 = arith.constant 0 : index
    %255 = vector.load %arg35[%c0_147, %c0_148] : memref<128x128xbf16, #tpu.memory_space<vmem>>, vector<128x128xbf16>
    %c0_149 = arith.constant 0 : index
    %c0_150 = arith.constant 0 : index
    %256 = vector.load %arg36[%c0_149, %c0_150] : memref<128x128xbf16, #tpu.memory_space<vmem>>, vector<128x128xbf16>
    %c0_151 = arith.constant 0 : index
    %c0_152 = arith.constant 0 : index
    %257 = vector.load %arg37[%c0_151, %c0_152] : memref<1x128xf32, #tpu.memory_space<vmem>>, vector<1x128xf32>
    %c0_153 = arith.constant 0 : index
    %c0_154 = arith.constant 0 : index
    %258 = vector.load %arg38[%c0_153, %c0_154] : memref<1x128xf32, #tpu.memory_space<vmem>>, vector<1x128xf32>
    %c0_155 = arith.constant 0 : index
    %c0_156 = arith.constant 0 : index
    %259 = vector.load %arg39[%c0_155, %c0_156] : memref<1x128xf32, #tpu.memory_space<vmem>>, vector<1x128xf32>
    %260 = arith.truncf %214 : vector<256x128xf32> to vector<256x128xbf16>
    %cst_157 = arith.constant dense<0.000000e+00> : vector<256x128xf32>
    %261 = tpu.matmul %3, %260, %cst_157 {dimension_numbers = #tpu.dot_dimension_numbers<[1], [0], [0], [1], [0, 0, 1, 1], [], []>} : vector<256x256xbf16>, vector<256x128xbf16>, vector<256x128xf32> -> vector<256x128xf32>
    %cst_158 = arith.constant dense<0.000000e+00> : vector<256x128xf32>
    %262 = tpu.matmul %260, %255, %cst_158 {dimension_numbers = #tpu.dot_dimension_numbers<[1], [0], [0], [1], [0, 0, 1, 1], [], []>} : vector<256x128xbf16>, vector<128x128xbf16>, vector<256x128xf32> -> vector<256x128xf32>
    %263 = arith.subf %214, %261 : vector<256x128xf32>
    %264 = arith.truncf %263 : vector<256x128xf32> to vector<256x128xbf16>
    %cst_159 = arith.constant dense<0.000000e+00> : vector<256x128xf32>
    %265 = tpu.matmul %264, %256, %cst_159 {dimension_numbers = #tpu.dot_dimension_numbers<[1], [0], [0], [1], [0, 0, 1, 1], [], []>} : vector<256x128xbf16>, vector<128x128xbf16>, vector<256x128xf32> -> vector<256x128xf32>
    %266 = arith.addf %262, %265 : vector<256x128xf32>
    %267 = vector.broadcast %257 : vector<1x128xf32> to vector<256x128xf32>
    %268 = arith.addf %266, %267 : vector<256x128xf32>
    %cst_160 = arith.constant dense<0.000000e+00> : vector<128xf32>
    %269 = vector.multi_reduction <add>, %268, %cst_160 [0] : vector<256x128xf32> to vector<128xf32>
    %270 = vector.shape_cast %269 : vector<128xf32> to vector<1x128xf32>
    %cst_161 = arith.constant 3.906250e-03 : f32
    %271 = vector.broadcast %cst_161 : f32 to vector<1x128xf32>
    %272 = arith.mulf %270, %271 : vector<1x128xf32>
    %273 = arith.mulf %268, %268 : vector<256x128xf32>
    %cst_162 = arith.constant dense<0.000000e+00> : vector<128xf32>
    %274 = vector.multi_reduction <add>, %273, %cst_162 [0] : vector<256x128xf32> to vector<128xf32>
    %275 = vector.shape_cast %274 : vector<128xf32> to vector<1x128xf32>
    %cst_163 = arith.constant 3.906250e-03 : f32
    %276 = vector.broadcast %cst_163 : f32 to vector<1x128xf32>
    %277 = arith.mulf %275, %276 : vector<1x128xf32>
    %278 = arith.mulf %272, %272 : vector<1x128xf32>
    %279 = arith.subf %277, %278 : vector<1x128xf32>
    %cst_164 = arith.constant 0.000000e+00 : f32
    %280 = vector.broadcast %cst_164 : f32 to vector<1x128xf32>
    %281 = arith.maximumf %279, %280 : vector<1x128xf32>
    %282 = vector.broadcast %272 : vector<1x128xf32> to vector<256x128xf32>
    %283 = arith.subf %268, %282 : vector<256x128xf32>
    %cst_165 = arith.constant 9.99999974E-6 : f32
    %284 = vector.broadcast %cst_165 : f32 to vector<1x128xf32>
    %285 = arith.addf %281, %284 : vector<1x128xf32>
    %286 = math.rsqrt %285 : vector<1x128xf32>
    %287 = vector.broadcast %286 : vector<1x128xf32> to vector<256x128xf32>
    %288 = arith.mulf %283, %287 : vector<256x128xf32>
    %289 = vector.broadcast %258 : vector<1x128xf32> to vector<256x128xf32>
    %290 = arith.mulf %288, %289 : vector<256x128xf32>
    %291 = vector.broadcast %259 : vector<1x128xf32> to vector<256x128xf32>
    %292 = arith.addf %290, %291 : vector<256x128xf32>
    %cst_166 = arith.constant 0.000000e+00 : f32
    %293 = vector.broadcast %cst_166 : f32 to vector<256x128xf32>
    %294 = arith.maximumf %292, %293 : vector<256x128xf32>
    %c0_167 = arith.constant 0 : index
    %c256 = arith.constant 256 : index
    %295 = vector.load %arg44[%c0_167, %c256] : memref<128x384xf32, #tpu.memory_space<vmem>>, vector<128x128xf32>
    tpu.vector_store %arg44[%c0_167, %c256], %254 {strides = array<i32>} : memref<128x384xf32, #tpu.memory_space<vmem>>, vector<128x128xf32>,
    %c0_168 = arith.constant 0 : index
    %c256_169 = arith.constant 256 : index
    %296 = vector.load %arg45[%c0_168, %c256_169] : memref<256x384xf32, #tpu.memory_space<vmem>>, vector<256x128xf32>
    tpu.vector_store %arg45[%c0_168, %c256_169], %294 {strides = array<i32>} : memref<256x384xf32, #tpu.memory_space<vmem>>, vector<256x128xf32>,
    %c0_170 = arith.constant 0 : index
    %c0_171 = arith.constant 0 : index
    %297 = vector.load %arg40[%c0_170, %c0_171] : memref<128x128xbf16, #tpu.memory_space<vmem>>, vector<128x128xbf16>
    %c0_172 = arith.constant 0 : index
    %c0_173 = arith.constant 0 : index
    %298 = vector.load %arg41[%c0_172, %c0_173] : memref<128x128xbf16, #tpu.memory_space<vmem>>, vector<128x128xbf16>
    %c0_174 = arith.constant 0 : index
    %c0_175 = arith.constant 0 : index
    %299 = vector.load %arg42[%c0_174, %c0_175] : memref<1x128xf32, #tpu.memory_space<vmem>>, vector<1x128xf32>
    %300 = arith.truncf %254 : vector<128x128xf32> to vector<128x128xbf16>
    %cst_176 = arith.constant dense<0.000000e+00> : vector<256x128xf32>
    %301 = tpu.matmul %6, %300, %cst_176 {dimension_numbers = #tpu.dot_dimension_numbers<[1], [0], [0], [1], [0, 0, 1, 1], [], []>} : vector<256x128xbf16>, vector<128x128xbf16>, vector<256x128xf32> -> vector<256x128xf32>
    %cst_177 = arith.constant 5.000000e-01 : f32
    %302 = vector.broadcast %cst_177 : f32 to vector<256x128xf32>
    %303 = arith.mulf %301, %302 : vector<256x128xf32>
    %304 = arith.truncf %294 : vector<256x128xf32> to vector<256x128xbf16>
    %cst_178 = arith.constant dense<0.000000e+00> : vector<256x128xf32>
    %305 = tpu.matmul %304, %297, %cst_178 {dimension_numbers = #tpu.dot_dimension_numbers<[1], [0], [0], [1], [0, 0, 1, 1], [], []>} : vector<256x128xbf16>, vector<128x128xbf16>, vector<256x128xf32> -> vector<256x128xf32>
    %306 = arith.truncf %303 : vector<256x128xf32> to vector<256x128xbf16>
    %cst_179 = arith.constant dense<0.000000e+00> : vector<256x128xf32>
    %307 = tpu.matmul %306, %298, %cst_179 {dimension_numbers = #tpu.dot_dimension_numbers<[1], [0], [0], [1], [0, 0, 1, 1], [], []>} : vector<256x128xbf16>, vector<128x128xbf16>, vector<256x128xf32> -> vector<256x128xf32>
    %308 = arith.addf %305, %307 : vector<256x128xf32>
    %309 = vector.broadcast %299 : vector<1x128xf32> to vector<256x128xf32>
    %310 = arith.addf %308, %309 : vector<256x128xf32>
    %c0_180 = arith.constant 0 : index
    %c0_181 = arith.constant 0 : index
    %311 = vector.load %arg43[%c0_180, %c0_181] : memref<256x128xf32, #tpu.memory_space<vmem>>, vector<256x128xf32>
    tpu.vector_store %arg43[%c0_180, %c0_181], %310 {strides = array<i32>} : memref<256x128xf32, #tpu.memory_space<vmem>>, vector<256x128xf32>,
    return
  }
}

</mosaic_0001>

<llo_original>
// kernel: tpu_custom_call.1
$region0: #{tpu_custom_call.1}
  #allocation0 [shape = 'u32[]', space=smem, size = 0x4, offset = 0x4, fixed_abs, tag = 'smem constant byte address 0x4 - core index']
  #allocation1 [shape = 'u32[72,128]{1,0:T(1,128)}', space=vmem, size = 0x9000, scoped, tag = 'internal scratch']
  %s0 = inlined_call_operand.smem [shape: u32[46], index: -1, kind: input, shape index: {}]
  %s1 = sld [smem:[%s0]]
  %s2 = scalar_lea.smem %s0, 1
  %s3 = sld [smem:[%s2]]
  %s4 = scalar_lea.smem %s0, 2
  %s5 = sld [smem:[%s4]]
  %s6 = scalar_lea.smem %s0, 3
  %s7 = sld [smem:[%s6]]
  %s8 = scalar_lea.smem %s0, 4
  %s9 = sld [smem:[%s8]]
  %s10 = scalar_lea.smem %s0, 5
  %s11 = sld [smem:[%s10]]
  %s12 = scalar_lea.smem %s0, 6
  %s13 = sld [smem:[%s12]]
  %s14 = scalar_lea.smem %s0, 7
  %s15 = sld [smem:[%s14]]
  %s16 = scalar_lea.smem %s0, 8
  %s17 = sld [smem:[%s16]]
  %s18 = scalar_lea.smem %s0, 9
  %s19 = sld [smem:[%s18]]
  %s20 = scalar_lea.smem %s0, 10
  %s21 = sld [smem:[%s20]]
  %s22 = scalar_lea.smem %s0, 11
  %s23 = sld [smem:[%s22]]
  %s24 = scalar_lea.smem %s0, 12
  %s25 = sld [smem:[%s24]]
  %s26 = scalar_lea.smem %s0, 13
  %s27 = sld [smem:[%s26]]
  %s28 = scalar_lea.smem %s0, 14
  %s29 = sld [smem:[%s28]]
  %s30 = scalar_lea.smem %s0, 15
  %s31 = sld [smem:[%s30]]
  %s32 = scalar_lea.smem %s0, 16
  %s33 = sld [smem:[%s32]]
  %s34 = scalar_lea.smem %s0, 17
  %s35 = sld [smem:[%s34]]
  %s36 = scalar_lea.smem %s0, 18
  %s37 = sld [smem:[%s36]]
  %s38 = scalar_lea.smem %s0, 19
  %s39 = sld [smem:[%s38]]
  %s40 = scalar_lea.smem %s0, 20
  %s41 = sld [smem:[%s40]]
  %s42 = scalar_lea.smem %s0, 21
  %s43 = sld [smem:[%s42]]
  %s44 = scalar_lea.smem %s0, 22
  %s45 = sld [smem:[%s44]]
  %s46 = scalar_lea.smem %s0, 23
  %s47 = sld [smem:[%s46]]
  %s48 = scalar_lea.smem %s0, 24
  %s49 = sld [smem:[%s48]]
  %s50 = scalar_lea.smem %s0, 25
  %s51 = sld [smem:[%s50]]
  %s52 = scalar_lea.smem %s0, 26
  %s53 = sld [smem:[%s52]]
  %s54 = scalar_lea.smem %s0, 27
  %s55 = sld [smem:[%s54]]
  %s56 = scalar_lea.smem %s0, 28
  %s57 = sld [smem:[%s56]]
  %s58 = scalar_lea.smem %s0, 29
  %s59 = sld [smem:[%s58]]
  %s60 = scalar_lea.smem %s0, 30
  %s61 = sld [smem:[%s60]]
  %s62 = scalar_lea.smem %s0, 31
  %s63 = sld [smem:[%s62]]
  %s64 = scalar_lea.smem %s0, 32
  %s65 = sld [smem:[%s64]]
  %s66 = scalar_lea.smem %s0, 33
  %s67 = sld [smem:[%s66]]
  %s68 = scalar_lea.smem %s0, 34
  %s69 = sld [smem:[%s68]]
  %s70 = scalar_lea.smem %s0, 35
  %s71 = sld [smem:[%s70]]
  %s72 = scalar_lea.smem %s0, 36
  %s73 = sld [smem:[%s72]]
  %s74 = scalar_lea.smem %s0, 37
  %s75 = sld [smem:[%s74]]
  %s76 = scalar_lea.smem %s0, 38
  %s77 = sld [smem:[%s76]]
  %s78 = scalar_lea.smem %s0, 39
  %s79 = sld [smem:[%s78]]
  %s80 = scalar_lea.smem %s0, 40
  %s81 = sld [smem:[%s80]]
  %s82 = scalar_lea.smem %s0, 41
  %s83 = sld [smem:[%s82]]
  %s84 = scalar_lea.smem %s0, 42
  %s85 = sld [smem:[%s84]]
  %s86 = scalar_lea.smem %s0, 43
  %s87 = sld [smem:[%s86]]
  %s88 = scalar_lea.smem %s0, 44
  %s89 = sld [smem:[%s88]]
  %s90 = scalar_lea.smem %s0, 45
  %s91 = sld [smem:[%s90]]
  %92 = xla_tuple %s87, %s89, %s91
  %s93 = sld [smem:[#allocation0]]
  $region286: #{tpu_custom_call.1} parent=0
    _
  %s95 = ssub.s32 1, %s93
  %s96 = scalar_select 0, %s95, %s93
  $region1: #{tpu_custom_call.1} parent=0
    #allocation2 [shape = 'u8[131072]{0}', space=vmem, size = 0x20000, scoped, tag = 'input window, operand 1, single buffered']
    #allocation3 [shape = 's32[1]{0}', space=sflag, size = 0x4, scoped, tag = 'scoped memory for tpu_custom_call.1']
    #allocation4 [shape = 's32[1]{0}', space=sflag, size = 0x4, scoped, tag = 'scoped memory for tpu_custom_call.1']
    #allocation5 [shape = 'u8[32768]{0}', space=vmem, size = 0x8000, scoped, tag = 'input window, operand 2, single buffered']
    #allocation6 [shape = 's32[1]{0}', space=sflag, size = 0x4, scoped, tag = 'scoped memory for tpu_custom_call.1']
    #allocation7 [shape = 'u8[131072]{0}', space=vmem, size = 0x20000, scoped, tag = 'input window, operand 3, single buffered']
    #allocation8 [shape = 'u8[65536]{0}', space=vmem, size = 0x10000, scoped, tag = 'input window, operand 4, single buffered']
    #allocation9 [shape = 's32[1]{0}', space=sflag, size = 0x4, scoped, tag = 'scoped memory for tpu_custom_call.1']
    #allocation10 [shape = 'u8[32768]{0}', space=vmem, size = 0x8000, scoped, tag = 'input window, operand 6, single buffered']
    #allocation11 [shape = 'u8[32768]{0}', space=vmem, size = 0x8000, scoped, tag = 'input window, operand 7, single buffered']
    #allocation12 [shape = 's32[1]{0}', space=sflag, size = 0x4, scoped, tag = 'scoped memory for tpu_custom_call.1']
    #allocation13 [shape = 'u8[32768]{0}', space=vmem, size = 0x8000, scoped, tag = 'input window, operand 11, single buffered']
    #allocation14 [shape = 'u8[32768]{0}', space=vmem, size = 0x8000, scoped, tag = 'input window, operand 12, single buffered']
    #allocation15 [shape = 's32[1]{0}', space=sflag, size = 0x4, scoped, tag = 'scoped memory for tpu_custom_call.1']
    #allocation16 [shape = 'u8[32768]{0}', space=vmem, size = 0x8000, scoped, tag = 'input window, operand 16, single buffered']
    #allocation17 [shape = 'u8[32768]{0}', space=vmem, size = 0x8000, scoped, tag = 'input window, operand 17, single buffered']
    #allocation18 [shape = 's32[1]{0}', space=sflag, size = 0x4, scoped, tag = 'scoped memory for tpu_custom_call.1']
    #allocation19 [shape = 'u8[32768]{0}', space=vmem, size = 0x8000, scoped, tag = 'input window, operand 18, single buffered']
    #allocation20 [shape = 'u8[32768]{0}', space=vmem, size = 0x8000, scoped, tag = 'input window, operand 19, single buffered']
    #allocation21 [shape = 's32[1]{0}', space=sflag, size = 0x4, scoped, tag = 'scoped memory for tpu_custom_call.1']
    #allocation22 [shape = 'u8[32768]{0}', space=vmem, size = 0x8000, scoped, tag = 'input window, operand 23, single buffered']
    #allocation23 [shape = 'u8[32768]{0}', space=vmem, size = 0x8000, scoped, tag = 'input window, operand 24, single buffered']
    #allocation24 [shape = 's32[1]{0}', space=sflag, size = 0x4, scoped, tag = 'scoped memory for tpu_custom_call.1']
    #allocation25 [shape = 'u8[65536]{0}', space=vmem, size = 0x10000, scoped, tag = 'input window, operand 28, single buffered']
    #allocation26 [shape = 'u8[65536]{0}', space=vmem, size = 0x10000, scoped, tag = 'input window, operand 29, single buffered']
    #allocation27 [shape = 's32[1]{0}', space=sflag, size = 0x4, scoped, tag = 'scoped memory for tpu_custom_call.1']
    #allocation28 [shape = 'u8[32768]{0}', space=vmem, size = 0x8000, scoped, tag = 'input window, operand 30, single buffered']
    #allocation29 [shape = 'u8[32768]{0}', space=vmem, size = 0x8000, scoped, tag = 'input window, operand 31, single buffered']
    #allocation30 [shape = 's32[1]{0}', space=sflag, size = 0x4, scoped, tag = 'scoped memory for tpu_custom_call.1']
    #allocation31 [shape = 'u8[32768]{0}', space=vmem, size = 0x8000, scoped, tag = 'input window, operand 35, single buffered']
    #allocation32 [shape = 'u8[32768]{0}', space=vmem, size = 0x8000, scoped, tag = 'input window, operand 36, single buffered']
    #allocation33 [shape = 's32[1]{0}', space=sflag, size = 0x4, scoped, tag = 'scoped memory for tpu_custom_call.1']
    #allocation34 [shape = 'u8[32768]{0}', space=vmem, size = 0x8000, scoped, tag = 'input window, operand 40, single buffered']
    #allocation35 [shape = 'u8[32768]{0}', space=vmem, size = 0x8000, scoped, tag = 'input window, operand 41, single buffered']
    #allocation36 [shape = 's32[1]{0}', space=sflag, size = 0x4, scoped, tag = 'scoped memory for tpu_custom_call.1']
    #allocation37 [shape = 'u8[131072]{0}', space=vmem, size = 0x20000, scoped, tag = 'output window, operand 0, single buffered']
    #allocation38 [shape = 'u8[196608]{0}', space=vmem, size = 0x30000, scoped, tag = 'output window, operand 1, single buffered']
    #allocation39 [shape = 's32[1]{0}', space=sflag, size = 0x4, scoped, tag = 'scoped memory for tpu_custom_call.1']
    #allocation40 [shape = 'u8[393216]{0}', space=vmem, size = 0x60000, scoped, tag = 'output window, operand 2, single buffered']
    %97 = vsyncpa [#allocation3], 0
    %98 = vsyncpa [#allocation6], 0
    %99 = vsyncpa [#allocation9], 0
    %100 = vsyncpa [#allocation12], 0
    %101 = vsyncpa [#allocation15], 0
    %102 = vsyncpa [#allocation18], 0
    %103 = vsyncpa [#allocation21], 0
    %104 = vsyncpa [#allocation24], 0
    %105 = vsyncpa [#allocation27], 0
    %106 = vsyncpa [#allocation30], 0
    %107 = vsyncpa [#allocation33], 0
    %108 = vsyncpa [#allocation36], 0
    %109 = vsyncpa [#allocation4], 0
    %110 = vsyncpa [#allocation39], 0
    // Predicated region
    $region2: #{tpu_custom_call.1} parent=1 // pred_check
      _
    $region3: #{tpu_custom_call.1} parent=1 // pred_check_branch
      %112 = sbr.rel (0) target = $region5
    $region4: #{tpu_custom_call.1} parent=1 // pred_region
      _
    $region5: #{tpu_custom_call.1} parent=1 // pred_fallthru
      _
    // Predicated region
    $region6: #{tpu_custom_call.1} parent=1 // pred_check
      _
    $region7: #{tpu_custom_call.1} parent=1 // pred_check_branch
      %114 = sbr.rel (0) target = $region9
    $region8: #{tpu_custom_call.1} parent=1 // pred_region
      %116 = vsyncadd [#allocation3], 0
      %s117 = sshll.u32 %s3, 4
      %s118 = int_to_ptr.hbm [resolvable:$true] %s117
      %s119 = sshll.u32 [#allocation2], 4
      %s120 = int_to_ptr.vmem [resolvable:$true] %s119
      %125 = dma.hbm_to_vmem [thread:$0]  %s118, 4096, %s120, [#allocation3], 128, 128, 8
    $region9: #{tpu_custom_call.1} parent=1 // pred_fallthru
      _
    // Predicated region
    $region10: #{tpu_custom_call.1} parent=1 // pred_check
      _
    $region11: #{tpu_custom_call.1} parent=1 // pred_check_branch
      %127 = sbr.rel (0) target = $region13
    $region12: #{tpu_custom_call.1} parent=1 // pred_region
      %129 = vsyncadd [#allocation6], 0
      %s130 = sshll.u32 %s5, 4
      %s131 = int_to_ptr.hbm [resolvable:$true] %s130
      %s132 = sshll.u32 [#allocation5], 4
      %s133 = int_to_ptr.vmem [resolvable:$true] %s132
      %138 = dma.hbm_to_vmem [thread:$0]  %s131, 1024, %s133, [#allocation6], 64, 64, 4
    $region13: #{tpu_custom_call.1} parent=1 // pred_fallthru
      _
    // Predicated region
    $region14: #{tpu_custom_call.1} parent=1 // pred_check
      _
    $region15: #{tpu_custom_call.1} parent=1 // pred_check_branch
      %140 = sbr.rel (0) target = $region17
    $region16: #{tpu_custom_call.1} parent=1 // pred_region
      %142 = vsyncadd [#allocation6], 0
      %s143 = sshll.u32 %s7, 4
      %s144 = int_to_ptr.hbm [resolvable:$true] %s143
      %s145 = sshll.u32 [#allocation7], 4
      %s146 = int_to_ptr.vmem [resolvable:$true] %s145
      %151 = dma.hbm_to_vmem [thread:$0]  %s144, 4096, %s146, [#allocation6], 128, 128, 8
    $region17: #{tpu_custom_call.1} parent=1 // pred_fallthru
      _
    // Predicated region
    $region18: #{tpu_custom_call.1} parent=1 // pred_check
      _
    $region19: #{tpu_custom_call.1} parent=1 // pred_check_branch
      %153 = sbr.rel (0) target = $region21
    $region20: #{tpu_custom_call.1} parent=1 // pred_region
      %155 = vsyncadd [#allocation9], 0
      %s156 = sshll.u32 %s9, 4
      %s157 = int_to_ptr.hbm [resolvable:$true] %s156
      %s158 = sshll.u32 [#allocation8], 4
      %s159 = int_to_ptr.vmem [resolvable:$true] %s158
      %164 = dma.hbm_to_vmem [thread:$0]  %s157, 2048, %s159, [#allocation9], 128, 128, 8
    $region21: #{tpu_custom_call.1} parent=1 // pred_fallthru
      _
    // Predicated region
    $region22: #{tpu_custom_call.1} parent=1 // pred_check
      _
    $region23: #{tpu_custom_call.1} parent=1 // pred_check_branch
      %166 = sbr.rel (0) target = $region25
    $region24: #{tpu_custom_call.1} parent=1 // pred_region
      _
    $region25: #{tpu_custom_call.1} parent=1 // pred_fallthru
      _
    // Predicated region
    $region26: #{tpu_custom_call.1} parent=1 // pred_check
      _
    $region27: #{tpu_custom_call.1} parent=1 // pred_check_branch
      %168 = sbr.rel (0) target = $region29
    $region28: #{tpu_custom_call.1} parent=1 // pred_region
      %170 = vsyncadd [#allocation9], 0
      %s171 = sshll.u32 %s13, 4
      %s172 = int_to_ptr.hbm [resolvable:$true] %s171
      %s173 = sshll.u32 [#allocation10], 4
      %s174 = int_to_ptr.vmem [resolvable:$true] %s173
      %179 = dma.hbm_to_vmem [thread:$0]  %s172, 1024, %s174, [#allocation9], 64, 64, 4
    $region29: #{tpu_custom_call.1} parent=1 // pred_fallthru
      _
    // Predicated region
    $region30: #{tpu_custom_call.1} parent=1 // pred_check
      _
    $region31: #{tpu_custom_call.1} parent=1 // pred_check_branch
      %181 = sbr.rel (0) target = $region33
    $region32: #{tpu_custom_call.1} parent=1 // pred_region
      %183 = vsyncadd [#allocation12], 0
      %s184 = sshll.u32 %s15, 4
      %s185 = int_to_ptr.hbm [resolvable:$true] %s184
      %s186 = sshll.u32 [#allocation11], 4
      %s187 = int_to_ptr.vmem [resolvable:$true] %s186
      %192 = dma.hbm_to_vmem [thread:$0]  %s185, 1024, %s187, [#allocation12], 64, 64, 4
    $region33: #{tpu_custom_call.1} parent=1 // pred_fallthru
      _
    // Predicated region
    $region34: #{tpu_custom_call.1} parent=1 // pred_check
      _
    $region35: #{tpu_custom_call.1} parent=1 // pred_check_branch
      %194 = sbr.rel (0) target = $region37
    $region36: #{tpu_custom_call.1} parent=1 // pred_region
      _
    $region37: #{tpu_custom_call.1} parent=1 // pred_fallthru
      _
    // Predicated region
    $region38: #{tpu_custom_call.1} parent=1 // pred_check
      _
    $region39: #{tpu_custom_call.1} parent=1 // pred_check_branch
      %196 = sbr.rel (0) target = $region41
    $region40: #{tpu_custom_call.1} parent=1 // pred_region
      _
    $region41: #{tpu_custom_call.1} parent=1 // pred_fallthru
      _
    // Predicated region
    $region42: #{tpu_custom_call.1} parent=1 // pred_check
      _
    $region43: #{tpu_custom_call.1} parent=1 // pred_check_branch
      %198 = sbr.rel (0) target = $region45
    $region44: #{tpu_custom_call.1} parent=1 // pred_region
      _
    $region45: #{tpu_custom_call.1} parent=1 // pred_fallthru
      _
    // Predicated region
    $region46: #{tpu_custom_call.1} parent=1 // pred_check
      _
    $region47: #{tpu_custom_call.1} parent=1 // pred_check_branch
      %200 = sbr.rel (0) target = $region49
    $region48: #{tpu_custom_call.1} parent=1 // pred_region
      %202 = vsyncadd [#allocation12], 0
      %s203 = sshll.u32 %s23, 4
      %s204 = int_to_ptr.hbm [resolvable:$true] %s203
      %s205 = sshll.u32 [#allocation13], 4
      %s206 = int_to_ptr.vmem [resolvable:$true] %s205
      %211 = dma.hbm_to_vmem [thread:$0]  %s204, 1024, %s206, [#allocation12], 64, 64, 4
    $region49: #{tpu_custom_call.1} parent=1 // pred_fallthru
      _
    // Predicated region
    $region50: #{tpu_custom_call.1} parent=1 // pred_check
      _
    $region51: #{tpu_custom_call.1} parent=1 // pred_check_branch
      %213 = sbr.rel (0) target = $region53
    $region52: #{tpu_custom_call.1} parent=1 // pred_region
      %215 = vsyncadd [#allocation15], 0
      %s216 = sshll.u32 %s25, 4
      %s217 = int_to_ptr.hbm [resolvable:$true] %s216
      %s218 = sshll.u32 [#allocation14], 4
      %s219 = int_to_ptr.vmem [resolvable:$true] %s218
      %224 = dma.hbm_to_vmem [thread:$0]  %s217, 1024, %s219, [#allocation15], 64, 64, 4
    $region53: #{tpu_custom_call.1} parent=1 // pred_fallthru
      _
    // Predicated region
    $region54: #{tpu_custom_call.1} parent=1 // pred_check
      _
    $region55: #{tpu_custom_call.1} parent=1 // pred_check_branch
      %226 = sbr.rel (0) target = $region57
    $region56: #{tpu_custom_call.1} parent=1 // pred_region
      _
    $region57: #{tpu_custom_call.1} parent=1 // pred_fallthru
      _
    // Predicated region
    $region58: #{tpu_custom_call.1} parent=1 // pred_check
      _
    $region59: #{tpu_custom_call.1} parent=1 // pred_check_branch
      %228 = sbr.rel (0) target = $region61
    $region60: #{tpu_custom_call.1} parent=1 // pred_region
      _
    $region61: #{tpu_custom_call.1} parent=1 // pred_fallthru
      _
    // Predicated region
    $region62: #{tpu_custom_call.1} parent=1 // pred_check
      _
    $region63: #{tpu_custom_call.1} parent=1 // pred_check_branch
      %230 = sbr.rel (0) target = $region65
    $region64: #{tpu_custom_call.1} parent=1 // pred_region
      _
    $region65: #{tpu_custom_call.1} parent=1 // pred_fallthru
      _
    // Predicated region
    $region66: #{tpu_custom_call.1} parent=1 // pred_check
      _
    $region67: #{tpu_custom_call.1} parent=1 // pred_check_branch
      %232 = sbr.rel (0) target = $region69
    $region68: #{tpu_custom_call.1} parent=1 // pred_region
      %234 = vsyncadd [#allocation15], 0
      %s235 = sshll.u32 %s33, 4
      %s236 = int_to_ptr.hbm [resolvable:$true] %s235
      %s237 = sshll.u32 [#allocation16], 4
      %s238 = int_to_ptr.vmem [resolvable:$true] %s237
      %243 = dma.hbm_to_vmem [thread:$0]  %s236, 1024, %s238, [#allocation15], 64, 64, 4
    $region69: #{tpu_custom_call.1} parent=1 // pred_fallthru
      _
    // Predicated region
    $region70: #{tpu_custom_call.1} parent=1 // pred_check
      _
    $region71: #{tpu_custom_call.1} parent=1 // pred_check_branch
      %245 = sbr.rel (0) target = $region73
    $region72: #{tpu_custom_call.1} parent=1 // pred_region
      %247 = vsyncadd [#allocation18], 0
      %s248 = sshll.u32 %s35, 4
      %s249 = int_to_ptr.hbm [resolvable:$true] %s248
      %s250 = sshll.u32 [#allocation17], 4
      %s251 = int_to_ptr.vmem [resolvable:$true] %s250
      %256 = dma.hbm_to_vmem [thread:$0]  %s249, 1024, %s251, [#allocation18], 64, 64, 4
    $region73: #{tpu_custom_call.1} parent=1 // pred_fallthru
      _
    // Predicated region
    $region74: #{tpu_custom_call.1} parent=1 // pred_check
      _
    $region75: #{tpu_custom_call.1} parent=1 // pred_check_branch
      %258 = sbr.rel (0) target = $region77
    $region76: #{tpu_custom_call.1} parent=1 // pred_region
      %260 = vsyncadd [#allocation18], 0
      %s261 = sshll.u32 %s37, 4
      %s262 = int_to_ptr.hbm [resolvable:$true] %s261
      %s263 = sshll.u32 [#allocation19], 4
      %s264 = int_to_ptr.vmem [resolvable:$true] %s263
      %269 = dma.hbm_to_vmem [thread:$0]  %s262, 1024, %s264, [#allocation18], 64, 64, 4
    $region77: #{tpu_custom_call.1} parent=1 // pred_fallthru
      _
    // Predicated region
    $region78: #{tpu_custom_call.1} parent=1 // pred_check
      _
    $region79: #{tpu_custom_call.1} parent=1 // pred_check_branch
      %271 = sbr.rel (0) target = $region81
    $region80: #{tpu_custom_call.1} parent=1 // pred_region
      %273 = vsyncadd [#allocation21], 0
      %s274 = sshll.u32 %s39, 4
      %s275 = int_to_ptr.hbm [resolvable:$true] %s274
      %s276 = sshll.u32 [#allocation20], 4
      %s277 = int_to_ptr.vmem [resolvable:$true] %s276
      %282 = dma.hbm_to_vmem [thread:$0]  %s275, 1024, %s277, [#allocation21], 64, 64, 4
    $region81: #{tpu_custom_call.1} parent=1 // pred_fallthru
      _
    // Predicated region
    $region82: #{tpu_custom_call.1} parent=1 // pred_check
      _
    $region83: #{tpu_custom_call.1} parent=1 // pred_check_branch
      %284 = sbr.rel (0) target = $region85
    $region84: #{tpu_custom_call.1} parent=1 // pred_region
      _
    $region85: #{tpu_custom_call.1} parent=1 // pred_fallthru
      _
    // Predicated region
    $region86: #{tpu_custom_call.1} parent=1 // pred_check
      _
    $region87: #{tpu_custom_call.1} parent=1 // pred_check_branch
      %286 = sbr.rel (0) target = $region89
    $region88: #{tpu_custom_call.1} parent=1 // pred_region
      _
    $region89: #{tpu_custom_call.1} parent=1 // pred_fallthru
      _
    // Predicated region
    $region90: #{tpu_custom_call.1} parent=1 // pred_check
      _
    $region91: #{tpu_custom_call.1} parent=1 // pred_check_branch
      %288 = sbr.rel (0) target = $region93
    $region92: #{tpu_custom_call.1} parent=1 // pred_region
      _
    $region93: #{tpu_custom_call.1} parent=1 // pred_fallthru
      _
    // Predicated region
    $region94: #{tpu_custom_call.1} parent=1 // pred_check
      _
    $region95: #{tpu_custom_call.1} parent=1 // pred_check_branch
      %290 = sbr.rel (0) target = $region97
    $region96: #{tpu_custom_call.1} parent=1 // pred_region
      %292 = vsyncadd [#allocation21], 0
      %s293 = sshll.u32 %s47, 4
      %s294 = int_to_ptr.hbm [resolvable:$true] %s293
      %s295 = sshll.u32 [#allocation22], 4
      %s296 = int_to_ptr.vmem [resolvable:$true] %s295
      %301 = dma.hbm_to_vmem [thread:$0]  %s294, 1024, %s296, [#allocation21], 64, 64, 4
    $region97: #{tpu_custom_call.1} parent=1 // pred_fallthru
      _
    // Predicated region
    $region98: #{tpu_custom_call.1} parent=1 // pred_check
      _
    $region99: #{tpu_custom_call.1} parent=1 // pred_check_branch
      %303 = sbr.rel (0) target = $region101
    $region100: #{tpu_custom_call.1} parent=1 // pred_region
      %305 = vsyncadd [#allocation24], 0
      %s306 = sshll.u32 %s49, 4
      %s307 = int_to_ptr.hbm [resolvable:$true] %s306
      %s308 = sshll.u32 [#allocation23], 4
      %s309 = int_to_ptr.vmem [resolvable:$true] %s308
      %314 = dma.hbm_to_vmem [thread:$0]  %s307, 1024, %s309, [#allocation24], 64, 64, 4
    $region101: #{tpu_custom_call.1} parent=1 // pred_fallthru
      _
    // Predicated region
    $region102: #{tpu_custom_call.1} parent=1 // pred_check
      _
    $region103: #{tpu_custom_call.1} parent=1 // pred_check_branch
      %316 = sbr.rel (0) target = $region105
    $region104: #{tpu_custom_call.1} parent=1 // pred_region
      _
    $region105: #{tpu_custom_call.1} parent=1 // pred_fallthru
      _
    // Predicated region
    $region106: #{tpu_custom_call.1} parent=1 // pred_check
      _
    $region107: #{tpu_custom_call.1} parent=1 // pred_check_branch
      %318 = sbr.rel (0) target = $region109
    $region108: #{tpu_custom_call.1} parent=1 // pred_region
      _
    $region109: #{tpu_custom_call.1} parent=1 // pred_fallthru
      _
    // Predicated region
    $region110: #{tpu_custom_call.1} parent=1 // pred_check
      _
    $region111: #{tpu_custom_call.1} parent=1 // pred_check_branch
      %320 = sbr.rel (0) target = $region113
    $region112: #{tpu_custom_call.1} parent=1 // pred_region
      _
    $region113: #{tpu_custom_call.1} parent=1 // pred_fallthru
      _
    // Predicated region
    $region114: #{tpu_custom_call.1} parent=1 // pred_check
      _
    $region115: #{tpu_custom_call.1} parent=1 // pred_check_branch
      %322 = sbr.rel (0) target = $region117
    $region116: #{tpu_custom_call.1} parent=1 // pred_region
      %324 = vsyncadd [#allocation24], 0
      %s325 = sshll.u32 %s57, 4
      %s326 = int_to_ptr.hbm [resolvable:$true] %s325
      %s327 = sshll.u32 [#allocation25], 4
      %s328 = int_to_ptr.vmem [resolvable:$true] %s327
      %333 = dma.hbm_to_vmem [thread:$0]  %s326, 2048, %s328, [#allocation24], 64, 64, 4
    $region117: #{tpu_custom_call.1} parent=1 // pred_fallthru
      _
    // Predicated region
    $region118: #{tpu_custom_call.1} parent=1 // pred_check
      _
    $region119: #{tpu_custom_call.1} parent=1 // pred_check_branch
      %335 = sbr.rel (0) target = $region121
    $region120: #{tpu_custom_call.1} parent=1 // pred_region
      %337 = vsyncadd [#allocation27], 0
      %s338 = sshll.u32 %s59, 4
      %s339 = int_to_ptr.hbm [resolvable:$true] %s338
      %s340 = sshll.u32 [#allocation26], 4
      %s341 = int_to_ptr.vmem [resolvable:$true] %s340
      %346 = dma.hbm_to_vmem [thread:$0]  %s339, 2048, %s341, [#allocation27], 64, 64, 4
    $region121: #{tpu_custom_call.1} parent=1 // pred_fallthru
      _
    // Predicated region
    $region122: #{tpu_custom_call.1} parent=1 // pred_check
      _
    $region123: #{tpu_custom_call.1} parent=1 // pred_check_branch
      %348 = sbr.rel (0) target = $region125
    $region124: #{tpu_custom_call.1} parent=1 // pred_region
      %350 = vsyncadd [#allocation27], 0
      %s351 = sshll.u32 %s61, 4
      %s352 = int_to_ptr.hbm [resolvable:$true] %s351
      %s353 = sshll.u32 [#allocation28], 4
      %s354 = int_to_ptr.vmem [resolvable:$true] %s353
      %359 = dma.hbm_to_vmem [thread:$0]  %s352, 1024, %s354, [#allocation27], 64, 64, 4
    $region125: #{tpu_custom_call.1} parent=1 // pred_fallthru
      _
    // Predicated region
    $region126: #{tpu_custom_call.1} parent=1 // pred_check
      _
    $region127: #{tpu_custom_call.1} parent=1 // pred_check_branch
      %361 = sbr.rel (0) target = $region129
    $region128: #{tpu_custom_call.1} parent=1 // pred_region
      %363 = vsyncadd [#allocation30], 0
      %s364 = sshll.u32 %s63, 4
      %s365 = int_to_ptr.hbm [resolvable:$true] %s364
      %s366 = sshll.u32 [#allocation29], 4
      %s367 = int_to_ptr.vmem [resolvable:$true] %s366
      %372 = dma.hbm_to_vmem [thread:$0]  %s365, 1024, %s367, [#allocation30], 64, 64, 4
    $region129: #{tpu_custom_call.1} parent=1 // pred_fallthru
      _
    // Predicated region
    $region130: #{tpu_custom_call.1} parent=1 // pred_check
      _
    $region131: #{tpu_custom_call.1} parent=1 // pred_check_branch
      %374 = sbr.rel (0) target = $region133
    $region132: #{tpu_custom_call.1} parent=1 // pred_region
      _
    $region133: #{tpu_custom_call.1} parent=1 // pred_fallthru
      _
    // Predicated region
    $region134: #{tpu_custom_call.1} parent=1 // pred_check
      _
    $region135: #{tpu_custom_call.1} parent=1 // pred_check_branch
      %376 = sbr.rel (0) target = $region137
    $region136: #{tpu_custom_call.1} parent=1 // pred_region
      _
    $region137: #{tpu_custom_call.1} parent=1 // pred_fallthru
      _
    // Predicated region
    $region138: #{tpu_custom_call.1} parent=1 // pred_check
      _
    $region139: #{tpu_custom_call.1} parent=1 // pred_check_branch
      %378 = sbr.rel (0) target = $region141
    $region140: #{tpu_custom_call.1} parent=1 // pred_region
      _
    $region141: #{tpu_custom_call.1} parent=1 // pred_fallthru
      _
    // Predicated region
    $region142: #{tpu_custom_call.1} parent=1 // pred_check
      _
    $region143: #{tpu_custom_call.1} parent=1 // pred_check_branch
      %380 = sbr.rel (0) target = $region145
    $region144: #{tpu_custom_call.1} parent=1 // pred_region
      %382 = vsyncadd [#allocation30], 0
      %s383 = sshll.u32 %s71, 4
      %s384 = int_to_ptr.hbm [resolvable:$true] %s383
      %s385 = sshll.u32 [#allocation31], 4
      %s386 = int_to_ptr.vmem [resolvable:$true] %s385
      %391 = dma.hbm_to_vmem [thread:$0]  %s384, 1024, %s386, [#allocation30], 64, 64, 4
    $region145: #{tpu_custom_call.1} parent=1 // pred_fallthru
      _
    // Predicated region
    $region146: #{tpu_custom_call.1} parent=1 // pred_check
      _
    $region147: #{tpu_custom_call.1} parent=1 // pred_check_branch
      %393 = sbr.rel (0) target = $region149
    $region148: #{tpu_custom_call.1} parent=1 // pred_region
      %395 = vsyncadd [#allocation33], 0
      %s396 = sshll.u32 %s73, 4
      %s397 = int_to_ptr.hbm [resolvable:$true] %s396
      %s398 = sshll.u32 [#allocation32], 4
      %s399 = int_to_ptr.vmem [resolvable:$true] %s398
      %404 = dma.hbm_to_vmem [thread:$0]  %s397, 1024, %s399, [#allocation33], 64, 64, 4
    $region149: #{tpu_custom_call.1} parent=1 // pred_fallthru
      _
    // Predicated region
    $region150: #{tpu_custom_call.1} parent=1 // pred_check
      _
    $region151: #{tpu_custom_call.1} parent=1 // pred_check_branch
      %406 = sbr.rel (0) target = $region153
    $region152: #{tpu_custom_call.1} parent=1 // pred_region
      _
    $region153: #{tpu_custom_call.1} parent=1 // pred_fallthru
      _
    // Predicated region
    $region154: #{tpu_custom_call.1} parent=1 // pred_check
      _
    $region155: #{tpu_custom_call.1} parent=1 // pred_check_branch
      %408 = sbr.rel (0) target = $region157
    $region156: #{tpu_custom_call.1} parent=1 // pred_region
      _
    $region157: #{tpu_custom_call.1} parent=1 // pred_fallthru
      _
    // Predicated region
    $region158: #{tpu_custom_call.1} parent=1 // pred_check
      _
    $region159: #{tpu_custom_call.1} parent=1 // pred_check_branch
      %410 = sbr.rel (0) target = $region161
    $region160: #{tpu_custom_call.1} parent=1 // pred_region
      _
    $region161: #{tpu_custom_call.1} parent=1 // pred_fallthru
      _
    // Predicated region
    $region162: #{tpu_custom_call.1} parent=1 // pred_check
      _
    $region163: #{tpu_custom_call.1} parent=1 // pred_check_branch
      %412 = sbr.rel (0) target = $region165
    $region164: #{tpu_custom_call.1} parent=1 // pred_region
      %414 = vsyncadd [#allocation33], 0
      %s415 = sshll.u32 %s81, 4
      %s416 = int_to_ptr.hbm [resolvable:$true] %s415
      %s417 = sshll.u32 [#allocation34], 4
      %s418 = int_to_ptr.vmem [resolvable:$true] %s417
      %423 = dma.hbm_to_vmem [thread:$0]  %s416, 1024, %s418, [#allocation33], 64, 64, 4
    $region165: #{tpu_custom_call.1} parent=1 // pred_fallthru
      _
    // Predicated region
    $region166: #{tpu_custom_call.1} parent=1 // pred_check
      _
    $region167: #{tpu_custom_call.1} parent=1 // pred_check_branch
      %425 = sbr.rel (0) target = $region169
    $region168: #{tpu_custom_call.1} parent=1 // pred_region
      %427 = vsyncadd [#allocation36], 0
      %s428 = sshll.u32 %s83, 4
      %s429 = int_to_ptr.hbm [resolvable:$true] %s428
      %s430 = sshll.u32 [#allocation35], 4
      %s431 = int_to_ptr.vmem [resolvable:$true] %s430
      %436 = dma.hbm_to_vmem [thread:$0]  %s429, 1024, %s431, [#allocation36], 64, 64, 4
    $region169: #{tpu_custom_call.1} parent=1 // pred_fallthru
      _
    // Predicated region
    $region170: #{tpu_custom_call.1} parent=1 // pred_check
      _
    $region171: #{tpu_custom_call.1} parent=1 // pred_check_branch
      %438 = sbr.rel (0) target = $region173
    $region172: #{tpu_custom_call.1} parent=1 // pred_region
      _
    $region173: #{tpu_custom_call.1} parent=1 // pred_fallthru
      _
    // Predicated region
    $region174: #{tpu_custom_call.1} parent=1 // pred_check
      _
    $region175: #{tpu_custom_call.1} parent=1 // pred_check_branch
      %440 = sbr.rel (0) target = $region177
    $region176: #{tpu_custom_call.1} parent=1 // pred_region
      %442 = dma.done [#allocation3], 4096
    $region177: #{tpu_custom_call.1} parent=1 // pred_fallthru
      _
    // Predicated region
    $region178: #{tpu_custom_call.1} parent=1 // pred_check
      _
    $region179: #{tpu_custom_call.1} parent=1 // pred_check_branch
      %444 = sbr.rel (0) target = $region181
    $region180: #{tpu_custom_call.1} parent=1 // pred_region
      %446 = dma.done [#allocation6], 1024
    $region181: #{tpu_custom_call.1} parent=1 // pred_fallthru
      _
    // Predicated region
    $region182: #{tpu_custom_call.1} parent=1 // pred_check
      _
    $region183: #{tpu_custom_call.1} parent=1 // pred_check_branch
      %448 = sbr.rel (0) target = $region185
    $region184: #{tpu_custom_call.1} parent=1 // pred_region
      %450 = dma.done [#allocation6], 4096
    $region185: #{tpu_custom_call.1} parent=1 // pred_fallthru
      _
    // Predicated region
    $region186: #{tpu_custom_call.1} parent=1 // pred_check
      _
    $region187: #{tpu_custom_call.1} parent=1 // pred_check_branch
      %452 = sbr.rel (0) target = $region189
    $region188: #{tpu_custom_call.1} parent=1 // pred_region
      %454 = dma.done [#allocation9], 2048
    $region189: #{tpu_custom_call.1} parent=1 // pred_fallthru
      _
    // Predicated region
    $region190: #{tpu_custom_call.1} parent=1 // pred_check
      _
    $region191: #{tpu_custom_call.1} parent=1 // pred_check_branch
      %456 = sbr.rel (0) target = $region193
    $region192: #{tpu_custom_call.1} parent=1 // pred_region
      %458 = dma.done [#allocation9], 1024
    $region193: #{tpu_custom_call.1} parent=1 // pred_fallthru
      _
    // Predicated region
    $region194: #{tpu_custom_call.1} parent=1 // pred_check
      _
    $region195: #{tpu_custom_call.1} parent=1 // pred_check_branch
      %460 = sbr.rel (0) target = $region197
    $region196: #{tpu_custom_call.1} parent=1 // pred_region
      %462 = dma.done [#allocation12], 1024
    $region197: #{tpu_custom_call.1} parent=1 // pred_fallthru
      _
    // Predicated region
    $region198: #{tpu_custom_call.1} parent=1 // pred_check
      _
    $region199: #{tpu_custom_call.1} parent=1 // pred_check_branch
      %464 = sbr.rel (0) target = $region201
    $region200: #{tpu_custom_call.1} parent=1 // pred_region
      %466 = dma.done [#allocation12], 1024
    $region201: #{tpu_custom_call.1} parent=1 // pred_fallthru
      _
    // Predicated region
    $region202: #{tpu_custom_call.1} parent=1 // pred_check
      _
    $region203: #{tpu_custom_call.1} parent=1 // pred_check_branch
      %468 = sbr.rel (0) target = $region205
    $region204: #{tpu_custom_call.1} parent=1 // pred_region
      %470 = dma.done [#allocation15], 1024
    $region205: #{tpu_custom_call.1} parent=1 // pred_fallthru
      _
    // Predicated region
    $region206: #{tpu_custom_call.1} parent=1 // pred_check
      _
    $region207: #{tpu_custom_call.1} parent=1 // pred_check_branch
      %472 = sbr.rel (0) target = $region209
    $region208: #{tpu_custom_call.1} parent=1 // pred_region
      %474 = dma.done [#allocation15], 1024
    $region209: #{tpu_custom_call.1} parent=1 // pred_fallthru
      _
    // Predicated region
    $region210: #{tpu_custom_call.1} parent=1 // pred_check
      _
    $region211: #{tpu_custom_call.1} parent=1 // pred_check_branch
      %476 = sbr.rel (0) target = $region213
    $region212: #{tpu_custom_call.1} parent=1 // pred_region
      %478 = dma.done [#allocation18], 1024
    $region213: #{tpu_custom_call.1} parent=1 // pred_fallthru
      _
    // Predicated region
    $region214: #{tpu_custom_call.1} parent=1 // pred_check
      _
    $region215: #{tpu_custom_call.1} parent=1 // pred_check_branch
      %480 = sbr.rel (0) target = $region217
    $region216: #{tpu_custom_call.1} parent=1 // pred_region
      %482 = dma.done [#allocation18], 1024
    $region217: #{tpu_custom_call.1} parent=1 // pred_fallthru
      _
    // Predicated region
    $region218: #{tpu_custom_call.1} parent=1 // pred_check
      _
    $region219: #{tpu_custom_call.1} parent=1 // pred_check_branch
      %484 = sbr.rel (0) target = $region221
    $region220: #{tpu_custom_call.1} parent=1 // pred_region
      %486 = dma.done [#allocation21], 1024
    $region221: #{tpu_custom_call.1} parent=1 // pred_fallthru
      _
    // Predicated region
    $region222: #{tpu_custom_call.1} parent=1 // pred_check
      _
    $region223: #{tpu_custom_call.1} parent=1 // pred_check_branch
      %488 = sbr.rel (0) target = $region225
    $region224: #{tpu_custom_call.1} parent=1 // pred_region
      %490 = dma.done [#allocation21], 1024
    $region225: #{tpu_custom_call.1} parent=1 // pred_fallthru
      _
    // Predicated region
    $region226: #{tpu_custom_call.1} parent=1 // pred_check
      _
    $region227: #{tpu_custom_call.1} parent=1 // pred_check_branch
      %492 = sbr.rel (0) target = $region229
    $region228: #{tpu_custom_call.1} parent=1 // pred_region
      %494 = dma.done [#allocation24], 1024
    $region229: #{tpu_custom_call.1} parent=1 // pred_fallthru
      _
    // Predicated region
    $region230: #{tpu_custom_call.1} parent=1 // pred_check
      _
    $region231: #{tpu_custom_call.1} parent=1 // pred_check_branch
      %496 = sbr.rel (0) target = $region233
    $region232: #{tpu_custom_call.1} parent=1 // pred_region
      %498 = dma.done [#allocation24], 2048
    $region233: #{tpu_custom_call.1} parent=1 // pred_fallthru
      _
    // Predicated region
    $region234: #{tpu_custom_call.1} parent=1 // pred_check
      _
    $region235: #{tpu_custom_call.1} parent=1 // pred_check_branch
      %500 = sbr.rel (0) target = $region237
    $region236: #{tpu_custom_call.1} parent=1 // pred_region
      %502 = dma.done [#allocation27], 2048
    $region237: #{tpu_custom_call.1} parent=1 // pred_fallthru
      _
    // Predicated region
    $region238: #{tpu_custom_call.1} parent=1 // pred_check
      _
    $region239: #{tpu_custom_call.1} parent=1 // pred_check_branch
      %504 = sbr.rel (0) target = $region241
    $region240: #{tpu_custom_call.1} parent=1 // pred_region
      %506 = dma.done [#allocation27], 1024
    $region241: #{tpu_custom_call.1} parent=1 // pred_fallthru
      _
    // Predicated region
    $region242: #{tpu_custom_call.1} parent=1 // pred_check
      _
    $region243: #{tpu_custom_call.1} parent=1 // pred_check_branch
      %508 = sbr.rel (0) target = $region245
    $region244: #{tpu_custom_call.1} parent=1 // pred_region
      %510 = dma.done [#allocation30], 1024
    $region245: #{tpu_custom_call.1} parent=1 // pred_fallthru
      _
    // Predicated region
    $region246: #{tpu_custom_call.1} parent=1 // pred_check
      _
    $region247: #{tpu_custom_call.1} parent=1 // pred_check_branch
      %512 = sbr.rel (0) target = $region249
    $region248: #{tpu_custom_call.1} parent=1 // pred_region
      %514 = dma.done [#allocation30], 1024
    $region249: #{tpu_custom_call.1} parent=1 // pred_fallthru
      _
    // Predicated region
    $region250: #{tpu_custom_call.1} parent=1 // pred_check
      _
    $region251: #{tpu_custom_call.1} parent=1 // pred_check_branch
      %516 = sbr.rel (0) target = $region253
    $region252: #{tpu_custom_call.1} parent=1 // pred_region
      %518 = dma.done [#allocation33], 1024
    $region253: #{tpu_custom_call.1} parent=1 // pred_fallthru
      _
    // Predicated region
    $region254: #{tpu_custom_call.1} parent=1 // pred_check
      _
    $region255: #{tpu_custom_call.1} parent=1 // pred_check_branch
      %520 = sbr.rel (0) target = $region257
    $region256: #{tpu_custom_call.1} parent=1 // pred_region
      %522 = dma.done [#allocation33], 1024
    $region257: #{tpu_custom_call.1} parent=1 // pred_fallthru
      _
    // Predicated region
    $region258: #{tpu_custom_call.1} parent=1 // pred_check
      _
    $region259: #{tpu_custom_call.1} parent=1 // pred_check_branch
      %524 = sbr.rel (0) target = $region261
    $region260: #{tpu_custom_call.1} parent=1 // pred_region
      %526 = dma.done [#allocation36], 1024
    $region261: #{tpu_custom_call.1} parent=1 // pred_fallthru
      _
    %v527 = vld [vmem:[%s1] sm:$0xff]
    %v528 = vld [vmem:[%s1 + $0x8] sm:$0xff]
    %v529 = vld [vmem:[%s1 + $0x10] sm:$0xff]
    %v530 = vld [vmem:[%s1 + $0x18] sm:$0xff]
    %v531 = vld [vmem:[%s1 + $0x20] sm:$0xff]
    %v532 = vld [vmem:[%s1 + $0x28] sm:$0xff]
    %v533 = vld [vmem:[%s1 + $0x30] sm:$0xff]
    %v534 = vld [vmem:[%s1 + $0x38] sm:$0xff]
    %v535 = vld [vmem:[%s1 + $0x40] sm:$0xff]
    %v536 = vld [vmem:[%s1 + $0x48] sm:$0xff]
    %v537 = vld [vmem:[%s1 + $0x50] sm:$0xff]
    %v538 = vld [vmem:[%s1 + $0x58] sm:$0xff]
    %v539 = vld [vmem:[%s1 + $0x60] sm:$0xff]
    %v540 = vld [vmem:[%s1 + $0x68] sm:$0xff]
    %v541 = vld [vmem:[%s1 + $0x70] sm:$0xff]
    %v542 = vld [vmem:[%s1 + $0x78] sm:$0xff]
    %v543 = vld [vmem:[#allocation2] sm:$0xff]
    %v544 = vld [vmem:[#allocation2 + $0x8] sm:$0xff]
    %v545 = vld [vmem:[#allocation2 + $0x10] sm:$0xff]
    %v546 = vld [vmem:[#allocation2 + $0x18] sm:$0xff]
    %v547 = vld [vmem:[#allocation2 + $0x20] sm:$0xff]
    %v548 = vld [vmem:[#allocation2 + $0x28] sm:$0xff]
    %v549 = vld [vmem:[#allocation2 + $0x30] sm:$0xff]
    %v550 = vld [vmem:[#allocation2 + $0x38] sm:$0xff]
    %v551 = vld [vmem:[#allocation2 + $0x40] sm:$0xff]
    %v552 = vld [vmem:[#allocation2 + $0x48] sm:$0xff]
    %v553 = vld [vmem:[#allocation2 + $0x50] sm:$0xff]
    %v554 = vld [vmem:[#allocation2 + $0x58] sm:$0xff]
    %v555 = vld [vmem:[#allocation2 + $0x60] sm:$0xff]
    %v556 = vld [vmem:[#allocation2 + $0x68] sm:$0xff]
    %v557 = vld [vmem:[#allocation2 + $0x70] sm:$0xff]
    %v558 = vld [vmem:[#allocation2 + $0x78] sm:$0xff]
    %v559 = vld [vmem:[#allocation2 + $0x80] sm:$0xff]
    %v560 = vld [vmem:[#allocation2 + $0x88] sm:$0xff]
    %v561 = vld [vmem:[#allocation2 + $0x90] sm:$0xff]
    %v562 = vld [vmem:[#allocation2 + $0x98] sm:$0xff]
    %v563 = vld [vmem:[#allocation2 + $0xa0] sm:$0xff]
    %v564 = vld [vmem:[#allocation2 + $0xa8] sm:$0xff]
    %v565 = vld [vmem:[#allocation2 + $0xb0] sm:$0xff]
    %v566 = vld [vmem:[#allocation2 + $0xb8] sm:$0xff]
    %v567 = vld [vmem:[#allocation2 + $0xc0] sm:$0xff]
    %v568 = vld [vmem:[#allocation2 + $0xc8] sm:$0xff]
    %v569 = vld [vmem:[#allocation2 + $0xd0] sm:$0xff]
    %v570 = vld [vmem:[#allocation2 + $0xd8] sm:$0xff]
    %v571 = vld [vmem:[#allocation2 + $0xe0] sm:$0xff]
    %v572 = vld [vmem:[#allocation2 + $0xe8] sm:$0xff]
    %v573 = vld [vmem:[#allocation2 + $0xf0] sm:$0xff]
    %v574 = vld [vmem:[#allocation2 + $0xf8] sm:$0xff]
    %v575 = vld [vmem:[#allocation5] sm:$0xf]
    %v576 = vld [vmem:[#allocation5 + $0x4] sm:$0xf]
    %v577 = vld [vmem:[#allocation5 + $0x8] sm:$0xf]
    %v578 = vld [vmem:[#allocation5 + $0xc] sm:$0xf]
    %v579 = vld [vmem:[#allocation5 + $0x10] sm:$0xf]
    %v580 = vld [vmem:[#allocation5 + $0x14] sm:$0xf]
    %v581 = vld [vmem:[#allocation5 + $0x18] sm:$0xf]
    %v582 = vld [vmem:[#allocation5 + $0x1c] sm:$0xf]
    %v583 = vld [vmem:[#allocation5 + $0x20] sm:$0xf]
    %v584 = vld [vmem:[#allocation5 + $0x24] sm:$0xf]
    %v585 = vld [vmem:[#allocation5 + $0x28] sm:$0xf]
    %v586 = vld [vmem:[#allocation5 + $0x2c] sm:$0xf]
    %v587 = vld [vmem:[#allocation5 + $0x30] sm:$0xf]
    %v588 = vld [vmem:[#allocation5 + $0x34] sm:$0xf]
    %v589 = vld [vmem:[#allocation5 + $0x38] sm:$0xf]
    %v590 = vld [vmem:[#allocation5 + $0x3c] sm:$0xf]
    %v591 = vld [vmem:[#allocation7] sm:$0xff]
    %v592 = vld [vmem:[#allocation7 + $0x8] sm:$0xff]
    %v593 = vld [vmem:[#allocation7 + $0x10] sm:$0xff]
    %v594 = vld [vmem:[#allocation7 + $0x18] sm:$0xff]
    %v595 = vld [vmem:[#allocation7 + $0x20] sm:$0xff]
    %v596 = vld [vmem:[#allocation7 + $0x28] sm:$0xff]
    %v597 = vld [vmem:[#allocation7 + $0x30] sm:$0xff]
    %v598 = vld [vmem:[#allocation7 + $0x38] sm:$0xff]
    %v599 = vld [vmem:[#allocation7 + $0x40] sm:$0xff]
    %v600 = vld [vmem:[#allocation7 + $0x48] sm:$0xff]
    %v601 = vld [vmem:[#allocation7 + $0x50] sm:$0xff]
    %v602 = vld [vmem:[#allocation7 + $0x58] sm:$0xff]
    %v603 = vld [vmem:[#allocation7 + $0x60] sm:$0xff]
    %v604 = vld [vmem:[#allocation7 + $0x68] sm:$0xff]
    %v605 = vld [vmem:[#allocation7 + $0x70] sm:$0xff]
    %v606 = vld [vmem:[#allocation7 + $0x78] sm:$0xff]
    %v607 = vld [vmem:[#allocation7 + $0x80] sm:$0xff]
    %v608 = vld [vmem:[#allocation7 + $0x88] sm:$0xff]
    %v609 = vld [vmem:[#allocation7 + $0x90] sm:$0xff]
    %v610 = vld [vmem:[#allocation7 + $0x98] sm:$0xff]
    %v611 = vld [vmem:[#allocation7 + $0xa0] sm:$0xff]
    %v612 = vld [vmem:[#allocation7 + $0xa8] sm:$0xff]
    %v613 = vld [vmem:[#allocation7 + $0xb0] sm:$0xff]
    %v614 = vld [vmem:[#allocation7 + $0xb8] sm:$0xff]
    %v615 = vld [vmem:[#allocation7 + $0xc0] sm:$0xff]
    %v616 = vld [vmem:[#allocation7 + $0xc8] sm:$0xff]
    %v617 = vld [vmem:[#allocation7 + $0xd0] sm:$0xff]
    %v618 = vld [vmem:[#allocation7 + $0xd8] sm:$0xff]
    %v619 = vld [vmem:[#allocation7 + $0xe0] sm:$0xff]
    %v620 = vld [vmem:[#allocation7 + $0xe8] sm:$0xff]
    %v621 = vld [vmem:[#allocation7 + $0xf0] sm:$0xff]
    %v622 = vld [vmem:[#allocation7 + $0xf8] sm:$0xff]
    %v623 = vld [vmem:[#allocation8] sm:$0xff]
    %v624 = vld [vmem:[#allocation8 + $0x8] sm:$0xff]
    %v625 = vld [vmem:[#allocation8 + $0x10] sm:$0xff]
    %v626 = vld [vmem:[#allocation8 + $0x18] sm:$0xff]
    %v627 = vld [vmem:[#allocation8 + $0x20] sm:$0xff]
    %v628 = vld [vmem:[#allocation8 + $0x28] sm:$0xff]
    %v629 = vld [vmem:[#allocation8 + $0x30] sm:$0xff]
    %v630 = vld [vmem:[#allocation8 + $0x38] sm:$0xff]
    %v631 = vld [vmem:[#allocation8 + $0x40] sm:$0xff]
    %v632 = vld [vmem:[#allocation8 + $0x48] sm:$0xff]
    %v633 = vld [vmem:[#allocation8 + $0x50] sm:$0xff]
    %v634 = vld [vmem:[#allocation8 + $0x58] sm:$0xff]
    %v635 = vld [vmem:[#allocation8 + $0x60] sm:$0xff]
    %v636 = vld [vmem:[#allocation8 + $0x68] sm:$0xff]
    %v637 = vld [vmem:[#allocation8 + $0x70] sm:$0xff]
    %v638 = vld [vmem:[#allocation8 + $0x78] sm:$0xff]
    %v639 = vld [vmem:[%s11] sm:$0xff]
    %v640 = vld [vmem:[%s11 + $0x8] sm:$0xff]
    %v641 = vld [vmem:[%s11 + $0x10] sm:$0xff]
    %v642 = vld [vmem:[%s11 + $0x18] sm:$0xff]
    %v643 = vld [vmem:[%s11 + $0x20] sm:$0xff]
    %v644 = vld [vmem:[%s11 + $0x28] sm:$0xff]
    %v645 = vld [vmem:[%s11 + $0x30] sm:$0xff]
    %v646 = vld [vmem:[%s11 + $0x38] sm:$0xff]
    %v647 = vld [vmem:[%s11 + $0x40] sm:$0xff]
    %v648 = vld [vmem:[%s11 + $0x48] sm:$0xff]
    %v649 = vld [vmem:[%s11 + $0x50] sm:$0xff]
    %v650 = vld [vmem:[%s11 + $0x58] sm:$0xff]
    %v651 = vld [vmem:[%s11 + $0x60] sm:$0xff]
    %v652 = vld [vmem:[%s11 + $0x68] sm:$0xff]
    %v653 = vld [vmem:[%s11 + $0x70] sm:$0xff]
    %v654 = vld [vmem:[%s11 + $0x78] sm:$0xff]
    %v671 = vunpack.c.l.b16 %v623
    %v672 = vunpack.c.h.b16 %v623
    %v673 = vunpack.c.l.b16 %v624
    %v674 = vunpack.c.h.b16 %v624
    %v675 = vunpack.c.l.b16 %v625
    %v676 = vunpack.c.h.b16 %v625
    %v677 = vunpack.c.l.b16 %v626
    %v678 = vunpack.c.h.b16 %v626
    %v679 = vunpack.c.l.b16 %v627
    %v680 = vunpack.c.h.b16 %v627
    %v681 = vunpack.c.l.b16 %v628
    %v682 = vunpack.c.h.b16 %v628
    %v683 = vunpack.c.l.b16 %v629
    %v684 = vunpack.c.h.b16 %v629
    %v685 = vunpack.c.l.b16 %v630
    %v686 = vunpack.c.h.b16 %v630
    %v687 = vunpack.c.l.b16 %v631
    %v688 = vunpack.c.h.b16 %v631
    %v689 = vunpack.c.l.b16 %v632
    %v690 = vunpack.c.h.b16 %v632
    %v691 = vunpack.c.l.b16 %v633
    %v692 = vunpack.c.h.b16 %v633
    %v693 = vunpack.c.l.b16 %v634
    %v694 = vunpack.c.h.b16 %v634
    %v695 = vunpack.c.l.b16 %v635
    %v696 = vunpack.c.h.b16 %v635
    %v697 = vunpack.c.l.b16 %v636
    %v698 = vunpack.c.h.b16 %v636
    %v699 = vunpack.c.l.b16 %v637
    %v700 = vunpack.c.h.b16 %v637
    %v701 = vunpack.c.l.b16 %v638
    %v702 = vunpack.c.h.b16 %v638
    %v703 = vpack.c.b16 %v673, %v671
    %v704 = vpack.c.b16 %v674, %v672
    %v705 = vpack.c.b16 %v677, %v675
    %v706 = vpack.c.b16 %v678, %v676
    %v707 = vpack.c.b16 %v681, %v679
    %v708 = vpack.c.b16 %v682, %v680
    %v709 = vpack.c.b16 %v685, %v683
    %v710 = vpack.c.b16 %v686, %v684
    %v711 = vpack.c.b16 %v689, %v687
    %v712 = vpack.c.b16 %v690, %v688
    %v713 = vpack.c.b16 %v693, %v691
    %v714 = vpack.c.b16 %v694, %v692
    %v715 = vpack.c.b16 %v697, %v695
    %v716 = vpack.c.b16 %v698, %v696
    %v717 = vpack.c.b16 %v701, %v699
    %v718 = vpack.c.b16 %v702, %v700
    %735 = vxpose.binary.xlu0.c.b16.start [1/16] %v704, %v703, 128
    %736 = vxpose.binary.xlu0.c.b16.cont [2/16] %v706, %v705, 128
    %737 = vxpose.binary.xlu0.c.b16.cont [3/16] %v708, %v707, 128
    %738 = vxpose.binary.xlu0.c.b16.cont [4/16] %v710, %v709, 128
    %739 = vxpose.binary.xlu0.c.b16.cont [5/16] %v712, %v711, 128
    %740 = vxpose.binary.xlu0.c.b16.cont [6/16] %v714, %v713, 128
    %741 = vxpose.binary.xlu0.c.b16.cont [7/16] %v716, %v715, 128
    %742 = vxpose.binary.xlu0.c.b16.end [8/16] %v718, %v717, 128
    %v743 = vpop.trf.xlu0
    %v744 = vpop.trf.xlu0
    %v745 = vpop.trf.xlu0
    %v746 = vpop.trf.xlu0
    %v747 = vpop.trf.xlu0
    %v748 = vpop.trf.xlu0
    %v749 = vpop.trf.xlu0
    %v750 = vpop.trf.xlu0
    %v751 = vpop.trf.xlu0
    %v752 = vpop.trf.xlu0
    %v753 = vpop.trf.xlu0
    %v754 = vpop.trf.xlu0
    %v755 = vpop.trf.xlu0
    %v756 = vpop.trf.xlu0
    %v757 = vpop.trf.xlu0
    %v758 = vpop.trf.xlu0
    %v759 = vld [vmem:[#allocation10] sm:$0xf]
    %v760 = vld [vmem:[#allocation10 + $0x4] sm:$0xf]
    %v761 = vld [vmem:[#allocation10 + $0x8] sm:$0xf]
    %v762 = vld [vmem:[#allocation10 + $0xc] sm:$0xf]
    %v763 = vld [vmem:[#allocation10 + $0x10] sm:$0xf]
    %v764 = vld [vmem:[#allocation10 + $0x14] sm:$0xf]
    %v765 = vld [vmem:[#allocation10 + $0x18] sm:$0xf]
    %v766 = vld [vmem:[#allocation10 + $0x1c] sm:$0xf]
    %v767 = vld [vmem:[#allocation10 + $0x20] sm:$0xf]
    %v768 = vld [vmem:[#allocation10 + $0x24] sm:$0xf]
    %v769 = vld [vmem:[#allocation10 + $0x28] sm:$0xf]
    %v770 = vld [vmem:[#allocation10 + $0x2c] sm:$0xf]
    %v771 = vld [vmem:[#allocation10 + $0x30] sm:$0xf]
    %v772 = vld [vmem:[#allocation10 + $0x34] sm:$0xf]
    %v773 = vld [vmem:[#allocation10 + $0x38] sm:$0xf]
    %v774 = vld [vmem:[#allocation10 + $0x3c] sm:$0xf]
    %v775 = vld [vmem:[#allocation11] sm:$0xf]
    %v776 = vld [vmem:[#allocation11 + $0x4] sm:$0xf]
    %v777 = vld [vmem:[#allocation11 + $0x8] sm:$0xf]
    %v778 = vld [vmem:[#allocation11 + $0xc] sm:$0xf]
    %v779 = vld [vmem:[#allocation11 + $0x10] sm:$0xf]
    %v780 = vld [vmem:[#allocation11 + $0x14] sm:$0xf]
    %v781 = vld [vmem:[#allocation11 + $0x18] sm:$0xf]
    %v782 = vld [vmem:[#allocation11 + $0x1c] sm:$0xf]
    %v783 = vld [vmem:[#allocation11 + $0x20] sm:$0xf]
    %v784 = vld [vmem:[#allocation11 + $0x24] sm:$0xf]
    %v785 = vld [vmem:[#allocation11 + $0x28] sm:$0xf]
    %v786 = vld [vmem:[#allocation11 + $0x2c] sm:$0xf]
    %v787 = vld [vmem:[#allocation11 + $0x30] sm:$0xf]
    %v788 = vld [vmem:[#allocation11 + $0x34] sm:$0xf]
    %v789 = vld [vmem:[#allocation11 + $0x38] sm:$0xf]
    %v790 = vld [vmem:[#allocation11 + $0x3c] sm:$0xf]
    %v791 = vld [vmem:[%s17] sm:$0x1]
    %v792 = vld [vmem:[%s19] sm:$0x1]
    %v793 = vld [vmem:[%s21] sm:$0x1]
    %v794 = vpack.c.bf16 %v528, %v527
    %v795 = vpack.c.bf16 %v530, %v529
    %v796 = vpack.c.bf16 %v532, %v531
    %v797 = vpack.c.bf16 %v534, %v533
    %v798 = vpack.c.bf16 %v536, %v535
    %v799 = vpack.c.bf16 %v538, %v537
    %v800 = vpack.c.bf16 %v540, %v539
    %v801 = vpack.c.bf16 %v542, %v541
    %v818 = vunpack.c.l.b16 %v575
    %v819 = vunpack.c.l.b16 %v576
    %v820 = vunpack.c.l.b16 %v577
    %v821 = vunpack.c.l.b16 %v578
    %v822 = vunpack.c.l.b16 %v579
    %v823 = vunpack.c.l.b16 %v580
    %v824 = vunpack.c.l.b16 %v581
    %v825 = vunpack.c.l.b16 %v582
    %v826 = vunpack.c.l.b16 %v583
    %v827 = vunpack.c.l.b16 %v584
    %v828 = vunpack.c.l.b16 %v585
    %v829 = vunpack.c.l.b16 %v586
    %v830 = vunpack.c.l.b16 %v587
    %v831 = vunpack.c.l.b16 %v588
    %v832 = vunpack.c.l.b16 %v589
    %v833 = vunpack.c.l.b16 %v590
    %v834 = vpack.c.b16 %v819, %v818
    %v835 = vpack.c.b16 %v821, %v820
    %v836 = vpack.c.b16 %v823, %v822
    %v837 = vpack.c.b16 %v825, %v824
    %v838 = vpack.c.b16 %v827, %v826
    %v839 = vpack.c.b16 %v829, %v828
    %v840 = vpack.c.b16 %v831, %v830
    %v841 = vpack.c.b16 %v833, %v832
    %850 = vmatpush.bf16.msra.mxu0 %v801
    %851 = vmatpush.bf16.msra.mxu0 %v800
    %852 = vmatpush.bf16.msra.mxu0 %v799
    %853 = vmatpush.bf16.msra.mxu0 %v798
    %854 = vmatpush.bf16.msra.mxu0 %v797
    %855 = vmatpush.bf16.msra.mxu0 %v796
    %856 = vmatpush.bf16.msra.mxu0 %v795
    %857 = vmatpush.bf16.msra.mxu0 %v794
    %858 = vmatmul.bf16.gmra.mxu0 %v834
    %v859 = vpop.f32.mrf.mxu0
    %v860 = vadd.f32 0.0, %v859
    %v861 = vpop.f32.mrf.mxu0
    %v862 = vadd.f32 0.0, %v861
    %863 = vmatmul.bf16.gmra.mxu0 %v835
    %v864 = vpop.f32.mrf.mxu0
    %v865 = vadd.f32 0.0, %v864
    %v866 = vpop.f32.mrf.mxu0
    %v867 = vadd.f32 0.0, %v866
    %868 = vmatmul.bf16.gmra.mxu0 %v836
    %v869 = vpop.f32.mrf.mxu0
    %v870 = vadd.f32 0.0, %v869
    %v871 = vpop.f32.mrf.mxu0
    %v872 = vadd.f32 0.0, %v871
    %873 = vmatmul.bf16.gmra.mxu0 %v837
    %v874 = vpop.f32.mrf.mxu0
    %v875 = vadd.f32 0.0, %v874
    %v876 = vpop.f32.mrf.mxu0
    %v877 = vadd.f32 0.0, %v876
    %878 = vmatmul.bf16.gmra.mxu0 %v838
    %v879 = vpop.f32.mrf.mxu0
    %v880 = vadd.f32 0.0, %v879
    %v881 = vpop.f32.mrf.mxu0
    %v882 = vadd.f32 0.0, %v881
    %883 = vmatmul.bf16.gmra.mxu0 %v839
    %v884 = vpop.f32.mrf.mxu0
    %v885 = vadd.f32 0.0, %v884
    %v886 = vpop.f32.mrf.mxu0
    %v887 = vadd.f32 0.0, %v886
    %888 = vmatmul.bf16.gmra.mxu0 %v840
    %v889 = vpop.f32.mrf.mxu0
    %v890 = vadd.f32 0.0, %v889
    %v891 = vpop.f32.mrf.mxu0
    %v892 = vadd.f32 0.0, %v891
    %893 = vmatmul.bf16.gmra.mxu0 %v841
    %v894 = vpop.f32.mrf.mxu0
    %v895 = vadd.f32 0.0, %v894
    %v896 = vpop.f32.mrf.mxu0
    %v897 = vadd.f32 0.0, %v896
    %898 = vdwg.mxu0
    %v899 = vsub.f32 %v527, %v860
    %v900 = vsub.f32 %v528, %v862
    %v901 = vsub.f32 %v529, %v865
    %v902 = vsub.f32 %v530, %v867
    %v903 = vsub.f32 %v531, %v870
    %v904 = vsub.f32 %v532, %v872
    %v905 = vsub.f32 %v533, %v875
    %v906 = vsub.f32 %v534, %v877
    %v907 = vsub.f32 %v535, %v880
    %v908 = vsub.f32 %v536, %v882
    %v909 = vsub.f32 %v537, %v885
    %v910 = vsub.f32 %v538, %v887
    %v911 = vsub.f32 %v539, %v890
    %v912 = vsub.f32 %v540, %v892
    %v913 = vsub.f32 %v541, %v895
    %v914 = vsub.f32 %v542, %v897
    %v915 = vpack.c.bf16 %v900, %v899
    %v916 = vpack.c.bf16 %v902, %v901
    %v917 = vpack.c.bf16 %v904, %v903
    %v918 = vpack.c.bf16 %v906, %v905
    %v919 = vpack.c.bf16 %v908, %v907
    %v920 = vpack.c.bf16 %v910, %v909
    %v921 = vpack.c.bf16 %v912, %v911
    %v922 = vpack.c.bf16 %v914, %v913
    %v939 = vunpack.c.l.b16 %v775
    %v940 = vunpack.c.l.b16 %v776
    %v941 = vunpack.c.l.b16 %v777
    %v942 = vunpack.c.l.b16 %v778
    %v943 = vunpack.c.l.b16 %v779
    %v944 = vunpack.c.l.b16 %v780
    %v945 = vunpack.c.l.b16 %v781
    %v946 = vunpack.c.l.b16 %v782
    %v947 = vunpack.c.l.b16 %v783
    %v948 = vunpack.c.l.b16 %v784
    %v949 = vunpack.c.l.b16 %v785
    %v950 = vunpack.c.l.b16 %v786
    %v951 = vunpack.c.l.b16 %v787
    %v952 = vunpack.c.l.b16 %v788
    %v953 = vunpack.c.l.b16 %v789
    %v954 = vunpack.c.l.b16 %v790
    %v955 = vpack.c.b16 %v940, %v939
    %v956 = vpack.c.b16 %v942, %v941
    %v957 = vpack.c.b16 %v944, %v943
    %v958 = vpack.c.b16 %v946, %v945
    %v959 = vpack.c.b16 %v948, %v947
    %v960 = vpack.c.b16 %v950, %v949
    %v961 = vpack.c.b16 %v952, %v951
    %v962 = vpack.c.b16 %v954, %v953
    %971 = vmatpush.bf16.msra.mxu0 %v962
    %972 = vmatpush.bf16.msra.mxu0 %v961
    %973 = vmatpush.bf16.msra.mxu0 %v960
    %974 = vmatpush.bf16.msra.mxu0 %v959
    %975 = vmatpush.bf16.msra.mxu0 %v958
    %976 = vmatpush.bf16.msra.mxu0 %v957
    %977 = vmatpush.bf16.msra.mxu0 %v956
    %978 = vmatpush.bf16.msra.mxu0 %v955
    %979 = vmatmul.bf16.gmra.mxu0 %v915
    %v980 = vpop.f32.mrf.mxu0
    %v981 = vadd.f32 0.0, %v980
    %v982 = vpop.f32.mrf.mxu0
    %v983 = vadd.f32 0.0, %v982
    %984 = vmatmul.bf16.gmra.mxu0 %v916
    %v985 = vpop.f32.mrf.mxu0
    %v986 = vadd.f32 0.0, %v985
    %v987 = vpop.f32.mrf.mxu0
    %v988 = vadd.f32 0.0, %v987
    %989 = vmatmul.bf16.gmra.mxu0 %v917
    %v990 = vpop.f32.mrf.mxu0
    %v991 = vadd.f32 0.0, %v990
    %v992 = vpop.f32.mrf.mxu0
    %v993 = vadd.f32 0.0, %v992
    %994 = vmatmul.bf16.gmra.mxu0 %v918
    %v995 = vpop.f32.mrf.mxu0
    %v996 = vadd.f32 0.0, %v995
    %v997 = vpop.f32.mrf.mxu0
    %v998 = vadd.f32 0.0, %v997
    %999 = vmatmul.bf16.gmra.mxu0 %v919
    %v1000 = vpop.f32.mrf.mxu0
    %v1001 = vadd.f32 0.0, %v1000
    %v1002 = vpop.f32.mrf.mxu0
    %v1003 = vadd.f32 0.0, %v1002
    %1004 = vmatmul.bf16.gmra.mxu0 %v920
    %v1005 = vpop.f32.mrf.mxu0
    %v1006 = vadd.f32 0.0, %v1005
    %v1007 = vpop.f32.mrf.mxu0
    %v1008 = vadd.f32 0.0, %v1007
    %1009 = vmatmul.bf16.gmra.mxu0 %v921
    %v1010 = vpop.f32.mrf.mxu0
    %v1011 = vadd.f32 0.0, %v1010
    %v1012 = vpop.f32.mrf.mxu0
    %v1013 = vadd.f32 0.0, %v1012
    %1014 = vmatmul.bf16.gmra.mxu0 %v922
    %v1015 = vpop.f32.mrf.mxu0
    %v1016 = vadd.f32 0.0, %v1015
    %v1017 = vpop.f32.mrf.mxu0
    %v1018 = vadd.f32 0.0, %v1017
    %1019 = vdwg.mxu0
    %v1036 = vunpack.c.l.b16 %v759
    %v1037 = vunpack.c.l.b16 %v760
    %v1038 = vunpack.c.l.b16 %v761
    %v1039 = vunpack.c.l.b16 %v762
    %v1040 = vunpack.c.l.b16 %v763
    %v1041 = vunpack.c.l.b16 %v764
    %v1042 = vunpack.c.l.b16 %v765
    %v1043 = vunpack.c.l.b16 %v766
    %v1044 = vunpack.c.l.b16 %v767
    %v1045 = vunpack.c.l.b16 %v768
    %v1046 = vunpack.c.l.b16 %v769
    %v1047 = vunpack.c.l.b16 %v770
    %v1048 = vunpack.c.l.b16 %v771
    %v1049 = vunpack.c.l.b16 %v772
    %v1050 = vunpack.c.l.b16 %v773
    %v1051 = vunpack.c.l.b16 %v774
    %v1052 = vpack.c.b16 %v1037, %v1036
    %v1053 = vpack.c.b16 %v1039, %v1038
    %v1054 = vpack.c.b16 %v1041, %v1040
    %v1055 = vpack.c.b16 %v1043, %v1042
    %v1056 = vpack.c.b16 %v1045, %v1044
    %v1057 = vpack.c.b16 %v1047, %v1046
    %v1058 = vpack.c.b16 %v1049, %v1048
    %v1059 = vpack.c.b16 %v1051, %v1050
    %1068 = vmatpush.bf16.msra.mxu0 %v1059
    %1069 = vmatpush.bf16.msra.mxu0 %v1058
    %1070 = vmatpush.bf16.msra.mxu0 %v1057
    %1071 = vmatpush.bf16.msra.mxu0 %v1056
    %1072 = vmatpush.bf16.msra.mxu0 %v1055
    %1073 = vmatpush.bf16.msra.mxu0 %v1054
    %1074 = vmatpush.bf16.msra.mxu0 %v1053
    %1075 = vmatpush.bf16.msra.mxu0 %v1052
    %1076 = vmatmul.bf16.gmra.mxu0 %v794
    %v1077 = vpop.f32.mrf.mxu0
    %v1078 = vadd.f32 %v981, %v1077
    %v1079 = vpop.f32.mrf.mxu0
    %v1080 = vadd.f32 %v983, %v1079
    %1081 = vmatmul.bf16.gmra.mxu0 %v795
    %v1082 = vpop.f32.mrf.mxu0
    %v1083 = vadd.f32 %v986, %v1082
    %v1084 = vpop.f32.mrf.mxu0
    %v1085 = vadd.f32 %v988, %v1084
    %1086 = vmatmul.bf16.gmra.mxu0 %v796
    %v1087 = vpop.f32.mrf.mxu0
    %v1088 = vadd.f32 %v991, %v1087
    %v1089 = vpop.f32.mrf.mxu0
    %v1090 = vadd.f32 %v993, %v1089
    %1091 = vmatmul.bf16.gmra.mxu0 %v797
    %v1092 = vpop.f32.mrf.mxu0
    %v1093 = vadd.f32 %v996, %v1092
    %v1094 = vpop.f32.mrf.mxu0
    %v1095 = vadd.f32 %v998, %v1094
    %1096 = vmatmul.bf16.gmra.mxu0 %v798
    %v1097 = vpop.f32.mrf.mxu0
    %v1098 = vadd.f32 %v1001, %v1097
    %v1099 = vpop.f32.mrf.mxu0
    %v1100 = vadd.f32 %v1003, %v1099
    %1101 = vmatmul.bf16.gmra.mxu0 %v799
    %v1102 = vpop.f32.mrf.mxu0
    %v1103 = vadd.f32 %v1006, %v1102
    %v1104 = vpop.f32.mrf.mxu0
    %v1105 = vadd.f32 %v1008, %v1104
    %1106 = vmatmul.bf16.gmra.mxu0 %v800
    %v1107 = vpop.f32.mrf.mxu0
    %v1108 = vadd.f32 %v1011, %v1107
    %v1109 = vpop.f32.mrf.mxu0
    %v1110 = vadd.f32 %v1013, %v1109
    %1111 = vmatmul.bf16.gmra.mxu0 %v801
    %v1112 = vpop.f32.mrf.mxu0
    %v1113 = vadd.f32 %v1016, %v1112
    %v1114 = vpop.f32.mrf.mxu0
    %v1115 = vadd.f32 %v1018, %v1114
    %1116 = vdwg.mxu0
    %v1118 = vperm.slane %v791, 0
    %v1120 = vadd.f32 %v1078, %v1118
    %v1121 = vadd.f32 %v1080, %v1118
    %v1122 = vadd.f32 %v1083, %v1118
    %v1123 = vadd.f32 %v1085, %v1118
    %v1124 = vadd.f32 %v1088, %v1118
    %v1125 = vadd.f32 %v1090, %v1118
    %v1126 = vadd.f32 %v1093, %v1118
    %v1127 = vadd.f32 %v1095, %v1118
    %v1128 = vadd.f32 %v1098, %v1118
    %v1129 = vadd.f32 %v1100, %v1118
    %v1130 = vadd.f32 %v1103, %v1118
    %v1131 = vadd.f32 %v1105, %v1118
    %v1132 = vadd.f32 %v1108, %v1118
    %v1133 = vadd.f32 %v1110, %v1118
    %v1134 = vadd.f32 %v1113, %v1118
    %v1135 = vadd.f32 %v1115, %v1118
    %v1136 = vadd.f32 %v1120, %v1121
    %v1137 = vadd.f32 %v1136, %v1122
    %v1138 = vadd.f32 %v1137, %v1123
    %v1139 = vadd.f32 %v1138, %v1124
    %v1140 = vadd.f32 %v1139, %v1125
    %v1141 = vadd.f32 %v1140, %v1126
    %v1142 = vadd.f32 %v1141, %v1127
    %v1143 = vadd.f32 %v1142, %v1128
    %v1144 = vadd.f32 %v1143, %v1129
    %v1145 = vadd.f32 %v1144, %v1130
    %v1146 = vadd.f32 %v1145, %v1131
    %v1147 = vadd.f32 %v1146, %v1132
    %v1148 = vadd.f32 %v1147, %v1133
    %v1149 = vadd.f32 %v1148, %v1134
    %v1150 = vadd.f32 %v1149, %v1135
    %v1151 = vrot.slane %v1150, 4
    %v1152 = vadd.f32 %v1150, %v1151
    %v1153 = vrot.slane %v1152, 2
    %v1154 = vadd.f32 %v1152, %v1153
    %v1155 = vrot.slane %v1154, 1
    %v1156 = vadd.f32 %v1154, %v1155
    %v1157 = vmul.f32 %v1156, 0.0078125
    %v1158 = vmul.f32 %v1120, %v1120
    %v1159 = vmul.f32 %v1121, %v1121
    %v1160 = vmul.f32 %v1122, %v1122
    %v1161 = vmul.f32 %v1123, %v1123
    %v1162 = vmul.f32 %v1124, %v1124
    %v1163 = vmul.f32 %v1125, %v1125
    %v1164 = vmul.f32 %v1126, %v1126
    %v1165 = vmul.f32 %v1127, %v1127
    %v1166 = vmul.f32 %v1128, %v1128
    %v1167 = vmul.f32 %v1129, %v1129
    %v1168 = vmul.f32 %v1130, %v1130
    %v1169 = vmul.f32 %v1131, %v1131
    %v1170 = vmul.f32 %v1132, %v1132
    %v1171 = vmul.f32 %v1133, %v1133
    %v1172 = vmul.f32 %v1134, %v1134
    %v1173 = vmul.f32 %v1135, %v1135
    %v1174 = vadd.f32 %v1158, %v1159
    %v1175 = vadd.f32 %v1174, %v1160
    %v1176 = vadd.f32 %v1175, %v1161
    %v1177 = vadd.f32 %v1176, %v1162
    %v1178 = vadd.f32 %v1177, %v1163
    %v1179 = vadd.f32 %v1178, %v1164
    %v1180 = vadd.f32 %v1179, %v1165
    %v1181 = vadd.f32 %v1180, %v1166
    %v1182 = vadd.f32 %v1181, %v1167
    %v1183 = vadd.f32 %v1182, %v1168
    %v1184 = vadd.f32 %v1183, %v1169
    %v1185 = vadd.f32 %v1184, %v1170
    %v1186 = vadd.f32 %v1185, %v1171
    %v1187 = vadd.f32 %v1186, %v1172
    %v1188 = vadd.f32 %v1187, %v1173
    %v1189 = vrot.slane %v1188, 4
    %v1190 = vadd.f32 %v1188, %v1189
    %v1191 = vrot.slane %v1190, 2
    %v1192 = vadd.f32 %v1190, %v1191
    %v1193 = vrot.slane %v1192, 1
    %v1194 = vadd.f32 %v1192, %v1193
    %v1195 = vmul.f32 %v1194, 0.0078125
    %v1196 = vmul.f32 %v1157, %v1157
    %v1197 = vsub.f32 %v1195, %v1196
    %v1198 = vmax.f32 %v1197, 0.0
    %v1199 = vsub.f32 %v1120, %v1157
    %v1200 = vsub.f32 %v1121, %v1157
    %v1201 = vsub.f32 %v1122, %v1157
    %v1202 = vsub.f32 %v1123, %v1157
    %v1203 = vsub.f32 %v1124, %v1157
    %v1204 = vsub.f32 %v1125, %v1157
    %v1205 = vsub.f32 %v1126, %v1157
    %v1206 = vsub.f32 %v1127, %v1157
    %v1207 = vsub.f32 %v1128, %v1157
    %v1208 = vsub.f32 %v1129, %v1157
    %v1209 = vsub.f32 %v1130, %v1157
    %v1210 = vsub.f32 %v1131, %v1157
    %v1211 = vsub.f32 %v1132, %v1157
    %v1212 = vsub.f32 %v1133, %v1157
    %v1213 = vsub.f32 %v1134, %v1157
    %v1214 = vsub.f32 %v1135, %v1157
    %v1215 = vadd.f32 %v1198, 1e-05
    %v1216 = vrsqrt.pop %v1215
    %v1217 = vmul.f32 %v1216, %v1215
    %v1218 = vmul.f32 %v1217, %v1216
    %v1219 = vmul.f32 0.5, %v1218
    %v1220 = vsub.f32 1.5, %v1219
    %v1221 = vmul.f32 %v1216, %v1220
    %vm1222 = vweird.f32 %v1215
    %vm1223 = vweird.f32 %v1216
    %vm1224 = vmor %vm1222, %vm1223
    %v1225 = vsel %vm1224, %v1216, %v1221
    %v1226 = vmul.f32 %v1199, %v1225
    %v1227 = vmul.f32 %v1200, %v1225
    %v1228 = vmul.f32 %v1201, %v1225
    %v1229 = vmul.f32 %v1202, %v1225
    %v1230 = vmul.f32 %v1203, %v1225
    %v1231 = vmul.f32 %v1204, %v1225
    %v1232 = vmul.f32 %v1205, %v1225
    %v1233 = vmul.f32 %v1206, %v1225
    %v1234 = vmul.f32 %v1207, %v1225
    %v1235 = vmul.f32 %v1208, %v1225
    %v1236 = vmul.f32 %v1209, %v1225
    %v1237 = vmul.f32 %v1210, %v1225
    %v1238 = vmul.f32 %v1211, %v1225
    %v1239 = vmul.f32 %v1212, %v1225
    %v1240 = vmul.f32 %v1213, %v1225
    %v1241 = vmul.f32 %v1214, %v1225
    %v1243 = vperm.slane %v792, 0
    %v1245 = vmul.f32 %v1226, %v1243
    %v1246 = vmul.f32 %v1227, %v1243
    %v1247 = vmul.f32 %v1228, %v1243
    %v1248 = vmul.f32 %v1229, %v1243
    %v1249 = vmul.f32 %v1230, %v1243
    %v1250 = vmul.f32 %v1231, %v1243
    %v1251 = vmul.f32 %v1232, %v1243
    %v1252 = vmul.f32 %v1233, %v1243
    %v1253 = vmul.f32 %v1234, %v1243
    %v1254 = vmul.f32 %v1235, %v1243
    %v1255 = vmul.f32 %v1236, %v1243
    %v1256 = vmul.f32 %v1237, %v1243
    %v1257 = vmul.f32 %v1238, %v1243
    %v1258 = vmul.f32 %v1239, %v1243
    %v1259 = vmul.f32 %v1240, %v1243
    %v1260 = vmul.f32 %v1241, %v1243
    %v1262 = vperm.slane %v793, 0
    %v1264 = vadd.f32 %v1245, %v1262
    %v1265 = vadd.f32 %v1246, %v1262
    %v1266 = vadd.f32 %v1247, %v1262
    %v1267 = vadd.f32 %v1248, %v1262
    %v1268 = vadd.f32 %v1249, %v1262
    %v1269 = vadd.f32 %v1250, %v1262
    %v1270 = vadd.f32 %v1251, %v1262
    %v1271 = vadd.f32 %v1252, %v1262
    %v1272 = vadd.f32 %v1253, %v1262
    %v1273 = vadd.f32 %v1254, %v1262
    %v1274 = vadd.f32 %v1255, %v1262
    %v1275 = vadd.f32 %v1256, %v1262
    %v1276 = vadd.f32 %v1257, %v1262
    %v1277 = vadd.f32 %v1258, %v1262
    %v1278 = vadd.f32 %v1259, %v1262
    %v1279 = vadd.f32 %v1260, %v1262
    %v1280 = vmax.f32 %v1264, 0.0
    %v1281 = vmax.f32 %v1265, 0.0
    %v1282 = vmax.f32 %v1266, 0.0
    %v1283 = vmax.f32 %v1267, 0.0
    %v1284 = vmax.f32 %v1268, 0.0
    %v1285 = vmax.f32 %v1269, 0.0
    %v1286 = vmax.f32 %v1270, 0.0
    %v1287 = vmax.f32 %v1271, 0.0
    %v1288 = vmax.f32 %v1272, 0.0
    %v1289 = vmax.f32 %v1273, 0.0
    %v1290 = vmax.f32 %v1274, 0.0
    %v1291 = vmax.f32 %v1275, 0.0
    %v1292 = vmax.f32 %v1276, 0.0
    %v1293 = vmax.f32 %v1277, 0.0
    %v1294 = vmax.f32 %v1278, 0.0
    %v1295 = vmax.f32 %v1279, 0.0
    %v1296 = vld [vmem:[#allocation13] sm:$0xf]
    %v1297 = vld [vmem:[#allocation13 + $0x4] sm:$0xf]
    %v1298 = vld [vmem:[#allocation13 + $0x8] sm:$0xf]
    %v1299 = vld [vmem:[#allocation13 + $0xc] sm:$0xf]
    %v1300 = vld [vmem:[#allocation13 + $0x10] sm:$0xf]
    %v1301 = vld [vmem:[#allocation13 + $0x14] sm:$0xf]
    %v1302 = vld [vmem:[#allocation13 + $0x18] sm:$0xf]
    %v1303 = vld [vmem:[#allocation13 + $0x1c] sm:$0xf]
    %v1304 = vld [vmem:[#allocation13 + $0x20] sm:$0xf]
    %v1305 = vld [vmem:[#allocation13 + $0x24] sm:$0xf]
    %v1306 = vld [vmem:[#allocation13 + $0x28] sm:$0xf]
    %v1307 = vld [vmem:[#allocation13 + $0x2c] sm:$0xf]
    %v1308 = vld [vmem:[#allocation13 + $0x30] sm:$0xf]
    %v1309 = vld [vmem:[#allocation13 + $0x34] sm:$0xf]
    %v1310 = vld [vmem:[#allocation13 + $0x38] sm:$0xf]
    %v1311 = vld [vmem:[#allocation13 + $0x3c] sm:$0xf]
    %v1312 = vld [vmem:[#allocation14] sm:$0xf]
    %v1313 = vld [vmem:[#allocation14 + $0x4] sm:$0xf]
    %v1314 = vld [vmem:[#allocation14 + $0x8] sm:$0xf]
    %v1315 = vld [vmem:[#allocation14 + $0xc] sm:$0xf]
    %v1316 = vld [vmem:[#allocation14 + $0x10] sm:$0xf]
    %v1317 = vld [vmem:[#allocation14 + $0x14] sm:$0xf]
    %v1318 = vld [vmem:[#allocation14 + $0x18] sm:$0xf]
    %v1319 = vld [vmem:[#allocation14 + $0x1c] sm:$0xf]
    %v1320 = vld [vmem:[#allocation14 + $0x20] sm:$0xf]
    %v1321 = vld [vmem:[#allocation14 + $0x24] sm:$0xf]
    %v1322 = vld [vmem:[#allocation14 + $0x28] sm:$0xf]
    %v1323 = vld [vmem:[#allocation14 + $0x2c] sm:$0xf]
    %v1324 = vld [vmem:[#allocation14 + $0x30] sm:$0xf]
    %v1325 = vld [vmem:[#allocation14 + $0x34] sm:$0xf]
    %v1326 = vld [vmem:[#allocation14 + $0x38] sm:$0xf]
    %v1327 = vld [vmem:[#allocation14 + $0x3c] sm:$0xf]
    %v1328 = vld [vmem:[%s27] sm:$0x1]
    %v1329 = vld [vmem:[%s29] sm:$0x1]
    %v1330 = vld [vmem:[%s31] sm:$0x1]
    %v1331 = vpack.c.bf16 %v544, %v543
    %v1332 = vpack.c.bf16 %v546, %v545
    %v1333 = vpack.c.bf16 %v548, %v547
    %v1334 = vpack.c.bf16 %v550, %v549
    %v1335 = vpack.c.bf16 %v552, %v551
    %v1336 = vpack.c.bf16 %v554, %v553
    %v1337 = vpack.c.bf16 %v556, %v555
    %v1338 = vpack.c.bf16 %v558, %v557
    %v1339 = vpack.c.bf16 %v560, %v559
    %v1340 = vpack.c.bf16 %v562, %v561
    %v1341 = vpack.c.bf16 %v564, %v563
    %v1342 = vpack.c.bf16 %v566, %v565
    %v1343 = vpack.c.bf16 %v568, %v567
    %v1344 = vpack.c.bf16 %v570, %v569
    %v1345 = vpack.c.bf16 %v572, %v571
    %v1346 = vpack.c.bf16 %v574, %v573
    %v1379 = vunpack.c.l.b16 %v591
    %v1380 = vunpack.c.h.b16 %v591
    %v1381 = vunpack.c.l.b16 %v592
    %v1382 = vunpack.c.h.b16 %v592
    %v1383 = vunpack.c.l.b16 %v593
    %v1384 = vunpack.c.h.b16 %v593
    %v1385 = vunpack.c.l.b16 %v594
    %v1386 = vunpack.c.h.b16 %v594
    %v1387 = vunpack.c.l.b16 %v595
    %v1388 = vunpack.c.h.b16 %v595
    %v1389 = vunpack.c.l.b16 %v596
    %v1390 = vunpack.c.h.b16 %v596
    %v1391 = vunpack.c.l.b16 %v597
    %v1392 = vunpack.c.h.b16 %v597
    %v1393 = vunpack.c.l.b16 %v598
    %v1394 = vunpack.c.h.b16 %v598
    %v1395 = vunpack.c.l.b16 %v599
    %v1396 = vunpack.c.h.b16 %v599
    %v1397 = vunpack.c.l.b16 %v600
    %v1398 = vunpack.c.h.b16 %v600
    %v1399 = vunpack.c.l.b16 %v601
    %v1400 = vunpack.c.h.b16 %v601
    %v1401 = vunpack.c.l.b16 %v602
    %v1402 = vunpack.c.h.b16 %v602
    %v1403 = vunpack.c.l.b16 %v603
    %v1404 = vunpack.c.h.b16 %v603
    %v1405 = vunpack.c.l.b16 %v604
    %v1406 = vunpack.c.h.b16 %v604
    %v1407 = vunpack.c.l.b16 %v605
    %v1408 = vunpack.c.h.b16 %v605
    %v1409 = vunpack.c.l.b16 %v606
    %v1410 = vunpack.c.h.b16 %v606
    %v1411 = vunpack.c.l.b16 %v607
    %v1412 = vunpack.c.h.b16 %v607
    %v1413 = vunpack.c.l.b16 %v608
    %v1414 = vunpack.c.h.b16 %v608
    %v1415 = vunpack.c.l.b16 %v609
    %v1416 = vunpack.c.h.b16 %v609
    %v1417 = vunpack.c.l.b16 %v610
    %v1418 = vunpack.c.h.b16 %v610
    %v1419 = vunpack.c.l.b16 %v611
    %v1420 = vunpack.c.h.b16 %v611
    %v1421 = vunpack.c.l.b16 %v612
    %v1422 = vunpack.c.h.b16 %v612
    %v1423 = vunpack.c.l.b16 %v613
    %v1424 = vunpack.c.h.b16 %v613
    %v1425 = vunpack.c.l.b16 %v614
    %v1426 = vunpack.c.h.b16 %v614
    %v1427 = vunpack.c.l.b16 %v615
    %v1428 = vunpack.c.h.b16 %v615
    %v1429 = vunpack.c.l.b16 %v616
    %v1430 = vunpack.c.h.b16 %v616
    %v1431 = vunpack.c.l.b16 %v617
    %v1432 = vunpack.c.h.b16 %v617
    %v1433 = vunpack.c.l.b16 %v618
    %v1434 = vunpack.c.h.b16 %v618
    %v1435 = vunpack.c.l.b16 %v619
    %v1436 = vunpack.c.h.b16 %v619
    %v1437 = vunpack.c.l.b16 %v620
    %v1438 = vunpack.c.h.b16 %v620
    %v1439 = vunpack.c.l.b16 %v621
    %v1440 = vunpack.c.h.b16 %v621
    %v1441 = vunpack.c.l.b16 %v622
    %v1442 = vunpack.c.h.b16 %v622
    %v1443 = vpack.c.b16 %v1381, %v1379
    %v1444 = vpack.c.b16 %v1382, %v1380
    %v1445 = vpack.c.b16 %v1385, %v1383
    %v1446 = vpack.c.b16 %v1386, %v1384
    %v1447 = vpack.c.b16 %v1389, %v1387
    %v1448 = vpack.c.b16 %v1390, %v1388
    %v1449 = vpack.c.b16 %v1393, %v1391
    %v1450 = vpack.c.b16 %v1394, %v1392
    %v1451 = vpack.c.b16 %v1397, %v1395
    %v1452 = vpack.c.b16 %v1398, %v1396
    %v1453 = vpack.c.b16 %v1401, %v1399
    %v1454 = vpack.c.b16 %v1402, %v1400
    %v1455 = vpack.c.b16 %v1405, %v1403
    %v1456 = vpack.c.b16 %v1406, %v1404
    %v1457 = vpack.c.b16 %v1409, %v1407
    %v1458 = vpack.c.b16 %v1410, %v1408
    %v1459 = vpack.c.b16 %v1413, %v1411
    %v1460 = vpack.c.b16 %v1414, %v1412
    %v1461 = vpack.c.b16 %v1417, %v1415
    %v1462 = vpack.c.b16 %v1418, %v1416
    %v1463 = vpack.c.b16 %v1421, %v1419
    %v1464 = vpack.c.b16 %v1422, %v1420
    %v1465 = vpack.c.b16 %v1425, %v1423
    %v1466 = vpack.c.b16 %v1426, %v1424
    %v1467 = vpack.c.b16 %v1429, %v1427
    %v1468 = vpack.c.b16 %v1430, %v1428
    %v1469 = vpack.c.b16 %v1433, %v1431
    %v1470 = vpack.c.b16 %v1434, %v1432
    %v1471 = vpack.c.b16 %v1437, %v1435
    %v1472 = vpack.c.b16 %v1438, %v1436
    %v1473 = vpack.c.b16 %v1441, %v1439
    %v1474 = vpack.c.b16 %v1442, %v1440
    %1507 = vmatpush.bf16.msra.mxu0 %v1338
    %1508 = vmatpush.bf16.msra.mxu0 %v1337
    %1509 = vmatpush.bf16.msra.mxu0 %v1336
    %1510 = vmatpush.bf16.msra.mxu0 %v1335
    %1511 = vmatpush.bf16.msra.mxu0 %v1334
    %1512 = vmatpush.bf16.msra.mxu0 %v1333
    %1513 = vmatpush.bf16.msra.mxu0 %v1332
    %1514 = vmatpush.bf16.msra.mxu0 %v1331
    %1515 = vmatmul.bf16.gmra.mxu0 %v1443
    %v1516 = vpop.f32.mrf.mxu0
    %v1517 = vadd.f32 0.0, %v1516
    %v1518 = vpop.f32.mrf.mxu0
    %v1519 = vadd.f32 0.0, %v1518
    %1520 = vmatmul.bf16.gmra.mxu0 %v1445
    %v1521 = vpop.f32.mrf.mxu0
    %v1522 = vadd.f32 0.0, %v1521
    %v1523 = vpop.f32.mrf.mxu0
    %v1524 = vadd.f32 0.0, %v1523
    %1525 = vmatmul.bf16.gmra.mxu0 %v1447
    %v1526 = vpop.f32.mrf.mxu0
    %v1527 = vadd.f32 0.0, %v1526
    %v1528 = vpop.f32.mrf.mxu0
    %v1529 = vadd.f32 0.0, %v1528
    %1530 = vmatmul.bf16.gmra.mxu0 %v1449
    %v1531 = vpop.f32.mrf.mxu0
    %v1532 = vadd.f32 0.0, %v1531
    %v1533 = vpop.f32.mrf.mxu0
    %v1534 = vadd.f32 0.0, %v1533
    %1535 = vmatmul.bf16.gmra.mxu0 %v1451
    %v1536 = vpop.f32.mrf.mxu0
    %v1537 = vadd.f32 0.0, %v1536
    %v1538 = vpop.f32.mrf.mxu0
    %v1539 = vadd.f32 0.0, %v1538
    %1540 = vmatmul.bf16.gmra.mxu0 %v1453
    %v1541 = vpop.f32.mrf.mxu0
    %v1542 = vadd.f32 0.0, %v1541
    %v1543 = vpop.f32.mrf.mxu0
    %v1544 = vadd.f32 0.0, %v1543
    %1545 = vmatmul.bf16.gmra.mxu0 %v1455
    %v1546 = vpop.f32.mrf.mxu0
    %v1547 = vadd.f32 0.0, %v1546
    %v1548 = vpop.f32.mrf.mxu0
    %v1549 = vadd.f32 0.0, %v1548
    %1550 = vmatmul.bf16.gmra.mxu0 %v1457
    %v1551 = vpop.f32.mrf.mxu0
    %v1552 = vadd.f32 0.0, %v1551
    %v1553 = vpop.f32.mrf.mxu0
    %v1554 = vadd.f32 0.0, %v1553
    %1555 = vmatmul.bf16.gmra.mxu0 %v1459
    %v1556 = vpop.f32.mrf.mxu0
    %v1557 = vadd.f32 0.0, %v1556
    %v1558 = vpop.f32.mrf.mxu0
    %v1559 = vadd.f32 0.0, %v1558
    %1560 = vmatmul.bf16.gmra.mxu0 %v1461
    %v1561 = vpop.f32.mrf.mxu0
    %v1562 = vadd.f32 0.0, %v1561
    %v1563 = vpop.f32.mrf.mxu0
    %v1564 = vadd.f32 0.0, %v1563
    %1565 = vmatmul.bf16.gmra.mxu0 %v1463
    %v1566 = vpop.f32.mrf.mxu0
    %v1567 = vadd.f32 0.0, %v1566
    %v1568 = vpop.f32.mrf.mxu0
    %v1569 = vadd.f32 0.0, %v1568
    %1570 = vmatmul.bf16.gmra.mxu0 %v1465
    %v1571 = vpop.f32.mrf.mxu0
    %v1572 = vadd.f32 0.0, %v1571
    %v1573 = vpop.f32.mrf.mxu0
    %v1574 = vadd.f32 0.0, %v1573
    %1575 = vmatmul.bf16.gmra.mxu0 %v1467
    %v1576 = vpop.f32.mrf.mxu0
    %v1577 = vadd.f32 0.0, %v1576
    %v1578 = vpop.f32.mrf.mxu0
    %v1579 = vadd.f32 0.0, %v1578
    %1580 = vmatmul.bf16.gmra.mxu0 %v1469
    %v1581 = vpop.f32.mrf.mxu0
    %v1582 = vadd.f32 0.0, %v1581
    %v1583 = vpop.f32.mrf.mxu0
    %v1584 = vadd.f32 0.0, %v1583
    %1585 = vmatmul.bf16.gmra.mxu0 %v1471
    %v1586 = vpop.f32.mrf.mxu0
    %v1587 = vadd.f32 0.0, %v1586
    %v1588 = vpop.f32.mrf.mxu0
    %v1589 = vadd.f32 0.0, %v1588
    %1590 = vmatmul.bf16.gmra.mxu0 %v1473
    %v1591 = vpop.f32.mrf.mxu0
    %v1592 = vadd.f32 0.0, %v1591
    %v1593 = vpop.f32.mrf.mxu0
    %v1594 = vadd.f32 0.0, %v1593
    %1595 = vdwg.mxu0
    %1596 = vmatpush.bf16.msra.mxu0 %v1346
    %1597 = vmatpush.bf16.msra.mxu0 %v1345
    %1598 = vmatpush.bf16.msra.mxu0 %v1344
    %1599 = vmatpush.bf16.msra.mxu0 %v1343
    %1600 = vmatpush.bf16.msra.mxu0 %v1342
    %1601 = vmatpush.bf16.msra.mxu0 %v1341
    %1602 = vmatpush.bf16.msra.mxu0 %v1340
    %1603 = vmatpush.bf16.msra.mxu0 %v1339
    %1604 = vmatmul.bf16.gmra.mxu0 %v1444
    %v1605 = vpop.f32.mrf.mxu0
    %v1606 = vadd.f32 %v1517, %v1605
    %v1607 = vpop.f32.mrf.mxu0
    %v1608 = vadd.f32 %v1519, %v1607
    %1609 = vmatmul.bf16.gmra.mxu0 %v1446
    %v1610 = vpop.f32.mrf.mxu0
    %v1611 = vadd.f32 %v1522, %v1610
    %v1612 = vpop.f32.mrf.mxu0
    %v1613 = vadd.f32 %v1524, %v1612
    %1614 = vmatmul.bf16.gmra.mxu0 %v1448
    %v1615 = vpop.f32.mrf.mxu0
    %v1616 = vadd.f32 %v1527, %v1615
    %v1617 = vpop.f32.mrf.mxu0
    %v1618 = vadd.f32 %v1529, %v1617
    %1619 = vmatmul.bf16.gmra.mxu0 %v1450
    %v1620 = vpop.f32.mrf.mxu0
    %v1621 = vadd.f32 %v1532, %v1620
    %v1622 = vpop.f32.mrf.mxu0
    %v1623 = vadd.f32 %v1534, %v1622
    %1624 = vmatmul.bf16.gmra.mxu0 %v1452
    %v1625 = vpop.f32.mrf.mxu0
    %v1626 = vadd.f32 %v1537, %v1625
    %v1627 = vpop.f32.mrf.mxu0
    %v1628 = vadd.f32 %v1539, %v1627
    %1629 = vmatmul.bf16.gmra.mxu0 %v1454
    %v1630 = vpop.f32.mrf.mxu0
    %v1631 = vadd.f32 %v1542, %v1630
    %v1632 = vpop.f32.mrf.mxu0
    %v1633 = vadd.f32 %v1544, %v1632
    %1634 = vmatmul.bf16.gmra.mxu0 %v1456
    %v1635 = vpop.f32.mrf.mxu0
    %v1636 = vadd.f32 %v1547, %v1635
    %v1637 = vpop.f32.mrf.mxu0
    %v1638 = vadd.f32 %v1549, %v1637
    %1639 = vmatmul.bf16.gmra.mxu0 %v1458
    %v1640 = vpop.f32.mrf.mxu0
    %v1641 = vadd.f32 %v1552, %v1640
    %v1642 = vpop.f32.mrf.mxu0
    %v1643 = vadd.f32 %v1554, %v1642
    %1644 = vmatmul.bf16.gmra.mxu0 %v1460
    %v1645 = vpop.f32.mrf.mxu0
    %v1646 = vadd.f32 %v1557, %v1645
    %v1647 = vpop.f32.mrf.mxu0
    %v1648 = vadd.f32 %v1559, %v1647
    %1649 = vmatmul.bf16.gmra.mxu0 %v1462
    %v1650 = vpop.f32.mrf.mxu0
    %v1651 = vadd.f32 %v1562, %v1650
    %v1652 = vpop.f32.mrf.mxu0
    %v1653 = vadd.f32 %v1564, %v1652
    %1654 = vmatmul.bf16.gmra.mxu0 %v1464
    %v1655 = vpop.f32.mrf.mxu0
    %v1656 = vadd.f32 %v1567, %v1655
    %v1657 = vpop.f32.mrf.mxu0
    %v1658 = vadd.f32 %v1569, %v1657
    %1659 = vmatmul.bf16.gmra.mxu0 %v1466
    %v1660 = vpop.f32.mrf.mxu0
    %v1661 = vadd.f32 %v1572, %v1660
    %v1662 = vpop.f32.mrf.mxu0
    %v1663 = vadd.f32 %v1574, %v1662
    %1664 = vmatmul.bf16.gmra.mxu0 %v1468
    %v1665 = vpop.f32.mrf.mxu0
    %v1666 = vadd.f32 %v1577, %v1665
    %v1667 = vpop.f32.mrf.mxu0
    %v1668 = vadd.f32 %v1579, %v1667
    %1669 = vmatmul.bf16.gmra.mxu0 %v1470
    %v1670 = vpop.f32.mrf.mxu0
    %v1671 = vadd.f32 %v1582, %v1670
    %v1672 = vpop.f32.mrf.mxu0
    %v1673 = vadd.f32 %v1584, %v1672
    %1674 = vmatmul.bf16.gmra.mxu0 %v1472
    %v1675 = vpop.f32.mrf.mxu0
    %v1676 = vadd.f32 %v1587, %v1675
    %v1677 = vpop.f32.mrf.mxu0
    %v1678 = vadd.f32 %v1589, %v1677
    %1679 = vmatmul.bf16.gmra.mxu0 %v1474
    %v1680 = vpop.f32.mrf.mxu0
    %v1681 = vadd.f32 %v1592, %v1680
    %v1682 = vpop.f32.mrf.mxu0
    %v1683 = vadd.f32 %v1594, %v1682
    %1684 = vdwg.mxu0
    %v1685 = vsub.f32 %v543, %v1606
    %v1686 = vsub.f32 %v544, %v1608
    %v1687 = vsub.f32 %v545, %v1611
    %v1688 = vsub.f32 %v546, %v1613
    %v1689 = vsub.f32 %v547, %v1616
    %v1690 = vsub.f32 %v548, %v1618
    %v1691 = vsub.f32 %v549, %v1621
    %v1692 = vsub.f32 %v550, %v1623
    %v1693 = vsub.f32 %v551, %v1626
    %v1694 = vsub.f32 %v552, %v1628
    %v1695 = vsub.f32 %v553, %v1631
    %v1696 = vsub.f32 %v554, %v1633
    %v1697 = vsub.f32 %v555, %v1636
    %v1698 = vsub.f32 %v556, %v1638
    %v1699 = vsub.f32 %v557, %v1641
    %v1700 = vsub.f32 %v558, %v1643
    %v1701 = vsub.f32 %v559, %v1646
    %v1702 = vsub.f32 %v560, %v1648
    %v1703 = vsub.f32 %v561, %v1651
    %v1704 = vsub.f32 %v562, %v1653
    %v1705 = vsub.f32 %v563, %v1656
    %v1706 = vsub.f32 %v564, %v1658
    %v1707 = vsub.f32 %v565, %v1661
    %v1708 = vsub.f32 %v566, %v1663
    %v1709 = vsub.f32 %v567, %v1666
    %v1710 = vsub.f32 %v568, %v1668
    %v1711 = vsub.f32 %v569, %v1671
    %v1712 = vsub.f32 %v570, %v1673
    %v1713 = vsub.f32 %v571, %v1676
    %v1714 = vsub.f32 %v572, %v1678
    %v1715 = vsub.f32 %v573, %v1681
    %v1716 = vsub.f32 %v574, %v1683
    %v1717 = vpack.c.bf16 %v1686, %v1685
    %v1718 = vpack.c.bf16 %v1688, %v1687
    %v1719 = vpack.c.bf16 %v1690, %v1689
    %v1720 = vpack.c.bf16 %v1692, %v1691
    %v1721 = vpack.c.bf16 %v1694, %v1693
    %v1722 = vpack.c.bf16 %v1696, %v1695
    %v1723 = vpack.c.bf16 %v1698, %v1697
    %v1724 = vpack.c.bf16 %v1700, %v1699
    %v1725 = vpack.c.bf16 %v1702, %v1701
    %v1726 = vpack.c.bf16 %v1704, %v1703
    %v1727 = vpack.c.bf16 %v1706, %v1705
    %v1728 = vpack.c.bf16 %v1708, %v1707
    %v1729 = vpack.c.bf16 %v1710, %v1709
    %v1730 = vpack.c.bf16 %v1712, %v1711
    %v1731 = vpack.c.bf16 %v1714, %v1713
    %v1732 = vpack.c.bf16 %v1716, %v1715
    %v1749 = vunpack.c.l.b16 %v1312
    %v1750 = vunpack.c.l.b16 %v1313
    %v1751 = vunpack.c.l.b16 %v1314
    %v1752 = vunpack.c.l.b16 %v1315
    %v1753 = vunpack.c.l.b16 %v1316
    %v1754 = vunpack.c.l.b16 %v1317
    %v1755 = vunpack.c.l.b16 %v1318
    %v1756 = vunpack.c.l.b16 %v1319
    %v1757 = vunpack.c.l.b16 %v1320
    %v1758 = vunpack.c.l.b16 %v1321
    %v1759 = vunpack.c.l.b16 %v1322
    %v1760 = vunpack.c.l.b16 %v1323
    %v1761 = vunpack.c.l.b16 %v1324
    %v1762 = vunpack.c.l.b16 %v1325
    %v1763 = vunpack.c.l.b16 %v1326
    %v1764 = vunpack.c.l.b16 %v1327
    %v1765 = vpack.c.b16 %v1750, %v1749
    %v1766 = vpack.c.b16 %v1752, %v1751
    %v1767 = vpack.c.b16 %v1754, %v1753
    %v1768 = vpack.c.b16 %v1756, %v1755
    %v1769 = vpack.c.b16 %v1758, %v1757
    %v1770 = vpack.c.b16 %v1760, %v1759
    %v1771 = vpack.c.b16 %v1762, %v1761
    %v1772 = vpack.c.b16 %v1764, %v1763
    %1781 = vmatpush.bf16.msra.mxu0 %v1772
    %1782 = vmatpush.bf16.msra.mxu0 %v1771
    %1783 = vmatpush.bf16.msra.mxu0 %v1770
    %1784 = vmatpush.bf16.msra.mxu0 %v1769
    %1785 = vmatpush.bf16.msra.mxu0 %v1768
    %1786 = vmatpush.bf16.msra.mxu0 %v1767
    %1787 = vmatpush.bf16.msra.mxu0 %v1766
    %1788 = vmatpush.bf16.msra.mxu0 %v1765
    %1789 = vmatmul.bf16.gmra.mxu0 %v1717
    %v1790 = vpop.f32.mrf.mxu0
    %v1791 = vadd.f32 0.0, %v1790
    %v1792 = vpop.f32.mrf.mxu0
    %v1793 = vadd.f32 0.0, %v1792
    %1794 = vmatmul.bf16.gmra.mxu0 %v1718
    %v1795 = vpop.f32.mrf.mxu0
    %v1796 = vadd.f32 0.0, %v1795
    %v1797 = vpop.f32.mrf.mxu0
    %v1798 = vadd.f32 0.0, %v1797
    %1799 = vmatmul.bf16.gmra.mxu0 %v1719
    %v1800 = vpop.f32.mrf.mxu0
    %v1801 = vadd.f32 0.0, %v1800
    %v1802 = vpop.f32.mrf.mxu0
    %v1803 = vadd.f32 0.0, %v1802
    %1804 = vmatmul.bf16.gmra.mxu0 %v1720
    %v1805 = vpop.f32.mrf.mxu0
    %v1806 = vadd.f32 0.0, %v1805
    %v1807 = vpop.f32.mrf.mxu0
    %v1808 = vadd.f32 0.0, %v1807
    %1809 = vmatmul.bf16.gmra.mxu0 %v1721
    %v1810 = vpop.f32.mrf.mxu0
    %v1811 = vadd.f32 0.0, %v1810
    %v1812 = vpop.f32.mrf.mxu0
    %v1813 = vadd.f32 0.0, %v1812
    %1814 = vmatmul.bf16.gmra.mxu0 %v1722
    %v1815 = vpop.f32.mrf.mxu0
    %v1816 = vadd.f32 0.0, %v1815
    %v1817 = vpop.f32.mrf.mxu0
    %v1818 = vadd.f32 0.0, %v1817
    %1819 = vmatmul.bf16.gmra.mxu0 %v1723
    %v1820 = vpop.f32.mrf.mxu0
    %v1821 = vadd.f32 0.0, %v1820
    %v1822 = vpop.f32.mrf.mxu0
    %v1823 = vadd.f32 0.0, %v1822
    %1824 = vmatmul.bf16.gmra.mxu0 %v1724
    %v1825 = vpop.f32.mrf.mxu0
    %v1826 = vadd.f32 0.0, %v1825
    %v1827 = vpop.f32.mrf.mxu0
    %v1828 = vadd.f32 0.0, %v1827
    %1829 = vmatmul.bf16.gmra.mxu0 %v1725
    %v1830 = vpop.f32.mrf.mxu0
    %v1831 = vadd.f32 0.0, %v1830
    %v1832 = vpop.f32.mrf.mxu0
    %v1833 = vadd.f32 0.0, %v1832
    %1834 = vmatmul.bf16.gmra.mxu0 %v1726
    %v1835 = vpop.f32.mrf.mxu0
    %v1836 = vadd.f32 0.0, %v1835
    %v1837 = vpop.f32.mrf.mxu0
    %v1838 = vadd.f32 0.0, %v1837
    %1839 = vmatmul.bf16.gmra.mxu0 %v1727
    %v1840 = vpop.f32.mrf.mxu0
    %v1841 = vadd.f32 0.0, %v1840
    %v1842 = vpop.f32.mrf.mxu0
    %v1843 = vadd.f32 0.0, %v1842
    %1844 = vmatmul.bf16.gmra.mxu0 %v1728
    %v1845 = vpop.f32.mrf.mxu0
    %v1846 = vadd.f32 0.0, %v1845
    %v1847 = vpop.f32.mrf.mxu0
    %v1848 = vadd.f32 0.0, %v1847
    %1849 = vmatmul.bf16.gmra.mxu0 %v1729
    %v1850 = vpop.f32.mrf.mxu0
    %v1851 = vadd.f32 0.0, %v1850
    %v1852 = vpop.f32.mrf.mxu0
    %v1853 = vadd.f32 0.0, %v1852
    %1854 = vmatmul.bf16.gmra.mxu0 %v1730
    %v1855 = vpop.f32.mrf.mxu0
    %v1856 = vadd.f32 0.0, %v1855
    %v1857 = vpop.f32.mrf.mxu0
    %v1858 = vadd.f32 0.0, %v1857
    %1859 = vmatmul.bf16.gmra.mxu0 %v1731
    %v1860 = vpop.f32.mrf.mxu0
    %v1861 = vadd.f32 0.0, %v1860
    %v1862 = vpop.f32.mrf.mxu0
    %v1863 = vadd.f32 0.0, %v1862
    %1864 = vmatmul.bf16.gmra.mxu0 %v1732
    %v1865 = vpop.f32.mrf.mxu0
    %v1866 = vadd.f32 0.0, %v1865
    %v1867 = vpop.f32.mrf.mxu0
    %v1868 = vadd.f32 0.0, %v1867
    %1869 = vdwg.mxu0
    %v1886 = vunpack.c.l.b16 %v1296
    %v1887 = vunpack.c.l.b16 %v1297
    %v1888 = vunpack.c.l.b16 %v1298
    %v1889 = vunpack.c.l.b16 %v1299
    %v1890 = vunpack.c.l.b16 %v1300
    %v1891 = vunpack.c.l.b16 %v1301
    %v1892 = vunpack.c.l.b16 %v1302
    %v1893 = vunpack.c.l.b16 %v1303
    %v1894 = vunpack.c.l.b16 %v1304
    %v1895 = vunpack.c.l.b16 %v1305
    %v1896 = vunpack.c.l.b16 %v1306
    %v1897 = vunpack.c.l.b16 %v1307
    %v1898 = vunpack.c.l.b16 %v1308
    %v1899 = vunpack.c.l.b16 %v1309
    %v1900 = vunpack.c.l.b16 %v1310
    %v1901 = vunpack.c.l.b16 %v1311
    %v1902 = vpack.c.b16 %v1887, %v1886
    %v1903 = vpack.c.b16 %v1889, %v1888
    %v1904 = vpack.c.b16 %v1891, %v1890
    %v1905 = vpack.c.b16 %v1893, %v1892
    %v1906 = vpack.c.b16 %v1895, %v1894
    %v1907 = vpack.c.b16 %v1897, %v1896
    %v1908 = vpack.c.b16 %v1899, %v1898
    %v1909 = vpack.c.b16 %v1901, %v1900
    %1918 = vmatpush.bf16.msra.mxu0 %v1909
    %1919 = vmatpush.bf16.msra.mxu0 %v1908
    %1920 = vmatpush.bf16.msra.mxu0 %v1907
    %1921 = vmatpush.bf16.msra.mxu0 %v1906
    %1922 = vmatpush.bf16.msra.mxu0 %v1905
    %1923 = vmatpush.bf16.msra.mxu0 %v1904
    %1924 = vmatpush.bf16.msra.mxu0 %v1903
    %1925 = vmatpush.bf16.msra.mxu0 %v1902
    %1926 = vmatmul.bf16.gmra.mxu0 %v1331
    %v1927 = vpop.f32.mrf.mxu0
    %v1928 = vadd.f32 %v1791, %v1927
    %v1929 = vpop.f32.mrf.mxu0
    %v1930 = vadd.f32 %v1793, %v1929
    %1931 = vmatmul.bf16.gmra.mxu0 %v1332
    %v1932 = vpop.f32.mrf.mxu0
    %v1933 = vadd.f32 %v1796, %v1932
    %v1934 = vpop.f32.mrf.mxu0
    %v1935 = vadd.f32 %v1798, %v1934
    %1936 = vmatmul.bf16.gmra.mxu0 %v1333
    %v1937 = vpop.f32.mrf.mxu0
    %v1938 = vadd.f32 %v1801, %v1937
    %v1939 = vpop.f32.mrf.mxu0
    %v1940 = vadd.f32 %v1803, %v1939
    %1941 = vmatmul.bf16.gmra.mxu0 %v1334
    %v1942 = vpop.f32.mrf.mxu0
    %v1943 = vadd.f32 %v1806, %v1942
    %v1944 = vpop.f32.mrf.mxu0
    %v1945 = vadd.f32 %v1808, %v1944
    %1946 = vmatmul.bf16.gmra.mxu0 %v1335
    %v1947 = vpop.f32.mrf.mxu0
    %v1948 = vadd.f32 %v1811, %v1947
    %v1949 = vpop.f32.mrf.mxu0
    %v1950 = vadd.f32 %v1813, %v1949
    %1951 = vmatmul.bf16.gmra.mxu0 %v1336
    %v1952 = vpop.f32.mrf.mxu0
    %v1953 = vadd.f32 %v1816, %v1952
    %v1954 = vpop.f32.mrf.mxu0
    %v1955 = vadd.f32 %v1818, %v1954
    %1956 = vmatmul.bf16.gmra.mxu0 %v1337
    %v1957 = vpop.f32.mrf.mxu0
    %v1958 = vadd.f32 %v1821, %v1957
    %v1959 = vpop.f32.mrf.mxu0
    %v1960 = vadd.f32 %v1823, %v1959
    %1961 = vmatmul.bf16.gmra.mxu0 %v1338
    %v1962 = vpop.f32.mrf.mxu0
    %v1963 = vadd.f32 %v1826, %v1962
    %v1964 = vpop.f32.mrf.mxu0
    %v1965 = vadd.f32 %v1828, %v1964
    %1966 = vmatmul.bf16.gmra.mxu0 %v1339
    %v1967 = vpop.f32.mrf.mxu0
    %v1968 = vadd.f32 %v1831, %v1967
    %v1969 = vpop.f32.mrf.mxu0
    %v1970 = vadd.f32 %v1833, %v1969
    %1971 = vmatmul.bf16.gmra.mxu0 %v1340
    %v1972 = vpop.f32.mrf.mxu0
    %v1973 = vadd.f32 %v1836, %v1972
    %v1974 = vpop.f32.mrf.mxu0
    %v1975 = vadd.f32 %v1838, %v1974
    %1976 = vmatmul.bf16.gmra.mxu0 %v1341
    %v1977 = vpop.f32.mrf.mxu0
    %v1978 = vadd.f32 %v1841, %v1977
    %v1979 = vpop.f32.mrf.mxu0
    %v1980 = vadd.f32 %v1843, %v1979
    %1981 = vmatmul.bf16.gmra.mxu0 %v1342
    %v1982 = vpop.f32.mrf.mxu0
    %v1983 = vadd.f32 %v1846, %v1982
    %v1984 = vpop.f32.mrf.mxu0
    %v1985 = vadd.f32 %v1848, %v1984
    %1986 = vmatmul.bf16.gmra.mxu0 %v1343
    %v1987 = vpop.f32.mrf.mxu0
    %v1988 = vadd.f32 %v1851, %v1987
    %v1989 = vpop.f32.mrf.mxu0
    %v1990 = vadd.f32 %v1853, %v1989
    %1991 = vmatmul.bf16.gmra.mxu0 %v1344
    %v1992 = vpop.f32.mrf.mxu0
    %v1993 = vadd.f32 %v1856, %v1992
    %v1994 = vpop.f32.mrf.mxu0
    %v1995 = vadd.f32 %v1858, %v1994
    %1996 = vmatmul.bf16.gmra.mxu0 %v1345
    %v1997 = vpop.f32.mrf.mxu0
    %v1998 = vadd.f32 %v1861, %v1997
    %v1999 = vpop.f32.mrf.mxu0
    %v2000 = vadd.f32 %v1863, %v1999
    %2001 = vmatmul.bf16.gmra.mxu0 %v1346
    %v2002 = vpop.f32.mrf.mxu0
    %v2003 = vadd.f32 %v1866, %v2002
    %v2004 = vpop.f32.mrf.mxu0
    %v2005 = vadd.f32 %v1868, %v2004
    %2006 = vdwg.mxu0
    %v2008 = vperm.slane %v1328, 0
    %v2010 = vadd.f32 %v1928, %v2008
    %v2011 = vadd.f32 %v1930, %v2008
    %v2012 = vadd.f32 %v1933, %v2008
    %v2013 = vadd.f32 %v1935, %v2008
    %v2014 = vadd.f32 %v1938, %v2008
    %v2015 = vadd.f32 %v1940, %v2008
    %v2016 = vadd.f32 %v1943, %v2008
    %v2017 = vadd.f32 %v1945, %v2008
    %v2018 = vadd.f32 %v1948, %v2008
    %v2019 = vadd.f32 %v1950, %v2008
    %v2020 = vadd.f32 %v1953, %v2008
    %v2021 = vadd.f32 %v1955, %v2008
    %v2022 = vadd.f32 %v1958, %v2008
    %v2023 = vadd.f32 %v1960, %v2008
    %v2024 = vadd.f32 %v1963, %v2008
    %v2025 = vadd.f32 %v1965, %v2008
    %v2026 = vadd.f32 %v1968, %v2008
    %v2027 = vadd.f32 %v1970, %v2008
    %v2028 = vadd.f32 %v1973, %v2008
    %v2029 = vadd.f32 %v1975, %v2008
    %v2030 = vadd.f32 %v1978, %v2008
    %v2031 = vadd.f32 %v1980, %v2008
    %v2032 = vadd.f32 %v1983, %v2008
    %v2033 = vadd.f32 %v1985, %v2008
    %v2034 = vadd.f32 %v1988, %v2008
    %v2035 = vadd.f32 %v1990, %v2008
    %v2036 = vadd.f32 %v1993, %v2008
    %v2037 = vadd.f32 %v1995, %v2008
    %v2038 = vadd.f32 %v1998, %v2008
    %v2039 = vadd.f32 %v2000, %v2008
    %v2040 = vadd.f32 %v2003, %v2008
    %v2041 = vadd.f32 %v2005, %v2008
    %v2042 = vadd.f32 %v2010, %v2011
    %v2043 = vadd.f32 %v2042, %v2012
    %v2044 = vadd.f32 %v2043, %v2013
    %v2045 = vadd.f32 %v2044, %v2014
    %v2046 = vadd.f32 %v2045, %v2015
    %v2047 = vadd.f32 %v2046, %v2016
    %v2048 = vadd.f32 %v2047, %v2017
    %v2049 = vadd.f32 %v2048, %v2018
    %v2050 = vadd.f32 %v2049, %v2019
    %v2051 = vadd.f32 %v2050, %v2020
    %v2052 = vadd.f32 %v2051, %v2021
    %v2053 = vadd.f32 %v2052, %v2022
    %v2054 = vadd.f32 %v2053, %v2023
    %v2055 = vadd.f32 %v2054, %v2024
    %v2056 = vadd.f32 %v2055, %v2025
    %v2057 = vadd.f32 %v2056, %v2026
    %v2058 = vadd.f32 %v2057, %v2027
    %v2059 = vadd.f32 %v2058, %v2028
    %v2060 = vadd.f32 %v2059, %v2029
    %v2061 = vadd.f32 %v2060, %v2030
    %v2062 = vadd.f32 %v2061, %v2031
    %v2063 = vadd.f32 %v2062, %v2032
    %v2064 = vadd.f32 %v2063, %v2033
    %v2065 = vadd.f32 %v2064, %v2034
    %v2066 = vadd.f32 %v2065, %v2035
    %v2067 = vadd.f32 %v2066, %v2036
    %v2068 = vadd.f32 %v2067, %v2037
    %v2069 = vadd.f32 %v2068, %v2038
    %v2070 = vadd.f32 %v2069, %v2039
    %v2071 = vadd.f32 %v2070, %v2040
    %v2072 = vadd.f32 %v2071, %v2041
    %v2073 = vrot.slane %v2072, 4
    %v2074 = vadd.f32 %v2072, %v2073
    %v2075 = vrot.slane %v2074, 2
    %v2076 = vadd.f32 %v2074, %v2075
    %v2077 = vrot.slane %v2076, 1
    %v2078 = vadd.f32 %v2076, %v2077
    %v2079 = vmul.f32 %v2078, 0.00390625
    %v2080 = vmul.f32 %v2010, %v2010
    %v2081 = vmul.f32 %v2011, %v2011
    %v2082 = vmul.f32 %v2012, %v2012
    %v2083 = vmul.f32 %v2013, %v2013
    %v2084 = vmul.f32 %v2014, %v2014
    %v2085 = vmul.f32 %v2015, %v2015
    %v2086 = vmul.f32 %v2016, %v2016
    %v2087 = vmul.f32 %v2017, %v2017
    %v2088 = vmul.f32 %v2018, %v2018
    %v2089 = vmul.f32 %v2019, %v2019
    %v2090 = vmul.f32 %v2020, %v2020
    %v2091 = vmul.f32 %v2021, %v2021
    %v2092 = vmul.f32 %v2022, %v2022
    %v2093 = vmul.f32 %v2023, %v2023
    %v2094 = vmul.f32 %v2024, %v2024
    %v2095 = vmul.f32 %v2025, %v2025
    %v2096 = vmul.f32 %v2026, %v2026
    %v2097 = vmul.f32 %v2027, %v2027
    %v2098 = vmul.f32 %v2028, %v2028
    %v2099 = vmul.f32 %v2029, %v2029
    %v2100 = vmul.f32 %v2030, %v2030
    %v2101 = vmul.f32 %v2031, %v2031
    %v2102 = vmul.f32 %v2032, %v2032
    %v2103 = vmul.f32 %v2033, %v2033
    %v2104 = vmul.f32 %v2034, %v2034
    %v2105 = vmul.f32 %v2035, %v2035
    %v2106 = vmul.f32 %v2036, %v2036
    %v2107 = vmul.f32 %v2037, %v2037
    %v2108 = vmul.f32 %v2038, %v2038
    %v2109 = vmul.f32 %v2039, %v2039
    %v2110 = vmul.f32 %v2040, %v2040
    %v2111 = vmul.f32 %v2041, %v2041
    %v2112 = vadd.f32 %v2080, %v2081
    %v2113 = vadd.f32 %v2112, %v2082
    %v2114 = vadd.f32 %v2113, %v2083
    %v2115 = vadd.f32 %v2114, %v2084
    %v2116 = vadd.f32 %v2115, %v2085
    %v2117 = vadd.f32 %v2116, %v2086
    %v2118 = vadd.f32 %v2117, %v2087
    %v2119 = vadd.f32 %v2118, %v2088
    %v2120 = vadd.f32 %v2119, %v2089
    %v2121 = vadd.f32 %v2120, %v2090
    %v2122 = vadd.f32 %v2121, %v2091
    %v2123 = vadd.f32 %v2122, %v2092
    %v2124 = vadd.f32 %v2123, %v2093
    %v2125 = vadd.f32 %v2124, %v2094
    %v2126 = vadd.f32 %v2125, %v2095
    %v2127 = vadd.f32 %v2126, %v2096
    %v2128 = vadd.f32 %v2127, %v2097
    %v2129 = vadd.f32 %v2128, %v2098
    %v2130 = vadd.f32 %v2129, %v2099
    %v2131 = vadd.f32 %v2130, %v2100
    %v2132 = vadd.f32 %v2131, %v2101
    %v2133 = vadd.f32 %v2132, %v2102
    %v2134 = vadd.f32 %v2133, %v2103
    %v2135 = vadd.f32 %v2134, %v2104
    %v2136 = vadd.f32 %v2135, %v2105
    %v2137 = vadd.f32 %v2136, %v2106
    %v2138 = vadd.f32 %v2137, %v2107
    %v2139 = vadd.f32 %v2138, %v2108
    %v2140 = vadd.f32 %v2139, %v2109
    %v2141 = vadd.f32 %v2140, %v2110
    %v2142 = vadd.f32 %v2141, %v2111
    %v2143 = vrot.slane %v2142, 4
    %v2144 = vadd.f32 %v2142, %v2143
    %v2145 = vrot.slane %v2144, 2
    %v2146 = vadd.f32 %v2144, %v2145
    %v2147 = vrot.slane %v2146, 1
    %v2148 = vadd.f32 %v2146, %v2147
    %v2149 = vmul.f32 %v2148, 0.00390625
    %v2150 = vmul.f32 %v2079, %v2079
    %v2151 = vsub.f32 %v2149, %v2150
    %v2152 = vmax.f32 %v2151, 0.0
    %v2153 = vsub.f32 %v2010, %v2079
    %v2154 = vsub.f32 %v2011, %v2079
    %v2155 = vsub.f32 %v2012, %v2079
    %v2156 = vsub.f32 %v2013, %v2079
    %v2157 = vsub.f32 %v2014, %v2079
    %v2158 = vsub.f32 %v2015, %v2079
    %v2159 = vsub.f32 %v2016, %v2079
    %v2160 = vsub.f32 %v2017, %v2079
    %v2161 = vsub.f32 %v2018, %v2079
    %v2162 = vsub.f32 %v2019, %v2079
    %v2163 = vsub.f32 %v2020, %v2079
    %v2164 = vsub.f32 %v2021, %v2079
    %v2165 = vsub.f32 %v2022, %v2079
    %v2166 = vsub.f32 %v2023, %v2079
    %v2167 = vsub.f32 %v2024, %v2079
    %v2168 = vsub.f32 %v2025, %v2079
    %v2169 = vsub.f32 %v2026, %v2079
    %v2170 = vsub.f32 %v2027, %v2079
    %v2171 = vsub.f32 %v2028, %v2079
    %v2172 = vsub.f32 %v2029, %v2079
    %v2173 = vsub.f32 %v2030, %v2079
    %v2174 = vsub.f32 %v2031, %v2079
    %v2175 = vsub.f32 %v2032, %v2079
    %v2176 = vsub.f32 %v2033, %v2079
    %v2177 = vsub.f32 %v2034, %v2079
    %v2178 = vsub.f32 %v2035, %v2079
    %v2179 = vsub.f32 %v2036, %v2079
    %v2180 = vsub.f32 %v2037, %v2079
    %v2181 = vsub.f32 %v2038, %v2079
    %v2182 = vsub.f32 %v2039, %v2079
    %v2183 = vsub.f32 %v2040, %v2079
    %v2184 = vsub.f32 %v2041, %v2079
    %v2185 = vadd.f32 %v2152, 1e-05
    %v2186 = vrsqrt.pop %v2185
    %v2187 = vmul.f32 %v2186, %v2185
    %v2188 = vmul.f32 %v2187, %v2186
    %v2189 = vmul.f32 0.5, %v2188
    %v2190 = vsub.f32 1.5, %v2189
    %v2191 = vmul.f32 %v2186, %v2190
    %vm2192 = vweird.f32 %v2185
    %vm2193 = vweird.f32 %v2186
    %vm2194 = vmor %vm2192, %vm2193
    %v2195 = vsel %vm2194, %v2186, %v2191
    %v2196 = vmul.f32 %v2153, %v2195
    %v2197 = vmul.f32 %v2154, %v2195
    %v2198 = vmul.f32 %v2155, %v2195
    %v2199 = vmul.f32 %v2156, %v2195
    %v2200 = vmul.f32 %v2157, %v2195
    %v2201 = vmul.f32 %v2158, %v2195
    %v2202 = vmul.f32 %v2159, %v2195
    %v2203 = vmul.f32 %v2160, %v2195
    %v2204 = vmul.f32 %v2161, %v2195
    %v2205 = vmul.f32 %v2162, %v2195
    %v2206 = vmul.f32 %v2163, %v2195
    %v2207 = vmul.f32 %v2164, %v2195
    %v2208 = vmul.f32 %v2165, %v2195
    %v2209 = vmul.f32 %v2166, %v2195
    %v2210 = vmul.f32 %v2167, %v2195
    %v2211 = vmul.f32 %v2168, %v2195
    %v2212 = vmul.f32 %v2169, %v2195
    %v2213 = vmul.f32 %v2170, %v2195
    %v2214 = vmul.f32 %v2171, %v2195
    %v2215 = vmul.f32 %v2172, %v2195
    %v2216 = vmul.f32 %v2173, %v2195
    %v2217 = vmul.f32 %v2174, %v2195
    %v2218 = vmul.f32 %v2175, %v2195
    %v2219 = vmul.f32 %v2176, %v2195
    %v2220 = vmul.f32 %v2177, %v2195
    %v2221 = vmul.f32 %v2178, %v2195
    %v2222 = vmul.f32 %v2179, %v2195
    %v2223 = vmul.f32 %v2180, %v2195
    %v2224 = vmul.f32 %v2181, %v2195
    %v2225 = vmul.f32 %v2182, %v2195
    %v2226 = vmul.f32 %v2183, %v2195
    %v2227 = vmul.f32 %v2184, %v2195
    %v2229 = vperm.slane %v1329, 0
    %v2231 = vmul.f32 %v2196, %v2229
    %v2232 = vmul.f32 %v2197, %v2229
    %v2233 = vmul.f32 %v2198, %v2229
    %v2234 = vmul.f32 %v2199, %v2229
    %v2235 = vmul.f32 %v2200, %v2229
    %v2236 = vmul.f32 %v2201, %v2229
    %v2237 = vmul.f32 %v2202, %v2229
    %v2238 = vmul.f32 %v2203, %v2229
    %v2239 = vmul.f32 %v2204, %v2229
    %v2240 = vmul.f32 %v2205, %v2229
    %v2241 = vmul.f32 %v2206, %v2229
    %v2242 = vmul.f32 %v2207, %v2229
    %v2243 = vmul.f32 %v2208, %v2229
    %v2244 = vmul.f32 %v2209, %v2229
    %v2245 = vmul.f32 %v2210, %v2229
    %v2246 = vmul.f32 %v2211, %v2229
    %v2247 = vmul.f32 %v2212, %v2229
    %v2248 = vmul.f32 %v2213, %v2229
    %v2249 = vmul.f32 %v2214, %v2229
    %v2250 = vmul.f32 %v2215, %v2229
    %v2251 = vmul.f32 %v2216, %v2229
    %v2252 = vmul.f32 %v2217, %v2229
    %v2253 = vmul.f32 %v2218, %v2229
    %v2254 = vmul.f32 %v2219, %v2229
    %v2255 = vmul.f32 %v2220, %v2229
    %v2256 = vmul.f32 %v2221, %v2229
    %v2257 = vmul.f32 %v2222, %v2229
    %v2258 = vmul.f32 %v2223, %v2229
    %v2259 = vmul.f32 %v2224, %v2229
    %v2260 = vmul.f32 %v2225, %v2229
    %v2261 = vmul.f32 %v2226, %v2229
    %v2262 = vmul.f32 %v2227, %v2229
    %v2264 = vperm.slane %v1330, 0
    %v2266 = vadd.f32 %v2231, %v2264
    %v2267 = vadd.f32 %v2232, %v2264
    %v2268 = vadd.f32 %v2233, %v2264
    %v2269 = vadd.f32 %v2234, %v2264
    %v2270 = vadd.f32 %v2235, %v2264
    %v2271 = vadd.f32 %v2236, %v2264
    %v2272 = vadd.f32 %v2237, %v2264
    %v2273 = vadd.f32 %v2238, %v2264
    %v2274 = vadd.f32 %v2239, %v2264
    %v2275 = vadd.f32 %v2240, %v2264
    %v2276 = vadd.f32 %v2241, %v2264
    %v2277 = vadd.f32 %v2242, %v2264
    %v2278 = vadd.f32 %v2243, %v2264
    %v2279 = vadd.f32 %v2244, %v2264
    %v2280 = vadd.f32 %v2245, %v2264
    %v2281 = vadd.f32 %v2246, %v2264
    %v2282 = vadd.f32 %v2247, %v2264
    %v2283 = vadd.f32 %v2248, %v2264
    %v2284 = vadd.f32 %v2249, %v2264
    %v2285 = vadd.f32 %v2250, %v2264
    %v2286 = vadd.f32 %v2251, %v2264
    %v2287 = vadd.f32 %v2252, %v2264
    %v2288 = vadd.f32 %v2253, %v2264
    %v2289 = vadd.f32 %v2254, %v2264
    %v2290 = vadd.f32 %v2255, %v2264
    %v2291 = vadd.f32 %v2256, %v2264
    %v2292 = vadd.f32 %v2257, %v2264
    %v2293 = vadd.f32 %v2258, %v2264
    %v2294 = vadd.f32 %v2259, %v2264
    %v2295 = vadd.f32 %v2260, %v2264
    %v2296 = vadd.f32 %v2261, %v2264
    %v2297 = vadd.f32 %v2262, %v2264
    %v2298 = vmax.f32 %v2266, 0.0
    %v2299 = vmax.f32 %v2267, 0.0
    %v2300 = vmax.f32 %v2268, 0.0
    %v2301 = vmax.f32 %v2269, 0.0
    %v2302 = vmax.f32 %v2270, 0.0
    %v2303 = vmax.f32 %v2271, 0.0
    %v2304 = vmax.f32 %v2272, 0.0
    %v2305 = vmax.f32 %v2273, 0.0
    %v2306 = vmax.f32 %v2274, 0.0
    %v2307 = vmax.f32 %v2275, 0.0
    %v2308 = vmax.f32 %v2276, 0.0
    %v2309 = vmax.f32 %v2277, 0.0
    %v2310 = vmax.f32 %v2278, 0.0
    %v2311 = vmax.f32 %v2279, 0.0
    %v2312 = vmax.f32 %v2280, 0.0
    %v2313 = vmax.f32 %v2281, 0.0
    %v2314 = vmax.f32 %v2282, 0.0
    %v2315 = vmax.f32 %v2283, 0.0
    %v2316 = vmax.f32 %v2284, 0.0
    %v2317 = vmax.f32 %v2285, 0.0
    %v2318 = vmax.f32 %v2286, 0.0
    %v2319 = vmax.f32 %v2287, 0.0
    %v2320 = vmax.f32 %v2288, 0.0
    %v2321 = vmax.f32 %v2289, 0.0
    %v2322 = vmax.f32 %v2290, 0.0
    %v2323 = vmax.f32 %v2291, 0.0
    %v2324 = vmax.f32 %v2292, 0.0
    %v2325 = vmax.f32 %v2293, 0.0
    %v2326 = vmax.f32 %v2294, 0.0
    %v2327 = vmax.f32 %v2295, 0.0
    %v2328 = vmax.f32 %v2296, 0.0
    %v2329 = vmax.f32 %v2297, 0.0
    %2330 = vst [vmem:[#allocation38] sm:$0xff] %v1280
    %2331 = vst [vmem:[#allocation38 + $0x18] sm:$0xff] %v1281
    %2332 = vst [vmem:[#allocation38 + $0x30] sm:$0xff] %v1282
    %2333 = vst [vmem:[#allocation38 + $0x48] sm:$0xff] %v1283
    %2334 = vst [vmem:[#allocation38 + $0x60] sm:$0xff] %v1284
    %2335 = vst [vmem:[#allocation38 + $0x78] sm:$0xff] %v1285
    %2336 = vst [vmem:[#allocation38 + $0x90] sm:$0xff] %v1286
    %2337 = vst [vmem:[#allocation38 + $0xa8] sm:$0xff] %v1287
    %2338 = vst [vmem:[#allocation38 + $0xc0] sm:$0xff] %v1288
    %2339 = vst [vmem:[#allocation38 + $0xd8] sm:$0xff] %v1289
    %2340 = vst [vmem:[#allocation38 + $0xf0] sm:$0xff] %v1290
    %2341 = vst [vmem:[#allocation38 + $0x108] sm:$0xff] %v1291
    %2342 = vst [vmem:[#allocation38 + $0x120] sm:$0xff] %v1292
    %2343 = vst [vmem:[#allocation38 + $0x138] sm:$0xff] %v1293
    %2344 = vst [vmem:[#allocation38 + $0x150] sm:$0xff] %v1294
    %2345 = vst [vmem:[#allocation38 + $0x168] sm:$0xff] %v1295
    %2346 = vst [vmem:[#allocation40] sm:$0xff] %v2298
    %2347 = vst [vmem:[#allocation40 + $0x18] sm:$0xff] %v2299
    %2348 = vst [vmem:[#allocation40 + $0x30] sm:$0xff] %v2300
    %2349 = vst [vmem:[#allocation40 + $0x48] sm:$0xff] %v2301
    %2350 = vst [vmem:[#allocation40 + $0x60] sm:$0xff] %v2302
    %2351 = vst [vmem:[#allocation40 + $0x78] sm:$0xff] %v2303
    %2352 = vst [vmem:[#allocation40 + $0x90] sm:$0xff] %v2304
    %2353 = vst [vmem:[#allocation40 + $0xa8] sm:$0xff] %v2305
    %2354 = vst [vmem:[#allocation40 + $0xc0] sm:$0xff] %v2306
    %2355 = vst [vmem:[#allocation40 + $0xd8] sm:$0xff] %v2307
    %2356 = vst [vmem:[#allocation40 + $0xf0] sm:$0xff] %v2308
    %2357 = vst [vmem:[#allocation40 + $0x108] sm:$0xff] %v2309
    %2358 = vst [vmem:[#allocation40 + $0x120] sm:$0xff] %v2310
    %2359 = vst [vmem:[#allocation40 + $0x138] sm:$0xff] %v2311
    %2360 = vst [vmem:[#allocation40 + $0x150] sm:$0xff] %v2312
    %2361 = vst [vmem:[#allocation40 + $0x168] sm:$0xff] %v2313
    %2362 = vst [vmem:[#allocation40 + $0x180] sm:$0xff] %v2314
    %2363 = vst [vmem:[#allocation40 + $0x198] sm:$0xff] %v2315
    %2364 = vst [vmem:[#allocation40 + $0x1b0] sm:$0xff] %v2316
    %2365 = vst [vmem:[#allocation40 + $0x1c8] sm:$0xff] %v2317
    %2366 = vst [vmem:[#allocation40 + $0x1e0] sm:$0xff] %v2318
    %2367 = vst [vmem:[#allocation40 + $0x1f8] sm:$0xff] %v2319
    %2368 = vst [vmem:[#allocation40 + $0x210] sm:$0xff] %v2320
    %2369 = vst [vmem:[#allocation40 + $0x228] sm:$0xff] %v2321
    %2370 = vst [vmem:[#allocation40 + $0x240] sm:$0xff] %v2322
    %2371 = vst [vmem:[#allocation40 + $0x258] sm:$0xff] %v2323
    %2372 = vst [vmem:[#allocation40 + $0x270] sm:$0xff] %v2324
    %2373 = vst [vmem:[#allocation40 + $0x288] sm:$0xff] %v2325
    %2374 = vst [vmem:[#allocation40 + $0x2a0] sm:$0xff] %v2326
    %2375 = vst [vmem:[#allocation40 + $0x2b8] sm:$0xff] %v2327
    %2376 = vst [vmem:[#allocation40 + $0x2d0] sm:$0xff] %v2328
    %2377 = vst [vmem:[#allocation40 + $0x2e8] sm:$0xff] %v2329
    %v2378 = vld [vmem:[#allocation16] sm:$0xf]
    %v2379 = vld [vmem:[#allocation16 + $0x4] sm:$0xf]
    %v2380 = vld [vmem:[#allocation16 + $0x8] sm:$0xf]
    %v2381 = vld [vmem:[#allocation16 + $0xc] sm:$0xf]
    %v2382 = vld [vmem:[#allocation16 + $0x10] sm:$0xf]
    %v2383 = vld [vmem:[#allocation16 + $0x14] sm:$0xf]
    %v2384 = vld [vmem:[#allocation16 + $0x18] sm:$0xf]
    %v2385 = vld [vmem:[#allocation16 + $0x1c] sm:$0xf]
    %v2386 = vld [vmem:[#allocation16 + $0x20] sm:$0xf]
    %v2387 = vld [vmem:[#allocation16 + $0x24] sm:$0xf]
    %v2388 = vld [vmem:[#allocation16 + $0x28] sm:$0xf]
    %v2389 = vld [vmem:[#allocation16 + $0x2c] sm:$0xf]
    %v2390 = vld [vmem:[#allocation16 + $0x30] sm:$0xf]
    %v2391 = vld [vmem:[#allocation16 + $0x34] sm:$0xf]
    %v2392 = vld [vmem:[#allocation16 + $0x38] sm:$0xf]
    %v2393 = vld [vmem:[#allocation16 + $0x3c] sm:$0xf]
    %v2394 = vld [vmem:[#allocation17] sm:$0xf]
    %v2395 = vld [vmem:[#allocation17 + $0x4] sm:$0xf]
    %v2396 = vld [vmem:[#allocation17 + $0x8] sm:$0xf]
    %v2397 = vld [vmem:[#allocation17 + $0xc] sm:$0xf]
    %v2398 = vld [vmem:[#allocation17 + $0x10] sm:$0xf]
    %v2399 = vld [vmem:[#allocation17 + $0x14] sm:$0xf]
    %v2400 = vld [vmem:[#allocation17 + $0x18] sm:$0xf]
    %v2401 = vld [vmem:[#allocation17 + $0x1c] sm:$0xf]
    %v2402 = vld [vmem:[#allocation17 + $0x20] sm:$0xf]
    %v2403 = vld [vmem:[#allocation17 + $0x24] sm:$0xf]
    %v2404 = vld [vmem:[#allocation17 + $0x28] sm:$0xf]
    %v2405 = vld [vmem:[#allocation17 + $0x2c] sm:$0xf]
    %v2406 = vld [vmem:[#allocation17 + $0x30] sm:$0xf]
    %v2407 = vld [vmem:[#allocation17 + $0x34] sm:$0xf]
    %v2408 = vld [vmem:[#allocation17 + $0x38] sm:$0xf]
    %v2409 = vld [vmem:[#allocation17 + $0x3c] sm:$0xf]
    %v2410 = vld [vmem:[#allocation38] sm:$0xff]
    %v2411 = vld [vmem:[#allocation38 + $0x18] sm:$0xff]
    %v2412 = vld [vmem:[#allocation38 + $0x30] sm:$0xff]
    %v2413 = vld [vmem:[#allocation38 + $0x48] sm:$0xff]
    %v2414 = vld [vmem:[#allocation38 + $0x60] sm:$0xff]
    %v2415 = vld [vmem:[#allocation38 + $0x78] sm:$0xff]
    %v2416 = vld [vmem:[#allocation38 + $0x90] sm:$0xff]
    %v2417 = vld [vmem:[#allocation38 + $0xa8] sm:$0xff]
    %v2418 = vld [vmem:[#allocation38 + $0xc0] sm:$0xff]
    %v2419 = vld [vmem:[#allocation38 + $0xd8] sm:$0xff]
    %v2420 = vld [vmem:[#allocation38 + $0xf0] sm:$0xff]
    %v2421 = vld [vmem:[#allocation38 + $0x108] sm:$0xff]
    %v2422 = vld [vmem:[#allocation38 + $0x120] sm:$0xff]
    %v2423 = vld [vmem:[#allocation38 + $0x138] sm:$0xff]
    %v2424 = vld [vmem:[#allocation38 + $0x150] sm:$0xff]
    %v2425 = vld [vmem:[#allocation38 + $0x168] sm:$0xff]
    %v2426 = vpack.c.bf16 %v2411, %v2410
    %v2427 = vpack.c.bf16 %v2413, %v2412
    %v2428 = vpack.c.bf16 %v2415, %v2414
    %v2429 = vpack.c.bf16 %v2417, %v2416
    %v2430 = vpack.c.bf16 %v2419, %v2418
    %v2431 = vpack.c.bf16 %v2421, %v2420
    %v2432 = vpack.c.bf16 %v2423, %v2422
    %v2433 = vpack.c.bf16 %v2425, %v2424
    %v2434 = vld [vmem:[#allocation40] sm:$0xff]
    %v2435 = vld [vmem:[#allocation40 + $0x18] sm:$0xff]
    %v2436 = vld [vmem:[#allocation40 + $0x30] sm:$0xff]
    %v2437 = vld [vmem:[#allocation40 + $0x48] sm:$0xff]
    %v2438 = vld [vmem:[#allocation40 + $0x60] sm:$0xff]
    %v2439 = vld [vmem:[#allocation40 + $0x78] sm:$0xff]
    %v2440 = vld [vmem:[#allocation40 + $0x90] sm:$0xff]
    %v2441 = vld [vmem:[#allocation40 + $0xa8] sm:$0xff]
    %v2442 = vld [vmem:[#allocation40 + $0xc0] sm:$0xff]
    %v2443 = vld [vmem:[#allocation40 + $0xd8] sm:$0xff]
    %v2444 = vld [vmem:[#allocation40 + $0xf0] sm:$0xff]
    %v2445 = vld [vmem:[#allocation40 + $0x108] sm:$0xff]
    %v2446 = vld [vmem:[#allocation40 + $0x120] sm:$0xff]
    %v2447 = vld [vmem:[#allocation40 + $0x138] sm:$0xff]
    %v2448 = vld [vmem:[#allocation40 + $0x150] sm:$0xff]
    %v2449 = vld [vmem:[#allocation40 + $0x168] sm:$0xff]
    %v2450 = vld [vmem:[#allocation40 + $0x180] sm:$0xff]
    %v2451 = vld [vmem:[#allocation40 + $0x198] sm:$0xff]
    %v2452 = vld [vmem:[#allocation40 + $0x1b0] sm:$0xff]
    %v2453 = vld [vmem:[#allocation40 + $0x1c8] sm:$0xff]
    %v2454 = vld [vmem:[#allocation40 + $0x1e0] sm:$0xff]
    %v2455 = vld [vmem:[#allocation40 + $0x1f8] sm:$0xff]
    %v2456 = vld [vmem:[#allocation40 + $0x210] sm:$0xff]
    %v2457 = vld [vmem:[#allocation40 + $0x228] sm:$0xff]
    %v2458 = vld [vmem:[#allocation40 + $0x240] sm:$0xff]
    %v2459 = vld [vmem:[#allocation40 + $0x258] sm:$0xff]
    %v2460 = vld [vmem:[#allocation40 + $0x270] sm:$0xff]
    %v2461 = vld [vmem:[#allocation40 + $0x288] sm:$0xff]
    %v2462 = vld [vmem:[#allocation40 + $0x2a0] sm:$0xff]
    %v2463 = vld [vmem:[#allocation40 + $0x2b8] sm:$0xff]
    %v2464 = vld [vmem:[#allocation40 + $0x2d0] sm:$0xff]
    %v2465 = vld [vmem:[#allocation40 + $0x2e8] sm:$0xff]
    %v2466 = vpack.c.bf16 %v2435, %v2434
    %v2467 = vpack.c.bf16 %v2437, %v2436
    %v2468 = vpack.c.bf16 %v2439, %v2438
    %v2469 = vpack.c.bf16 %v2441, %v2440
    %v2470 = vpack.c.bf16 %v2443, %v2442
    %v2471 = vpack.c.bf16 %v2445, %v2444
    %v2472 = vpack.c.bf16 %v2447, %v2446
    %v2473 = vpack.c.bf16 %v2449, %v2448
    %v2474 = vpack.c.bf16 %v2451, %v2450
    %v2475 = vpack.c.bf16 %v2453, %v2452
    %v2476 = vpack.c.bf16 %v2455, %v2454
    %v2477 = vpack.c.bf16 %v2457, %v2456
    %v2478 = vpack.c.bf16 %v2459, %v2458
    %v2479 = vpack.c.bf16 %v2461, %v2460
    %v2480 = vpack.c.bf16 %v2463, %v2462
    %v2481 = vpack.c.bf16 %v2465, %v2464
    %v2498 = vunpack.c.l.b16 %v2378
    %v2499 = vunpack.c.l.b16 %v2379
    %v2500 = vunpack.c.l.b16 %v2380
    %v2501 = vunpack.c.l.b16 %v2381
    %v2502 = vunpack.c.l.b16 %v2382
    %v2503 = vunpack.c.l.b16 %v2383
    %v2504 = vunpack.c.l.b16 %v2384
    %v2505 = vunpack.c.l.b16 %v2385
    %v2506 = vunpack.c.l.b16 %v2386
    %v2507 = vunpack.c.l.b16 %v2387
    %v2508 = vunpack.c.l.b16 %v2388
    %v2509 = vunpack.c.l.b16 %v2389
    %v2510 = vunpack.c.l.b16 %v2390
    %v2511 = vunpack.c.l.b16 %v2391
    %v2512 = vunpack.c.l.b16 %v2392
    %v2513 = vunpack.c.l.b16 %v2393
    %v2514 = vpack.c.b16 %v2499, %v2498
    %v2515 = vpack.c.b16 %v2501, %v2500
    %v2516 = vpack.c.b16 %v2503, %v2502
    %v2517 = vpack.c.b16 %v2505, %v2504
    %v2518 = vpack.c.b16 %v2507, %v2506
    %v2519 = vpack.c.b16 %v2509, %v2508
    %v2520 = vpack.c.b16 %v2511, %v2510
    %v2521 = vpack.c.b16 %v2513, %v2512
    %2530 = vmatpush.bf16.msra.mxu0 %v2521
    %2531 = vmatpush.bf16.msra.mxu0 %v2520
    %2532 = vmatpush.bf16.msra.mxu0 %v2519
    %2533 = vmatpush.bf16.msra.mxu0 %v2518
    %2534 = vmatpush.bf16.msra.mxu0 %v2517
    %2535 = vmatpush.bf16.msra.mxu0 %v2516
    %2536 = vmatpush.bf16.msra.mxu0 %v2515
    %2537 = vmatpush.bf16.msra.mxu0 %v2514
    %2538 = vmatmul.bf16.gmra.mxu0 %v2426
    %v2539 = vpop.f32.mrf.mxu0
    %v2540 = vadd.f32 0.0, %v2539
    %v2541 = vpop.f32.mrf.mxu0
    %v2542 = vadd.f32 0.0, %v2541
    %2543 = vmatmul.bf16.gmra.mxu0 %v2427
    %v2544 = vpop.f32.mrf.mxu0
    %v2545 = vadd.f32 0.0, %v2544
    %v2546 = vpop.f32.mrf.mxu0
    %v2547 = vadd.f32 0.0, %v2546
    %2548 = vmatmul.bf16.gmra.mxu0 %v2428
    %v2549 = vpop.f32.mrf.mxu0
    %v2550 = vadd.f32 0.0, %v2549
    %v2551 = vpop.f32.mrf.mxu0
    %v2552 = vadd.f32 0.0, %v2551
    %2553 = vmatmul.bf16.gmra.mxu0 %v2429
    %v2554 = vpop.f32.mrf.mxu0
    %v2555 = vadd.f32 0.0, %v2554
    %v2556 = vpop.f32.mrf.mxu0
    %v2557 = vadd.f32 0.0, %v2556
    %2558 = vmatmul.bf16.gmra.mxu0 %v2430
    %v2559 = vpop.f32.mrf.mxu0
    %v2560 = vadd.f32 0.0, %v2559
    %v2561 = vpop.f32.mrf.mxu0
    %v2562 = vadd.f32 0.0, %v2561
    %2563 = vmatmul.bf16.gmra.mxu0 %v2431
    %v2564 = vpop.f32.mrf.mxu0
    %v2565 = vadd.f32 0.0, %v2564
    %v2566 = vpop.f32.mrf.mxu0
    %v2567 = vadd.f32 0.0, %v2566
    %2568 = vmatmul.bf16.gmra.mxu0 %v2432
    %v2569 = vpop.f32.mrf.mxu0
    %v2570 = vadd.f32 0.0, %v2569
    %v2571 = vpop.f32.mrf.mxu0
    %v2572 = vadd.f32 0.0, %v2571
    %2573 = vmatmul.bf16.gmra.mxu0 %v2433
    %v2574 = vpop.f32.mrf.mxu0
    %v2575 = vadd.f32 0.0, %v2574
    %v2576 = vpop.f32.mrf.mxu0
    %v2577 = vadd.f32 0.0, %v2576
    %2578 = vdwg.mxu0
    %v2595 = vunpack.c.l.b16 %v2394
    %v2596 = vunpack.c.l.b16 %v2395
    %v2597 = vunpack.c.l.b16 %v2396
    %v2598 = vunpack.c.l.b16 %v2397
    %v2599 = vunpack.c.l.b16 %v2398
    %v2600 = vunpack.c.l.b16 %v2399
    %v2601 = vunpack.c.l.b16 %v2400
    %v2602 = vunpack.c.l.b16 %v2401
    %v2603 = vunpack.c.l.b16 %v2402
    %v2604 = vunpack.c.l.b16 %v2403
    %v2605 = vunpack.c.l.b16 %v2404
    %v2606 = vunpack.c.l.b16 %v2405
    %v2607 = vunpack.c.l.b16 %v2406
    %v2608 = vunpack.c.l.b16 %v2407
    %v2609 = vunpack.c.l.b16 %v2408
    %v2610 = vunpack.c.l.b16 %v2409
    %v2611 = vpack.c.b16 %v2596, %v2595
    %v2612 = vpack.c.b16 %v2598, %v2597
    %v2613 = vpack.c.b16 %v2600, %v2599
    %v2614 = vpack.c.b16 %v2602, %v2601
    %v2615 = vpack.c.b16 %v2604, %v2603
    %v2616 = vpack.c.b16 %v2606, %v2605
    %v2617 = vpack.c.b16 %v2608, %v2607
    %v2618 = vpack.c.b16 %v2610, %v2609
    %2627 = vmatpush.bf16.msra.mxu0 %v2618
    %2628 = vmatpush.bf16.msra.mxu0 %v2617
    %2629 = vmatpush.bf16.msra.mxu0 %v2616
    %2630 = vmatpush.bf16.msra.mxu0 %v2615
    %2631 = vmatpush.bf16.msra.mxu0 %v2614
    %2632 = vmatpush.bf16.msra.mxu0 %v2613
    %2633 = vmatpush.bf16.msra.mxu0 %v2612
    %2634 = vmatpush.bf16.msra.mxu0 %v2611
    %2635 = vmatmul.bf16.gmra.mxu0 %v2466
    %v2636 = vpop.f32.mrf.mxu0
    %v2637 = vadd.f32 0.0, %v2636
    %v2638 = vpop.f32.mrf.mxu0
    %v2639 = vadd.f32 0.0, %v2638
    %2640 = vmatmul.bf16.gmra.mxu0 %v2467
    %v2641 = vpop.f32.mrf.mxu0
    %v2642 = vadd.f32 0.0, %v2641
    %v2643 = vpop.f32.mrf.mxu0
    %v2644 = vadd.f32 0.0, %v2643
    %2645 = vmatmul.bf16.gmra.mxu0 %v2468
    %v2646 = vpop.f32.mrf.mxu0
    %v2647 = vadd.f32 0.0, %v2646
    %v2648 = vpop.f32.mrf.mxu0
    %v2649 = vadd.f32 0.0, %v2648
    %2650 = vmatmul.bf16.gmra.mxu0 %v2469
    %v2651 = vpop.f32.mrf.mxu0
    %v2652 = vadd.f32 0.0, %v2651
    %v2653 = vpop.f32.mrf.mxu0
    %v2654 = vadd.f32 0.0, %v2653
    %2655 = vmatmul.bf16.gmra.mxu0 %v2470
    %v2656 = vpop.f32.mrf.mxu0
    %v2657 = vadd.f32 0.0, %v2656
    %v2658 = vpop.f32.mrf.mxu0
    %v2659 = vadd.f32 0.0, %v2658
    %2660 = vmatmul.bf16.gmra.mxu0 %v2471
    %v2661 = vpop.f32.mrf.mxu0
    %v2662 = vadd.f32 0.0, %v2661
    %v2663 = vpop.f32.mrf.mxu0
    %v2664 = vadd.f32 0.0, %v2663
    %2665 = vmatmul.bf16.gmra.mxu0 %v2472
    %v2666 = vpop.f32.mrf.mxu0
    %v2667 = vadd.f32 0.0, %v2666
    %v2668 = vpop.f32.mrf.mxu0
    %v2669 = vadd.f32 0.0, %v2668
    %2670 = vmatmul.bf16.gmra.mxu0 %v2473
    %v2671 = vpop.f32.mrf.mxu0
    %v2672 = vadd.f32 0.0, %v2671
    %v2673 = vpop.f32.mrf.mxu0
    %v2674 = vadd.f32 0.0, %v2673
    %2675 = vmatmul.bf16.gmra.mxu0 %v2474
    %v2676 = vpop.f32.mrf.mxu0
    %v2677 = vadd.f32 0.0, %v2676
    %v2678 = vpop.f32.mrf.mxu0
    %v2679 = vadd.f32 0.0, %v2678
    %2680 = vmatmul.bf16.gmra.mxu0 %v2475
    %v2681 = vpop.f32.mrf.mxu0
    %v2682 = vadd.f32 0.0, %v2681
    %v2683 = vpop.f32.mrf.mxu0
    %v2684 = vadd.f32 0.0, %v2683
    %2685 = vmatmul.bf16.gmra.mxu0 %v2476
    %v2686 = vpop.f32.mrf.mxu0
    %v2687 = vadd.f32 0.0, %v2686
    %v2688 = vpop.f32.mrf.mxu0
    %v2689 = vadd.f32 0.0, %v2688
    %2690 = vmatmul.bf16.gmra.mxu0 %v2477
    %v2691 = vpop.f32.mrf.mxu0
    %v2692 = vadd.f32 0.0, %v2691
    %v2693 = vpop.f32.mrf.mxu0
    %v2694 = vadd.f32 0.0, %v2693
    %2695 = vmatmul.bf16.gmra.mxu0 %v2478
    %v2696 = vpop.f32.mrf.mxu0
    %v2697 = vadd.f32 0.0, %v2696
    %v2698 = vpop.f32.mrf.mxu0
    %v2699 = vadd.f32 0.0, %v2698
    %2700 = vmatmul.bf16.gmra.mxu0 %v2479
    %v2701 = vpop.f32.mrf.mxu0
    %v2702 = vadd.f32 0.0, %v2701
    %v2703 = vpop.f32.mrf.mxu0
    %v2704 = vadd.f32 0.0, %v2703
    %2705 = vmatmul.bf16.gmra.mxu0 %v2480
    %v2706 = vpop.f32.mrf.mxu0
    %v2707 = vadd.f32 0.0, %v2706
    %v2708 = vpop.f32.mrf.mxu0
    %v2709 = vadd.f32 0.0, %v2708
    %2710 = vmatmul.bf16.gmra.mxu0 %v2481
    %v2711 = vpop.f32.mrf.mxu0
    %v2712 = vadd.f32 0.0, %v2711
    %v2713 = vpop.f32.mrf.mxu0
    %v2714 = vadd.f32 0.0, %v2713
    %2715 = vdwg.mxu0
    %v2716 = vpack.c.bf16 %v2639, %v2637
    %v2717 = vpack.c.bf16 %v2644, %v2642
    %v2718 = vpack.c.bf16 %v2649, %v2647
    %v2719 = vpack.c.bf16 %v2654, %v2652
    %v2720 = vpack.c.bf16 %v2659, %v2657
    %v2721 = vpack.c.bf16 %v2664, %v2662
    %v2722 = vpack.c.bf16 %v2669, %v2667
    %v2723 = vpack.c.bf16 %v2674, %v2672
    %v2724 = vpack.c.bf16 %v2679, %v2677
    %v2725 = vpack.c.bf16 %v2684, %v2682
    %v2726 = vpack.c.bf16 %v2689, %v2687
    %v2727 = vpack.c.bf16 %v2694, %v2692
    %v2728 = vpack.c.bf16 %v2699, %v2697
    %v2729 = vpack.c.bf16 %v2704, %v2702
    %v2730 = vpack.c.bf16 %v2709, %v2707
    %v2731 = vpack.c.bf16 %v2714, %v2712
    %2732 = vmatpush.bf16.msra.mxu0 %v2723
    %2733 = vmatpush.bf16.msra.mxu0 %v2722
    %2734 = vmatpush.bf16.msra.mxu0 %v2721
    %2735 = vmatpush.bf16.msra.mxu0 %v2720
    %2736 = vmatpush.bf16.msra.mxu0 %v2719
    %2737 = vmatpush.bf16.msra.mxu0 %v2718
    %2738 = vmatpush.bf16.msra.mxu0 %v2717
    %2739 = vmatpush.bf16.msra.mxu0 %v2716
    %2740 = vmatmul.bf16.gmra.mxu0 %v703
    %v2741 = vpop.f32.mrf.mxu0
    %v2742 = vadd.f32 0.0, %v2741
    %v2743 = vpop.f32.mrf.mxu0
    %v2744 = vadd.f32 0.0, %v2743
    %2745 = vmatmul.bf16.gmra.mxu0 %v705
    %v2746 = vpop.f32.mrf.mxu0
    %v2747 = vadd.f32 0.0, %v2746
    %v2748 = vpop.f32.mrf.mxu0
    %v2749 = vadd.f32 0.0, %v2748
    %2750 = vmatmul.bf16.gmra.mxu0 %v707
    %v2751 = vpop.f32.mrf.mxu0
    %v2752 = vadd.f32 0.0, %v2751
    %v2753 = vpop.f32.mrf.mxu0
    %v2754 = vadd.f32 0.0, %v2753
    %2755 = vmatmul.bf16.gmra.mxu0 %v709
    %v2756 = vpop.f32.mrf.mxu0
    %v2757 = vadd.f32 0.0, %v2756
    %v2758 = vpop.f32.mrf.mxu0
    %v2759 = vadd.f32 0.0, %v2758
    %2760 = vmatmul.bf16.gmra.mxu0 %v711
    %v2761 = vpop.f32.mrf.mxu0
    %v2762 = vadd.f32 0.0, %v2761
    %v2763 = vpop.f32.mrf.mxu0
    %v2764 = vadd.f32 0.0, %v2763
    %2765 = vmatmul.bf16.gmra.mxu0 %v713
    %v2766 = vpop.f32.mrf.mxu0
    %v2767 = vadd.f32 0.0, %v2766
    %v2768 = vpop.f32.mrf.mxu0
    %v2769 = vadd.f32 0.0, %v2768
    %2770 = vmatmul.bf16.gmra.mxu0 %v715
    %v2771 = vpop.f32.mrf.mxu0
    %v2772 = vadd.f32 0.0, %v2771
    %v2773 = vpop.f32.mrf.mxu0
    %v2774 = vadd.f32 0.0, %v2773
    %2775 = vmatmul.bf16.gmra.mxu0 %v717
    %v2776 = vpop.f32.mrf.mxu0
    %v2777 = vadd.f32 0.0, %v2776
    %v2778 = vpop.f32.mrf.mxu0
    %v2779 = vadd.f32 0.0, %v2778
    %2780 = vdwg.mxu0
    %2781 = vmatpush.bf16.msra.mxu0 %v2731
    %2782 = vmatpush.bf16.msra.mxu0 %v2730
    %2783 = vmatpush.bf16.msra.mxu0 %v2729
    %2784 = vmatpush.bf16.msra.mxu0 %v2728
    %2785 = vmatpush.bf16.msra.mxu0 %v2727
    %2786 = vmatpush.bf16.msra.mxu0 %v2726
    %2787 = vmatpush.bf16.msra.mxu0 %v2725
    %2788 = vmatpush.bf16.msra.mxu0 %v2724
    %2789 = vmatmul.bf16.gmra.mxu0 %v704
    %v2790 = vpop.f32.mrf.mxu0
    %v2791 = vadd.f32 %v2742, %v2790
    %v2792 = vpop.f32.mrf.mxu0
    %v2793 = vadd.f32 %v2744, %v2792
    %2794 = vmatmul.bf16.gmra.mxu0 %v706
    %v2795 = vpop.f32.mrf.mxu0
    %v2796 = vadd.f32 %v2747, %v2795
    %v2797 = vpop.f32.mrf.mxu0
    %v2798 = vadd.f32 %v2749, %v2797
    %2799 = vmatmul.bf16.gmra.mxu0 %v708
    %v2800 = vpop.f32.mrf.mxu0
    %v2801 = vadd.f32 %v2752, %v2800
    %v2802 = vpop.f32.mrf.mxu0
    %v2803 = vadd.f32 %v2754, %v2802
    %2804 = vmatmul.bf16.gmra.mxu0 %v710
    %v2805 = vpop.f32.mrf.mxu0
    %v2806 = vadd.f32 %v2757, %v2805
    %v2807 = vpop.f32.mrf.mxu0
    %v2808 = vadd.f32 %v2759, %v2807
    %2809 = vmatmul.bf16.gmra.mxu0 %v712
    %v2810 = vpop.f32.mrf.mxu0
    %v2811 = vadd.f32 %v2762, %v2810
    %v2812 = vpop.f32.mrf.mxu0
    %v2813 = vadd.f32 %v2764, %v2812
    %2814 = vmatmul.bf16.gmra.mxu0 %v714
    %v2815 = vpop.f32.mrf.mxu0
    %v2816 = vadd.f32 %v2767, %v2815
    %v2817 = vpop.f32.mrf.mxu0
    %v2818 = vadd.f32 %v2769, %v2817
    %2819 = vmatmul.bf16.gmra.mxu0 %v716
    %v2820 = vpop.f32.mrf.mxu0
    %v2821 = vadd.f32 %v2772, %v2820
    %v2822 = vpop.f32.mrf.mxu0
    %v2823 = vadd.f32 %v2774, %v2822
    %2824 = vmatmul.bf16.gmra.mxu0 %v718
    %v2825 = vpop.f32.mrf.mxu0
    %v2826 = vadd.f32 %v2777, %v2825
    %v2827 = vpop.f32.mrf.mxu0
    %v2828 = vadd.f32 %v2779, %v2827
    %2829 = vdwg.mxu0
    %2831 = vset.pattern.permute.xlu0 0
    %2832 = vperm.xlu0 %2831, %v639
    %v2833 = vpop.permute.xlu0 %2832
    %2836 = vset.pattern.permute.xlu0 0
    %2837 = vperm.xlu0 %2836, %v640
    %v2838 = vpop.permute.xlu0 %2837
    %2841 = vset.pattern.permute.xlu0 0
    %2842 = vperm.xlu0 %2841, %v641
    %v2843 = vpop.permute.xlu0 %2842
    %2846 = vset.pattern.permute.xlu0 0
    %2847 = vperm.xlu0 %2846, %v642
    %v2848 = vpop.permute.xlu0 %2847
    %2851 = vset.pattern.permute.xlu0 0
    %2852 = vperm.xlu0 %2851, %v643
    %v2853 = vpop.permute.xlu0 %2852
    %2856 = vset.pattern.permute.xlu0 0
    %2857 = vperm.xlu0 %2856, %v644
    %v2858 = vpop.permute.xlu0 %2857
    %2861 = vset.pattern.permute.xlu0 0
    %2862 = vperm.xlu0 %2861, %v645
    %v2863 = vpop.permute.xlu0 %2862
    %2866 = vset.pattern.permute.xlu0 0
    %2867 = vperm.xlu0 %2866, %v646
    %v2868 = vpop.permute.xlu0 %2867
    %2871 = vset.pattern.permute.xlu0 0
    %2872 = vperm.xlu0 %2871, %v647
    %v2873 = vpop.permute.xlu0 %2872
    %2876 = vset.pattern.permute.xlu0 0
    %2877 = vperm.xlu0 %2876, %v648
    %v2878 = vpop.permute.xlu0 %2877
    %2881 = vset.pattern.permute.xlu0 0
    %2882 = vperm.xlu0 %2881, %v649
    %v2883 = vpop.permute.xlu0 %2882
    %2886 = vset.pattern.permute.xlu0 0
    %2887 = vperm.xlu0 %2886, %v650
    %v2888 = vpop.permute.xlu0 %2887
    %2891 = vset.pattern.permute.xlu0 0
    %2892 = vperm.xlu0 %2891, %v651
    %v2893 = vpop.permute.xlu0 %2892
    %2896 = vset.pattern.permute.xlu0 0
    %2897 = vperm.xlu0 %2896, %v652
    %v2898 = vpop.permute.xlu0 %2897
    %2901 = vset.pattern.permute.xlu0 0
    %2902 = vperm.xlu0 %2901, %v653
    %v2903 = vpop.permute.xlu0 %2902
    %2906 = vset.pattern.permute.xlu0 0
    %2907 = vperm.xlu0 %2906, %v654
    %v2908 = vpop.permute.xlu0 %2907
    %v2910 = vmul.f32 %v2791, %v2833
    %v2911 = vmul.f32 %v2793, %v2838
    %v2912 = vmul.f32 %v2796, %v2843
    %v2913 = vmul.f32 %v2798, %v2848
    %v2914 = vmul.f32 %v2801, %v2853
    %v2915 = vmul.f32 %v2803, %v2858
    %v2916 = vmul.f32 %v2806, %v2863
    %v2917 = vmul.f32 %v2808, %v2868
    %v2918 = vmul.f32 %v2811, %v2873
    %v2919 = vmul.f32 %v2813, %v2878
    %v2920 = vmul.f32 %v2816, %v2883
    %v2921 = vmul.f32 %v2818, %v2888
    %v2922 = vmul.f32 %v2821, %v2893
    %v2923 = vmul.f32 %v2823, %v2898
    %v2924 = vmul.f32 %v2826, %v2903
    %v2925 = vmul.f32 %v2828, %v2908
    %v2926 = vpack.c.bf16 %v2542, %v2540
    %v2927 = vpack.c.bf16 %v2547, %v2545
    %v2928 = vpack.c.bf16 %v2552, %v2550
    %v2929 = vpack.c.bf16 %v2557, %v2555
    %v2930 = vpack.c.bf16 %v2562, %v2560
    %v2931 = vpack.c.bf16 %v2567, %v2565
    %v2932 = vpack.c.bf16 %v2572, %v2570
    %v2933 = vpack.c.bf16 %v2577, %v2575
    %2934 = vmatpush.bf16.msra.mxu0 %v2933
    %2935 = vmatpush.bf16.msra.mxu0 %v2932
    %2936 = vmatpush.bf16.msra.mxu0 %v2931
    %2937 = vmatpush.bf16.msra.mxu0 %v2930
    %2938 = vmatpush.bf16.msra.mxu0 %v2929
    %2939 = vmatpush.bf16.msra.mxu0 %v2928
    %2940 = vmatpush.bf16.msra.mxu0 %v2927
    %2941 = vmatpush.bf16.msra.mxu0 %v2926
    %2942 = vmatmul.bf16.gmra.mxu0 %v743
    %v2943 = vpop.f32.mrf.mxu0
    %v2944 = vadd.f32 0.0, %v2943
    %v2945 = vpop.f32.mrf.mxu0
    %v2946 = vadd.f32 0.0, %v2945
    %2947 = vmatmul.bf16.gmra.mxu0 %v745
    %v2948 = vpop.f32.mrf.mxu0
    %v2949 = vadd.f32 0.0, %v2948
    %v2950 = vpop.f32.mrf.mxu0
    %v2951 = vadd.f32 0.0, %v2950
    %2952 = vmatmul.bf16.gmra.mxu0 %v747
    %v2953 = vpop.f32.mrf.mxu0
    %v2954 = vadd.f32 0.0, %v2953
    %v2955 = vpop.f32.mrf.mxu0
    %v2956 = vadd.f32 0.0, %v2955
    %2957 = vmatmul.bf16.gmra.mxu0 %v749
    %v2958 = vpop.f32.mrf.mxu0
    %v2959 = vadd.f32 0.0, %v2958
    %v2960 = vpop.f32.mrf.mxu0
    %v2961 = vadd.f32 0.0, %v2960
    %2962 = vmatmul.bf16.gmra.mxu0 %v751
    %v2963 = vpop.f32.mrf.mxu0
    %v2964 = vadd.f32 0.0, %v2963
    %v2965 = vpop.f32.mrf.mxu0
    %v2966 = vadd.f32 0.0, %v2965
    %2967 = vmatmul.bf16.gmra.mxu0 %v753
    %v2968 = vpop.f32.mrf.mxu0
    %v2969 = vadd.f32 0.0, %v2968
    %v2970 = vpop.f32.mrf.mxu0
    %v2971 = vadd.f32 0.0, %v2970
    %2972 = vmatmul.bf16.gmra.mxu0 %v755
    %v2973 = vpop.f32.mrf.mxu0
    %v2974 = vadd.f32 0.0, %v2973
    %v2975 = vpop.f32.mrf.mxu0
    %v2976 = vadd.f32 0.0, %v2975
    %2977 = vmatmul.bf16.gmra.mxu0 %v757
    %v2978 = vpop.f32.mrf.mxu0
    %v2979 = vadd.f32 0.0, %v2978
    %v2980 = vpop.f32.mrf.mxu0
    %v2981 = vadd.f32 0.0, %v2980
    %2982 = vmatmul.bf16.gmra.mxu0 %v744
    %v2983 = vpop.f32.mrf.mxu0
    %v2984 = vadd.f32 0.0, %v2983
    %v2985 = vpop.f32.mrf.mxu0
    %v2986 = vadd.f32 0.0, %v2985
    %2987 = vmatmul.bf16.gmra.mxu0 %v746
    %v2988 = vpop.f32.mrf.mxu0
    %v2989 = vadd.f32 0.0, %v2988
    %v2990 = vpop.f32.mrf.mxu0
    %v2991 = vadd.f32 0.0, %v2990
    %2992 = vmatmul.bf16.gmra.mxu0 %v748
    %v2993 = vpop.f32.mrf.mxu0
    %v2994 = vadd.f32 0.0, %v2993
    %v2995 = vpop.f32.mrf.mxu0
    %v2996 = vadd.f32 0.0, %v2995
    %2997 = vmatmul.bf16.gmra.mxu0 %v750
    %v2998 = vpop.f32.mrf.mxu0
    %v2999 = vadd.f32 0.0, %v2998
    %v3000 = vpop.f32.mrf.mxu0
    %v3001 = vadd.f32 0.0, %v3000
    %3002 = vmatmul.bf16.gmra.mxu0 %v752
    %v3003 = vpop.f32.mrf.mxu0
    %v3004 = vadd.f32 0.0, %v3003
    %v3005 = vpop.f32.mrf.mxu0
    %v3006 = vadd.f32 0.0, %v3005
    %3007 = vmatmul.bf16.gmra.mxu0 %v754
    %v3008 = vpop.f32.mrf.mxu0
    %v3009 = vadd.f32 0.0, %v3008
    %v3010 = vpop.f32.mrf.mxu0
    %v3011 = vadd.f32 0.0, %v3010
    %3012 = vmatmul.bf16.gmra.mxu0 %v756
    %v3013 = vpop.f32.mrf.mxu0
    %v3014 = vadd.f32 0.0, %v3013
    %v3015 = vpop.f32.mrf.mxu0
    %v3016 = vadd.f32 0.0, %v3015
    %3017 = vmatmul.bf16.gmra.mxu0 %v758
    %v3018 = vpop.f32.mrf.mxu0
    %v3019 = vadd.f32 0.0, %v3018
    %v3020 = vpop.f32.mrf.mxu0
    %v3021 = vadd.f32 0.0, %v3020
    %3022 = vdwg.mxu0
    %v3023 = vmul.f32 %v2944, 0.5
    %v3024 = vmul.f32 %v2946, 0.5
    %v3025 = vmul.f32 %v2949, 0.5
    %v3026 = vmul.f32 %v2951, 0.5
    %v3027 = vmul.f32 %v2954, 0.5
    %v3028 = vmul.f32 %v2956, 0.5
    %v3029 = vmul.f32 %v2959, 0.5
    %v3030 = vmul.f32 %v2961, 0.5
    %v3031 = vmul.f32 %v2964, 0.5
    %v3032 = vmul.f32 %v2966, 0.5
    %v3033 = vmul.f32 %v2969, 0.5
    %v3034 = vmul.f32 %v2971, 0.5
    %v3035 = vmul.f32 %v2974, 0.5
    %v3036 = vmul.f32 %v2976, 0.5
    %v3037 = vmul.f32 %v2979, 0.5
    %v3038 = vmul.f32 %v2981, 0.5
    %v3039 = vmul.f32 %v2984, 0.5
    %v3040 = vmul.f32 %v2986, 0.5
    %v3041 = vmul.f32 %v2989, 0.5
    %v3042 = vmul.f32 %v2991, 0.5
    %v3043 = vmul.f32 %v2994, 0.5
    %v3044 = vmul.f32 %v2996, 0.5
    %v3045 = vmul.f32 %v2999, 0.5
    %v3046 = vmul.f32 %v3001, 0.5
    %v3047 = vmul.f32 %v3004, 0.5
    %v3048 = vmul.f32 %v3006, 0.5
    %v3049 = vmul.f32 %v3009, 0.5
    %v3050 = vmul.f32 %v3011, 0.5
    %v3051 = vmul.f32 %v3014, 0.5
    %v3052 = vmul.f32 %v3016, 0.5
    %v3053 = vmul.f32 %v3019, 0.5
    %v3054 = vmul.f32 %v3021, 0.5
    %v3055 = vadd.f32 %v2540, %v2910
    %v3056 = vadd.f32 %v2542, %v2911
    %v3057 = vadd.f32 %v2545, %v2912
    %v3058 = vadd.f32 %v2547, %v2913
    %v3059 = vadd.f32 %v2550, %v2914
    %v3060 = vadd.f32 %v2552, %v2915
    %v3061 = vadd.f32 %v2555, %v2916
    %v3062 = vadd.f32 %v2557, %v2917
    %v3063 = vadd.f32 %v2560, %v2918
    %v3064 = vadd.f32 %v2562, %v2919
    %v3065 = vadd.f32 %v2565, %v2920
    %v3066 = vadd.f32 %v2567, %v2921
    %v3067 = vadd.f32 %v2570, %v2922
    %v3068 = vadd.f32 %v2572, %v2923
    %v3069 = vadd.f32 %v2575, %v2924
    %v3070 = vadd.f32 %v2577, %v2925
    %v3071 = vmax.f32 %v3055, 0.0
    %v3072 = vmax.f32 %v3056, 0.0
    %v3073 = vmax.f32 %v3057, 0.0
    %v3074 = vmax.f32 %v3058, 0.0
    %v3075 = vmax.f32 %v3059, 0.0
    %v3076 = vmax.f32 %v3060, 0.0
    %v3077 = vmax.f32 %v3061, 0.0
    %v3078 = vmax.f32 %v3062, 0.0
    %v3079 = vmax.f32 %v3063, 0.0
    %v3080 = vmax.f32 %v3064, 0.0
    %v3081 = vmax.f32 %v3065, 0.0
    %v3082 = vmax.f32 %v3066, 0.0
    %v3083 = vmax.f32 %v3067, 0.0
    %v3084 = vmax.f32 %v3068, 0.0
    %v3085 = vmax.f32 %v3069, 0.0
    %v3086 = vmax.f32 %v3070, 0.0
    %v3087 = vadd.f32 %v2637, %v3023
    %v3088 = vadd.f32 %v2639, %v3024
    %v3089 = vadd.f32 %v2642, %v3025
    %v3090 = vadd.f32 %v2644, %v3026
    %v3091 = vadd.f32 %v2647, %v3027
    %v3092 = vadd.f32 %v2649, %v3028
    %v3093 = vadd.f32 %v2652, %v3029
    %v3094 = vadd.f32 %v2654, %v3030
    %v3095 = vadd.f32 %v2657, %v3031
    %v3096 = vadd.f32 %v2659, %v3032
    %v3097 = vadd.f32 %v2662, %v3033
    %v3098 = vadd.f32 %v2664, %v3034
    %v3099 = vadd.f32 %v2667, %v3035
    %v3100 = vadd.f32 %v2669, %v3036
    %v3101 = vadd.f32 %v2672, %v3037
    %v3102 = vadd.f32 %v2674, %v3038
    %v3103 = vadd.f32 %v2677, %v3039
    %v3104 = vadd.f32 %v2679, %v3040
    %v3105 = vadd.f32 %v2682, %v3041
    %v3106 = vadd.f32 %v2684, %v3042
    %v3107 = vadd.f32 %v2687, %v3043
    %v3108 = vadd.f32 %v2689, %v3044
    %v3109 = vadd.f32 %v2692, %v3045
    %v3110 = vadd.f32 %v2694, %v3046
    %v3111 = vadd.f32 %v2697, %v3047
    %v3112 = vadd.f32 %v2699, %v3048
    %v3113 = vadd.f32 %v2702, %v3049
    %v3114 = vadd.f32 %v2704, %v3050
    %v3115 = vadd.f32 %v2707, %v3051
    %v3116 = vadd.f32 %v2709, %v3052
    %v3117 = vadd.f32 %v2712, %v3053
    %v3118 = vadd.f32 %v2714, %v3054
    %v3119 = vmax.f32 %v3087, 0.0
    %v3120 = vmax.f32 %v3088, 0.0
    %v3121 = vmax.f32 %v3089, 0.0
    %v3122 = vmax.f32 %v3090, 0.0
    %v3123 = vmax.f32 %v3091, 0.0
    %v3124 = vmax.f32 %v3092, 0.0
    %v3125 = vmax.f32 %v3093, 0.0
    %v3126 = vmax.f32 %v3094, 0.0
    %v3127 = vmax.f32 %v3095, 0.0
    %v3128 = vmax.f32 %v3096, 0.0
    %v3129 = vmax.f32 %v3097, 0.0
    %v3130 = vmax.f32 %v3098, 0.0
    %v3131 = vmax.f32 %v3099, 0.0
    %v3132 = vmax.f32 %v3100, 0.0
    %v3133 = vmax.f32 %v3101, 0.0
    %v3134 = vmax.f32 %v3102, 0.0
    %v3135 = vmax.f32 %v3103, 0.0
    %v3136 = vmax.f32 %v3104, 0.0
    %v3137 = vmax.f32 %v3105, 0.0
    %v3138 = vmax.f32 %v3106, 0.0
    %v3139 = vmax.f32 %v3107, 0.0
    %v3140 = vmax.f32 %v3108, 0.0
    %v3141 = vmax.f32 %v3109, 0.0
    %v3142 = vmax.f32 %v3110, 0.0
    %v3143 = vmax.f32 %v3111, 0.0
    %v3144 = vmax.f32 %v3112, 0.0
    %v3145 = vmax.f32 %v3113, 0.0
    %v3146 = vmax.f32 %v3114, 0.0
    %v3147 = vmax.f32 %v3115, 0.0
    %v3148 = vmax.f32 %v3116, 0.0
    %v3149 = vmax.f32 %v3117, 0.0
    %v3150 = vmax.f32 %v3118, 0.0
    %v3151 = vld [vmem:[#allocation19] sm:$0xf]
    %v3152 = vld [vmem:[#allocation19 + $0x4] sm:$0xf]
    %v3153 = vld [vmem:[#allocation19 + $0x8] sm:$0xf]
    %v3154 = vld [vmem:[#allocation19 + $0xc] sm:$0xf]
    %v3155 = vld [vmem:[#allocation19 + $0x10] sm:$0xf]
    %v3156 = vld [vmem:[#allocation19 + $0x14] sm:$0xf]
    %v3157 = vld [vmem:[#allocation19 + $0x18] sm:$0xf]
    %v3158 = vld [vmem:[#allocation19 + $0x1c] sm:$0xf]
    %v3159 = vld [vmem:[#allocation19 + $0x20] sm:$0xf]
    %v3160 = vld [vmem:[#allocation19 + $0x24] sm:$0xf]
    %v3161 = vld [vmem:[#allocation19 + $0x28] sm:$0xf]
    %v3162 = vld [vmem:[#allocation19 + $0x2c] sm:$0xf]
    %v3163 = vld [vmem:[#allocation19 + $0x30] sm:$0xf]
    %v3164 = vld [vmem:[#allocation19 + $0x34] sm:$0xf]
    %v3165 = vld [vmem:[#allocation19 + $0x38] sm:$0xf]
    %v3166 = vld [vmem:[#allocation19 + $0x3c] sm:$0xf]
    %v3167 = vld [vmem:[#allocation20] sm:$0xf]
    %v3168 = vld [vmem:[#allocation20 + $0x4] sm:$0xf]
    %v3169 = vld [vmem:[#allocation20 + $0x8] sm:$0xf]
    %v3170 = vld [vmem:[#allocation20 + $0xc] sm:$0xf]
    %v3171 = vld [vmem:[#allocation20 + $0x10] sm:$0xf]
    %v3172 = vld [vmem:[#allocation20 + $0x14] sm:$0xf]
    %v3173 = vld [vmem:[#allocation20 + $0x18] sm:$0xf]
    %v3174 = vld [vmem:[#allocation20 + $0x1c] sm:$0xf]
    %v3175 = vld [vmem:[#allocation20 + $0x20] sm:$0xf]
    %v3176 = vld [vmem:[#allocation20 + $0x24] sm:$0xf]
    %v3177 = vld [vmem:[#allocation20 + $0x28] sm:$0xf]
    %v3178 = vld [vmem:[#allocation20 + $0x2c] sm:$0xf]
    %v3179 = vld [vmem:[#allocation20 + $0x30] sm:$0xf]
    %v3180 = vld [vmem:[#allocation20 + $0x34] sm:$0xf]
    %v3181 = vld [vmem:[#allocation20 + $0x38] sm:$0xf]
    %v3182 = vld [vmem:[#allocation20 + $0x3c] sm:$0xf]
    %v3183 = vld [vmem:[%s41] sm:$0x1]
    %v3184 = vld [vmem:[%s43] sm:$0x1]
    %v3185 = vld [vmem:[%s45] sm:$0x1]
    %v3186 = vpack.c.bf16 %v3072, %v3071
    %v3187 = vpack.c.bf16 %v3074, %v3073
    %v3188 = vpack.c.bf16 %v3076, %v3075
    %v3189 = vpack.c.bf16 %v3078, %v3077
    %v3190 = vpack.c.bf16 %v3080, %v3079
    %v3191 = vpack.c.bf16 %v3082, %v3081
    %v3192 = vpack.c.bf16 %v3084, %v3083
    %v3193 = vpack.c.bf16 %v3086, %v3085
    %3194 = vmatpush.bf16.msra.mxu0 %v3193
    %3195 = vmatpush.bf16.msra.mxu0 %v3192
    %3196 = vmatpush.bf16.msra.mxu0 %v3191
    %3197 = vmatpush.bf16.msra.mxu0 %v3190
    %3198 = vmatpush.bf16.msra.mxu0 %v3189
    %3199 = vmatpush.bf16.msra.mxu0 %v3188
    %3200 = vmatpush.bf16.msra.mxu0 %v3187
    %3201 = vmatpush.bf16.msra.mxu0 %v3186
    %3202 = vmatmul.bf16.gmra.mxu0 %v834
    %v3203 = vpop.f32.mrf.mxu0
    %v3204 = vadd.f32 0.0, %v3203
    %v3205 = vpop.f32.mrf.mxu0
    %v3206 = vadd.f32 0.0, %v3205
    %3207 = vmatmul.bf16.gmra.mxu0 %v835
    %v3208 = vpop.f32.mrf.mxu0
    %v3209 = vadd.f32 0.0, %v3208
    %v3210 = vpop.f32.mrf.mxu0
    %v3211 = vadd.f32 0.0, %v3210
    %3212 = vmatmul.bf16.gmra.mxu0 %v836
    %v3213 = vpop.f32.mrf.mxu0
    %v3214 = vadd.f32 0.0, %v3213
    %v3215 = vpop.f32.mrf.mxu0
    %v3216 = vadd.f32 0.0, %v3215
    %3217 = vmatmul.bf16.gmra.mxu0 %v837
    %v3218 = vpop.f32.mrf.mxu0
    %v3219 = vadd.f32 0.0, %v3218
    %v3220 = vpop.f32.mrf.mxu0
    %v3221 = vadd.f32 0.0, %v3220
    %3222 = vmatmul.bf16.gmra.mxu0 %v838
    %v3223 = vpop.f32.mrf.mxu0
    %v3224 = vadd.f32 0.0, %v3223
    %v3225 = vpop.f32.mrf.mxu0
    %v3226 = vadd.f32 0.0, %v3225
    %3227 = vmatmul.bf16.gmra.mxu0 %v839
    %v3228 = vpop.f32.mrf.mxu0
    %v3229 = vadd.f32 0.0, %v3228
    %v3230 = vpop.f32.mrf.mxu0
    %v3231 = vadd.f32 0.0, %v3230
    %3232 = vmatmul.bf16.gmra.mxu0 %v840
    %v3233 = vpop.f32.mrf.mxu0
    %v3234 = vadd.f32 0.0, %v3233
    %v3235 = vpop.f32.mrf.mxu0
    %v3236 = vadd.f32 0.0, %v3235
    %3237 = vmatmul.bf16.gmra.mxu0 %v841
    %v3238 = vpop.f32.mrf.mxu0
    %v3239 = vadd.f32 0.0, %v3238
    %v3240 = vpop.f32.mrf.mxu0
    %v3241 = vadd.f32 0.0, %v3240
    %3242 = vdwg.mxu0
    %v3243 = vsub.f32 %v3071, %v3204
    %v3244 = vsub.f32 %v3072, %v3206
    %v3245 = vsub.f32 %v3073, %v3209
    %v3246 = vsub.f32 %v3074, %v3211
    %v3247 = vsub.f32 %v3075, %v3214
    %v3248 = vsub.f32 %v3076, %v3216
    %v3249 = vsub.f32 %v3077, %v3219
    %v3250 = vsub.f32 %v3078, %v3221
    %v3251 = vsub.f32 %v3079, %v3224
    %v3252 = vsub.f32 %v3080, %v3226
    %v3253 = vsub.f32 %v3081, %v3229
    %v3254 = vsub.f32 %v3082, %v3231
    %v3255 = vsub.f32 %v3083, %v3234
    %v3256 = vsub.f32 %v3084, %v3236
    %v3257 = vsub.f32 %v3085, %v3239
    %v3258 = vsub.f32 %v3086, %v3241
    %v3259 = vpack.c.bf16 %v3244, %v3243
    %v3260 = vpack.c.bf16 %v3246, %v3245
    %v3261 = vpack.c.bf16 %v3248, %v3247
    %v3262 = vpack.c.bf16 %v3250, %v3249
    %v3263 = vpack.c.bf16 %v3252, %v3251
    %v3264 = vpack.c.bf16 %v3254, %v3253
    %v3265 = vpack.c.bf16 %v3256, %v3255
    %v3266 = vpack.c.bf16 %v3258, %v3257
    %v3283 = vunpack.c.l.b16 %v3167
    %v3284 = vunpack.c.l.b16 %v3168
    %v3285 = vunpack.c.l.b16 %v3169
    %v3286 = vunpack.c.l.b16 %v3170
    %v3287 = vunpack.c.l.b16 %v3171
    %v3288 = vunpack.c.l.b16 %v3172
    %v3289 = vunpack.c.l.b16 %v3173
    %v3290 = vunpack.c.l.b16 %v3174
    %v3291 = vunpack.c.l.b16 %v3175
    %v3292 = vunpack.c.l.b16 %v3176
    %v3293 = vunpack.c.l.b16 %v3177
    %v3294 = vunpack.c.l.b16 %v3178
    %v3295 = vunpack.c.l.b16 %v3179
    %v3296 = vunpack.c.l.b16 %v3180
    %v3297 = vunpack.c.l.b16 %v3181
    %v3298 = vunpack.c.l.b16 %v3182
    %v3299 = vpack.c.b16 %v3284, %v3283
    %v3300 = vpack.c.b16 %v3286, %v3285
    %v3301 = vpack.c.b16 %v3288, %v3287
    %v3302 = vpack.c.b16 %v3290, %v3289
    %v3303 = vpack.c.b16 %v3292, %v3291
    %v3304 = vpack.c.b16 %v3294, %v3293
    %v3305 = vpack.c.b16 %v3296, %v3295
    %v3306 = vpack.c.b16 %v3298, %v3297
    %3315 = vmatpush.bf16.msra.mxu0 %v3306
    %3316 = vmatpush.bf16.msra.mxu0 %v3305
    %3317 = vmatpush.bf16.msra.mxu0 %v3304
    %3318 = vmatpush.bf16.msra.mxu0 %v3303
    %3319 = vmatpush.bf16.msra.mxu0 %v3302
    %3320 = vmatpush.bf16.msra.mxu0 %v3301
    %3321 = vmatpush.bf16.msra.mxu0 %v3300
    %3322 = vmatpush.bf16.msra.mxu0 %v3299
    %3323 = vmatmul.bf16.gmra.mxu0 %v3259
    %v3324 = vpop.f32.mrf.mxu0
    %v3325 = vadd.f32 0.0, %v3324
    %v3326 = vpop.f32.mrf.mxu0
    %v3327 = vadd.f32 0.0, %v3326
    %3328 = vmatmul.bf16.gmra.mxu0 %v3260
    %v3329 = vpop.f32.mrf.mxu0
    %v3330 = vadd.f32 0.0, %v3329
    %v3331 = vpop.f32.mrf.mxu0
    %v3332 = vadd.f32 0.0, %v3331
    %3333 = vmatmul.bf16.gmra.mxu0 %v3261
    %v3334 = vpop.f32.mrf.mxu0
    %v3335 = vadd.f32 0.0, %v3334
    %v3336 = vpop.f32.mrf.mxu0
    %v3337 = vadd.f32 0.0, %v3336
    %3338 = vmatmul.bf16.gmra.mxu0 %v3262
    %v3339 = vpop.f32.mrf.mxu0
    %v3340 = vadd.f32 0.0, %v3339
    %v3341 = vpop.f32.mrf.mxu0
    %v3342 = vadd.f32 0.0, %v3341
    %3343 = vmatmul.bf16.gmra.mxu0 %v3263
    %v3344 = vpop.f32.mrf.mxu0
    %v3345 = vadd.f32 0.0, %v3344
    %v3346 = vpop.f32.mrf.mxu0
    %v3347 = vadd.f32 0.0, %v3346
    %3348 = vmatmul.bf16.gmra.mxu0 %v3264
    %v3349 = vpop.f32.mrf.mxu0
    %v3350 = vadd.f32 0.0, %v3349
    %v3351 = vpop.f32.mrf.mxu0
    %v3352 = vadd.f32 0.0, %v3351
    %3353 = vmatmul.bf16.gmra.mxu0 %v3265
    %v3354 = vpop.f32.mrf.mxu0
    %v3355 = vadd.f32 0.0, %v3354
    %v3356 = vpop.f32.mrf.mxu0
    %v3357 = vadd.f32 0.0, %v3356
    %3358 = vmatmul.bf16.gmra.mxu0 %v3266
    %v3359 = vpop.f32.mrf.mxu0
    %v3360 = vadd.f32 0.0, %v3359
    %v3361 = vpop.f32.mrf.mxu0
    %v3362 = vadd.f32 0.0, %v3361
    %3363 = vdwg.mxu0
    %v3380 = vunpack.c.l.b16 %v3151
    %v3381 = vunpack.c.l.b16 %v3152
    %v3382 = vunpack.c.l.b16 %v3153
    %v3383 = vunpack.c.l.b16 %v3154
    %v3384 = vunpack.c.l.b16 %v3155
    %v3385 = vunpack.c.l.b16 %v3156
    %v3386 = vunpack.c.l.b16 %v3157
    %v3387 = vunpack.c.l.b16 %v3158
    %v3388 = vunpack.c.l.b16 %v3159
    %v3389 = vunpack.c.l.b16 %v3160
    %v3390 = vunpack.c.l.b16 %v3161
    %v3391 = vunpack.c.l.b16 %v3162
    %v3392 = vunpack.c.l.b16 %v3163
    %v3393 = vunpack.c.l.b16 %v3164
    %v3394 = vunpack.c.l.b16 %v3165
    %v3395 = vunpack.c.l.b16 %v3166
    %v3396 = vpack.c.b16 %v3381, %v3380
    %v3397 = vpack.c.b16 %v3383, %v3382
    %v3398 = vpack.c.b16 %v3385, %v3384
    %v3399 = vpack.c.b16 %v3387, %v3386
    %v3400 = vpack.c.b16 %v3389, %v3388
    %v3401 = vpack.c.b16 %v3391, %v3390
    %v3402 = vpack.c.b16 %v3393, %v3392
    %v3403 = vpack.c.b16 %v3395, %v3394
    %3412 = vmatpush.bf16.msra.mxu0 %v3403
    %3413 = vmatpush.bf16.msra.mxu0 %v3402
    %3414 = vmatpush.bf16.msra.mxu0 %v3401
    %3415 = vmatpush.bf16.msra.mxu0 %v3400
    %3416 = vmatpush.bf16.msra.mxu0 %v3399
    %3417 = vmatpush.bf16.msra.mxu0 %v3398
    %3418 = vmatpush.bf16.msra.mxu0 %v3397
    %3419 = vmatpush.bf16.msra.mxu0 %v3396
    %3420 = vmatmul.bf16.gmra.mxu0 %v3186
    %v3421 = vpop.f32.mrf.mxu0
    %v3422 = vadd.f32 %v3325, %v3421
    %v3423 = vpop.f32.mrf.mxu0
    %v3424 = vadd.f32 %v3327, %v3423
    %3425 = vmatmul.bf16.gmra.mxu0 %v3187
    %v3426 = vpop.f32.mrf.mxu0
    %v3427 = vadd.f32 %v3330, %v3426
    %v3428 = vpop.f32.mrf.mxu0
    %v3429 = vadd.f32 %v3332, %v3428
    %3430 = vmatmul.bf16.gmra.mxu0 %v3188
    %v3431 = vpop.f32.mrf.mxu0
    %v3432 = vadd.f32 %v3335, %v3431
    %v3433 = vpop.f32.mrf.mxu0
    %v3434 = vadd.f32 %v3337, %v3433
    %3435 = vmatmul.bf16.gmra.mxu0 %v3189
    %v3436 = vpop.f32.mrf.mxu0
    %v3437 = vadd.f32 %v3340, %v3436
    %v3438 = vpop.f32.mrf.mxu0
    %v3439 = vadd.f32 %v3342, %v3438
    %3440 = vmatmul.bf16.gmra.mxu0 %v3190
    %v3441 = vpop.f32.mrf.mxu0
    %v3442 = vadd.f32 %v3345, %v3441
    %v3443 = vpop.f32.mrf.mxu0
    %v3444 = vadd.f32 %v3347, %v3443
    %3445 = vmatmul.bf16.gmra.mxu0 %v3191
    %v3446 = vpop.f32.mrf.mxu0
    %v3447 = vadd.f32 %v3350, %v3446
    %v3448 = vpop.f32.mrf.mxu0
    %v3449 = vadd.f32 %v3352, %v3448
    %3450 = vmatmul.bf16.gmra.mxu0 %v3192
    %v3451 = vpop.f32.mrf.mxu0
    %v3452 = vadd.f32 %v3355, %v3451
    %v3453 = vpop.f32.mrf.mxu0
    %v3454 = vadd.f32 %v3357, %v3453
    %3455 = vmatmul.bf16.gmra.mxu0 %v3193
    %v3456 = vpop.f32.mrf.mxu0
    %v3457 = vadd.f32 %v3360, %v3456
    %v3458 = vpop.f32.mrf.mxu0
    %v3459 = vadd.f32 %v3362, %v3458
    %3460 = vdwg.mxu0
    %v3462 = vperm.slane %v3183, 0
    %v3464 = vadd.f32 %v3422, %v3462
    %v3465 = vadd.f32 %v3424, %v3462
    %v3466 = vadd.f32 %v3427, %v3462
    %v3467 = vadd.f32 %v3429, %v3462
    %v3468 = vadd.f32 %v3432, %v3462
    %v3469 = vadd.f32 %v3434, %v3462
    %v3470 = vadd.f32 %v3437, %v3462
    %v3471 = vadd.f32 %v3439, %v3462
    %v3472 = vadd.f32 %v3442, %v3462
    %v3473 = vadd.f32 %v3444, %v3462
    %v3474 = vadd.f32 %v3447, %v3462
    %v3475 = vadd.f32 %v3449, %v3462
    %v3476 = vadd.f32 %v3452, %v3462
    %v3477 = vadd.f32 %v3454, %v3462
    %v3478 = vadd.f32 %v3457, %v3462
    %v3479 = vadd.f32 %v3459, %v3462
    %v3480 = vadd.f32 %v3464, %v3465
    %v3481 = vadd.f32 %v3480, %v3466
    %v3482 = vadd.f32 %v3481, %v3467
    %v3483 = vadd.f32 %v3482, %v3468
    %v3484 = vadd.f32 %v3483, %v3469
    %v3485 = vadd.f32 %v3484, %v3470
    %v3486 = vadd.f32 %v3485, %v3471
    %v3487 = vadd.f32 %v3486, %v3472
    %v3488 = vadd.f32 %v3487, %v3473
    %v3489 = vadd.f32 %v3488, %v3474
    %v3490 = vadd.f32 %v3489, %v3475
    %v3491 = vadd.f32 %v3490, %v3476
    %v3492 = vadd.f32 %v3491, %v3477
    %v3493 = vadd.f32 %v3492, %v3478
    %v3494 = vadd.f32 %v3493, %v3479
    %v3495 = vrot.slane %v3494, 4
    %v3496 = vadd.f32 %v3494, %v3495
    %v3497 = vrot.slane %v3496, 2
    %v3498 = vadd.f32 %v3496, %v3497
    %v3499 = vrot.slane %v3498, 1
    %v3500 = vadd.f32 %v3498, %v3499
    %v3501 = vmul.f32 %v3500, 0.0078125
    %v3502 = vmul.f32 %v3464, %v3464
    %v3503 = vmul.f32 %v3465, %v3465
    %v3504 = vmul.f32 %v3466, %v3466
    %v3505 = vmul.f32 %v3467, %v3467
    %v3506 = vmul.f32 %v3468, %v3468
    %v3507 = vmul.f32 %v3469, %v3469
    %v3508 = vmul.f32 %v3470, %v3470
    %v3509 = vmul.f32 %v3471, %v3471
    %v3510 = vmul.f32 %v3472, %v3472
    %v3511 = vmul.f32 %v3473, %v3473
    %v3512 = vmul.f32 %v3474, %v3474
    %v3513 = vmul.f32 %v3475, %v3475
    %v3514 = vmul.f32 %v3476, %v3476
    %v3515 = vmul.f32 %v3477, %v3477
    %v3516 = vmul.f32 %v3478, %v3478
    %v3517 = vmul.f32 %v3479, %v3479
    %v3518 = vadd.f32 %v3502, %v3503
    %v3519 = vadd.f32 %v3518, %v3504
    %v3520 = vadd.f32 %v3519, %v3505
    %v3521 = vadd.f32 %v3520, %v3506
    %v3522 = vadd.f32 %v3521, %v3507
    %v3523 = vadd.f32 %v3522, %v3508
    %v3524 = vadd.f32 %v3523, %v3509
    %v3525 = vadd.f32 %v3524, %v3510
    %v3526 = vadd.f32 %v3525, %v3511
    %v3527 = vadd.f32 %v3526, %v3512
    %v3528 = vadd.f32 %v3527, %v3513
    %v3529 = vadd.f32 %v3528, %v3514
    %v3530 = vadd.f32 %v3529, %v3515
    %v3531 = vadd.f32 %v3530, %v3516
    %v3532 = vadd.f32 %v3531, %v3517
    %v3533 = vrot.slane %v3532, 4
    %v3534 = vadd.f32 %v3532, %v3533
    %v3535 = vrot.slane %v3534, 2
    %v3536 = vadd.f32 %v3534, %v3535
    %v3537 = vrot.slane %v3536, 1
    %v3538 = vadd.f32 %v3536, %v3537
    %v3539 = vmul.f32 %v3538, 0.0078125
    %v3540 = vmul.f32 %v3501, %v3501
    %v3541 = vsub.f32 %v3539, %v3540
    %v3542 = vmax.f32 %v3541, 0.0
    %v3543 = vsub.f32 %v3464, %v3501
    %v3544 = vsub.f32 %v3465, %v3501
    %v3545 = vsub.f32 %v3466, %v3501
    %v3546 = vsub.f32 %v3467, %v3501
    %v3547 = vsub.f32 %v3468, %v3501
    %v3548 = vsub.f32 %v3469, %v3501
    %v3549 = vsub.f32 %v3470, %v3501
    %v3550 = vsub.f32 %v3471, %v3501
    %v3551 = vsub.f32 %v3472, %v3501
    %v3552 = vsub.f32 %v3473, %v3501
    %v3553 = vsub.f32 %v3474, %v3501
    %v3554 = vsub.f32 %v3475, %v3501
    %v3555 = vsub.f32 %v3476, %v3501
    %v3556 = vsub.f32 %v3477, %v3501
    %v3557 = vsub.f32 %v3478, %v3501
    %v3558 = vsub.f32 %v3479, %v3501
    %v3559 = vadd.f32 %v3542, 1e-05
    %v3560 = vrsqrt.pop %v3559
    %v3561 = vmul.f32 %v3560, %v3559
    %v3562 = vmul.f32 %v3561, %v3560
    %v3563 = vmul.f32 0.5, %v3562
    %v3564 = vsub.f32 1.5, %v3563
    %v3565 = vmul.f32 %v3560, %v3564
    %vm3566 = vweird.f32 %v3559
    %vm3567 = vweird.f32 %v3560
    %vm3568 = vmor %vm3566, %vm3567
    %v3569 = vsel %vm3568, %v3560, %v3565
    %v3570 = vmul.f32 %v3543, %v3569
    %v3571 = vmul.f32 %v3544, %v3569
    %v3572 = vmul.f32 %v3545, %v3569
    %v3573 = vmul.f32 %v3546, %v3569
    %v3574 = vmul.f32 %v3547, %v3569
    %v3575 = vmul.f32 %v3548, %v3569
    %v3576 = vmul.f32 %v3549, %v3569
    %v3577 = vmul.f32 %v3550, %v3569
    %v3578 = vmul.f32 %v3551, %v3569
    %v3579 = vmul.f32 %v3552, %v3569
    %v3580 = vmul.f32 %v3553, %v3569
    %v3581 = vmul.f32 %v3554, %v3569
    %v3582 = vmul.f32 %v3555, %v3569
    %v3583 = vmul.f32 %v3556, %v3569
    %v3584 = vmul.f32 %v3557, %v3569
    %v3585 = vmul.f32 %v3558, %v3569
    %v3587 = vperm.slane %v3184, 0
    %v3589 = vmul.f32 %v3570, %v3587
    %v3590 = vmul.f32 %v3571, %v3587
    %v3591 = vmul.f32 %v3572, %v3587
    %v3592 = vmul.f32 %v3573, %v3587
    %v3593 = vmul.f32 %v3574, %v3587
    %v3594 = vmul.f32 %v3575, %v3587
    %v3595 = vmul.f32 %v3576, %v3587
    %v3596 = vmul.f32 %v3577, %v3587
    %v3597 = vmul.f32 %v3578, %v3587
    %v3598 = vmul.f32 %v3579, %v3587
    %v3599 = vmul.f32 %v3580, %v3587
    %v3600 = vmul.f32 %v3581, %v3587
    %v3601 = vmul.f32 %v3582, %v3587
    %v3602 = vmul.f32 %v3583, %v3587
    %v3603 = vmul.f32 %v3584, %v3587
    %v3604 = vmul.f32 %v3585, %v3587
    %v3606 = vperm.slane %v3185, 0
    %v3608 = vadd.f32 %v3589, %v3606
    %v3609 = vadd.f32 %v3590, %v3606
    %v3610 = vadd.f32 %v3591, %v3606
    %v3611 = vadd.f32 %v3592, %v3606
    %v3612 = vadd.f32 %v3593, %v3606
    %v3613 = vadd.f32 %v3594, %v3606
    %v3614 = vadd.f32 %v3595, %v3606
    %v3615 = vadd.f32 %v3596, %v3606
    %v3616 = vadd.f32 %v3597, %v3606
    %v3617 = vadd.f32 %v3598, %v3606
    %v3618 = vadd.f32 %v3599, %v3606
    %v3619 = vadd.f32 %v3600, %v3606
    %v3620 = vadd.f32 %v3601, %v3606
    %v3621 = vadd.f32 %v3602, %v3606
    %v3622 = vadd.f32 %v3603, %v3606
    %v3623 = vadd.f32 %v3604, %v3606
    %v3624 = vmax.f32 %v3608, 0.0
    %v3625 = vmax.f32 %v3609, 0.0
    %v3626 = vmax.f32 %v3610, 0.0
    %v3627 = vmax.f32 %v3611, 0.0
    %v3628 = vmax.f32 %v3612, 0.0
    %v3629 = vmax.f32 %v3613, 0.0
    %v3630 = vmax.f32 %v3614, 0.0
    %v3631 = vmax.f32 %v3615, 0.0
    %v3632 = vmax.f32 %v3616, 0.0
    %v3633 = vmax.f32 %v3617, 0.0
    %v3634 = vmax.f32 %v3618, 0.0
    %v3635 = vmax.f32 %v3619, 0.0
    %v3636 = vmax.f32 %v3620, 0.0
    %v3637 = vmax.f32 %v3621, 0.0
    %v3638 = vmax.f32 %v3622, 0.0
    %v3639 = vmax.f32 %v3623, 0.0
    %v3640 = vld [vmem:[#allocation22] sm:$0xf]
    %v3641 = vld [vmem:[#allocation22 + $0x4] sm:$0xf]
    %v3642 = vld [vmem:[#allocation22 + $0x8] sm:$0xf]
    %v3643 = vld [vmem:[#allocation22 + $0xc] sm:$0xf]
    %v3644 = vld [vmem:[#allocation22 + $0x10] sm:$0xf]
    %v3645 = vld [vmem:[#allocation22 + $0x14] sm:$0xf]
    %v3646 = vld [vmem:[#allocation22 + $0x18] sm:$0xf]
    %v3647 = vld [vmem:[#allocation22 + $0x1c] sm:$0xf]
    %v3648 = vld [vmem:[#allocation22 + $0x20] sm:$0xf]
    %v3649 = vld [vmem:[#allocation22 + $0x24] sm:$0xf]
    %v3650 = vld [vmem:[#allocation22 + $0x28] sm:$0xf]
    %v3651 = vld [vmem:[#allocation22 + $0x2c] sm:$0xf]
    %v3652 = vld [vmem:[#allocation22 + $0x30] sm:$0xf]
    %v3653 = vld [vmem:[#allocation22 + $0x34] sm:$0xf]
    %v3654 = vld [vmem:[#allocation22 + $0x38] sm:$0xf]
    %v3655 = vld [vmem:[#allocation22 + $0x3c] sm:$0xf]
    %v3656 = vld [vmem:[#allocation23] sm:$0xf]
    %v3657 = vld [vmem:[#allocation23 + $0x4] sm:$0xf]
    %v3658 = vld [vmem:[#allocation23 + $0x8] sm:$0xf]
    %v3659 = vld [vmem:[#allocation23 + $0xc] sm:$0xf]
    %v3660 = vld [vmem:[#allocation23 + $0x10] sm:$0xf]
    %v3661 = vld [vmem:[#allocation23 + $0x14] sm:$0xf]
    %v3662 = vld [vmem:[#allocation23 + $0x18] sm:$0xf]
    %v3663 = vld [vmem:[#allocation23 + $0x1c] sm:$0xf]
    %v3664 = vld [vmem:[#allocation23 + $0x20] sm:$0xf]
    %v3665 = vld [vmem:[#allocation23 + $0x24] sm:$0xf]
    %v3666 = vld [vmem:[#allocation23 + $0x28] sm:$0xf]
    %v3667 = vld [vmem:[#allocation23 + $0x2c] sm:$0xf]
    %v3668 = vld [vmem:[#allocation23 + $0x30] sm:$0xf]
    %v3669 = vld [vmem:[#allocation23 + $0x34] sm:$0xf]
    %v3670 = vld [vmem:[#allocation23 + $0x38] sm:$0xf]
    %v3671 = vld [vmem:[#allocation23 + $0x3c] sm:$0xf]
    %v3672 = vld [vmem:[%s51] sm:$0x1]
    %v3673 = vld [vmem:[%s53] sm:$0x1]
    %v3674 = vld [vmem:[%s55] sm:$0x1]
    %v3675 = vpack.c.bf16 %v3120, %v3119
    %v3676 = vpack.c.bf16 %v3122, %v3121
    %v3677 = vpack.c.bf16 %v3124, %v3123
    %v3678 = vpack.c.bf16 %v3126, %v3125
    %v3679 = vpack.c.bf16 %v3128, %v3127
    %v3680 = vpack.c.bf16 %v3130, %v3129
    %v3681 = vpack.c.bf16 %v3132, %v3131
    %v3682 = vpack.c.bf16 %v3134, %v3133
    %v3683 = vpack.c.bf16 %v3136, %v3135
    %v3684 = vpack.c.bf16 %v3138, %v3137
    %v3685 = vpack.c.bf16 %v3140, %v3139
    %v3686 = vpack.c.bf16 %v3142, %v3141
    %v3687 = vpack.c.bf16 %v3144, %v3143
    %v3688 = vpack.c.bf16 %v3146, %v3145
    %v3689 = vpack.c.bf16 %v3148, %v3147
    %v3690 = vpack.c.bf16 %v3150, %v3149
    %3691 = vmatpush.bf16.msra.mxu0 %v3682
    %3692 = vmatpush.bf16.msra.mxu0 %v3681
    %3693 = vmatpush.bf16.msra.mxu0 %v3680
    %3694 = vmatpush.bf16.msra.mxu0 %v3679
    %3695 = vmatpush.bf16.msra.mxu0 %v3678
    %3696 = vmatpush.bf16.msra.mxu0 %v3677
    %3697 = vmatpush.bf16.msra.mxu0 %v3676
    %3698 = vmatpush.bf16.msra.mxu0 %v3675
    %3699 = vmatmul.bf16.gmra.mxu0 %v1443
    %v3700 = vpop.f32.mrf.mxu0
    %v3701 = vadd.f32 0.0, %v3700
    %v3702 = vpop.f32.mrf.mxu0
    %v3703 = vadd.f32 0.0, %v3702
    %3704 = vmatmul.bf16.gmra.mxu0 %v1445
    %v3705 = vpop.f32.mrf.mxu0
    %v3706 = vadd.f32 0.0, %v3705
    %v3707 = vpop.f32.mrf.mxu0
    %v3708 = vadd.f32 0.0, %v3707
    %3709 = vmatmul.bf16.gmra.mxu0 %v1447
    %v3710 = vpop.f32.mrf.mxu0
    %v3711 = vadd.f32 0.0, %v3710
    %v3712 = vpop.f32.mrf.mxu0
    %v3713 = vadd.f32 0.0, %v3712
    %3714 = vmatmul.bf16.gmra.mxu0 %v1449
    %v3715 = vpop.f32.mrf.mxu0
    %v3716 = vadd.f32 0.0, %v3715
    %v3717 = vpop.f32.mrf.mxu0
    %v3718 = vadd.f32 0.0, %v3717
    %3719 = vmatmul.bf16.gmra.mxu0 %v1451
    %v3720 = vpop.f32.mrf.mxu0
    %v3721 = vadd.f32 0.0, %v3720
    %v3722 = vpop.f32.mrf.mxu0
    %v3723 = vadd.f32 0.0, %v3722
    %3724 = vmatmul.bf16.gmra.mxu0 %v1453
    %v3725 = vpop.f32.mrf.mxu0
    %v3726 = vadd.f32 0.0, %v3725
    %v3727 = vpop.f32.mrf.mxu0
    %v3728 = vadd.f32 0.0, %v3727
    %3729 = vmatmul.bf16.gmra.mxu0 %v1455
    %v3730 = vpop.f32.mrf.mxu0
    %v3731 = vadd.f32 0.0, %v3730
    %v3732 = vpop.f32.mrf.mxu0
    %v3733 = vadd.f32 0.0, %v3732
    %3734 = vmatmul.bf16.gmra.mxu0 %v1457
    %v3735 = vpop.f32.mrf.mxu0
    %v3736 = vadd.f32 0.0, %v3735
    %v3737 = vpop.f32.mrf.mxu0
    %v3738 = vadd.f32 0.0, %v3737
    %3739 = vmatmul.bf16.gmra.mxu0 %v1459
    %v3740 = vpop.f32.mrf.mxu0
    %v3741 = vadd.f32 0.0, %v3740
    %v3742 = vpop.f32.mrf.mxu0
    %v3743 = vadd.f32 0.0, %v3742
    %3744 = vmatmul.bf16.gmra.mxu0 %v1461
    %v3745 = vpop.f32.mrf.mxu0
    %v3746 = vadd.f32 0.0, %v3745
    %v3747 = vpop.f32.mrf.mxu0
    %v3748 = vadd.f32 0.0, %v3747
    %3749 = vmatmul.bf16.gmra.mxu0 %v1463
    %v3750 = vpop.f32.mrf.mxu0
    %v3751 = vadd.f32 0.0, %v3750
    %v3752 = vpop.f32.mrf.mxu0
    %v3753 = vadd.f32 0.0, %v3752
    %3754 = vmatmul.bf16.gmra.mxu0 %v1465
    %v3755 = vpop.f32.mrf.mxu0
    %v3756 = vadd.f32 0.0, %v3755
    %v3757 = vpop.f32.mrf.mxu0
    %v3758 = vadd.f32 0.0, %v3757
    %3759 = vmatmul.bf16.gmra.mxu0 %v1467
    %v3760 = vpop.f32.mrf.mxu0
    %v3761 = vadd.f32 0.0, %v3760
    %v3762 = vpop.f32.mrf.mxu0
    %v3763 = vadd.f32 0.0, %v3762
    %3764 = vmatmul.bf16.gmra.mxu0 %v1469
    %v3765 = vpop.f32.mrf.mxu0
    %v3766 = vadd.f32 0.0, %v3765
    %v3767 = vpop.f32.mrf.mxu0
    %v3768 = vadd.f32 0.0, %v3767
    %3769 = vmatmul.bf16.gmra.mxu0 %v1471
    %v3770 = vpop.f32.mrf.mxu0
    %v3771 = vadd.f32 0.0, %v3770
    %v3772 = vpop.f32.mrf.mxu0
    %v3773 = vadd.f32 0.0, %v3772
    %3774 = vmatmul.bf16.gmra.mxu0 %v1473
    %v3775 = vpop.f32.mrf.mxu0
    %v3776 = vadd.f32 0.0, %v3775
    %v3777 = vpop.f32.mrf.mxu0
    %v3778 = vadd.f32 0.0, %v3777
    %3779 = vdwg.mxu0
    %3780 = vmatpush.bf16.msra.mxu0 %v3690
    %3781 = vmatpush.bf16.msra.mxu0 %v3689
    %3782 = vmatpush.bf16.msra.mxu0 %v3688
    %3783 = vmatpush.bf16.msra.mxu0 %v3687
    %3784 = vmatpush.bf16.msra.mxu0 %v3686
    %3785 = vmatpush.bf16.msra.mxu0 %v3685
    %3786 = vmatpush.bf16.msra.mxu0 %v3684
    %3787 = vmatpush.bf16.msra.mxu0 %v3683
    %3788 = vmatmul.bf16.gmra.mxu0 %v1444
    %v3789 = vpop.f32.mrf.mxu0
    %v3790 = vadd.f32 %v3701, %v3789
    %v3791 = vpop.f32.mrf.mxu0
    %v3792 = vadd.f32 %v3703, %v3791
    %3793 = vmatmul.bf16.gmra.mxu0 %v1446
    %v3794 = vpop.f32.mrf.mxu0
    %v3795 = vadd.f32 %v3706, %v3794
    %v3796 = vpop.f32.mrf.mxu0
    %v3797 = vadd.f32 %v3708, %v3796
    %3798 = vmatmul.bf16.gmra.mxu0 %v1448
    %v3799 = vpop.f32.mrf.mxu0
    %v3800 = vadd.f32 %v3711, %v3799
    %v3801 = vpop.f32.mrf.mxu0
    %v3802 = vadd.f32 %v3713, %v3801
    %3803 = vmatmul.bf16.gmra.mxu0 %v1450
    %v3804 = vpop.f32.mrf.mxu0
    %v3805 = vadd.f32 %v3716, %v3804
    %v3806 = vpop.f32.mrf.mxu0
    %v3807 = vadd.f32 %v3718, %v3806
    %3808 = vmatmul.bf16.gmra.mxu0 %v1452
    %v3809 = vpop.f32.mrf.mxu0
    %v3810 = vadd.f32 %v3721, %v3809
    %v3811 = vpop.f32.mrf.mxu0
    %v3812 = vadd.f32 %v3723, %v3811
    %3813 = vmatmul.bf16.gmra.mxu0 %v1454
    %v3814 = vpop.f32.mrf.mxu0
    %v3815 = vadd.f32 %v3726, %v3814
    %v3816 = vpop.f32.mrf.mxu0
    %v3817 = vadd.f32 %v3728, %v3816
    %3818 = vmatmul.bf16.gmra.mxu0 %v1456
    %v3819 = vpop.f32.mrf.mxu0
    %v3820 = vadd.f32 %v3731, %v3819
    %v3821 = vpop.f32.mrf.mxu0
    %v3822 = vadd.f32 %v3733, %v3821
    %3823 = vmatmul.bf16.gmra.mxu0 %v1458
    %v3824 = vpop.f32.mrf.mxu0
    %v3825 = vadd.f32 %v3736, %v3824
    %v3826 = vpop.f32.mrf.mxu0
    %v3827 = vadd.f32 %v3738, %v3826
    %3828 = vmatmul.bf16.gmra.mxu0 %v1460
    %v3829 = vpop.f32.mrf.mxu0
    %v3830 = vadd.f32 %v3741, %v3829
    %v3831 = vpop.f32.mrf.mxu0
    %v3832 = vadd.f32 %v3743, %v3831
    %3833 = vmatmul.bf16.gmra.mxu0 %v1462
    %v3834 = vpop.f32.mrf.mxu0
    %v3835 = vadd.f32 %v3746, %v3834
    %v3836 = vpop.f32.mrf.mxu0
    %v3837 = vadd.f32 %v3748, %v3836
    %3838 = vmatmul.bf16.gmra.mxu0 %v1464
    %v3839 = vpop.f32.mrf.mxu0
    %v3840 = vadd.f32 %v3751, %v3839
    %v3841 = vpop.f32.mrf.mxu0
    %v3842 = vadd.f32 %v3753, %v3841
    %3843 = vmatmul.bf16.gmra.mxu0 %v1466
    %v3844 = vpop.f32.mrf.mxu0
    %v3845 = vadd.f32 %v3756, %v3844
    %v3846 = vpop.f32.mrf.mxu0
    %v3847 = vadd.f32 %v3758, %v3846
    %3848 = vmatmul.bf16.gmra.mxu0 %v1468
    %v3849 = vpop.f32.mrf.mxu0
    %v3850 = vadd.f32 %v3761, %v3849
    %v3851 = vpop.f32.mrf.mxu0
    %v3852 = vadd.f32 %v3763, %v3851
    %3853 = vmatmul.bf16.gmra.mxu0 %v1470
    %v3854 = vpop.f32.mrf.mxu0
    %v3855 = vadd.f32 %v3766, %v3854
    %v3856 = vpop.f32.mrf.mxu0
    %v3857 = vadd.f32 %v3768, %v3856
    %3858 = vmatmul.bf16.gmra.mxu0 %v1472
    %v3859 = vpop.f32.mrf.mxu0
    %v3860 = vadd.f32 %v3771, %v3859
    %v3861 = vpop.f32.mrf.mxu0
    %v3862 = vadd.f32 %v3773, %v3861
    %3863 = vmatmul.bf16.gmra.mxu0 %v1474
    %v3864 = vpop.f32.mrf.mxu0
    %v3865 = vadd.f32 %v3776, %v3864
    %v3866 = vpop.f32.mrf.mxu0
    %v3867 = vadd.f32 %v3778, %v3866
    %3868 = vdwg.mxu0
    %v3869 = vsub.f32 %v3119, %v3790
    %v3870 = vsub.f32 %v3120, %v3792
    %v3871 = vsub.f32 %v3121, %v3795
    %v3872 = vsub.f32 %v3122, %v3797
    %v3873 = vsub.f32 %v3123, %v3800
    %v3874 = vsub.f32 %v3124, %v3802
    %v3875 = vsub.f32 %v3125, %v3805
    %v3876 = vsub.f32 %v3126, %v3807
    %v3877 = vsub.f32 %v3127, %v3810
    %v3878 = vsub.f32 %v3128, %v3812
    %v3879 = vsub.f32 %v3129, %v3815
    %v3880 = vsub.f32 %v3130, %v3817
    %v3881 = vsub.f32 %v3131, %v3820
    %v3882 = vsub.f32 %v3132, %v3822
    %v3883 = vsub.f32 %v3133, %v3825
    %v3884 = vsub.f32 %v3134, %v3827
    %v3885 = vsub.f32 %v3135, %v3830
    %v3886 = vsub.f32 %v3136, %v3832
    %v3887 = vsub.f32 %v3137, %v3835
    %v3888 = vsub.f32 %v3138, %v3837
    %v3889 = vsub.f32 %v3139, %v3840
    %v3890 = vsub.f32 %v3140, %v3842
    %v3891 = vsub.f32 %v3141, %v3845
    %v3892 = vsub.f32 %v3142, %v3847
    %v3893 = vsub.f32 %v3143, %v3850
    %v3894 = vsub.f32 %v3144, %v3852
    %v3895 = vsub.f32 %v3145, %v3855
    %v3896 = vsub.f32 %v3146, %v3857
    %v3897 = vsub.f32 %v3147, %v3860
    %v3898 = vsub.f32 %v3148, %v3862
    %v3899 = vsub.f32 %v3149, %v3865
    %v3900 = vsub.f32 %v3150, %v3867
    %v3901 = vpack.c.bf16 %v3870, %v3869
    %v3902 = vpack.c.bf16 %v3872, %v3871
    %v3903 = vpack.c.bf16 %v3874, %v3873
    %v3904 = vpack.c.bf16 %v3876, %v3875
    %v3905 = vpack.c.bf16 %v3878, %v3877
    %v3906 = vpack.c.bf16 %v3880, %v3879
    %v3907 = vpack.c.bf16 %v3882, %v3881
    %v3908 = vpack.c.bf16 %v3884, %v3883
    %v3909 = vpack.c.bf16 %v3886, %v3885
    %v3910 = vpack.c.bf16 %v3888, %v3887
    %v3911 = vpack.c.bf16 %v3890, %v3889
    %v3912 = vpack.c.bf16 %v3892, %v3891
    %v3913 = vpack.c.bf16 %v3894, %v3893
    %v3914 = vpack.c.bf16 %v3896, %v3895
    %v3915 = vpack.c.bf16 %v3898, %v3897
    %v3916 = vpack.c.bf16 %v3900, %v3899
    %v3933 = vunpack.c.l.b16 %v3656
    %v3934 = vunpack.c.l.b16 %v3657
    %v3935 = vunpack.c.l.b16 %v3658
    %v3936 = vunpack.c.l.b16 %v3659
    %v3937 = vunpack.c.l.b16 %v3660
    %v3938 = vunpack.c.l.b16 %v3661
    %v3939 = vunpack.c.l.b16 %v3662
    %v3940 = vunpack.c.l.b16 %v3663
    %v3941 = vunpack.c.l.b16 %v3664
    %v3942 = vunpack.c.l.b16 %v3665
    %v3943 = vunpack.c.l.b16 %v3666
    %v3944 = vunpack.c.l.b16 %v3667
    %v3945 = vunpack.c.l.b16 %v3668
    %v3946 = vunpack.c.l.b16 %v3669
    %v3947 = vunpack.c.l.b16 %v3670
    %v3948 = vunpack.c.l.b16 %v3671
    %v3949 = vpack.c.b16 %v3934, %v3933
    %v3950 = vpack.c.b16 %v3936, %v3935
    %v3951 = vpack.c.b16 %v3938, %v3937
    %v3952 = vpack.c.b16 %v3940, %v3939
    %v3953 = vpack.c.b16 %v3942, %v3941
    %v3954 = vpack.c.b16 %v3944, %v3943
    %v3955 = vpack.c.b16 %v3946, %v3945
    %v3956 = vpack.c.b16 %v3948, %v3947
    %3965 = vmatpush.bf16.msra.mxu0 %v3956
    %3966 = vmatpush.bf16.msra.mxu0 %v3955
    %3967 = vmatpush.bf16.msra.mxu0 %v3954
    %3968 = vmatpush.bf16.msra.mxu0 %v3953
    %3969 = vmatpush.bf16.msra.mxu0 %v3952
    %3970 = vmatpush.bf16.msra.mxu0 %v3951
    %3971 = vmatpush.bf16.msra.mxu0 %v3950
    %3972 = vmatpush.bf16.msra.mxu0 %v3949
    %3973 = vmatmul.bf16.gmra.mxu0 %v3901
    %v3974 = vpop.f32.mrf.mxu0
    %v3975 = vadd.f32 0.0, %v3974
    %v3976 = vpop.f32.mrf.mxu0
    %v3977 = vadd.f32 0.0, %v3976
    %3978 = vmatmul.bf16.gmra.mxu0 %v3902
    %v3979 = vpop.f32.mrf.mxu0
    %v3980 = vadd.f32 0.0, %v3979
    %v3981 = vpop.f32.mrf.mxu0
    %v3982 = vadd.f32 0.0, %v3981
    %3983 = vmatmul.bf16.gmra.mxu0 %v3903
    %v3984 = vpop.f32.mrf.mxu0
    %v3985 = vadd.f32 0.0, %v3984
    %v3986 = vpop.f32.mrf.mxu0
    %v3987 = vadd.f32 0.0, %v3986
    %3988 = vmatmul.bf16.gmra.mxu0 %v3904
    %v3989 = vpop.f32.mrf.mxu0
    %v3990 = vadd.f32 0.0, %v3989
    %v3991 = vpop.f32.mrf.mxu0
    %v3992 = vadd.f32 0.0, %v3991
    %3993 = vmatmul.bf16.gmra.mxu0 %v3905
    %v3994 = vpop.f32.mrf.mxu0
    %v3995 = vadd.f32 0.0, %v3994
    %v3996 = vpop.f32.mrf.mxu0
    %v3997 = vadd.f32 0.0, %v3996
    %3998 = vmatmul.bf16.gmra.mxu0 %v3906
    %v3999 = vpop.f32.mrf.mxu0
    %v4000 = vadd.f32 0.0, %v3999
    %v4001 = vpop.f32.mrf.mxu0
    %v4002 = vadd.f32 0.0, %v4001
    %4003 = vmatmul.bf16.gmra.mxu0 %v3907
    %v4004 = vpop.f32.mrf.mxu0
    %v4005 = vadd.f32 0.0, %v4004
    %v4006 = vpop.f32.mrf.mxu0
    %v4007 = vadd.f32 0.0, %v4006
    %4008 = vmatmul.bf16.gmra.mxu0 %v3908
    %v4009 = vpop.f32.mrf.mxu0
    %v4010 = vadd.f32 0.0, %v4009
    %v4011 = vpop.f32.mrf.mxu0
    %v4012 = vadd.f32 0.0, %v4011
    %4013 = vmatmul.bf16.gmra.mxu0 %v3909
    %v4014 = vpop.f32.mrf.mxu0
    %v4015 = vadd.f32 0.0, %v4014
    %v4016 = vpop.f32.mrf.mxu0
    %v4017 = vadd.f32 0.0, %v4016
    %4018 = vmatmul.bf16.gmra.mxu0 %v3910
    %v4019 = vpop.f32.mrf.mxu0
    %v4020 = vadd.f32 0.0, %v4019
    %v4021 = vpop.f32.mrf.mxu0
    %v4022 = vadd.f32 0.0, %v4021
    %4023 = vmatmul.bf16.gmra.mxu0 %v3911
    %v4024 = vpop.f32.mrf.mxu0
    %v4025 = vadd.f32 0.0, %v4024
    %v4026 = vpop.f32.mrf.mxu0
    %v4027 = vadd.f32 0.0, %v4026
    %4028 = vmatmul.bf16.gmra.mxu0 %v3912
    %v4029 = vpop.f32.mrf.mxu0
    %v4030 = vadd.f32 0.0, %v4029
    %v4031 = vpop.f32.mrf.mxu0
    %v4032 = vadd.f32 0.0, %v4031
    %4033 = vmatmul.bf16.gmra.mxu0 %v3913
    %v4034 = vpop.f32.mrf.mxu0
    %v4035 = vadd.f32 0.0, %v4034
    %v4036 = vpop.f32.mrf.mxu0
    %v4037 = vadd.f32 0.0, %v4036
    %4038 = vmatmul.bf16.gmra.mxu0 %v3914
    %v4039 = vpop.f32.mrf.mxu0
    %v4040 = vadd.f32 0.0, %v4039
    %v4041 = vpop.f32.mrf.mxu0
    %v4042 = vadd.f32 0.0, %v4041
    %4043 = vmatmul.bf16.gmra.mxu0 %v3915
    %v4044 = vpop.f32.mrf.mxu0
    %v4045 = vadd.f32 0.0, %v4044
    %v4046 = vpop.f32.mrf.mxu0
    %v4047 = vadd.f32 0.0, %v4046
    %4048 = vmatmul.bf16.gmra.mxu0 %v3916
    %v4049 = vpop.f32.mrf.mxu0
    %v4050 = vadd.f32 0.0, %v4049
    %v4051 = vpop.f32.mrf.mxu0
    %v4052 = vadd.f32 0.0, %v4051
    %4053 = vdwg.mxu0
    %v4070 = vunpack.c.l.b16 %v3640
    %v4071 = vunpack.c.l.b16 %v3641
    %v4072 = vunpack.c.l.b16 %v3642
    %v4073 = vunpack.c.l.b16 %v3643
    %v4074 = vunpack.c.l.b16 %v3644
    %v4075 = vunpack.c.l.b16 %v3645
    %v4076 = vunpack.c.l.b16 %v3646
    %v4077 = vunpack.c.l.b16 %v3647
    %v4078 = vunpack.c.l.b16 %v3648
    %v4079 = vunpack.c.l.b16 %v3649
    %v4080 = vunpack.c.l.b16 %v3650
    %v4081 = vunpack.c.l.b16 %v3651
    %v4082 = vunpack.c.l.b16 %v3652
    %v4083 = vunpack.c.l.b16 %v3653
    %v4084 = vunpack.c.l.b16 %v3654
    %v4085 = vunpack.c.l.b16 %v3655
    %v4086 = vpack.c.b16 %v4071, %v4070
    %v4087 = vpack.c.b16 %v4073, %v4072
    %v4088 = vpack.c.b16 %v4075, %v4074
    %v4089 = vpack.c.b16 %v4077, %v4076
    %v4090 = vpack.c.b16 %v4079, %v4078
    %v4091 = vpack.c.b16 %v4081, %v4080
    %v4092 = vpack.c.b16 %v4083, %v4082
    %v4093 = vpack.c.b16 %v4085, %v4084
    %4102 = vmatpush.bf16.msra.mxu0 %v4093
    %4103 = vmatpush.bf16.msra.mxu0 %v4092
    %4104 = vmatpush.bf16.msra.mxu0 %v4091
    %4105 = vmatpush.bf16.msra.mxu0 %v4090
    %4106 = vmatpush.bf16.msra.mxu0 %v4089
    %4107 = vmatpush.bf16.msra.mxu0 %v4088
    %4108 = vmatpush.bf16.msra.mxu0 %v4087
    %4109 = vmatpush.bf16.msra.mxu0 %v4086
    %4110 = vmatmul.bf16.gmra.mxu0 %v3675
    %v4111 = vpop.f32.mrf.mxu0
    %v4112 = vadd.f32 %v3975, %v4111
    %v4113 = vpop.f32.mrf.mxu0
    %v4114 = vadd.f32 %v3977, %v4113
    %4115 = vmatmul.bf16.gmra.mxu0 %v3676
    %v4116 = vpop.f32.mrf.mxu0
    %v4117 = vadd.f32 %v3980, %v4116
    %v4118 = vpop.f32.mrf.mxu0
    %v4119 = vadd.f32 %v3982, %v4118
    %4120 = vmatmul.bf16.gmra.mxu0 %v3677
    %v4121 = vpop.f32.mrf.mxu0
    %v4122 = vadd.f32 %v3985, %v4121
    %v4123 = vpop.f32.mrf.mxu0
    %v4124 = vadd.f32 %v3987, %v4123
    %4125 = vmatmul.bf16.gmra.mxu0 %v3678
    %v4126 = vpop.f32.mrf.mxu0
    %v4127 = vadd.f32 %v3990, %v4126
    %v4128 = vpop.f32.mrf.mxu0
    %v4129 = vadd.f32 %v3992, %v4128
    %4130 = vmatmul.bf16.gmra.mxu0 %v3679
    %v4131 = vpop.f32.mrf.mxu0
    %v4132 = vadd.f32 %v3995, %v4131
    %v4133 = vpop.f32.mrf.mxu0
    %v4134 = vadd.f32 %v3997, %v4133
    %4135 = vmatmul.bf16.gmra.mxu0 %v3680
    %v4136 = vpop.f32.mrf.mxu0
    %v4137 = vadd.f32 %v4000, %v4136
    %v4138 = vpop.f32.mrf.mxu0
    %v4139 = vadd.f32 %v4002, %v4138
    %4140 = vmatmul.bf16.gmra.mxu0 %v3681
    %v4141 = vpop.f32.mrf.mxu0
    %v4142 = vadd.f32 %v4005, %v4141
    %v4143 = vpop.f32.mrf.mxu0
    %v4144 = vadd.f32 %v4007, %v4143
    %4145 = vmatmul.bf16.gmra.mxu0 %v3682
    %v4146 = vpop.f32.mrf.mxu0
    %v4147 = vadd.f32 %v4010, %v4146
    %v4148 = vpop.f32.mrf.mxu0
    %v4149 = vadd.f32 %v4012, %v4148
    %4150 = vmatmul.bf16.gmra.mxu0 %v3683
    %v4151 = vpop.f32.mrf.mxu0
    %v4152 = vadd.f32 %v4015, %v4151
    %v4153 = vpop.f32.mrf.mxu0
    %v4154 = vadd.f32 %v4017, %v4153
    %4155 = vmatmul.bf16.gmra.mxu0 %v3684
    %v4156 = vpop.f32.mrf.mxu0
    %v4157 = vadd.f32 %v4020, %v4156
    %v4158 = vpop.f32.mrf.mxu0
    %v4159 = vadd.f32 %v4022, %v4158
    %4160 = vmatmul.bf16.gmra.mxu0 %v3685
    %v4161 = vpop.f32.mrf.mxu0
    %v4162 = vadd.f32 %v4025, %v4161
    %v4163 = vpop.f32.mrf.mxu0
    %v4164 = vadd.f32 %v4027, %v4163
    %4165 = vmatmul.bf16.gmra.mxu0 %v3686
    %v4166 = vpop.f32.mrf.mxu0
    %v4167 = vadd.f32 %v4030, %v4166
    %v4168 = vpop.f32.mrf.mxu0
    %v4169 = vadd.f32 %v4032, %v4168
    %4170 = vmatmul.bf16.gmra.mxu0 %v3687
    %v4171 = vpop.f32.mrf.mxu0
    %v4172 = vadd.f32 %v4035, %v4171
    %v4173 = vpop.f32.mrf.mxu0
    %v4174 = vadd.f32 %v4037, %v4173
    %4175 = vmatmul.bf16.gmra.mxu0 %v3688
    %v4176 = vpop.f32.mrf.mxu0
    %v4177 = vadd.f32 %v4040, %v4176
    %v4178 = vpop.f32.mrf.mxu0
    %v4179 = vadd.f32 %v4042, %v4178
    %4180 = vmatmul.bf16.gmra.mxu0 %v3689
    %v4181 = vpop.f32.mrf.mxu0
    %v4182 = vadd.f32 %v4045, %v4181
    %v4183 = vpop.f32.mrf.mxu0
    %v4184 = vadd.f32 %v4047, %v4183
    %4185 = vmatmul.bf16.gmra.mxu0 %v3690
    %v4186 = vpop.f32.mrf.mxu0
    %v4187 = vadd.f32 %v4050, %v4186
    %v4188 = vpop.f32.mrf.mxu0
    %v4189 = vadd.f32 %v4052, %v4188
    %4190 = vdwg.mxu0
    %v4192 = vperm.slane %v3672, 0
    %v4194 = vadd.f32 %v4112, %v4192
    %v4195 = vadd.f32 %v4114, %v4192
    %v4196 = vadd.f32 %v4117, %v4192
    %v4197 = vadd.f32 %v4119, %v4192
    %v4198 = vadd.f32 %v4122, %v4192
    %v4199 = vadd.f32 %v4124, %v4192
    %v4200 = vadd.f32 %v4127, %v4192
    %v4201 = vadd.f32 %v4129, %v4192
    %v4202 = vadd.f32 %v4132, %v4192
    %v4203 = vadd.f32 %v4134, %v4192
    %v4204 = vadd.f32 %v4137, %v4192
    %v4205 = vadd.f32 %v4139, %v4192
    %v4206 = vadd.f32 %v4142, %v4192
    %v4207 = vadd.f32 %v4144, %v4192
    %v4208 = vadd.f32 %v4147, %v4192
    %v4209 = vadd.f32 %v4149, %v4192
    %v4210 = vadd.f32 %v4152, %v4192
    %v4211 = vadd.f32 %v4154, %v4192
    %v4212 = vadd.f32 %v4157, %v4192
    %v4213 = vadd.f32 %v4159, %v4192
    %v4214 = vadd.f32 %v4162, %v4192
    %v4215 = vadd.f32 %v4164, %v4192
    %v4216 = vadd.f32 %v4167, %v4192
    %v4217 = vadd.f32 %v4169, %v4192
    %v4218 = vadd.f32 %v4172, %v4192
    %v4219 = vadd.f32 %v4174, %v4192
    %v4220 = vadd.f32 %v4177, %v4192
    %v4221 = vadd.f32 %v4179, %v4192
    %v4222 = vadd.f32 %v4182, %v4192
    %v4223 = vadd.f32 %v4184, %v4192
    %v4224 = vadd.f32 %v4187, %v4192
    %v4225 = vadd.f32 %v4189, %v4192
    %v4226 = vadd.f32 %v4194, %v4195
    %v4227 = vadd.f32 %v4226, %v4196
    %v4228 = vadd.f32 %v4227, %v4197
    %v4229 = vadd.f32 %v4228, %v4198
    %v4230 = vadd.f32 %v4229, %v4199
    %v4231 = vadd.f32 %v4230, %v4200
    %v4232 = vadd.f32 %v4231, %v4201
    %v4233 = vadd.f32 %v4232, %v4202
    %v4234 = vadd.f32 %v4233, %v4203
    %v4235 = vadd.f32 %v4234, %v4204
    %v4236 = vadd.f32 %v4235, %v4205
    %v4237 = vadd.f32 %v4236, %v4206
    %v4238 = vadd.f32 %v4237, %v4207
    %v4239 = vadd.f32 %v4238, %v4208
    %v4240 = vadd.f32 %v4239, %v4209
    %v4241 = vadd.f32 %v4240, %v4210
    %v4242 = vadd.f32 %v4241, %v4211
    %v4243 = vadd.f32 %v4242, %v4212
    %v4244 = vadd.f32 %v4243, %v4213
    %v4245 = vadd.f32 %v4244, %v4214
    %v4246 = vadd.f32 %v4245, %v4215
    %v4247 = vadd.f32 %v4246, %v4216
    %v4248 = vadd.f32 %v4247, %v4217
    %v4249 = vadd.f32 %v4248, %v4218
    %v4250 = vadd.f32 %v4249, %v4219
    %v4251 = vadd.f32 %v4250, %v4220
    %v4252 = vadd.f32 %v4251, %v4221
    %v4253 = vadd.f32 %v4252, %v4222
    %v4254 = vadd.f32 %v4253, %v4223
    %v4255 = vadd.f32 %v4254, %v4224
    %v4256 = vadd.f32 %v4255, %v4225
    %v4257 = vrot.slane %v4256, 4
    %v4258 = vadd.f32 %v4256, %v4257
    %v4259 = vrot.slane %v4258, 2
    %v4260 = vadd.f32 %v4258, %v4259
    %v4261 = vrot.slane %v4260, 1
    %v4262 = vadd.f32 %v4260, %v4261
    %v4263 = vmul.f32 %v4262, 0.00390625
    %v4264 = vmul.f32 %v4194, %v4194
    %v4265 = vmul.f32 %v4195, %v4195
    %v4266 = vmul.f32 %v4196, %v4196
    %v4267 = vmul.f32 %v4197, %v4197
    %v4268 = vmul.f32 %v4198, %v4198
    %v4269 = vmul.f32 %v4199, %v4199
    %v4270 = vmul.f32 %v4200, %v4200
    %v4271 = vmul.f32 %v4201, %v4201
    %v4272 = vmul.f32 %v4202, %v4202
    %v4273 = vmul.f32 %v4203, %v4203
    %v4274 = vmul.f32 %v4204, %v4204
    %v4275 = vmul.f32 %v4205, %v4205
    %v4276 = vmul.f32 %v4206, %v4206
    %v4277 = vmul.f32 %v4207, %v4207
    %v4278 = vmul.f32 %v4208, %v4208
    %v4279 = vmul.f32 %v4209, %v4209
    %v4280 = vmul.f32 %v4210, %v4210
    %v4281 = vmul.f32 %v4211, %v4211
    %v4282 = vmul.f32 %v4212, %v4212
    %v4283 = vmul.f32 %v4213, %v4213
    %v4284 = vmul.f32 %v4214, %v4214
    %v4285 = vmul.f32 %v4215, %v4215
    %v4286 = vmul.f32 %v4216, %v4216
    %v4287 = vmul.f32 %v4217, %v4217
    %v4288 = vmul.f32 %v4218, %v4218
    %v4289 = vmul.f32 %v4219, %v4219
    %v4290 = vmul.f32 %v4220, %v4220
    %v4291 = vmul.f32 %v4221, %v4221
    %v4292 = vmul.f32 %v4222, %v4222
    %v4293 = vmul.f32 %v4223, %v4223
    %v4294 = vmul.f32 %v4224, %v4224
    %v4295 = vmul.f32 %v4225, %v4225
    %v4296 = vadd.f32 %v4264, %v4265
    %v4297 = vadd.f32 %v4296, %v4266
    %v4298 = vadd.f32 %v4297, %v4267
    %v4299 = vadd.f32 %v4298, %v4268
    %v4300 = vadd.f32 %v4299, %v4269
    %v4301 = vadd.f32 %v4300, %v4270
    %v4302 = vadd.f32 %v4301, %v4271
    %v4303 = vadd.f32 %v4302, %v4272
    %v4304 = vadd.f32 %v4303, %v4273
    %v4305 = vadd.f32 %v4304, %v4274
    %v4306 = vadd.f32 %v4305, %v4275
    %v4307 = vadd.f32 %v4306, %v4276
    %v4308 = vadd.f32 %v4307, %v4277
    %v4309 = vadd.f32 %v4308, %v4278
    %v4310 = vadd.f32 %v4309, %v4279
    %v4311 = vadd.f32 %v4310, %v4280
    %v4312 = vadd.f32 %v4311, %v4281
    %v4313 = vadd.f32 %v4312, %v4282
    %v4314 = vadd.f32 %v4313, %v4283
    %v4315 = vadd.f32 %v4314, %v4284
    %v4316 = vadd.f32 %v4315, %v4285
    %v4317 = vadd.f32 %v4316, %v4286
    %v4318 = vadd.f32 %v4317, %v4287
    %v4319 = vadd.f32 %v4318, %v4288
    %v4320 = vadd.f32 %v4319, %v4289
    %v4321 = vadd.f32 %v4320, %v4290
    %v4322 = vadd.f32 %v4321, %v4291
    %v4323 = vadd.f32 %v4322, %v4292
    %v4324 = vadd.f32 %v4323, %v4293
    %v4325 = vadd.f32 %v4324, %v4294
    %v4326 = vadd.f32 %v4325, %v4295
    %v4327 = vrot.slane %v4326, 4
    %v4328 = vadd.f32 %v4326, %v4327
    %v4329 = vrot.slane %v4328, 2
    %v4330 = vadd.f32 %v4328, %v4329
    %v4331 = vrot.slane %v4330, 1
    %v4332 = vadd.f32 %v4330, %v4331
    %v4333 = vmul.f32 %v4332, 0.00390625
    %v4334 = vmul.f32 %v4263, %v4263
    %v4335 = vsub.f32 %v4333, %v4334
    %v4336 = vmax.f32 %v4335, 0.0
    %v4337 = vsub.f32 %v4194, %v4263
    %v4338 = vsub.f32 %v4195, %v4263
    %v4339 = vsub.f32 %v4196, %v4263
    %v4340 = vsub.f32 %v4197, %v4263
    %v4341 = vsub.f32 %v4198, %v4263
    %v4342 = vsub.f32 %v4199, %v4263
    %v4343 = vsub.f32 %v4200, %v4263
    %v4344 = vsub.f32 %v4201, %v4263
    %v4345 = vsub.f32 %v4202, %v4263
    %v4346 = vsub.f32 %v4203, %v4263
    %v4347 = vsub.f32 %v4204, %v4263
    %v4348 = vsub.f32 %v4205, %v4263
    %v4349 = vsub.f32 %v4206, %v4263
    %v4350 = vsub.f32 %v4207, %v4263
    %v4351 = vsub.f32 %v4208, %v4263
    %v4352 = vsub.f32 %v4209, %v4263
    %v4353 = vsub.f32 %v4210, %v4263
    %v4354 = vsub.f32 %v4211, %v4263
    %v4355 = vsub.f32 %v4212, %v4263
    %v4356 = vsub.f32 %v4213, %v4263
    %v4357 = vsub.f32 %v4214, %v4263
    %v4358 = vsub.f32 %v4215, %v4263
    %v4359 = vsub.f32 %v4216, %v4263
    %v4360 = vsub.f32 %v4217, %v4263
    %v4361 = vsub.f32 %v4218, %v4263
    %v4362 = vsub.f32 %v4219, %v4263
    %v4363 = vsub.f32 %v4220, %v4263
    %v4364 = vsub.f32 %v4221, %v4263
    %v4365 = vsub.f32 %v4222, %v4263
    %v4366 = vsub.f32 %v4223, %v4263
    %v4367 = vsub.f32 %v4224, %v4263
    %v4368 = vsub.f32 %v4225, %v4263
    %v4369 = vadd.f32 %v4336, 1e-05
    %v4370 = vrsqrt.pop %v4369
    %v4371 = vmul.f32 %v4370, %v4369
    %v4372 = vmul.f32 %v4371, %v4370
    %v4373 = vmul.f32 0.5, %v4372
    %v4374 = vsub.f32 1.5, %v4373
    %v4375 = vmul.f32 %v4370, %v4374
    %vm4376 = vweird.f32 %v4369
    %vm4377 = vweird.f32 %v4370
    %vm4378 = vmor %vm4376, %vm4377
    %v4379 = vsel %vm4378, %v4370, %v4375
    %v4380 = vmul.f32 %v4337, %v4379
    %v4381 = vmul.f32 %v4338, %v4379
    %v4382 = vmul.f32 %v4339, %v4379
    %v4383 = vmul.f32 %v4340, %v4379
    %v4384 = vmul.f32 %v4341, %v4379
    %v4385 = vmul.f32 %v4342, %v4379
    %v4386 = vmul.f32 %v4343, %v4379
    %v4387 = vmul.f32 %v4344, %v4379
    %v4388 = vmul.f32 %v4345, %v4379
    %v4389 = vmul.f32 %v4346, %v4379
    %v4390 = vmul.f32 %v4347, %v4379
    %v4391 = vmul.f32 %v4348, %v4379
    %v4392 = vmul.f32 %v4349, %v4379
    %v4393 = vmul.f32 %v4350, %v4379
    %v4394 = vmul.f32 %v4351, %v4379
    %v4395 = vmul.f32 %v4352, %v4379
    %v4396 = vmul.f32 %v4353, %v4379
    %v4397 = vmul.f32 %v4354, %v4379
    %v4398 = vmul.f32 %v4355, %v4379
    %v4399 = vmul.f32 %v4356, %v4379
    %v4400 = vmul.f32 %v4357, %v4379
    %v4401 = vmul.f32 %v4358, %v4379
    %v4402 = vmul.f32 %v4359, %v4379
    %v4403 = vmul.f32 %v4360, %v4379
    %v4404 = vmul.f32 %v4361, %v4379
    %v4405 = vmul.f32 %v4362, %v4379
    %v4406 = vmul.f32 %v4363, %v4379
    %v4407 = vmul.f32 %v4364, %v4379
    %v4408 = vmul.f32 %v4365, %v4379
    %v4409 = vmul.f32 %v4366, %v4379
    %v4410 = vmul.f32 %v4367, %v4379
    %v4411 = vmul.f32 %v4368, %v4379
    %v4413 = vperm.slane %v3673, 0
    %v4415 = vmul.f32 %v4380, %v4413
    %v4416 = vmul.f32 %v4381, %v4413
    %v4417 = vmul.f32 %v4382, %v4413
    %v4418 = vmul.f32 %v4383, %v4413
    %v4419 = vmul.f32 %v4384, %v4413
    %v4420 = vmul.f32 %v4385, %v4413
    %v4421 = vmul.f32 %v4386, %v4413
    %v4422 = vmul.f32 %v4387, %v4413
    %v4423 = vmul.f32 %v4388, %v4413
    %v4424 = vmul.f32 %v4389, %v4413
    %v4425 = vmul.f32 %v4390, %v4413
    %v4426 = vmul.f32 %v4391, %v4413
    %v4427 = vmul.f32 %v4392, %v4413
    %v4428 = vmul.f32 %v4393, %v4413
    %v4429 = vmul.f32 %v4394, %v4413
    %v4430 = vmul.f32 %v4395, %v4413
    %v4431 = vmul.f32 %v4396, %v4413
    %v4432 = vmul.f32 %v4397, %v4413
    %v4433 = vmul.f32 %v4398, %v4413
    %v4434 = vmul.f32 %v4399, %v4413
    %v4435 = vmul.f32 %v4400, %v4413
    %v4436 = vmul.f32 %v4401, %v4413
    %v4437 = vmul.f32 %v4402, %v4413
    %v4438 = vmul.f32 %v4403, %v4413
    %v4439 = vmul.f32 %v4404, %v4413
    %v4440 = vmul.f32 %v4405, %v4413
    %v4441 = vmul.f32 %v4406, %v4413
    %v4442 = vmul.f32 %v4407, %v4413
    %v4443 = vmul.f32 %v4408, %v4413
    %v4444 = vmul.f32 %v4409, %v4413
    %v4445 = vmul.f32 %v4410, %v4413
    %v4446 = vmul.f32 %v4411, %v4413
    %v4448 = vperm.slane %v3674, 0
    %v4450 = vadd.f32 %v4415, %v4448
    %v4451 = vadd.f32 %v4416, %v4448
    %v4452 = vadd.f32 %v4417, %v4448
    %v4453 = vadd.f32 %v4418, %v4448
    %v4454 = vadd.f32 %v4419, %v4448
    %v4455 = vadd.f32 %v4420, %v4448
    %v4456 = vadd.f32 %v4421, %v4448
    %v4457 = vadd.f32 %v4422, %v4448
    %v4458 = vadd.f32 %v4423, %v4448
    %v4459 = vadd.f32 %v4424, %v4448
    %v4460 = vadd.f32 %v4425, %v4448
    %v4461 = vadd.f32 %v4426, %v4448
    %v4462 = vadd.f32 %v4427, %v4448
    %v4463 = vadd.f32 %v4428, %v4448
    %v4464 = vadd.f32 %v4429, %v4448
    %v4465 = vadd.f32 %v4430, %v4448
    %v4466 = vadd.f32 %v4431, %v4448
    %v4467 = vadd.f32 %v4432, %v4448
    %v4468 = vadd.f32 %v4433, %v4448
    %v4469 = vadd.f32 %v4434, %v4448
    %v4470 = vadd.f32 %v4435, %v4448
    %v4471 = vadd.f32 %v4436, %v4448
    %v4472 = vadd.f32 %v4437, %v4448
    %v4473 = vadd.f32 %v4438, %v4448
    %v4474 = vadd.f32 %v4439, %v4448
    %v4475 = vadd.f32 %v4440, %v4448
    %v4476 = vadd.f32 %v4441, %v4448
    %v4477 = vadd.f32 %v4442, %v4448
    %v4478 = vadd.f32 %v4443, %v4448
    %v4479 = vadd.f32 %v4444, %v4448
    %v4480 = vadd.f32 %v4445, %v4448
    %v4481 = vadd.f32 %v4446, %v4448
    %v4482 = vmax.f32 %v4450, 0.0
    %v4483 = vmax.f32 %v4451, 0.0
    %v4484 = vmax.f32 %v4452, 0.0
    %v4485 = vmax.f32 %v4453, 0.0
    %v4486 = vmax.f32 %v4454, 0.0
    %v4487 = vmax.f32 %v4455, 0.0
    %v4488 = vmax.f32 %v4456, 0.0
    %v4489 = vmax.f32 %v4457, 0.0
    %v4490 = vmax.f32 %v4458, 0.0
    %v4491 = vmax.f32 %v4459, 0.0
    %v4492 = vmax.f32 %v4460, 0.0
    %v4493 = vmax.f32 %v4461, 0.0
    %v4494 = vmax.f32 %v4462, 0.0
    %v4495 = vmax.f32 %v4463, 0.0
    %v4496 = vmax.f32 %v4464, 0.0
    %v4497 = vmax.f32 %v4465, 0.0
    %v4498 = vmax.f32 %v4466, 0.0
    %v4499 = vmax.f32 %v4467, 0.0
    %v4500 = vmax.f32 %v4468, 0.0
    %v4501 = vmax.f32 %v4469, 0.0
    %v4502 = vmax.f32 %v4470, 0.0
    %v4503 = vmax.f32 %v4471, 0.0
    %v4504 = vmax.f32 %v4472, 0.0
    %v4505 = vmax.f32 %v4473, 0.0
    %v4506 = vmax.f32 %v4474, 0.0
    %v4507 = vmax.f32 %v4475, 0.0
    %v4508 = vmax.f32 %v4476, 0.0
    %v4509 = vmax.f32 %v4477, 0.0
    %v4510 = vmax.f32 %v4478, 0.0
    %v4511 = vmax.f32 %v4479, 0.0
    %v4512 = vmax.f32 %v4480, 0.0
    %v4513 = vmax.f32 %v4481, 0.0
    %4514 = vst [vmem:[#allocation38 + $0x8] sm:$0xff] %v3624
    %4515 = vst [vmem:[#allocation38 + $0x20] sm:$0xff] %v3625
    %4516 = vst [vmem:[#allocation38 + $0x38] sm:$0xff] %v3626
    %4517 = vst [vmem:[#allocation38 + $0x50] sm:$0xff] %v3627
    %4518 = vst [vmem:[#allocation38 + $0x68] sm:$0xff] %v3628
    %4519 = vst [vmem:[#allocation38 + $0x80] sm:$0xff] %v3629
    %4520 = vst [vmem:[#allocation38 + $0x98] sm:$0xff] %v3630
    %4521 = vst [vmem:[#allocation38 + $0xb0] sm:$0xff] %v3631
    %4522 = vst [vmem:[#allocation38 + $0xc8] sm:$0xff] %v3632
    %4523 = vst [vmem:[#allocation38 + $0xe0] sm:$0xff] %v3633
    %4524 = vst [vmem:[#allocation38 + $0xf8] sm:$0xff] %v3634
    %4525 = vst [vmem:[#allocation38 + $0x110] sm:$0xff] %v3635
    %4526 = vst [vmem:[#allocation38 + $0x128] sm:$0xff] %v3636
    %4527 = vst [vmem:[#allocation38 + $0x140] sm:$0xff] %v3637
    %4528 = vst [vmem:[#allocation38 + $0x158] sm:$0xff] %v3638
    %4529 = vst [vmem:[#allocation38 + $0x170] sm:$0xff] %v3639
    %4530 = vst [vmem:[#allocation40 + $0x8] sm:$0xff] %v4482
    %4531 = vst [vmem:[#allocation40 + $0x20] sm:$0xff] %v4483
    %4532 = vst [vmem:[#allocation40 + $0x38] sm:$0xff] %v4484
    %4533 = vst [vmem:[#allocation40 + $0x50] sm:$0xff] %v4485
    %4534 = vst [vmem:[#allocation40 + $0x68] sm:$0xff] %v4486
    %4535 = vst [vmem:[#allocation40 + $0x80] sm:$0xff] %v4487
    %4536 = vst [vmem:[#allocation40 + $0x98] sm:$0xff] %v4488
    %4537 = vst [vmem:[#allocation40 + $0xb0] sm:$0xff] %v4489
    %4538 = vst [vmem:[#allocation40 + $0xc8] sm:$0xff] %v4490
    %4539 = vst [vmem:[#allocation40 + $0xe0] sm:$0xff] %v4491
    %4540 = vst [vmem:[#allocation40 + $0xf8] sm:$0xff] %v4492
    %4541 = vst [vmem:[#allocation40 + $0x110] sm:$0xff] %v4493
    %4542 = vst [vmem:[#allocation40 + $0x128] sm:$0xff] %v4494
    %4543 = vst [vmem:[#allocation40 + $0x140] sm:$0xff] %v4495
    %4544 = vst [vmem:[#allocation40 + $0x158] sm:$0xff] %v4496
    %4545 = vst [vmem:[#allocation40 + $0x170] sm:$0xff] %v4497
    %4546 = vst [vmem:[#allocation40 + $0x188] sm:$0xff] %v4498
    %4547 = vst [vmem:[#allocation40 + $0x1a0] sm:$0xff] %v4499
    %4548 = vst [vmem:[#allocation40 + $0x1b8] sm:$0xff] %v4500
    %4549 = vst [vmem:[#allocation40 + $0x1d0] sm:$0xff] %v4501
    %4550 = vst [vmem:[#allocation40 + $0x1e8] sm:$0xff] %v4502
    %4551 = vst [vmem:[#allocation40 + $0x200] sm:$0xff] %v4503
    %4552 = vst [vmem:[#allocation40 + $0x218] sm:$0xff] %v4504
    %4553 = vst [vmem:[#allocation40 + $0x230] sm:$0xff] %v4505
    %4554 = vst [vmem:[#allocation40 + $0x248] sm:$0xff] %v4506
    %4555 = vst [vmem:[#allocation40 + $0x260] sm:$0xff] %v4507
    %4556 = vst [vmem:[#allocation40 + $0x278] sm:$0xff] %v4508
    %4557 = vst [vmem:[#allocation40 + $0x290] sm:$0xff] %v4509
    %4558 = vst [vmem:[#allocation40 + $0x2a8] sm:$0xff] %v4510
    %4559 = vst [vmem:[#allocation40 + $0x2c0] sm:$0xff] %v4511
    %4560 = vst [vmem:[#allocation40 + $0x2d8] sm:$0xff] %v4512
    %4561 = vst [vmem:[#allocation40 + $0x2f0] sm:$0xff] %v4513
    %v4562 = vld [vmem:[#allocation25] sm:$0xf]
    %v4563 = vld [vmem:[#allocation25 + $0x4] sm:$0xf]
    %v4564 = vld [vmem:[#allocation25 + $0x8] sm:$0xf]
    %v4565 = vld [vmem:[#allocation25 + $0xc] sm:$0xf]
    %v4566 = vld [vmem:[#allocation25 + $0x10] sm:$0xf]
    %v4567 = vld [vmem:[#allocation25 + $0x14] sm:$0xf]
    %v4568 = vld [vmem:[#allocation25 + $0x18] sm:$0xf]
    %v4569 = vld [vmem:[#allocation25 + $0x1c] sm:$0xf]
    %v4570 = vld [vmem:[#allocation25 + $0x20] sm:$0xf]
    %v4571 = vld [vmem:[#allocation25 + $0x24] sm:$0xf]
    %v4572 = vld [vmem:[#allocation25 + $0x28] sm:$0xf]
    %v4573 = vld [vmem:[#allocation25 + $0x2c] sm:$0xf]
    %v4574 = vld [vmem:[#allocation25 + $0x30] sm:$0xf]
    %v4575 = vld [vmem:[#allocation25 + $0x34] sm:$0xf]
    %v4576 = vld [vmem:[#allocation25 + $0x38] sm:$0xf]
    %v4577 = vld [vmem:[#allocation25 + $0x3c] sm:$0xf]
    %v4578 = vld [vmem:[#allocation25 + $0x40] sm:$0xf]
    %v4579 = vld [vmem:[#allocation25 + $0x44] sm:$0xf]
    %v4580 = vld [vmem:[#allocation25 + $0x48] sm:$0xf]
    %v4581 = vld [vmem:[#allocation25 + $0x4c] sm:$0xf]
    %v4582 = vld [vmem:[#allocation25 + $0x50] sm:$0xf]
    %v4583 = vld [vmem:[#allocation25 + $0x54] sm:$0xf]
    %v4584 = vld [vmem:[#allocation25 + $0x58] sm:$0xf]
    %v4585 = vld [vmem:[#allocation25 + $0x5c] sm:$0xf]
    %v4586 = vld [vmem:[#allocation25 + $0x60] sm:$0xf]
    %v4587 = vld [vmem:[#allocation25 + $0x64] sm:$0xf]
    %v4588 = vld [vmem:[#allocation25 + $0x68] sm:$0xf]
    %v4589 = vld [vmem:[#allocation25 + $0x6c] sm:$0xf]
    %v4590 = vld [vmem:[#allocation25 + $0x70] sm:$0xf]
    %v4591 = vld [vmem:[#allocation25 + $0x74] sm:$0xf]
    %v4592 = vld [vmem:[#allocation25 + $0x78] sm:$0xf]
    %v4593 = vld [vmem:[#allocation25 + $0x7c] sm:$0xf]
    %v4594 = vld [vmem:[#allocation26] sm:$0xf]
    %v4595 = vld [vmem:[#allocation26 + $0x4] sm:$0xf]
    %v4596 = vld [vmem:[#allocation26 + $0x8] sm:$0xf]
    %v4597 = vld [vmem:[#allocation26 + $0xc] sm:$0xf]
    %v4598 = vld [vmem:[#allocation26 + $0x10] sm:$0xf]
    %v4599 = vld [vmem:[#allocation26 + $0x14] sm:$0xf]
    %v4600 = vld [vmem:[#allocation26 + $0x18] sm:$0xf]
    %v4601 = vld [vmem:[#allocation26 + $0x1c] sm:$0xf]
    %v4602 = vld [vmem:[#allocation26 + $0x20] sm:$0xf]
    %v4603 = vld [vmem:[#allocation26 + $0x24] sm:$0xf]
    %v4604 = vld [vmem:[#allocation26 + $0x28] sm:$0xf]
    %v4605 = vld [vmem:[#allocation26 + $0x2c] sm:$0xf]
    %v4606 = vld [vmem:[#allocation26 + $0x30] sm:$0xf]
    %v4607 = vld [vmem:[#allocation26 + $0x34] sm:$0xf]
    %v4608 = vld [vmem:[#allocation26 + $0x38] sm:$0xf]
    %v4609 = vld [vmem:[#allocation26 + $0x3c] sm:$0xf]
    %v4610 = vld [vmem:[#allocation26 + $0x40] sm:$0xf]
    %v4611 = vld [vmem:[#allocation26 + $0x44] sm:$0xf]
    %v4612 = vld [vmem:[#allocation26 + $0x48] sm:$0xf]
    %v4613 = vld [vmem:[#allocation26 + $0x4c] sm:$0xf]
    %v4614 = vld [vmem:[#allocation26 + $0x50] sm:$0xf]
    %v4615 = vld [vmem:[#allocation26 + $0x54] sm:$0xf]
    %v4616 = vld [vmem:[#allocation26 + $0x58] sm:$0xf]
    %v4617 = vld [vmem:[#allocation26 + $0x5c] sm:$0xf]
    %v4618 = vld [vmem:[#allocation26 + $0x60] sm:$0xf]
    %v4619 = vld [vmem:[#allocation26 + $0x64] sm:$0xf]
    %v4620 = vld [vmem:[#allocation26 + $0x68] sm:$0xf]
    %v4621 = vld [vmem:[#allocation26 + $0x6c] sm:$0xf]
    %v4622 = vld [vmem:[#allocation26 + $0x70] sm:$0xf]
    %v4623 = vld [vmem:[#allocation26 + $0x74] sm:$0xf]
    %v4624 = vld [vmem:[#allocation26 + $0x78] sm:$0xf]
    %v4625 = vld [vmem:[#allocation26 + $0x7c] sm:$0xf]
    %v4626 = vld [vmem:[#allocation38] sm:$0xff]
    %v4627 = vld [vmem:[#allocation38 + $0x8] sm:$0xff]
    %v4628 = vld [vmem:[#allocation38 + $0x18] sm:$0xff]
    %v4629 = vld [vmem:[#allocation38 + $0x20] sm:$0xff]
    %v4630 = vld [vmem:[#allocation38 + $0x30] sm:$0xff]
    %v4631 = vld [vmem:[#allocation38 + $0x38] sm:$0xff]
    %v4632 = vld [vmem:[#allocation38 + $0x48] sm:$0xff]
    %v4633 = vld [vmem:[#allocation38 + $0x50] sm:$0xff]
    %v4634 = vld [vmem:[#allocation38 + $0x60] sm:$0xff]
    %v4635 = vld [vmem:[#allocation38 + $0x68] sm:$0xff]
    %v4636 = vld [vmem:[#allocation38 + $0x78] sm:$0xff]
    %v4637 = vld [vmem:[#allocation38 + $0x80] sm:$0xff]
    %v4638 = vld [vmem:[#allocation38 + $0x90] sm:$0xff]
    %v4639 = vld [vmem:[#allocation38 + $0x98] sm:$0xff]
    %v4640 = vld [vmem:[#allocation38 + $0xa8] sm:$0xff]
    %v4641 = vld [vmem:[#allocation38 + $0xb0] sm:$0xff]
    %v4642 = vld [vmem:[#allocation38 + $0xc0] sm:$0xff]
    %v4643 = vld [vmem:[#allocation38 + $0xc8] sm:$0xff]
    %v4644 = vld [vmem:[#allocation38 + $0xd8] sm:$0xff]
    %v4645 = vld [vmem:[#allocation38 + $0xe0] sm:$0xff]
    %v4646 = vld [vmem:[#allocation38 + $0xf0] sm:$0xff]
    %v4647 = vld [vmem:[#allocation38 + $0xf8] sm:$0xff]
    %v4648 = vld [vmem:[#allocation38 + $0x108] sm:$0xff]
    %v4649 = vld [vmem:[#allocation38 + $0x110] sm:$0xff]
    %v4650 = vld [vmem:[#allocation38 + $0x120] sm:$0xff]
    %v4651 = vld [vmem:[#allocation38 + $0x128] sm:$0xff]
    %v4652 = vld [vmem:[#allocation38 + $0x138] sm:$0xff]
    %v4653 = vld [vmem:[#allocation38 + $0x140] sm:$0xff]
    %v4654 = vld [vmem:[#allocation38 + $0x150] sm:$0xff]
    %v4655 = vld [vmem:[#allocation38 + $0x158] sm:$0xff]
    %v4656 = vld [vmem:[#allocation38 + $0x168] sm:$0xff]
    %v4657 = vld [vmem:[#allocation38 + $0x170] sm:$0xff]
    %v4658 = vpack.c.bf16 %v4628, %v4626
    %v4659 = vpack.c.bf16 %v4629, %v4627
    %v4660 = vpack.c.bf16 %v4632, %v4630
    %v4661 = vpack.c.bf16 %v4633, %v4631
    %v4662 = vpack.c.bf16 %v4636, %v4634
    %v4663 = vpack.c.bf16 %v4637, %v4635
    %v4664 = vpack.c.bf16 %v4640, %v4638
    %v4665 = vpack.c.bf16 %v4641, %v4639
    %v4666 = vpack.c.bf16 %v4644, %v4642
    %v4667 = vpack.c.bf16 %v4645, %v4643
    %v4668 = vpack.c.bf16 %v4648, %v4646
    %v4669 = vpack.c.bf16 %v4649, %v4647
    %v4670 = vpack.c.bf16 %v4652, %v4650
    %v4671 = vpack.c.bf16 %v4653, %v4651
    %v4672 = vpack.c.bf16 %v4656, %v4654
    %v4673 = vpack.c.bf16 %v4657, %v4655
    %v4674 = vld [vmem:[#allocation40] sm:$0xff]
    %v4675 = vld [vmem:[#allocation40 + $0x8] sm:$0xff]
    %v4676 = vld [vmem:[#allocation40 + $0x18] sm:$0xff]
    %v4677 = vld [vmem:[#allocation40 + $0x20] sm:$0xff]
    %v4678 = vld [vmem:[#allocation40 + $0x30] sm:$0xff]
    %v4679 = vld [vmem:[#allocation40 + $0x38] sm:$0xff]
    %v4680 = vld [vmem:[#allocation40 + $0x48] sm:$0xff]
    %v4681 = vld [vmem:[#allocation40 + $0x50] sm:$0xff]
    %v4682 = vld [vmem:[#allocation40 + $0x60] sm:$0xff]
    %v4683 = vld [vmem:[#allocation40 + $0x68] sm:$0xff]
    %v4684 = vld [vmem:[#allocation40 + $0x78] sm:$0xff]
    %v4685 = vld [vmem:[#allocation40 + $0x80] sm:$0xff]
    %v4686 = vld [vmem:[#allocation40 + $0x90] sm:$0xff]
    %v4687 = vld [vmem:[#allocation40 + $0x98] sm:$0xff]
    %v4688 = vld [vmem:[#allocation40 + $0xa8] sm:$0xff]
    %v4689 = vld [vmem:[#allocation40 + $0xb0] sm:$0xff]
    %v4690 = vld [vmem:[#allocation40 + $0xc0] sm:$0xff]
    %v4691 = vld [vmem:[#allocation40 + $0xc8] sm:$0xff]
    %v4692 = vld [vmem:[#allocation40 + $0xd8] sm:$0xff]
    %v4693 = vld [vmem:[#allocation40 + $0xe0] sm:$0xff]
    %v4694 = vld [vmem:[#allocation40 + $0xf0] sm:$0xff]
    %v4695 = vld [vmem:[#allocation40 + $0xf8] sm:$0xff]
    %v4696 = vld [vmem:[#allocation40 + $0x108] sm:$0xff]
    %v4697 = vld [vmem:[#allocation40 + $0x110] sm:$0xff]
    %v4698 = vld [vmem:[#allocation40 + $0x120] sm:$0xff]
    %v4699 = vld [vmem:[#allocation40 + $0x128] sm:$0xff]
    %v4700 = vld [vmem:[#allocation40 + $0x138] sm:$0xff]
    %v4701 = vld [vmem:[#allocation40 + $0x140] sm:$0xff]
    %v4702 = vld [vmem:[#allocation40 + $0x150] sm:$0xff]
    %v4703 = vld [vmem:[#allocation40 + $0x158] sm:$0xff]
    %v4704 = vld [vmem:[#allocation40 + $0x168] sm:$0xff]
    %v4705 = vld [vmem:[#allocation40 + $0x170] sm:$0xff]
    %v4706 = vld [vmem:[#allocation40 + $0x180] sm:$0xff]
    %v4707 = vld [vmem:[#allocation40 + $0x188] sm:$0xff]
    %v4708 = vld [vmem:[#allocation40 + $0x198] sm:$0xff]
    %v4709 = vld [vmem:[#allocation40 + $0x1a0] sm:$0xff]
    %v4710 = vld [vmem:[#allocation40 + $0x1b0] sm:$0xff]
    %v4711 = vld [vmem:[#allocation40 + $0x1b8] sm:$0xff]
    %v4712 = vld [vmem:[#allocation40 + $0x1c8] sm:$0xff]
    %v4713 = vld [vmem:[#allocation40 + $0x1d0] sm:$0xff]
    %v4714 = vld [vmem:[#allocation40 + $0x1e0] sm:$0xff]
    %v4715 = vld [vmem:[#allocation40 + $0x1e8] sm:$0xff]
    %v4716 = vld [vmem:[#allocation40 + $0x1f8] sm:$0xff]
    %v4717 = vld [vmem:[#allocation40 + $0x200] sm:$0xff]
    %v4718 = vld [vmem:[#allocation40 + $0x210] sm:$0xff]
    %v4719 = vld [vmem:[#allocation40 + $0x218] sm:$0xff]
    %v4720 = vld [vmem:[#allocation40 + $0x228] sm:$0xff]
    %v4721 = vld [vmem:[#allocation40 + $0x230] sm:$0xff]
    %v4722 = vld [vmem:[#allocation40 + $0x240] sm:$0xff]
    %v4723 = vld [vmem:[#allocation40 + $0x248] sm:$0xff]
    %v4724 = vld [vmem:[#allocation40 + $0x258] sm:$0xff]
    %v4725 = vld [vmem:[#allocation40 + $0x260] sm:$0xff]
    %v4726 = vld [vmem:[#allocation40 + $0x270] sm:$0xff]
    %v4727 = vld [vmem:[#allocation40 + $0x278] sm:$0xff]
    %v4728 = vld [vmem:[#allocation40 + $0x288] sm:$0xff]
    %v4729 = vld [vmem:[#allocation40 + $0x290] sm:$0xff]
    %v4730 = vld [vmem:[#allocation40 + $0x2a0] sm:$0xff]
    %v4731 = vld [vmem:[#allocation40 + $0x2a8] sm:$0xff]
    %v4732 = vld [vmem:[#allocation40 + $0x2b8] sm:$0xff]
    %v4733 = vld [vmem:[#allocation40 + $0x2c0] sm:$0xff]
    %v4734 = vld [vmem:[#allocation40 + $0x2d0] sm:$0xff]
    %v4735 = vld [vmem:[#allocation40 + $0x2d8] sm:$0xff]
    %v4736 = vld [vmem:[#allocation40 + $0x2e8] sm:$0xff]
    %v4737 = vld [vmem:[#allocation40 + $0x2f0] sm:$0xff]
    %v4738 = vpack.c.bf16 %v4676, %v4674
    %v4739 = vpack.c.bf16 %v4677, %v4675
    %v4740 = vpack.c.bf16 %v4680, %v4678
    %v4741 = vpack.c.bf16 %v4681, %v4679
    %v4742 = vpack.c.bf16 %v4684, %v4682
    %v4743 = vpack.c.bf16 %v4685, %v4683
    %v4744 = vpack.c.bf16 %v4688, %v4686
    %v4745 = vpack.c.bf16 %v4689, %v4687
    %v4746 = vpack.c.bf16 %v4692, %v4690
    %v4747 = vpack.c.bf16 %v4693, %v4691
    %v4748 = vpack.c.bf16 %v4696, %v4694
    %v4749 = vpack.c.bf16 %v4697, %v4695
    %v4750 = vpack.c.bf16 %v4700, %v4698
    %v4751 = vpack.c.bf16 %v4701, %v4699
    %v4752 = vpack.c.bf16 %v4704, %v4702
    %v4753 = vpack.c.bf16 %v4705, %v4703
    %v4754 = vpack.c.bf16 %v4708, %v4706
    %v4755 = vpack.c.bf16 %v4709, %v4707
    %v4756 = vpack.c.bf16 %v4712, %v4710
    %v4757 = vpack.c.bf16 %v4713, %v4711
    %v4758 = vpack.c.bf16 %v4716, %v4714
    %v4759 = vpack.c.bf16 %v4717, %v4715
    %v4760 = vpack.c.bf16 %v4720, %v4718
    %v4761 = vpack.c.bf16 %v4721, %v4719
    %v4762 = vpack.c.bf16 %v4724, %v4722
    %v4763 = vpack.c.bf16 %v4725, %v4723
    %v4764 = vpack.c.bf16 %v4728, %v4726
    %v4765 = vpack.c.bf16 %v4729, %v4727
    %v4766 = vpack.c.bf16 %v4732, %v4730
    %v4767 = vpack.c.bf16 %v4733, %v4731
    %v4768 = vpack.c.bf16 %v4736, %v4734
    %v4769 = vpack.c.bf16 %v4737, %v4735
    %v4802 = vunpack.c.l.b16 %v4562
    %v4803 = vunpack.c.l.b16 %v4563
    %v4804 = vunpack.c.l.b16 %v4564
    %v4805 = vunpack.c.l.b16 %v4565
    %v4806 = vunpack.c.l.b16 %v4566
    %v4807 = vunpack.c.l.b16 %v4567
    %v4808 = vunpack.c.l.b16 %v4568
    %v4809 = vunpack.c.l.b16 %v4569
    %v4810 = vunpack.c.l.b16 %v4570
    %v4811 = vunpack.c.l.b16 %v4571
    %v4812 = vunpack.c.l.b16 %v4572
    %v4813 = vunpack.c.l.b16 %v4573
    %v4814 = vunpack.c.l.b16 %v4574
    %v4815 = vunpack.c.l.b16 %v4575
    %v4816 = vunpack.c.l.b16 %v4576
    %v4817 = vunpack.c.l.b16 %v4577
    %v4818 = vunpack.c.l.b16 %v4578
    %v4819 = vunpack.c.l.b16 %v4579
    %v4820 = vunpack.c.l.b16 %v4580
    %v4821 = vunpack.c.l.b16 %v4581
    %v4822 = vunpack.c.l.b16 %v4582
    %v4823 = vunpack.c.l.b16 %v4583
    %v4824 = vunpack.c.l.b16 %v4584
    %v4825 = vunpack.c.l.b16 %v4585
    %v4826 = vunpack.c.l.b16 %v4586
    %v4827 = vunpack.c.l.b16 %v4587
    %v4828 = vunpack.c.l.b16 %v4588
    %v4829 = vunpack.c.l.b16 %v4589
    %v4830 = vunpack.c.l.b16 %v4590
    %v4831 = vunpack.c.l.b16 %v4591
    %v4832 = vunpack.c.l.b16 %v4592
    %v4833 = vunpack.c.l.b16 %v4593
    %v4834 = vpack.c.b16 %v4803, %v4802
    %v4835 = vpack.c.b16 %v4805, %v4804
    %v4836 = vpack.c.b16 %v4807, %v4806
    %v4837 = vpack.c.b16 %v4809, %v4808
    %v4838 = vpack.c.b16 %v4811, %v4810
    %v4839 = vpack.c.b16 %v4813, %v4812
    %v4840 = vpack.c.b16 %v4815, %v4814
    %v4841 = vpack.c.b16 %v4817, %v4816
    %v4842 = vpack.c.b16 %v4819, %v4818
    %v4843 = vpack.c.b16 %v4821, %v4820
    %v4844 = vpack.c.b16 %v4823, %v4822
    %v4845 = vpack.c.b16 %v4825, %v4824
    %v4846 = vpack.c.b16 %v4827, %v4826
    %v4847 = vpack.c.b16 %v4829, %v4828
    %v4848 = vpack.c.b16 %v4831, %v4830
    %v4849 = vpack.c.b16 %v4833, %v4832
    %4866 = vmatpush.bf16.msra.mxu0 %v4841
    %4867 = vmatpush.bf16.msra.mxu0 %v4840
    %4868 = vmatpush.bf16.msra.mxu0 %v4839
    %4869 = vmatpush.bf16.msra.mxu0 %v4838
    %4870 = vmatpush.bf16.msra.mxu0 %v4837
    %4871 = vmatpush.bf16.msra.mxu0 %v4836
    %4872 = vmatpush.bf16.msra.mxu0 %v4835
    %4873 = vmatpush.bf16.msra.mxu0 %v4834
    %4874 = vmatmul.bf16.gmra.mxu0 %v4658
    %v4875 = vpop.f32.mrf.mxu0
    %v4876 = vadd.f32 0.0, %v4875
    %v4877 = vpop.f32.mrf.mxu0
    %v4878 = vadd.f32 0.0, %v4877
    %4879 = vmatmul.bf16.gmra.mxu0 %v4660
    %v4880 = vpop.f32.mrf.mxu0
    %v4881 = vadd.f32 0.0, %v4880
    %v4882 = vpop.f32.mrf.mxu0
    %v4883 = vadd.f32 0.0, %v4882
    %4884 = vmatmul.bf16.gmra.mxu0 %v4662
    %v4885 = vpop.f32.mrf.mxu0
    %v4886 = vadd.f32 0.0, %v4885
    %v4887 = vpop.f32.mrf.mxu0
    %v4888 = vadd.f32 0.0, %v4887
    %4889 = vmatmul.bf16.gmra.mxu0 %v4664
    %v4890 = vpop.f32.mrf.mxu0
    %v4891 = vadd.f32 0.0, %v4890
    %v4892 = vpop.f32.mrf.mxu0
    %v4893 = vadd.f32 0.0, %v4892
    %4894 = vmatmul.bf16.gmra.mxu0 %v4666
    %v4895 = vpop.f32.mrf.mxu0
    %v4896 = vadd.f32 0.0, %v4895
    %v4897 = vpop.f32.mrf.mxu0
    %v4898 = vadd.f32 0.0, %v4897
    %4899 = vmatmul.bf16.gmra.mxu0 %v4668
    %v4900 = vpop.f32.mrf.mxu0
    %v4901 = vadd.f32 0.0, %v4900
    %v4902 = vpop.f32.mrf.mxu0
    %v4903 = vadd.f32 0.0, %v4902
    %4904 = vmatmul.bf16.gmra.mxu0 %v4670
    %v4905 = vpop.f32.mrf.mxu0
    %v4906 = vadd.f32 0.0, %v4905
    %v4907 = vpop.f32.mrf.mxu0
    %v4908 = vadd.f32 0.0, %v4907
    %4909 = vmatmul.bf16.gmra.mxu0 %v4672
    %v4910 = vpop.f32.mrf.mxu0
    %v4911 = vadd.f32 0.0, %v4910
    %v4912 = vpop.f32.mrf.mxu0
    %v4913 = vadd.f32 0.0, %v4912
    %4914 = vdwg.mxu0
    %4915 = vmatpush.bf16.msra.mxu0 %v4849
    %4916 = vmatpush.bf16.msra.mxu0 %v4848
    %4917 = vmatpush.bf16.msra.mxu0 %v4847
    %4918 = vmatpush.bf16.msra.mxu0 %v4846
    %4919 = vmatpush.bf16.msra.mxu0 %v4845
    %4920 = vmatpush.bf16.msra.mxu0 %v4844
    %4921 = vmatpush.bf16.msra.mxu0 %v4843
    %4922 = vmatpush.bf16.msra.mxu0 %v4842
    %4923 = vmatmul.bf16.gmra.mxu0 %v4659
    %v4924 = vpop.f32.mrf.mxu0
    %v4925 = vadd.f32 %v4876, %v4924
    %v4926 = vpop.f32.mrf.mxu0
    %v4927 = vadd.f32 %v4878, %v4926
    %4928 = vmatmul.bf16.gmra.mxu0 %v4661
    %v4929 = vpop.f32.mrf.mxu0
    %v4930 = vadd.f32 %v4881, %v4929
    %v4931 = vpop.f32.mrf.mxu0
    %v4932 = vadd.f32 %v4883, %v4931
    %4933 = vmatmul.bf16.gmra.mxu0 %v4663
    %v4934 = vpop.f32.mrf.mxu0
    %v4935 = vadd.f32 %v4886, %v4934
    %v4936 = vpop.f32.mrf.mxu0
    %v4937 = vadd.f32 %v4888, %v4936
    %4938 = vmatmul.bf16.gmra.mxu0 %v4665
    %v4939 = vpop.f32.mrf.mxu0
    %v4940 = vadd.f32 %v4891, %v4939
    %v4941 = vpop.f32.mrf.mxu0
    %v4942 = vadd.f32 %v4893, %v4941
    %4943 = vmatmul.bf16.gmra.mxu0 %v4667
    %v4944 = vpop.f32.mrf.mxu0
    %v4945 = vadd.f32 %v4896, %v4944
    %v4946 = vpop.f32.mrf.mxu0
    %v4947 = vadd.f32 %v4898, %v4946
    %4948 = vmatmul.bf16.gmra.mxu0 %v4669
    %v4949 = vpop.f32.mrf.mxu0
    %v4950 = vadd.f32 %v4901, %v4949
    %v4951 = vpop.f32.mrf.mxu0
    %v4952 = vadd.f32 %v4903, %v4951
    %4953 = vmatmul.bf16.gmra.mxu0 %v4671
    %v4954 = vpop.f32.mrf.mxu0
    %v4955 = vadd.f32 %v4906, %v4954
    %v4956 = vpop.f32.mrf.mxu0
    %v4957 = vadd.f32 %v4908, %v4956
    %4958 = vmatmul.bf16.gmra.mxu0 %v4673
    %v4959 = vpop.f32.mrf.mxu0
    %v4960 = vadd.f32 %v4911, %v4959
    %v4961 = vpop.f32.mrf.mxu0
    %v4962 = vadd.f32 %v4913, %v4961
    %4963 = vdwg.mxu0
    %v4996 = vunpack.c.l.b16 %v4594
    %v4997 = vunpack.c.l.b16 %v4595
    %v4998 = vunpack.c.l.b16 %v4596
    %v4999 = vunpack.c.l.b16 %v4597
    %v5000 = vunpack.c.l.b16 %v4598
    %v5001 = vunpack.c.l.b16 %v4599
    %v5002 = vunpack.c.l.b16 %v4600
    %v5003 = vunpack.c.l.b16 %v4601
    %v5004 = vunpack.c.l.b16 %v4602
    %v5005 = vunpack.c.l.b16 %v4603
    %v5006 = vunpack.c.l.b16 %v4604
    %v5007 = vunpack.c.l.b16 %v4605
    %v5008 = vunpack.c.l.b16 %v4606
    %v5009 = vunpack.c.l.b16 %v4607
    %v5010 = vunpack.c.l.b16 %v4608
    %v5011 = vunpack.c.l.b16 %v4609
    %v5012 = vunpack.c.l.b16 %v4610
    %v5013 = vunpack.c.l.b16 %v4611
    %v5014 = vunpack.c.l.b16 %v4612
    %v5015 = vunpack.c.l.b16 %v4613
    %v5016 = vunpack.c.l.b16 %v4614
    %v5017 = vunpack.c.l.b16 %v4615
    %v5018 = vunpack.c.l.b16 %v4616
    %v5019 = vunpack.c.l.b16 %v4617
    %v5020 = vunpack.c.l.b16 %v4618
    %v5021 = vunpack.c.l.b16 %v4619
    %v5022 = vunpack.c.l.b16 %v4620
    %v5023 = vunpack.c.l.b16 %v4621
    %v5024 = vunpack.c.l.b16 %v4622
    %v5025 = vunpack.c.l.b16 %v4623
    %v5026 = vunpack.c.l.b16 %v4624
    %v5027 = vunpack.c.l.b16 %v4625
    %v5028 = vpack.c.b16 %v4997, %v4996
    %v5029 = vpack.c.b16 %v4999, %v4998
    %v5030 = vpack.c.b16 %v5001, %v5000
    %v5031 = vpack.c.b16 %v5003, %v5002
    %v5032 = vpack.c.b16 %v5005, %v5004
    %v5033 = vpack.c.b16 %v5007, %v5006
    %v5034 = vpack.c.b16 %v5009, %v5008
    %v5035 = vpack.c.b16 %v5011, %v5010
    %v5036 = vpack.c.b16 %v5013, %v5012
    %v5037 = vpack.c.b16 %v5015, %v5014
    %v5038 = vpack.c.b16 %v5017, %v5016
    %v5039 = vpack.c.b16 %v5019, %v5018
    %v5040 = vpack.c.b16 %v5021, %v5020
    %v5041 = vpack.c.b16 %v5023, %v5022
    %v5042 = vpack.c.b16 %v5025, %v5024
    %v5043 = vpack.c.b16 %v5027, %v5026
    %5060 = vmatpush.bf16.msra.mxu0 %v5035
    %5061 = vmatpush.bf16.msra.mxu0 %v5034
    %5062 = vmatpush.bf16.msra.mxu0 %v5033
    %5063 = vmatpush.bf16.msra.mxu0 %v5032
    %5064 = vmatpush.bf16.msra.mxu0 %v5031
    %5065 = vmatpush.bf16.msra.mxu0 %v5030
    %5066 = vmatpush.bf16.msra.mxu0 %v5029
    %5067 = vmatpush.bf16.msra.mxu0 %v5028
    %5068 = vmatmul.bf16.gmra.mxu0 %v4738
    %v5069 = vpop.f32.mrf.mxu0
    %v5070 = vadd.f32 0.0, %v5069
    %v5071 = vpop.f32.mrf.mxu0
    %v5072 = vadd.f32 0.0, %v5071
    %5073 = vmatmul.bf16.gmra.mxu0 %v4740
    %v5074 = vpop.f32.mrf.mxu0
    %v5075 = vadd.f32 0.0, %v5074
    %v5076 = vpop.f32.mrf.mxu0
    %v5077 = vadd.f32 0.0, %v5076
    %5078 = vmatmul.bf16.gmra.mxu0 %v4742
    %v5079 = vpop.f32.mrf.mxu0
    %v5080 = vadd.f32 0.0, %v5079
    %v5081 = vpop.f32.mrf.mxu0
    %v5082 = vadd.f32 0.0, %v5081
    %5083 = vmatmul.bf16.gmra.mxu0 %v4744
    %v5084 = vpop.f32.mrf.mxu0
    %v5085 = vadd.f32 0.0, %v5084
    %v5086 = vpop.f32.mrf.mxu0
    %v5087 = vadd.f32 0.0, %v5086
    %5088 = vmatmul.bf16.gmra.mxu0 %v4746
    %v5089 = vpop.f32.mrf.mxu0
    %v5090 = vadd.f32 0.0, %v5089
    %v5091 = vpop.f32.mrf.mxu0
    %v5092 = vadd.f32 0.0, %v5091
    %5093 = vmatmul.bf16.gmra.mxu0 %v4748
    %v5094 = vpop.f32.mrf.mxu0
    %v5095 = vadd.f32 0.0, %v5094
    %v5096 = vpop.f32.mrf.mxu0
    %v5097 = vadd.f32 0.0, %v5096
    %5098 = vmatmul.bf16.gmra.mxu0 %v4750
    %v5099 = vpop.f32.mrf.mxu0
    %v5100 = vadd.f32 0.0, %v5099
    %v5101 = vpop.f32.mrf.mxu0
    %v5102 = vadd.f32 0.0, %v5101
    %5103 = vmatmul.bf16.gmra.mxu0 %v4752
    %v5104 = vpop.f32.mrf.mxu0
    %v5105 = vadd.f32 0.0, %v5104
    %v5106 = vpop.f32.mrf.mxu0
    %v5107 = vadd.f32 0.0, %v5106
    %5108 = vmatmul.bf16.gmra.mxu0 %v4754
    %v5109 = vpop.f32.mrf.mxu0
    %v5110 = vadd.f32 0.0, %v5109
    %v5111 = vpop.f32.mrf.mxu0
    %v5112 = vadd.f32 0.0, %v5111
    %5113 = vmatmul.bf16.gmra.mxu0 %v4756
    %v5114 = vpop.f32.mrf.mxu0
    %v5115 = vadd.f32 0.0, %v5114
    %v5116 = vpop.f32.mrf.mxu0
    %v5117 = vadd.f32 0.0, %v5116
    %5118 = vmatmul.bf16.gmra.mxu0 %v4758
    %v5119 = vpop.f32.mrf.mxu0
    %v5120 = vadd.f32 0.0, %v5119
    %v5121 = vpop.f32.mrf.mxu0
    %v5122 = vadd.f32 0.0, %v5121
    %5123 = vmatmul.bf16.gmra.mxu0 %v4760
    %v5124 = vpop.f32.mrf.mxu0
    %v5125 = vadd.f32 0.0, %v5124
    %v5126 = vpop.f32.mrf.mxu0
    %v5127 = vadd.f32 0.0, %v5126
    %5128 = vmatmul.bf16.gmra.mxu0 %v4762
    %v5129 = vpop.f32.mrf.mxu0
    %v5130 = vadd.f32 0.0, %v5129
    %v5131 = vpop.f32.mrf.mxu0
    %v5132 = vadd.f32 0.0, %v5131
    %5133 = vmatmul.bf16.gmra.mxu0 %v4764
    %v5134 = vpop.f32.mrf.mxu0
    %v5135 = vadd.f32 0.0, %v5134
    %v5136 = vpop.f32.mrf.mxu0
    %v5137 = vadd.f32 0.0, %v5136
    %5138 = vmatmul.bf16.gmra.mxu0 %v4766
    %v5139 = vpop.f32.mrf.mxu0
    %v5140 = vadd.f32 0.0, %v5139
    %v5141 = vpop.f32.mrf.mxu0
    %v5142 = vadd.f32 0.0, %v5141
    %5143 = vmatmul.bf16.gmra.mxu0 %v4768
    %v5144 = vpop.f32.mrf.mxu0
    %v5145 = vadd.f32 0.0, %v5144
    %v5146 = vpop.f32.mrf.mxu0
    %v5147 = vadd.f32 0.0, %v5146
    %5148 = vdwg.mxu0
    %5149 = vmatpush.bf16.msra.mxu0 %v5043
    %5150 = vmatpush.bf16.msra.mxu0 %v5042
    %5151 = vmatpush.bf16.msra.mxu0 %v5041
    %5152 = vmatpush.bf16.msra.mxu0 %v5040
    %5153 = vmatpush.bf16.msra.mxu0 %v5039
    %5154 = vmatpush.bf16.msra.mxu0 %v5038
    %5155 = vmatpush.bf16.msra.mxu0 %v5037
    %5156 = vmatpush.bf16.msra.mxu0 %v5036
    %5157 = vmatmul.bf16.gmra.mxu0 %v4739
    %v5158 = vpop.f32.mrf.mxu0
    %v5159 = vadd.f32 %v5070, %v5158
    %v5160 = vpop.f32.mrf.mxu0
    %v5161 = vadd.f32 %v5072, %v5160
    %5162 = vmatmul.bf16.gmra.mxu0 %v4741
    %v5163 = vpop.f32.mrf.mxu0
    %v5164 = vadd.f32 %v5075, %v5163
    %v5165 = vpop.f32.mrf.mxu0
    %v5166 = vadd.f32 %v5077, %v5165
    %5167 = vmatmul.bf16.gmra.mxu0 %v4743
    %v5168 = vpop.f32.mrf.mxu0
    %v5169 = vadd.f32 %v5080, %v5168
    %v5170 = vpop.f32.mrf.mxu0
    %v5171 = vadd.f32 %v5082, %v5170
    %5172 = vmatmul.bf16.gmra.mxu0 %v4745
    %v5173 = vpop.f32.mrf.mxu0
    %v5174 = vadd.f32 %v5085, %v5173
    %v5175 = vpop.f32.mrf.mxu0
    %v5176 = vadd.f32 %v5087, %v5175
    %5177 = vmatmul.bf16.gmra.mxu0 %v4747
    %v5178 = vpop.f32.mrf.mxu0
    %v5179 = vadd.f32 %v5090, %v5178
    %v5180 = vpop.f32.mrf.mxu0
    %v5181 = vadd.f32 %v5092, %v5180
    %5182 = vmatmul.bf16.gmra.mxu0 %v4749
    %v5183 = vpop.f32.mrf.mxu0
    %v5184 = vadd.f32 %v5095, %v5183
    %v5185 = vpop.f32.mrf.mxu0
    %v5186 = vadd.f32 %v5097, %v5185
    %5187 = vmatmul.bf16.gmra.mxu0 %v4751
    %v5188 = vpop.f32.mrf.mxu0
    %v5189 = vadd.f32 %v5100, %v5188
    %v5190 = vpop.f32.mrf.mxu0
    %v5191 = vadd.f32 %v5102, %v5190
    %5192 = vmatmul.bf16.gmra.mxu0 %v4753
    %v5193 = vpop.f32.mrf.mxu0
    %v5194 = vadd.f32 %v5105, %v5193
    %v5195 = vpop.f32.mrf.mxu0
    %v5196 = vadd.f32 %v5107, %v5195
    %5197 = vmatmul.bf16.gmra.mxu0 %v4755
    %v5198 = vpop.f32.mrf.mxu0
    %v5199 = vadd.f32 %v5110, %v5198
    %v5200 = vpop.f32.mrf.mxu0
    %v5201 = vadd.f32 %v5112, %v5200
    %5202 = vmatmul.bf16.gmra.mxu0 %v4757
    %v5203 = vpop.f32.mrf.mxu0
    %v5204 = vadd.f32 %v5115, %v5203
    %v5205 = vpop.f32.mrf.mxu0
    %v5206 = vadd.f32 %v5117, %v5205
    %5207 = vmatmul.bf16.gmra.mxu0 %v4759
    %v5208 = vpop.f32.mrf.mxu0
    %v5209 = vadd.f32 %v5120, %v5208
    %v5210 = vpop.f32.mrf.mxu0
    %v5211 = vadd.f32 %v5122, %v5210
    %5212 = vmatmul.bf16.gmra.mxu0 %v4761
    %v5213 = vpop.f32.mrf.mxu0
    %v5214 = vadd.f32 %v5125, %v5213
    %v5215 = vpop.f32.mrf.mxu0
    %v5216 = vadd.f32 %v5127, %v5215
    %5217 = vmatmul.bf16.gmra.mxu0 %v4763
    %v5218 = vpop.f32.mrf.mxu0
    %v5219 = vadd.f32 %v5130, %v5218
    %v5220 = vpop.f32.mrf.mxu0
    %v5221 = vadd.f32 %v5132, %v5220
    %5222 = vmatmul.bf16.gmra.mxu0 %v4765
    %v5223 = vpop.f32.mrf.mxu0
    %v5224 = vadd.f32 %v5135, %v5223
    %v5225 = vpop.f32.mrf.mxu0
    %v5226 = vadd.f32 %v5137, %v5225
    %5227 = vmatmul.bf16.gmra.mxu0 %v4767
    %v5228 = vpop.f32.mrf.mxu0
    %v5229 = vadd.f32 %v5140, %v5228
    %v5230 = vpop.f32.mrf.mxu0
    %v5231 = vadd.f32 %v5142, %v5230
    %5232 = vmatmul.bf16.gmra.mxu0 %v4769
    %v5233 = vpop.f32.mrf.mxu0
    %v5234 = vadd.f32 %v5145, %v5233
    %v5235 = vpop.f32.mrf.mxu0
    %v5236 = vadd.f32 %v5147, %v5235
    %5237 = vdwg.mxu0
    %v5238 = vpack.c.bf16 %v5161, %v5159
    %v5239 = vpack.c.bf16 %v5166, %v5164
    %v5240 = vpack.c.bf16 %v5171, %v5169
    %v5241 = vpack.c.bf16 %v5176, %v5174
    %v5242 = vpack.c.bf16 %v5181, %v5179
    %v5243 = vpack.c.bf16 %v5186, %v5184
    %v5244 = vpack.c.bf16 %v5191, %v5189
    %v5245 = vpack.c.bf16 %v5196, %v5194
    %v5246 = vpack.c.bf16 %v5201, %v5199
    %v5247 = vpack.c.bf16 %v5206, %v5204
    %v5248 = vpack.c.bf16 %v5211, %v5209
    %v5249 = vpack.c.bf16 %v5216, %v5214
    %v5250 = vpack.c.bf16 %v5221, %v5219
    %v5251 = vpack.c.bf16 %v5226, %v5224
    %v5252 = vpack.c.bf16 %v5231, %v5229
    %v5253 = vpack.c.bf16 %v5236, %v5234
    %5254 = vmatpush.bf16.msra.mxu0 %v5245
    %5255 = vmatpush.bf16.msra.mxu0 %v5244
    %5256 = vmatpush.bf16.msra.mxu0 %v5243
    %5257 = vmatpush.bf16.msra.mxu0 %v5242
    %5258 = vmatpush.bf16.msra.mxu0 %v5241
    %5259 = vmatpush.bf16.msra.mxu0 %v5240
    %5260 = vmatpush.bf16.msra.mxu0 %v5239
    %5261 = vmatpush.bf16.msra.mxu0 %v5238
    %5262 = vmatmul.bf16.gmra.mxu0 %v703
    %v5263 = vpop.f32.mrf.mxu0
    %v5264 = vadd.f32 0.0, %v5263
    %v5265 = vpop.f32.mrf.mxu0
    %v5266 = vadd.f32 0.0, %v5265
    %5267 = vmatmul.bf16.gmra.mxu0 %v705
    %v5268 = vpop.f32.mrf.mxu0
    %v5269 = vadd.f32 0.0, %v5268
    %v5270 = vpop.f32.mrf.mxu0
    %v5271 = vadd.f32 0.0, %v5270
    %5272 = vmatmul.bf16.gmra.mxu0 %v707
    %v5273 = vpop.f32.mrf.mxu0
    %v5274 = vadd.f32 0.0, %v5273
    %v5275 = vpop.f32.mrf.mxu0
    %v5276 = vadd.f32 0.0, %v5275
    %5277 = vmatmul.bf16.gmra.mxu0 %v709
    %v5278 = vpop.f32.mrf.mxu0
    %v5279 = vadd.f32 0.0, %v5278
    %v5280 = vpop.f32.mrf.mxu0
    %v5281 = vadd.f32 0.0, %v5280
    %5282 = vmatmul.bf16.gmra.mxu0 %v711
    %v5283 = vpop.f32.mrf.mxu0
    %v5284 = vadd.f32 0.0, %v5283
    %v5285 = vpop.f32.mrf.mxu0
    %v5286 = vadd.f32 0.0, %v5285
    %5287 = vmatmul.bf16.gmra.mxu0 %v713
    %v5288 = vpop.f32.mrf.mxu0
    %v5289 = vadd.f32 0.0, %v5288
    %v5290 = vpop.f32.mrf.mxu0
    %v5291 = vadd.f32 0.0, %v5290
    %5292 = vmatmul.bf16.gmra.mxu0 %v715
    %v5293 = vpop.f32.mrf.mxu0
    %v5294 = vadd.f32 0.0, %v5293
    %v5295 = vpop.f32.mrf.mxu0
    %v5296 = vadd.f32 0.0, %v5295
    %5297 = vmatmul.bf16.gmra.mxu0 %v717
    %v5298 = vpop.f32.mrf.mxu0
    %v5299 = vadd.f32 0.0, %v5298
    %v5300 = vpop.f32.mrf.mxu0
    %v5301 = vadd.f32 0.0, %v5300
    %5302 = vdwg.mxu0
    %5303 = vmatpush.bf16.msra.mxu0 %v5253
    %5304 = vmatpush.bf16.msra.mxu0 %v5252
    %5305 = vmatpush.bf16.msra.mxu0 %v5251
    %5306 = vmatpush.bf16.msra.mxu0 %v5250
    %5307 = vmatpush.bf16.msra.mxu0 %v5249
    %5308 = vmatpush.bf16.msra.mxu0 %v5248
    %5309 = vmatpush.bf16.msra.mxu0 %v5247
    %5310 = vmatpush.bf16.msra.mxu0 %v5246
    %5311 = vmatmul.bf16.gmra.mxu0 %v704
    %v5312 = vpop.f32.mrf.mxu0
    %v5313 = vadd.f32 %v5264, %v5312
    %v5314 = vpop.f32.mrf.mxu0
    %v5315 = vadd.f32 %v5266, %v5314
    %5316 = vmatmul.bf16.gmra.mxu0 %v706
    %v5317 = vpop.f32.mrf.mxu0
    %v5318 = vadd.f32 %v5269, %v5317
    %v5319 = vpop.f32.mrf.mxu0
    %v5320 = vadd.f32 %v5271, %v5319
    %5321 = vmatmul.bf16.gmra.mxu0 %v708
    %v5322 = vpop.f32.mrf.mxu0
    %v5323 = vadd.f32 %v5274, %v5322
    %v5324 = vpop.f32.mrf.mxu0
    %v5325 = vadd.f32 %v5276, %v5324
    %5326 = vmatmul.bf16.gmra.mxu0 %v710
    %v5327 = vpop.f32.mrf.mxu0
    %v5328 = vadd.f32 %v5279, %v5327
    %v5329 = vpop.f32.mrf.mxu0
    %v5330 = vadd.f32 %v5281, %v5329
    %5331 = vmatmul.bf16.gmra.mxu0 %v712
    %v5332 = vpop.f32.mrf.mxu0
    %v5333 = vadd.f32 %v5284, %v5332
    %v5334 = vpop.f32.mrf.mxu0
    %v5335 = vadd.f32 %v5286, %v5334
    %5336 = vmatmul.bf16.gmra.mxu0 %v714
    %v5337 = vpop.f32.mrf.mxu0
    %v5338 = vadd.f32 %v5289, %v5337
    %v5339 = vpop.f32.mrf.mxu0
    %v5340 = vadd.f32 %v5291, %v5339
    %5341 = vmatmul.bf16.gmra.mxu0 %v716
    %v5342 = vpop.f32.mrf.mxu0
    %v5343 = vadd.f32 %v5294, %v5342
    %v5344 = vpop.f32.mrf.mxu0
    %v5345 = vadd.f32 %v5296, %v5344
    %5346 = vmatmul.bf16.gmra.mxu0 %v718
    %v5347 = vpop.f32.mrf.mxu0
    %v5348 = vadd.f32 %v5299, %v5347
    %v5349 = vpop.f32.mrf.mxu0
    %v5350 = vadd.f32 %v5301, %v5349
    %5351 = vdwg.mxu0
    %v5352 = vmul.f32 %v5313, %v2833
    %v5353 = vmul.f32 %v5315, %v2838
    %v5354 = vmul.f32 %v5318, %v2843
    %v5355 = vmul.f32 %v5320, %v2848
    %v5356 = vmul.f32 %v5323, %v2853
    %v5357 = vmul.f32 %v5325, %v2858
    %v5358 = vmul.f32 %v5328, %v2863
    %v5359 = vmul.f32 %v5330, %v2868
    %v5360 = vmul.f32 %v5333, %v2873
    %v5361 = vmul.f32 %v5335, %v2878
    %v5362 = vmul.f32 %v5338, %v2883
    %v5363 = vmul.f32 %v5340, %v2888
    %v5364 = vmul.f32 %v5343, %v2893
    %v5365 = vmul.f32 %v5345, %v2898
    %v5366 = vmul.f32 %v5348, %v2903
    %v5367 = vmul.f32 %v5350, %v2908
    %v5368 = vpack.c.bf16 %v4927, %v4925
    %v5369 = vpack.c.bf16 %v4932, %v4930
    %v5370 = vpack.c.bf16 %v4937, %v4935
    %v5371 = vpack.c.bf16 %v4942, %v4940
    %v5372 = vpack.c.bf16 %v4947, %v4945
    %v5373 = vpack.c.bf16 %v4952, %v4950
    %v5374 = vpack.c.bf16 %v4957, %v4955
    %v5375 = vpack.c.bf16 %v4962, %v4960
    %5376 = vmatpush.bf16.msra.mxu0 %v5375
    %5377 = vmatpush.bf16.msra.mxu0 %v5374
    %5378 = vmatpush.bf16.msra.mxu0 %v5373
    %5379 = vmatpush.bf16.msra.mxu0 %v5372
    %5380 = vmatpush.bf16.msra.mxu0 %v5371
    %5381 = vmatpush.bf16.msra.mxu0 %v5370
    %5382 = vmatpush.bf16.msra.mxu0 %v5369
    %5383 = vmatpush.bf16.msra.mxu0 %v5368
    %5384 = vmatmul.bf16.gmra.mxu0 %v743
    %v5385 = vpop.f32.mrf.mxu0
    %v5386 = vadd.f32 0.0, %v5385
    %v5387 = vpop.f32.mrf.mxu0
    %v5388 = vadd.f32 0.0, %v5387
    %5389 = vmatmul.bf16.gmra.mxu0 %v745
    %v5390 = vpop.f32.mrf.mxu0
    %v5391 = vadd.f32 0.0, %v5390
    %v5392 = vpop.f32.mrf.mxu0
    %v5393 = vadd.f32 0.0, %v5392
    %5394 = vmatmul.bf16.gmra.mxu0 %v747
    %v5395 = vpop.f32.mrf.mxu0
    %v5396 = vadd.f32 0.0, %v5395
    %v5397 = vpop.f32.mrf.mxu0
    %v5398 = vadd.f32 0.0, %v5397
    %5399 = vmatmul.bf16.gmra.mxu0 %v749
    %v5400 = vpop.f32.mrf.mxu0
    %v5401 = vadd.f32 0.0, %v5400
    %v5402 = vpop.f32.mrf.mxu0
    %v5403 = vadd.f32 0.0, %v5402
    %5404 = vmatmul.bf16.gmra.mxu0 %v751
    %v5405 = vpop.f32.mrf.mxu0
    %v5406 = vadd.f32 0.0, %v5405
    %v5407 = vpop.f32.mrf.mxu0
    %v5408 = vadd.f32 0.0, %v5407
    %5409 = vmatmul.bf16.gmra.mxu0 %v753
    %v5410 = vpop.f32.mrf.mxu0
    %v5411 = vadd.f32 0.0, %v5410
    %v5412 = vpop.f32.mrf.mxu0
    %v5413 = vadd.f32 0.0, %v5412
    %5414 = vmatmul.bf16.gmra.mxu0 %v755
    %v5415 = vpop.f32.mrf.mxu0
    %v5416 = vadd.f32 0.0, %v5415
    %v5417 = vpop.f32.mrf.mxu0
    %v5418 = vadd.f32 0.0, %v5417
    %5419 = vmatmul.bf16.gmra.mxu0 %v757
    %v5420 = vpop.f32.mrf.mxu0
    %v5421 = vadd.f32 0.0, %v5420
    %v5422 = vpop.f32.mrf.mxu0
    %v5423 = vadd.f32 0.0, %v5422
    %5424 = vmatmul.bf16.gmra.mxu0 %v744
    %v5425 = vpop.f32.mrf.mxu0
    %v5426 = vadd.f32 0.0, %v5425
    %v5427 = vpop.f32.mrf.mxu0
    %v5428 = vadd.f32 0.0, %v5427
    %5429 = vmatmul.bf16.gmra.mxu0 %v746
    %v5430 = vpop.f32.mrf.mxu0
    %v5431 = vadd.f32 0.0, %v5430
    %v5432 = vpop.f32.mrf.mxu0
    %v5433 = vadd.f32 0.0, %v5432
    %5434 = vmatmul.bf16.gmra.mxu0 %v748
    %v5435 = vpop.f32.mrf.mxu0
    %v5436 = vadd.f32 0.0, %v5435
    %v5437 = vpop.f32.mrf.mxu0
    %v5438 = vadd.f32 0.0, %v5437
    %5439 = vmatmul.bf16.gmra.mxu0 %v750
    %v5440 = vpop.f32.mrf.mxu0
    %v5441 = vadd.f32 0.0, %v5440
    %v5442 = vpop.f32.mrf.mxu0
    %v5443 = vadd.f32 0.0, %v5442
    %5444 = vmatmul.bf16.gmra.mxu0 %v752
    %v5445 = vpop.f32.mrf.mxu0
    %v5446 = vadd.f32 0.0, %v5445
    %v5447 = vpop.f32.mrf.mxu0
    %v5448 = vadd.f32 0.0, %v5447
    %5449 = vmatmul.bf16.gmra.mxu0 %v754
    %v5450 = vpop.f32.mrf.mxu0
    %v5451 = vadd.f32 0.0, %v5450
    %v5452 = vpop.f32.mrf.mxu0
    %v5453 = vadd.f32 0.0, %v5452
    %5454 = vmatmul.bf16.gmra.mxu0 %v756
    %v5455 = vpop.f32.mrf.mxu0
    %v5456 = vadd.f32 0.0, %v5455
    %v5457 = vpop.f32.mrf.mxu0
    %v5458 = vadd.f32 0.0, %v5457
    %5459 = vmatmul.bf16.gmra.mxu0 %v758
    %v5460 = vpop.f32.mrf.mxu0
    %v5461 = vadd.f32 0.0, %v5460
    %v5462 = vpop.f32.mrf.mxu0
    %v5463 = vadd.f32 0.0, %v5462
    %5464 = vdwg.mxu0
    %v5465 = vmul.f32 %v5386, 0.5
    %v5466 = vmul.f32 %v5388, 0.5
    %v5467 = vmul.f32 %v5391, 0.5
    %v5468 = vmul.f32 %v5393, 0.5
    %v5469 = vmul.f32 %v5396, 0.5
    %v5470 = vmul.f32 %v5398, 0.5
    %v5471 = vmul.f32 %v5401, 0.5
    %v5472 = vmul.f32 %v5403, 0.5
    %v5473 = vmul.f32 %v5406, 0.5
    %v5474 = vmul.f32 %v5408, 0.5
    %v5475 = vmul.f32 %v5411, 0.5
    %v5476 = vmul.f32 %v5413, 0.5
    %v5477 = vmul.f32 %v5416, 0.5
    %v5478 = vmul.f32 %v5418, 0.5
    %v5479 = vmul.f32 %v5421, 0.5
    %v5480 = vmul.f32 %v5423, 0.5
    %v5481 = vmul.f32 %v5426, 0.5
    %v5482 = vmul.f32 %v5428, 0.5
    %v5483 = vmul.f32 %v5431, 0.5
    %v5484 = vmul.f32 %v5433, 0.5
    %v5485 = vmul.f32 %v5436, 0.5
    %v5486 = vmul.f32 %v5438, 0.5
    %v5487 = vmul.f32 %v5441, 0.5
    %v5488 = vmul.f32 %v5443, 0.5
    %v5489 = vmul.f32 %v5446, 0.5
    %v5490 = vmul.f32 %v5448, 0.5
    %v5491 = vmul.f32 %v5451, 0.5
    %v5492 = vmul.f32 %v5453, 0.5
    %v5493 = vmul.f32 %v5456, 0.5
    %v5494 = vmul.f32 %v5458, 0.5
    %v5495 = vmul.f32 %v5461, 0.5
    %v5496 = vmul.f32 %v5463, 0.5
    %v5497 = vadd.f32 %v4925, %v5352
    %v5498 = vadd.f32 %v4927, %v5353
    %v5499 = vadd.f32 %v4930, %v5354
    %v5500 = vadd.f32 %v4932, %v5355
    %v5501 = vadd.f32 %v4935, %v5356
    %v5502 = vadd.f32 %v4937, %v5357
    %v5503 = vadd.f32 %v4940, %v5358
    %v5504 = vadd.f32 %v4942, %v5359
    %v5505 = vadd.f32 %v4945, %v5360
    %v5506 = vadd.f32 %v4947, %v5361
    %v5507 = vadd.f32 %v4950, %v5362
    %v5508 = vadd.f32 %v4952, %v5363
    %v5509 = vadd.f32 %v4955, %v5364
    %v5510 = vadd.f32 %v4957, %v5365
    %v5511 = vadd.f32 %v4960, %v5366
    %v5512 = vadd.f32 %v4962, %v5367
    %v5513 = vmax.f32 %v5497, 0.0
    %v5514 = vmax.f32 %v5498, 0.0
    %v5515 = vmax.f32 %v5499, 0.0
    %v5516 = vmax.f32 %v5500, 0.0
    %v5517 = vmax.f32 %v5501, 0.0
    %v5518 = vmax.f32 %v5502, 0.0
    %v5519 = vmax.f32 %v5503, 0.0
    %v5520 = vmax.f32 %v5504, 0.0
    %v5521 = vmax.f32 %v5505, 0.0
    %v5522 = vmax.f32 %v5506, 0.0
    %v5523 = vmax.f32 %v5507, 0.0
    %v5524 = vmax.f32 %v5508, 0.0
    %v5525 = vmax.f32 %v5509, 0.0
    %v5526 = vmax.f32 %v5510, 0.0
    %v5527 = vmax.f32 %v5511, 0.0
    %v5528 = vmax.f32 %v5512, 0.0
    %v5529 = vadd.f32 %v5159, %v5465
    %v5530 = vadd.f32 %v5161, %v5466
    %v5531 = vadd.f32 %v5164, %v5467
    %v5532 = vadd.f32 %v5166, %v5468
    %v5533 = vadd.f32 %v5169, %v5469
    %v5534 = vadd.f32 %v5171, %v5470
    %v5535 = vadd.f32 %v5174, %v5471
    %v5536 = vadd.f32 %v5176, %v5472
    %v5537 = vadd.f32 %v5179, %v5473
    %v5538 = vadd.f32 %v5181, %v5474
    %v5539 = vadd.f32 %v5184, %v5475
    %v5540 = vadd.f32 %v5186, %v5476
    %v5541 = vadd.f32 %v5189, %v5477
    %v5542 = vadd.f32 %v5191, %v5478
    %v5543 = vadd.f32 %v5194, %v5479
    %v5544 = vadd.f32 %v5196, %v5480
    %v5545 = vadd.f32 %v5199, %v5481
    %v5546 = vadd.f32 %v5201, %v5482
    %v5547 = vadd.f32 %v5204, %v5483
    %v5548 = vadd.f32 %v5206, %v5484
    %v5549 = vadd.f32 %v5209, %v5485
    %v5550 = vadd.f32 %v5211, %v5486
    %v5551 = vadd.f32 %v5214, %v5487
    %v5552 = vadd.f32 %v5216, %v5488
    %v5553 = vadd.f32 %v5219, %v5489
    %v5554 = vadd.f32 %v5221, %v5490
    %v5555 = vadd.f32 %v5224, %v5491
    %v5556 = vadd.f32 %v5226, %v5492
    %v5557 = vadd.f32 %v5229, %v5493
    %v5558 = vadd.f32 %v5231, %v5494
    %v5559 = vadd.f32 %v5234, %v5495
    %v5560 = vadd.f32 %v5236, %v5496
    %v5561 = vmax.f32 %v5529, 0.0
    %v5562 = vmax.f32 %v5530, 0.0
    %v5563 = vmax.f32 %v5531, 0.0
    %v5564 = vmax.f32 %v5532, 0.0
    %v5565 = vmax.f32 %v5533, 0.0
    %v5566 = vmax.f32 %v5534, 0.0
    %v5567 = vmax.f32 %v5535, 0.0
    %v5568 = vmax.f32 %v5536, 0.0
    %v5569 = vmax.f32 %v5537, 0.0
    %v5570 = vmax.f32 %v5538, 0.0
    %v5571 = vmax.f32 %v5539, 0.0
    %v5572 = vmax.f32 %v5540, 0.0
    %v5573 = vmax.f32 %v5541, 0.0
    %v5574 = vmax.f32 %v5542, 0.0
    %v5575 = vmax.f32 %v5543, 0.0
    %v5576 = vmax.f32 %v5544, 0.0
    %v5577 = vmax.f32 %v5545, 0.0
    %v5578 = vmax.f32 %v5546, 0.0
    %v5579 = vmax.f32 %v5547, 0.0
    %v5580 = vmax.f32 %v5548, 0.0
    %v5581 = vmax.f32 %v5549, 0.0
    %v5582 = vmax.f32 %v5550, 0.0
    %v5583 = vmax.f32 %v5551, 0.0
    %v5584 = vmax.f32 %v5552, 0.0
    %v5585 = vmax.f32 %v5553, 0.0
    %v5586 = vmax.f32 %v5554, 0.0
    %v5587 = vmax.f32 %v5555, 0.0
    %v5588 = vmax.f32 %v5556, 0.0
    %v5589 = vmax.f32 %v5557, 0.0
    %v5590 = vmax.f32 %v5558, 0.0
    %v5591 = vmax.f32 %v5559, 0.0
    %v5592 = vmax.f32 %v5560, 0.0
    %v5593 = vld [vmem:[#allocation28] sm:$0xf]
    %v5594 = vld [vmem:[#allocation28 + $0x4] sm:$0xf]
    %v5595 = vld [vmem:[#allocation28 + $0x8] sm:$0xf]
    %v5596 = vld [vmem:[#allocation28 + $0xc] sm:$0xf]
    %v5597 = vld [vmem:[#allocation28 + $0x10] sm:$0xf]
    %v5598 = vld [vmem:[#allocation28 + $0x14] sm:$0xf]
    %v5599 = vld [vmem:[#allocation28 + $0x18] sm:$0xf]
    %v5600 = vld [vmem:[#allocation28 + $0x1c] sm:$0xf]
    %v5601 = vld [vmem:[#allocation28 + $0x20] sm:$0xf]
    %v5602 = vld [vmem:[#allocation28 + $0x24] sm:$0xf]
    %v5603 = vld [vmem:[#allocation28 + $0x28] sm:$0xf]
    %v5604 = vld [vmem:[#allocation28 + $0x2c] sm:$0xf]
    %v5605 = vld [vmem:[#allocation28 + $0x30] sm:$0xf]
    %v5606 = vld [vmem:[#allocation28 + $0x34] sm:$0xf]
    %v5607 = vld [vmem:[#allocation28 + $0x38] sm:$0xf]
    %v5608 = vld [vmem:[#allocation28 + $0x3c] sm:$0xf]
    %v5609 = vld [vmem:[#allocation29] sm:$0xf]
    %v5610 = vld [vmem:[#allocation29 + $0x4] sm:$0xf]
    %v5611 = vld [vmem:[#allocation29 + $0x8] sm:$0xf]
    %v5612 = vld [vmem:[#allocation29 + $0xc] sm:$0xf]
    %v5613 = vld [vmem:[#allocation29 + $0x10] sm:$0xf]
    %v5614 = vld [vmem:[#allocation29 + $0x14] sm:$0xf]
    %v5615 = vld [vmem:[#allocation29 + $0x18] sm:$0xf]
    %v5616 = vld [vmem:[#allocation29 + $0x1c] sm:$0xf]
    %v5617 = vld [vmem:[#allocation29 + $0x20] sm:$0xf]
    %v5618 = vld [vmem:[#allocation29 + $0x24] sm:$0xf]
    %v5619 = vld [vmem:[#allocation29 + $0x28] sm:$0xf]
    %v5620 = vld [vmem:[#allocation29 + $0x2c] sm:$0xf]
    %v5621 = vld [vmem:[#allocation29 + $0x30] sm:$0xf]
    %v5622 = vld [vmem:[#allocation29 + $0x34] sm:$0xf]
    %v5623 = vld [vmem:[#allocation29 + $0x38] sm:$0xf]
    %v5624 = vld [vmem:[#allocation29 + $0x3c] sm:$0xf]
    %v5625 = vld [vmem:[%s65] sm:$0x1]
    %v5626 = vld [vmem:[%s67] sm:$0x1]
    %v5627 = vld [vmem:[%s69] sm:$0x1]
    %v5628 = vpack.c.bf16 %v5514, %v5513
    %v5629 = vpack.c.bf16 %v5516, %v5515
    %v5630 = vpack.c.bf16 %v5518, %v5517
    %v5631 = vpack.c.bf16 %v5520, %v5519
    %v5632 = vpack.c.bf16 %v5522, %v5521
    %v5633 = vpack.c.bf16 %v5524, %v5523
    %v5634 = vpack.c.bf16 %v5526, %v5525
    %v5635 = vpack.c.bf16 %v5528, %v5527
    %5636 = vmatpush.bf16.msra.mxu0 %v5635
    %5637 = vmatpush.bf16.msra.mxu0 %v5634
    %5638 = vmatpush.bf16.msra.mxu0 %v5633
    %5639 = vmatpush.bf16.msra.mxu0 %v5632
    %5640 = vmatpush.bf16.msra.mxu0 %v5631
    %5641 = vmatpush.bf16.msra.mxu0 %v5630
    %5642 = vmatpush.bf16.msra.mxu0 %v5629
    %5643 = vmatpush.bf16.msra.mxu0 %v5628
    %5644 = vmatmul.bf16.gmra.mxu0 %v834
    %v5645 = vpop.f32.mrf.mxu0
    %v5646 = vadd.f32 0.0, %v5645
    %v5647 = vpop.f32.mrf.mxu0
    %v5648 = vadd.f32 0.0, %v5647
    %5649 = vmatmul.bf16.gmra.mxu0 %v835
    %v5650 = vpop.f32.mrf.mxu0
    %v5651 = vadd.f32 0.0, %v5650
    %v5652 = vpop.f32.mrf.mxu0
    %v5653 = vadd.f32 0.0, %v5652
    %5654 = vmatmul.bf16.gmra.mxu0 %v836
    %v5655 = vpop.f32.mrf.mxu0
    %v5656 = vadd.f32 0.0, %v5655
    %v5657 = vpop.f32.mrf.mxu0
    %v5658 = vadd.f32 0.0, %v5657
    %5659 = vmatmul.bf16.gmra.mxu0 %v837
    %v5660 = vpop.f32.mrf.mxu0
    %v5661 = vadd.f32 0.0, %v5660
    %v5662 = vpop.f32.mrf.mxu0
    %v5663 = vadd.f32 0.0, %v5662
    %5664 = vmatmul.bf16.gmra.mxu0 %v838
    %v5665 = vpop.f32.mrf.mxu0
    %v5666 = vadd.f32 0.0, %v5665
    %v5667 = vpop.f32.mrf.mxu0
    %v5668 = vadd.f32 0.0, %v5667
    %5669 = vmatmul.bf16.gmra.mxu0 %v839
    %v5670 = vpop.f32.mrf.mxu0
    %v5671 = vadd.f32 0.0, %v5670
    %v5672 = vpop.f32.mrf.mxu0
    %v5673 = vadd.f32 0.0, %v5672
    %5674 = vmatmul.bf16.gmra.mxu0 %v840
    %v5675 = vpop.f32.mrf.mxu0
    %v5676 = vadd.f32 0.0, %v5675
    %v5677 = vpop.f32.mrf.mxu0
    %v5678 = vadd.f32 0.0, %v5677
    %5679 = vmatmul.bf16.gmra.mxu0 %v841
    %v5680 = vpop.f32.mrf.mxu0
    %v5681 = vadd.f32 0.0, %v5680
    %v5682 = vpop.f32.mrf.mxu0
    %v5683 = vadd.f32 0.0, %v5682
    %5684 = vdwg.mxu0
    %v5685 = vsub.f32 %v5513, %v5646
    %v5686 = vsub.f32 %v5514, %v5648
    %v5687 = vsub.f32 %v5515, %v5651
    %v5688 = vsub.f32 %v5516, %v5653
    %v5689 = vsub.f32 %v5517, %v5656
    %v5690 = vsub.f32 %v5518, %v5658
    %v5691 = vsub.f32 %v5519, %v5661
    %v5692 = vsub.f32 %v5520, %v5663
    %v5693 = vsub.f32 %v5521, %v5666
    %v5694 = vsub.f32 %v5522, %v5668
    %v5695 = vsub.f32 %v5523, %v5671
    %v5696 = vsub.f32 %v5524, %v5673
    %v5697 = vsub.f32 %v5525, %v5676
    %v5698 = vsub.f32 %v5526, %v5678
    %v5699 = vsub.f32 %v5527, %v5681
    %v5700 = vsub.f32 %v5528, %v5683
    %v5701 = vpack.c.bf16 %v5686, %v5685
    %v5702 = vpack.c.bf16 %v5688, %v5687
    %v5703 = vpack.c.bf16 %v5690, %v5689
    %v5704 = vpack.c.bf16 %v5692, %v5691
    %v5705 = vpack.c.bf16 %v5694, %v5693
    %v5706 = vpack.c.bf16 %v5696, %v5695
    %v5707 = vpack.c.bf16 %v5698, %v5697
    %v5708 = vpack.c.bf16 %v5700, %v5699
    %v5725 = vunpack.c.l.b16 %v5609
    %v5726 = vunpack.c.l.b16 %v5610
    %v5727 = vunpack.c.l.b16 %v5611
    %v5728 = vunpack.c.l.b16 %v5612
    %v5729 = vunpack.c.l.b16 %v5613
    %v5730 = vunpack.c.l.b16 %v5614
    %v5731 = vunpack.c.l.b16 %v5615
    %v5732 = vunpack.c.l.b16 %v5616
    %v5733 = vunpack.c.l.b16 %v5617
    %v5734 = vunpack.c.l.b16 %v5618
    %v5735 = vunpack.c.l.b16 %v5619
    %v5736 = vunpack.c.l.b16 %v5620
    %v5737 = vunpack.c.l.b16 %v5621
    %v5738 = vunpack.c.l.b16 %v5622
    %v5739 = vunpack.c.l.b16 %v5623
    %v5740 = vunpack.c.l.b16 %v5624
    %v5741 = vpack.c.b16 %v5726, %v5725
    %v5742 = vpack.c.b16 %v5728, %v5727
    %v5743 = vpack.c.b16 %v5730, %v5729
    %v5744 = vpack.c.b16 %v5732, %v5731
    %v5745 = vpack.c.b16 %v5734, %v5733
    %v5746 = vpack.c.b16 %v5736, %v5735
    %v5747 = vpack.c.b16 %v5738, %v5737
    %v5748 = vpack.c.b16 %v5740, %v5739
    %5757 = vmatpush.bf16.msra.mxu0 %v5748
    %5758 = vmatpush.bf16.msra.mxu0 %v5747
    %5759 = vmatpush.bf16.msra.mxu0 %v5746
    %5760 = vmatpush.bf16.msra.mxu0 %v5745
    %5761 = vmatpush.bf16.msra.mxu0 %v5744
    %5762 = vmatpush.bf16.msra.mxu0 %v5743
    %5763 = vmatpush.bf16.msra.mxu0 %v5742
    %5764 = vmatpush.bf16.msra.mxu0 %v5741
    %5765 = vmatmul.bf16.gmra.mxu0 %v5701
    %v5766 = vpop.f32.mrf.mxu0
    %v5767 = vadd.f32 0.0, %v5766
    %v5768 = vpop.f32.mrf.mxu0
    %v5769 = vadd.f32 0.0, %v5768
    %5770 = vmatmul.bf16.gmra.mxu0 %v5702
    %v5771 = vpop.f32.mrf.mxu0
    %v5772 = vadd.f32 0.0, %v5771
    %v5773 = vpop.f32.mrf.mxu0
    %v5774 = vadd.f32 0.0, %v5773
    %5775 = vmatmul.bf16.gmra.mxu0 %v5703
    %v5776 = vpop.f32.mrf.mxu0
    %v5777 = vadd.f32 0.0, %v5776
    %v5778 = vpop.f32.mrf.mxu0
    %v5779 = vadd.f32 0.0, %v5778
    %5780 = vmatmul.bf16.gmra.mxu0 %v5704
    %v5781 = vpop.f32.mrf.mxu0
    %v5782 = vadd.f32 0.0, %v5781
    %v5783 = vpop.f32.mrf.mxu0
    %v5784 = vadd.f32 0.0, %v5783
    %5785 = vmatmul.bf16.gmra.mxu0 %v5705
    %v5786 = vpop.f32.mrf.mxu0
    %v5787 = vadd.f32 0.0, %v5786
    %v5788 = vpop.f32.mrf.mxu0
    %v5789 = vadd.f32 0.0, %v5788
    %5790 = vmatmul.bf16.gmra.mxu0 %v5706
    %v5791 = vpop.f32.mrf.mxu0
    %v5792 = vadd.f32 0.0, %v5791
    %v5793 = vpop.f32.mrf.mxu0
    %v5794 = vadd.f32 0.0, %v5793
    %5795 = vmatmul.bf16.gmra.mxu0 %v5707
    %v5796 = vpop.f32.mrf.mxu0
    %v5797 = vadd.f32 0.0, %v5796
    %v5798 = vpop.f32.mrf.mxu0
    %v5799 = vadd.f32 0.0, %v5798
    %5800 = vmatmul.bf16.gmra.mxu0 %v5708
    %v5801 = vpop.f32.mrf.mxu0
    %v5802 = vadd.f32 0.0, %v5801
    %v5803 = vpop.f32.mrf.mxu0
    %v5804 = vadd.f32 0.0, %v5803
    %5805 = vdwg.mxu0
    %v5822 = vunpack.c.l.b16 %v5593
    %v5823 = vunpack.c.l.b16 %v5594
    %v5824 = vunpack.c.l.b16 %v5595
    %v5825 = vunpack.c.l.b16 %v5596
    %v5826 = vunpack.c.l.b16 %v5597
    %v5827 = vunpack.c.l.b16 %v5598
    %v5828 = vunpack.c.l.b16 %v5599
    %v5829 = vunpack.c.l.b16 %v5600
    %v5830 = vunpack.c.l.b16 %v5601
    %v5831 = vunpack.c.l.b16 %v5602
    %v5832 = vunpack.c.l.b16 %v5603
    %v5833 = vunpack.c.l.b16 %v5604
    %v5834 = vunpack.c.l.b16 %v5605
    %v5835 = vunpack.c.l.b16 %v5606
    %v5836 = vunpack.c.l.b16 %v5607
    %v5837 = vunpack.c.l.b16 %v5608
    %v5838 = vpack.c.b16 %v5823, %v5822
    %v5839 = vpack.c.b16 %v5825, %v5824
    %v5840 = vpack.c.b16 %v5827, %v5826
    %v5841 = vpack.c.b16 %v5829, %v5828
    %v5842 = vpack.c.b16 %v5831, %v5830
    %v5843 = vpack.c.b16 %v5833, %v5832
    %v5844 = vpack.c.b16 %v5835, %v5834
    %v5845 = vpack.c.b16 %v5837, %v5836
    %5854 = vmatpush.bf16.msra.mxu0 %v5845
    %5855 = vmatpush.bf16.msra.mxu0 %v5844
    %5856 = vmatpush.bf16.msra.mxu0 %v5843
    %5857 = vmatpush.bf16.msra.mxu0 %v5842
    %5858 = vmatpush.bf16.msra.mxu0 %v5841
    %5859 = vmatpush.bf16.msra.mxu0 %v5840
    %5860 = vmatpush.bf16.msra.mxu0 %v5839
    %5861 = vmatpush.bf16.msra.mxu0 %v5838
    %5862 = vmatmul.bf16.gmra.mxu0 %v5628
    %v5863 = vpop.f32.mrf.mxu0
    %v5864 = vadd.f32 %v5767, %v5863
    %v5865 = vpop.f32.mrf.mxu0
    %v5866 = vadd.f32 %v5769, %v5865
    %5867 = vmatmul.bf16.gmra.mxu0 %v5629
    %v5868 = vpop.f32.mrf.mxu0
    %v5869 = vadd.f32 %v5772, %v5868
    %v5870 = vpop.f32.mrf.mxu0
    %v5871 = vadd.f32 %v5774, %v5870
    %5872 = vmatmul.bf16.gmra.mxu0 %v5630
    %v5873 = vpop.f32.mrf.mxu0
    %v5874 = vadd.f32 %v5777, %v5873
    %v5875 = vpop.f32.mrf.mxu0
    %v5876 = vadd.f32 %v5779, %v5875
    %5877 = vmatmul.bf16.gmra.mxu0 %v5631
    %v5878 = vpop.f32.mrf.mxu0
    %v5879 = vadd.f32 %v5782, %v5878
    %v5880 = vpop.f32.mrf.mxu0
    %v5881 = vadd.f32 %v5784, %v5880
    %5882 = vmatmul.bf16.gmra.mxu0 %v5632
    %v5883 = vpop.f32.mrf.mxu0
    %v5884 = vadd.f32 %v5787, %v5883
    %v5885 = vpop.f32.mrf.mxu0
    %v5886 = vadd.f32 %v5789, %v5885
    %5887 = vmatmul.bf16.gmra.mxu0 %v5633
    %v5888 = vpop.f32.mrf.mxu0
    %v5889 = vadd.f32 %v5792, %v5888
    %v5890 = vpop.f32.mrf.mxu0
    %v5891 = vadd.f32 %v5794, %v5890
    %5892 = vmatmul.bf16.gmra.mxu0 %v5634
    %v5893 = vpop.f32.mrf.mxu0
    %v5894 = vadd.f32 %v5797, %v5893
    %v5895 = vpop.f32.mrf.mxu0
    %v5896 = vadd.f32 %v5799, %v5895
    %5897 = vmatmul.bf16.gmra.mxu0 %v5635
    %v5898 = vpop.f32.mrf.mxu0
    %v5899 = vadd.f32 %v5802, %v5898
    %v5900 = vpop.f32.mrf.mxu0
    %v5901 = vadd.f32 %v5804, %v5900
    %5902 = vdwg.mxu0
    %v5904 = vperm.slane %v5625, 0
    %v5906 = vadd.f32 %v5864, %v5904
    %v5907 = vadd.f32 %v5866, %v5904
    %v5908 = vadd.f32 %v5869, %v5904
    %v5909 = vadd.f32 %v5871, %v5904
    %v5910 = vadd.f32 %v5874, %v5904
    %v5911 = vadd.f32 %v5876, %v5904
    %v5912 = vadd.f32 %v5879, %v5904
    %v5913 = vadd.f32 %v5881, %v5904
    %v5914 = vadd.f32 %v5884, %v5904
    %v5915 = vadd.f32 %v5886, %v5904
    %v5916 = vadd.f32 %v5889, %v5904
    %v5917 = vadd.f32 %v5891, %v5904
    %v5918 = vadd.f32 %v5894, %v5904
    %v5919 = vadd.f32 %v5896, %v5904
    %v5920 = vadd.f32 %v5899, %v5904
    %v5921 = vadd.f32 %v5901, %v5904
    %v5922 = vadd.f32 %v5906, %v5907
    %v5923 = vadd.f32 %v5922, %v5908
    %v5924 = vadd.f32 %v5923, %v5909
    %v5925 = vadd.f32 %v5924, %v5910
    %v5926 = vadd.f32 %v5925, %v5911
    %v5927 = vadd.f32 %v5926, %v5912
    %v5928 = vadd.f32 %v5927, %v5913
    %v5929 = vadd.f32 %v5928, %v5914
    %v5930 = vadd.f32 %v5929, %v5915
    %v5931 = vadd.f32 %v5930, %v5916
    %v5932 = vadd.f32 %v5931, %v5917
    %v5933 = vadd.f32 %v5932, %v5918
    %v5934 = vadd.f32 %v5933, %v5919
    %v5935 = vadd.f32 %v5934, %v5920
    %v5936 = vadd.f32 %v5935, %v5921
    %v5937 = vrot.slane %v5936, 4
    %v5938 = vadd.f32 %v5936, %v5937
    %v5939 = vrot.slane %v5938, 2
    %v5940 = vadd.f32 %v5938, %v5939
    %v5941 = vrot.slane %v5940, 1
    %v5942 = vadd.f32 %v5940, %v5941
    %v5943 = vmul.f32 %v5942, 0.0078125
    %v5944 = vmul.f32 %v5906, %v5906
    %v5945 = vmul.f32 %v5907, %v5907
    %v5946 = vmul.f32 %v5908, %v5908
    %v5947 = vmul.f32 %v5909, %v5909
    %v5948 = vmul.f32 %v5910, %v5910
    %v5949 = vmul.f32 %v5911, %v5911
    %v5950 = vmul.f32 %v5912, %v5912
    %v5951 = vmul.f32 %v5913, %v5913
    %v5952 = vmul.f32 %v5914, %v5914
    %v5953 = vmul.f32 %v5915, %v5915
    %v5954 = vmul.f32 %v5916, %v5916
    %v5955 = vmul.f32 %v5917, %v5917
    %v5956 = vmul.f32 %v5918, %v5918
    %v5957 = vmul.f32 %v5919, %v5919
    %v5958 = vmul.f32 %v5920, %v5920
    %v5959 = vmul.f32 %v5921, %v5921
    %v5960 = vadd.f32 %v5944, %v5945
    %v5961 = vadd.f32 %v5960, %v5946
    %v5962 = vadd.f32 %v5961, %v5947
    %v5963 = vadd.f32 %v5962, %v5948
    %v5964 = vadd.f32 %v5963, %v5949
    %v5965 = vadd.f32 %v5964, %v5950
    %v5966 = vadd.f32 %v5965, %v5951
    %v5967 = vadd.f32 %v5966, %v5952
    %v5968 = vadd.f32 %v5967, %v5953
    %v5969 = vadd.f32 %v5968, %v5954
    %v5970 = vadd.f32 %v5969, %v5955
    %v5971 = vadd.f32 %v5970, %v5956
    %v5972 = vadd.f32 %v5971, %v5957
    %v5973 = vadd.f32 %v5972, %v5958
    %v5974 = vadd.f32 %v5973, %v5959
    %v5975 = vrot.slane %v5974, 4
    %v5976 = vadd.f32 %v5974, %v5975
    %v5977 = vrot.slane %v5976, 2
    %v5978 = vadd.f32 %v5976, %v5977
    %v5979 = vrot.slane %v5978, 1
    %v5980 = vadd.f32 %v5978, %v5979
    %v5981 = vmul.f32 %v5980, 0.0078125
    %v5982 = vmul.f32 %v5943, %v5943
    %v5983 = vsub.f32 %v5981, %v5982
    %v5984 = vmax.f32 %v5983, 0.0
    %v5985 = vsub.f32 %v5906, %v5943
    %v5986 = vsub.f32 %v5907, %v5943
    %v5987 = vsub.f32 %v5908, %v5943
    %v5988 = vsub.f32 %v5909, %v5943
    %v5989 = vsub.f32 %v5910, %v5943
    %v5990 = vsub.f32 %v5911, %v5943
    %v5991 = vsub.f32 %v5912, %v5943
    %v5992 = vsub.f32 %v5913, %v5943
    %v5993 = vsub.f32 %v5914, %v5943
    %v5994 = vsub.f32 %v5915, %v5943
    %v5995 = vsub.f32 %v5916, %v5943
    %v5996 = vsub.f32 %v5917, %v5943
    %v5997 = vsub.f32 %v5918, %v5943
    %v5998 = vsub.f32 %v5919, %v5943
    %v5999 = vsub.f32 %v5920, %v5943
    %v6000 = vsub.f32 %v5921, %v5943
    %v6001 = vadd.f32 %v5984, 1e-05
    %v6002 = vrsqrt.pop %v6001
    %v6003 = vmul.f32 %v6002, %v6001
    %v6004 = vmul.f32 %v6003, %v6002
    %v6005 = vmul.f32 0.5, %v6004
    %v6006 = vsub.f32 1.5, %v6005
    %v6007 = vmul.f32 %v6002, %v6006
    %vm6008 = vweird.f32 %v6001
    %vm6009 = vweird.f32 %v6002
    %vm6010 = vmor %vm6008, %vm6009
    %v6011 = vsel %vm6010, %v6002, %v6007
    %v6012 = vmul.f32 %v5985, %v6011
    %v6013 = vmul.f32 %v5986, %v6011
    %v6014 = vmul.f32 %v5987, %v6011
    %v6015 = vmul.f32 %v5988, %v6011
    %v6016 = vmul.f32 %v5989, %v6011
    %v6017 = vmul.f32 %v5990, %v6011
    %v6018 = vmul.f32 %v5991, %v6011
    %v6019 = vmul.f32 %v5992, %v6011
    %v6020 = vmul.f32 %v5993, %v6011
    %v6021 = vmul.f32 %v5994, %v6011
    %v6022 = vmul.f32 %v5995, %v6011
    %v6023 = vmul.f32 %v5996, %v6011
    %v6024 = vmul.f32 %v5997, %v6011
    %v6025 = vmul.f32 %v5998, %v6011
    %v6026 = vmul.f32 %v5999, %v6011
    %v6027 = vmul.f32 %v6000, %v6011
    %v6029 = vperm.slane %v5626, 0
    %v6031 = vmul.f32 %v6012, %v6029
    %v6032 = vmul.f32 %v6013, %v6029
    %v6033 = vmul.f32 %v6014, %v6029
    %v6034 = vmul.f32 %v6015, %v6029
    %v6035 = vmul.f32 %v6016, %v6029
    %v6036 = vmul.f32 %v6017, %v6029
    %v6037 = vmul.f32 %v6018, %v6029
    %v6038 = vmul.f32 %v6019, %v6029
    %v6039 = vmul.f32 %v6020, %v6029
    %v6040 = vmul.f32 %v6021, %v6029
    %v6041 = vmul.f32 %v6022, %v6029
    %v6042 = vmul.f32 %v6023, %v6029
    %v6043 = vmul.f32 %v6024, %v6029
    %v6044 = vmul.f32 %v6025, %v6029
    %v6045 = vmul.f32 %v6026, %v6029
    %v6046 = vmul.f32 %v6027, %v6029
    %v6048 = vperm.slane %v5627, 0
    %v6050 = vadd.f32 %v6031, %v6048
    %v6051 = vadd.f32 %v6032, %v6048
    %v6052 = vadd.f32 %v6033, %v6048
    %v6053 = vadd.f32 %v6034, %v6048
    %v6054 = vadd.f32 %v6035, %v6048
    %v6055 = vadd.f32 %v6036, %v6048
    %v6056 = vadd.f32 %v6037, %v6048
    %v6057 = vadd.f32 %v6038, %v6048
    %v6058 = vadd.f32 %v6039, %v6048
    %v6059 = vadd.f32 %v6040, %v6048
    %v6060 = vadd.f32 %v6041, %v6048
    %v6061 = vadd.f32 %v6042, %v6048
    %v6062 = vadd.f32 %v6043, %v6048
    %v6063 = vadd.f32 %v6044, %v6048
    %v6064 = vadd.f32 %v6045, %v6048
    %v6065 = vadd.f32 %v6046, %v6048
    %v6066 = vmax.f32 %v6050, 0.0
    %v6067 = vmax.f32 %v6051, 0.0
    %v6068 = vmax.f32 %v6052, 0.0
    %v6069 = vmax.f32 %v6053, 0.0
    %v6070 = vmax.f32 %v6054, 0.0
    %v6071 = vmax.f32 %v6055, 0.0
    %v6072 = vmax.f32 %v6056, 0.0
    %v6073 = vmax.f32 %v6057, 0.0
    %v6074 = vmax.f32 %v6058, 0.0
    %v6075 = vmax.f32 %v6059, 0.0
    %v6076 = vmax.f32 %v6060, 0.0
    %v6077 = vmax.f32 %v6061, 0.0
    %v6078 = vmax.f32 %v6062, 0.0
    %v6079 = vmax.f32 %v6063, 0.0
    %v6080 = vmax.f32 %v6064, 0.0
    %v6081 = vmax.f32 %v6065, 0.0
    %v6082 = vld [vmem:[#allocation31] sm:$0xf]
    %v6083 = vld [vmem:[#allocation31 + $0x4] sm:$0xf]
    %v6084 = vld [vmem:[#allocation31 + $0x8] sm:$0xf]
    %v6085 = vld [vmem:[#allocation31 + $0xc] sm:$0xf]
    %v6086 = vld [vmem:[#allocation31 + $0x10] sm:$0xf]
    %v6087 = vld [vmem:[#allocation31 + $0x14] sm:$0xf]
    %v6088 = vld [vmem:[#allocation31 + $0x18] sm:$0xf]
    %v6089 = vld [vmem:[#allocation31 + $0x1c] sm:$0xf]
    %v6090 = vld [vmem:[#allocation31 + $0x20] sm:$0xf]
    %v6091 = vld [vmem:[#allocation31 + $0x24] sm:$0xf]
    %v6092 = vld [vmem:[#allocation31 + $0x28] sm:$0xf]
    %v6093 = vld [vmem:[#allocation31 + $0x2c] sm:$0xf]
    %v6094 = vld [vmem:[#allocation31 + $0x30] sm:$0xf]
    %v6095 = vld [vmem:[#allocation31 + $0x34] sm:$0xf]
    %v6096 = vld [vmem:[#allocation31 + $0x38] sm:$0xf]
    %v6097 = vld [vmem:[#allocation31 + $0x3c] sm:$0xf]
    %v6098 = vld [vmem:[#allocation32] sm:$0xf]
    %v6099 = vld [vmem:[#allocation32 + $0x4] sm:$0xf]
    %v6100 = vld [vmem:[#allocation32 + $0x8] sm:$0xf]
    %v6101 = vld [vmem:[#allocation32 + $0xc] sm:$0xf]
    %v6102 = vld [vmem:[#allocation32 + $0x10] sm:$0xf]
    %v6103 = vld [vmem:[#allocation32 + $0x14] sm:$0xf]
    %v6104 = vld [vmem:[#allocation32 + $0x18] sm:$0xf]
    %v6105 = vld [vmem:[#allocation32 + $0x1c] sm:$0xf]
    %v6106 = vld [vmem:[#allocation32 + $0x20] sm:$0xf]
    %v6107 = vld [vmem:[#allocation32 + $0x24] sm:$0xf]
    %v6108 = vld [vmem:[#allocation32 + $0x28] sm:$0xf]
    %v6109 = vld [vmem:[#allocation32 + $0x2c] sm:$0xf]
    %v6110 = vld [vmem:[#allocation32 + $0x30] sm:$0xf]
    %v6111 = vld [vmem:[#allocation32 + $0x34] sm:$0xf]
    %v6112 = vld [vmem:[#allocation32 + $0x38] sm:$0xf]
    %v6113 = vld [vmem:[#allocation32 + $0x3c] sm:$0xf]
    %v6114 = vld [vmem:[%s75] sm:$0x1]
    %v6115 = vld [vmem:[%s77] sm:$0x1]
    %v6116 = vld [vmem:[%s79] sm:$0x1]
    %v6117 = vpack.c.bf16 %v5562, %v5561
    %v6118 = vpack.c.bf16 %v5564, %v5563
    %v6119 = vpack.c.bf16 %v5566, %v5565
    %v6120 = vpack.c.bf16 %v5568, %v5567
    %v6121 = vpack.c.bf16 %v5570, %v5569
    %v6122 = vpack.c.bf16 %v5572, %v5571
    %v6123 = vpack.c.bf16 %v5574, %v5573
    %v6124 = vpack.c.bf16 %v5576, %v5575
    %v6125 = vpack.c.bf16 %v5578, %v5577
    %v6126 = vpack.c.bf16 %v5580, %v5579
    %v6127 = vpack.c.bf16 %v5582, %v5581
    %v6128 = vpack.c.bf16 %v5584, %v5583
    %v6129 = vpack.c.bf16 %v5586, %v5585
    %v6130 = vpack.c.bf16 %v5588, %v5587
    %v6131 = vpack.c.bf16 %v5590, %v5589
    %v6132 = vpack.c.bf16 %v5592, %v5591
    %6133 = vmatpush.bf16.msra.mxu0 %v6124
    %6134 = vmatpush.bf16.msra.mxu0 %v6123
    %6135 = vmatpush.bf16.msra.mxu0 %v6122
    %6136 = vmatpush.bf16.msra.mxu0 %v6121
    %6137 = vmatpush.bf16.msra.mxu0 %v6120
    %6138 = vmatpush.bf16.msra.mxu0 %v6119
    %6139 = vmatpush.bf16.msra.mxu0 %v6118
    %6140 = vmatpush.bf16.msra.mxu0 %v6117
    %6141 = vmatmul.bf16.gmra.mxu0 %v1443
    %v6142 = vpop.f32.mrf.mxu0
    %v6143 = vadd.f32 0.0, %v6142
    %v6144 = vpop.f32.mrf.mxu0
    %v6145 = vadd.f32 0.0, %v6144
    %6146 = vmatmul.bf16.gmra.mxu0 %v1445
    %v6147 = vpop.f32.mrf.mxu0
    %v6148 = vadd.f32 0.0, %v6147
    %v6149 = vpop.f32.mrf.mxu0
    %v6150 = vadd.f32 0.0, %v6149
    %6151 = vmatmul.bf16.gmra.mxu0 %v1447
    %v6152 = vpop.f32.mrf.mxu0
    %v6153 = vadd.f32 0.0, %v6152
    %v6154 = vpop.f32.mrf.mxu0
    %v6155 = vadd.f32 0.0, %v6154
    %6156 = vmatmul.bf16.gmra.mxu0 %v1449
    %v6157 = vpop.f32.mrf.mxu0
    %v6158 = vadd.f32 0.0, %v6157
    %v6159 = vpop.f32.mrf.mxu0
    %v6160 = vadd.f32 0.0, %v6159
    %6161 = vmatmul.bf16.gmra.mxu0 %v1451
    %v6162 = vpop.f32.mrf.mxu0
    %v6163 = vadd.f32 0.0, %v6162
    %v6164 = vpop.f32.mrf.mxu0
    %v6165 = vadd.f32 0.0, %v6164
    %6166 = vmatmul.bf16.gmra.mxu0 %v1453
    %v6167 = vpop.f32.mrf.mxu0
    %v6168 = vadd.f32 0.0, %v6167
    %v6169 = vpop.f32.mrf.mxu0
    %v6170 = vadd.f32 0.0, %v6169
    %6171 = vmatmul.bf16.gmra.mxu0 %v1455
    %v6172 = vpop.f32.mrf.mxu0
    %v6173 = vadd.f32 0.0, %v6172
    %v6174 = vpop.f32.mrf.mxu0
    %v6175 = vadd.f32 0.0, %v6174
    %6176 = vmatmul.bf16.gmra.mxu0 %v1457
    %v6177 = vpop.f32.mrf.mxu0
    %v6178 = vadd.f32 0.0, %v6177
    %v6179 = vpop.f32.mrf.mxu0
    %v6180 = vadd.f32 0.0, %v6179
    %6181 = vmatmul.bf16.gmra.mxu0 %v1459
    %v6182 = vpop.f32.mrf.mxu0
    %v6183 = vadd.f32 0.0, %v6182
    %v6184 = vpop.f32.mrf.mxu0
    %v6185 = vadd.f32 0.0, %v6184
    %6186 = vmatmul.bf16.gmra.mxu0 %v1461
    %v6187 = vpop.f32.mrf.mxu0
    %v6188 = vadd.f32 0.0, %v6187
    %v6189 = vpop.f32.mrf.mxu0
    %v6190 = vadd.f32 0.0, %v6189
    %6191 = vmatmul.bf16.gmra.mxu0 %v1463
    %v6192 = vpop.f32.mrf.mxu0
    %v6193 = vadd.f32 0.0, %v6192
    %v6194 = vpop.f32.mrf.mxu0
    %v6195 = vadd.f32 0.0, %v6194
    %6196 = vmatmul.bf16.gmra.mxu0 %v1465
    %v6197 = vpop.f32.mrf.mxu0
    %v6198 = vadd.f32 0.0, %v6197
    %v6199 = vpop.f32.mrf.mxu0
    %v6200 = vadd.f32 0.0, %v6199
    %6201 = vmatmul.bf16.gmra.mxu0 %v1467
    %v6202 = vpop.f32.mrf.mxu0
    %v6203 = vadd.f32 0.0, %v6202
    %v6204 = vpop.f32.mrf.mxu0
    %v6205 = vadd.f32 0.0, %v6204
    %6206 = vmatmul.bf16.gmra.mxu0 %v1469
    %v6207 = vpop.f32.mrf.mxu0
    %v6208 = vadd.f32 0.0, %v6207
    %v6209 = vpop.f32.mrf.mxu0
    %v6210 = vadd.f32 0.0, %v6209
    %6211 = vmatmul.bf16.gmra.mxu0 %v1471
    %v6212 = vpop.f32.mrf.mxu0
    %v6213 = vadd.f32 0.0, %v6212
    %v6214 = vpop.f32.mrf.mxu0
    %v6215 = vadd.f32 0.0, %v6214
    %6216 = vmatmul.bf16.gmra.mxu0 %v1473
    %v6217 = vpop.f32.mrf.mxu0
    %v6218 = vadd.f32 0.0, %v6217
    %v6219 = vpop.f32.mrf.mxu0
    %v6220 = vadd.f32 0.0, %v6219
    %6221 = vdwg.mxu0
    %6222 = vmatpush.bf16.msra.mxu0 %v6132
    %6223 = vmatpush.bf16.msra.mxu0 %v6131
    %6224 = vmatpush.bf16.msra.mxu0 %v6130
    %6225 = vmatpush.bf16.msra.mxu0 %v6129
    %6226 = vmatpush.bf16.msra.mxu0 %v6128
    %6227 = vmatpush.bf16.msra.mxu0 %v6127
    %6228 = vmatpush.bf16.msra.mxu0 %v6126
    %6229 = vmatpush.bf16.msra.mxu0 %v6125
    %6230 = vmatmul.bf16.gmra.mxu0 %v1444
    %v6231 = vpop.f32.mrf.mxu0
    %v6232 = vadd.f32 %v6143, %v6231
    %v6233 = vpop.f32.mrf.mxu0
    %v6234 = vadd.f32 %v6145, %v6233
    %6235 = vmatmul.bf16.gmra.mxu0 %v1446
    %v6236 = vpop.f32.mrf.mxu0
    %v6237 = vadd.f32 %v6148, %v6236
    %v6238 = vpop.f32.mrf.mxu0
    %v6239 = vadd.f32 %v6150, %v6238
    %6240 = vmatmul.bf16.gmra.mxu0 %v1448
    %v6241 = vpop.f32.mrf.mxu0
    %v6242 = vadd.f32 %v6153, %v6241
    %v6243 = vpop.f32.mrf.mxu0
    %v6244 = vadd.f32 %v6155, %v6243
    %6245 = vmatmul.bf16.gmra.mxu0 %v1450
    %v6246 = vpop.f32.mrf.mxu0
    %v6247 = vadd.f32 %v6158, %v6246
    %v6248 = vpop.f32.mrf.mxu0
    %v6249 = vadd.f32 %v6160, %v6248
    %6250 = vmatmul.bf16.gmra.mxu0 %v1452
    %v6251 = vpop.f32.mrf.mxu0
    %v6252 = vadd.f32 %v6163, %v6251
    %v6253 = vpop.f32.mrf.mxu0
    %v6254 = vadd.f32 %v6165, %v6253
    %6255 = vmatmul.bf16.gmra.mxu0 %v1454
    %v6256 = vpop.f32.mrf.mxu0
    %v6257 = vadd.f32 %v6168, %v6256
    %v6258 = vpop.f32.mrf.mxu0
    %v6259 = vadd.f32 %v6170, %v6258
    %6260 = vmatmul.bf16.gmra.mxu0 %v1456
    %v6261 = vpop.f32.mrf.mxu0
    %v6262 = vadd.f32 %v6173, %v6261
    %v6263 = vpop.f32.mrf.mxu0
    %v6264 = vadd.f32 %v6175, %v6263
    %6265 = vmatmul.bf16.gmra.mxu0 %v1458
    %v6266 = vpop.f32.mrf.mxu0
    %v6267 = vadd.f32 %v6178, %v6266
    %v6268 = vpop.f32.mrf.mxu0
    %v6269 = vadd.f32 %v6180, %v6268
    %6270 = vmatmul.bf16.gmra.mxu0 %v1460
    %v6271 = vpop.f32.mrf.mxu0
    %v6272 = vadd.f32 %v6183, %v6271
    %v6273 = vpop.f32.mrf.mxu0
    %v6274 = vadd.f32 %v6185, %v6273
    %6275 = vmatmul.bf16.gmra.mxu0 %v1462
    %v6276 = vpop.f32.mrf.mxu0
    %v6277 = vadd.f32 %v6188, %v6276
    %v6278 = vpop.f32.mrf.mxu0
    %v6279 = vadd.f32 %v6190, %v6278
    %6280 = vmatmul.bf16.gmra.mxu0 %v1464
    %v6281 = vpop.f32.mrf.mxu0
    %v6282 = vadd.f32 %v6193, %v6281
    %v6283 = vpop.f32.mrf.mxu0
    %v6284 = vadd.f32 %v6195, %v6283
    %6285 = vmatmul.bf16.gmra.mxu0 %v1466
    %v6286 = vpop.f32.mrf.mxu0
    %v6287 = vadd.f32 %v6198, %v6286
    %v6288 = vpop.f32.mrf.mxu0
    %v6289 = vadd.f32 %v6200, %v6288
    %6290 = vmatmul.bf16.gmra.mxu0 %v1468
    %v6291 = vpop.f32.mrf.mxu0
    %v6292 = vadd.f32 %v6203, %v6291
    %v6293 = vpop.f32.mrf.mxu0
    %v6294 = vadd.f32 %v6205, %v6293
    %6295 = vmatmul.bf16.gmra.mxu0 %v1470
    %v6296 = vpop.f32.mrf.mxu0
    %v6297 = vadd.f32 %v6208, %v6296
    %v6298 = vpop.f32.mrf.mxu0
    %v6299 = vadd.f32 %v6210, %v6298
    %6300 = vmatmul.bf16.gmra.mxu0 %v1472
    %v6301 = vpop.f32.mrf.mxu0
    %v6302 = vadd.f32 %v6213, %v6301
    %v6303 = vpop.f32.mrf.mxu0
    %v6304 = vadd.f32 %v6215, %v6303
    %6305 = vmatmul.bf16.gmra.mxu0 %v1474
    %v6306 = vpop.f32.mrf.mxu0
    %v6307 = vadd.f32 %v6218, %v6306
    %v6308 = vpop.f32.mrf.mxu0
    %v6309 = vadd.f32 %v6220, %v6308
    %6310 = vdwg.mxu0
    %v6311 = vsub.f32 %v5561, %v6232
    %v6312 = vsub.f32 %v5562, %v6234
    %v6313 = vsub.f32 %v5563, %v6237
    %v6314 = vsub.f32 %v5564, %v6239
    %v6315 = vsub.f32 %v5565, %v6242
    %v6316 = vsub.f32 %v5566, %v6244
    %v6317 = vsub.f32 %v5567, %v6247
    %v6318 = vsub.f32 %v5568, %v6249
    %v6319 = vsub.f32 %v5569, %v6252
    %v6320 = vsub.f32 %v5570, %v6254
    %v6321 = vsub.f32 %v5571, %v6257
    %v6322 = vsub.f32 %v5572, %v6259
    %v6323 = vsub.f32 %v5573, %v6262
    %v6324 = vsub.f32 %v5574, %v6264
    %v6325 = vsub.f32 %v5575, %v6267
    %v6326 = vsub.f32 %v5576, %v6269
    %v6327 = vsub.f32 %v5577, %v6272
    %v6328 = vsub.f32 %v5578, %v6274
    %v6329 = vsub.f32 %v5579, %v6277
    %v6330 = vsub.f32 %v5580, %v6279
    %v6331 = vsub.f32 %v5581, %v6282
    %v6332 = vsub.f32 %v5582, %v6284
    %v6333 = vsub.f32 %v5583, %v6287
    %v6334 = vsub.f32 %v5584, %v6289
    %v6335 = vsub.f32 %v5585, %v6292
    %v6336 = vsub.f32 %v5586, %v6294
    %v6337 = vsub.f32 %v5587, %v6297
    %v6338 = vsub.f32 %v5588, %v6299
    %v6339 = vsub.f32 %v5589, %v6302
    %v6340 = vsub.f32 %v5590, %v6304
    %v6341 = vsub.f32 %v5591, %v6307
    %v6342 = vsub.f32 %v5592, %v6309
    %v6343 = vpack.c.bf16 %v6312, %v6311
    %v6344 = vpack.c.bf16 %v6314, %v6313
    %v6345 = vpack.c.bf16 %v6316, %v6315
    %v6346 = vpack.c.bf16 %v6318, %v6317
    %v6347 = vpack.c.bf16 %v6320, %v6319
    %v6348 = vpack.c.bf16 %v6322, %v6321
    %v6349 = vpack.c.bf16 %v6324, %v6323
    %v6350 = vpack.c.bf16 %v6326, %v6325
    %v6351 = vpack.c.bf16 %v6328, %v6327
    %v6352 = vpack.c.bf16 %v6330, %v6329
    %v6353 = vpack.c.bf16 %v6332, %v6331
    %v6354 = vpack.c.bf16 %v6334, %v6333
    %v6355 = vpack.c.bf16 %v6336, %v6335
    %v6356 = vpack.c.bf16 %v6338, %v6337
    %v6357 = vpack.c.bf16 %v6340, %v6339
    %v6358 = vpack.c.bf16 %v6342, %v6341
    %v6375 = vunpack.c.l.b16 %v6098
    %v6376 = vunpack.c.l.b16 %v6099
    %v6377 = vunpack.c.l.b16 %v6100
    %v6378 = vunpack.c.l.b16 %v6101
    %v6379 = vunpack.c.l.b16 %v6102
    %v6380 = vunpack.c.l.b16 %v6103
    %v6381 = vunpack.c.l.b16 %v6104
    %v6382 = vunpack.c.l.b16 %v6105
    %v6383 = vunpack.c.l.b16 %v6106
    %v6384 = vunpack.c.l.b16 %v6107
    %v6385 = vunpack.c.l.b16 %v6108
    %v6386 = vunpack.c.l.b16 %v6109
    %v6387 = vunpack.c.l.b16 %v6110
    %v6388 = vunpack.c.l.b16 %v6111
    %v6389 = vunpack.c.l.b16 %v6112
    %v6390 = vunpack.c.l.b16 %v6113
    %v6391 = vpack.c.b16 %v6376, %v6375
    %v6392 = vpack.c.b16 %v6378, %v6377
    %v6393 = vpack.c.b16 %v6380, %v6379
    %v6394 = vpack.c.b16 %v6382, %v6381
    %v6395 = vpack.c.b16 %v6384, %v6383
    %v6396 = vpack.c.b16 %v6386, %v6385
    %v6397 = vpack.c.b16 %v6388, %v6387
    %v6398 = vpack.c.b16 %v6390, %v6389
    %6407 = vmatpush.bf16.msra.mxu0 %v6398
    %6408 = vmatpush.bf16.msra.mxu0 %v6397
    %6409 = vmatpush.bf16.msra.mxu0 %v6396
    %6410 = vmatpush.bf16.msra.mxu0 %v6395
    %6411 = vmatpush.bf16.msra.mxu0 %v6394
    %6412 = vmatpush.bf16.msra.mxu0 %v6393
    %6413 = vmatpush.bf16.msra.mxu0 %v6392
    %6414 = vmatpush.bf16.msra.mxu0 %v6391
    %6415 = vmatmul.bf16.gmra.mxu0 %v6343
    %v6416 = vpop.f32.mrf.mxu0
    %v6417 = vadd.f32 0.0, %v6416
    %v6418 = vpop.f32.mrf.mxu0
    %v6419 = vadd.f32 0.0, %v6418
    %6420 = vmatmul.bf16.gmra.mxu0 %v6344
    %v6421 = vpop.f32.mrf.mxu0
    %v6422 = vadd.f32 0.0, %v6421
    %v6423 = vpop.f32.mrf.mxu0
    %v6424 = vadd.f32 0.0, %v6423
    %6425 = vmatmul.bf16.gmra.mxu0 %v6345
    %v6426 = vpop.f32.mrf.mxu0
    %v6427 = vadd.f32 0.0, %v6426
    %v6428 = vpop.f32.mrf.mxu0
    %v6429 = vadd.f32 0.0, %v6428
    %6430 = vmatmul.bf16.gmra.mxu0 %v6346
    %v6431 = vpop.f32.mrf.mxu0
    %v6432 = vadd.f32 0.0, %v6431
    %v6433 = vpop.f32.mrf.mxu0
    %v6434 = vadd.f32 0.0, %v6433
    %6435 = vmatmul.bf16.gmra.mxu0 %v6347
    %v6436 = vpop.f32.mrf.mxu0
    %v6437 = vadd.f32 0.0, %v6436
    %v6438 = vpop.f32.mrf.mxu0
    %v6439 = vadd.f32 0.0, %v6438
    %6440 = vmatmul.bf16.gmra.mxu0 %v6348
    %v6441 = vpop.f32.mrf.mxu0
    %v6442 = vadd.f32 0.0, %v6441
    %v6443 = vpop.f32.mrf.mxu0
    %v6444 = vadd.f32 0.0, %v6443
    %6445 = vmatmul.bf16.gmra.mxu0 %v6349
    %v6446 = vpop.f32.mrf.mxu0
    %v6447 = vadd.f32 0.0, %v6446
    %v6448 = vpop.f32.mrf.mxu0
    %v6449 = vadd.f32 0.0, %v6448
    %6450 = vmatmul.bf16.gmra.mxu0 %v6350
    %v6451 = vpop.f32.mrf.mxu0
    %v6452 = vadd.f32 0.0, %v6451
    %v6453 = vpop.f32.mrf.mxu0
    %v6454 = vadd.f32 0.0, %v6453
    %6455 = vmatmul.bf16.gmra.mxu0 %v6351
    %v6456 = vpop.f32.mrf.mxu0
    %v6457 = vadd.f32 0.0, %v6456
    %v6458 = vpop.f32.mrf.mxu0
    %v6459 = vadd.f32 0.0, %v6458
    %6460 = vmatmul.bf16.gmra.mxu0 %v6352
    %v6461 = vpop.f32.mrf.mxu0
    %v6462 = vadd.f32 0.0, %v6461
    %v6463 = vpop.f32.mrf.mxu0
    %v6464 = vadd.f32 0.0, %v6463
    %6465 = vmatmul.bf16.gmra.mxu0 %v6353
    %v6466 = vpop.f32.mrf.mxu0
    %v6467 = vadd.f32 0.0, %v6466
    %v6468 = vpop.f32.mrf.mxu0
    %v6469 = vadd.f32 0.0, %v6468
    %6470 = vmatmul.bf16.gmra.mxu0 %v6354
    %v6471 = vpop.f32.mrf.mxu0
    %v6472 = vadd.f32 0.0, %v6471
    %v6473 = vpop.f32.mrf.mxu0
    %v6474 = vadd.f32 0.0, %v6473
    %6475 = vmatmul.bf16.gmra.mxu0 %v6355
    %v6476 = vpop.f32.mrf.mxu0
    %v6477 = vadd.f32 0.0, %v6476
    %v6478 = vpop.f32.mrf.mxu0
    %v6479 = vadd.f32 0.0, %v6478
    %6480 = vmatmul.bf16.gmra.mxu0 %v6356
    %v6481 = vpop.f32.mrf.mxu0
    %v6482 = vadd.f32 0.0, %v6481
    %v6483 = vpop.f32.mrf.mxu0
    %v6484 = vadd.f32 0.0, %v6483
    %6485 = vmatmul.bf16.gmra.mxu0 %v6357
    %v6486 = vpop.f32.mrf.mxu0
    %v6487 = vadd.f32 0.0, %v6486
    %v6488 = vpop.f32.mrf.mxu0
    %v6489 = vadd.f32 0.0, %v6488
    %6490 = vmatmul.bf16.gmra.mxu0 %v6358
    %v6491 = vpop.f32.mrf.mxu0
    %v6492 = vadd.f32 0.0, %v6491
    %v6493 = vpop.f32.mrf.mxu0
    %v6494 = vadd.f32 0.0, %v6493
    %6495 = vdwg.mxu0
    %v6512 = vunpack.c.l.b16 %v6082
    %v6513 = vunpack.c.l.b16 %v6083
    %v6514 = vunpack.c.l.b16 %v6084
    %v6515 = vunpack.c.l.b16 %v6085
    %v6516 = vunpack.c.l.b16 %v6086
    %v6517 = vunpack.c.l.b16 %v6087
    %v6518 = vunpack.c.l.b16 %v6088
    %v6519 = vunpack.c.l.b16 %v6089
    %v6520 = vunpack.c.l.b16 %v6090
    %v6521 = vunpack.c.l.b16 %v6091
    %v6522 = vunpack.c.l.b16 %v6092
    %v6523 = vunpack.c.l.b16 %v6093
    %v6524 = vunpack.c.l.b16 %v6094
    %v6525 = vunpack.c.l.b16 %v6095
    %v6526 = vunpack.c.l.b16 %v6096
    %v6527 = vunpack.c.l.b16 %v6097
    %v6528 = vpack.c.b16 %v6513, %v6512
    %v6529 = vpack.c.b16 %v6515, %v6514
    %v6530 = vpack.c.b16 %v6517, %v6516
    %v6531 = vpack.c.b16 %v6519, %v6518
    %v6532 = vpack.c.b16 %v6521, %v6520
    %v6533 = vpack.c.b16 %v6523, %v6522
    %v6534 = vpack.c.b16 %v6525, %v6524
    %v6535 = vpack.c.b16 %v6527, %v6526
    %6544 = vmatpush.bf16.msra.mxu0 %v6535
    %6545 = vmatpush.bf16.msra.mxu0 %v6534
    %6546 = vmatpush.bf16.msra.mxu0 %v6533
    %6547 = vmatpush.bf16.msra.mxu0 %v6532
    %6548 = vmatpush.bf16.msra.mxu0 %v6531
    %6549 = vmatpush.bf16.msra.mxu0 %v6530
    %6550 = vmatpush.bf16.msra.mxu0 %v6529
    %6551 = vmatpush.bf16.msra.mxu0 %v6528
    %6552 = vmatmul.bf16.gmra.mxu0 %v6117
    %v6553 = vpop.f32.mrf.mxu0
    %v6554 = vadd.f32 %v6417, %v6553
    %v6555 = vpop.f32.mrf.mxu0
    %v6556 = vadd.f32 %v6419, %v6555
    %6557 = vmatmul.bf16.gmra.mxu0 %v6118
    %v6558 = vpop.f32.mrf.mxu0
    %v6559 = vadd.f32 %v6422, %v6558
    %v6560 = vpop.f32.mrf.mxu0
    %v6561 = vadd.f32 %v6424, %v6560
    %6562 = vmatmul.bf16.gmra.mxu0 %v6119
    %v6563 = vpop.f32.mrf.mxu0
    %v6564 = vadd.f32 %v6427, %v6563
    %v6565 = vpop.f32.mrf.mxu0
    %v6566 = vadd.f32 %v6429, %v6565
    %6567 = vmatmul.bf16.gmra.mxu0 %v6120
    %v6568 = vpop.f32.mrf.mxu0
    %v6569 = vadd.f32 %v6432, %v6568
    %v6570 = vpop.f32.mrf.mxu0
    %v6571 = vadd.f32 %v6434, %v6570
    %6572 = vmatmul.bf16.gmra.mxu0 %v6121
    %v6573 = vpop.f32.mrf.mxu0
    %v6574 = vadd.f32 %v6437, %v6573
    %v6575 = vpop.f32.mrf.mxu0
    %v6576 = vadd.f32 %v6439, %v6575
    %6577 = vmatmul.bf16.gmra.mxu0 %v6122
    %v6578 = vpop.f32.mrf.mxu0
    %v6579 = vadd.f32 %v6442, %v6578
    %v6580 = vpop.f32.mrf.mxu0
    %v6581 = vadd.f32 %v6444, %v6580
    %6582 = vmatmul.bf16.gmra.mxu0 %v6123
    %v6583 = vpop.f32.mrf.mxu0
    %v6584 = vadd.f32 %v6447, %v6583
    %v6585 = vpop.f32.mrf.mxu0
    %v6586 = vadd.f32 %v6449, %v6585
    %6587 = vmatmul.bf16.gmra.mxu0 %v6124
    %v6588 = vpop.f32.mrf.mxu0
    %v6589 = vadd.f32 %v6452, %v6588
    %v6590 = vpop.f32.mrf.mxu0
    %v6591 = vadd.f32 %v6454, %v6590
    %6592 = vmatmul.bf16.gmra.mxu0 %v6125
    %v6593 = vpop.f32.mrf.mxu0
    %v6594 = vadd.f32 %v6457, %v6593
    %v6595 = vpop.f32.mrf.mxu0
    %v6596 = vadd.f32 %v6459, %v6595
    %6597 = vmatmul.bf16.gmra.mxu0 %v6126
    %v6598 = vpop.f32.mrf.mxu0
    %v6599 = vadd.f32 %v6462, %v6598
    %v6600 = vpop.f32.mrf.mxu0
    %v6601 = vadd.f32 %v6464, %v6600
    %6602 = vmatmul.bf16.gmra.mxu0 %v6127
    %v6603 = vpop.f32.mrf.mxu0
    %v6604 = vadd.f32 %v6467, %v6603
    %v6605 = vpop.f32.mrf.mxu0
    %v6606 = vadd.f32 %v6469, %v6605
    %6607 = vmatmul.bf16.gmra.mxu0 %v6128
    %v6608 = vpop.f32.mrf.mxu0
    %v6609 = vadd.f32 %v6472, %v6608
    %v6610 = vpop.f32.mrf.mxu0
    %v6611 = vadd.f32 %v6474, %v6610
    %6612 = vmatmul.bf16.gmra.mxu0 %v6129
    %v6613 = vpop.f32.mrf.mxu0
    %v6614 = vadd.f32 %v6477, %v6613
    %v6615 = vpop.f32.mrf.mxu0
    %v6616 = vadd.f32 %v6479, %v6615
    %6617 = vmatmul.bf16.gmra.mxu0 %v6130
    %v6618 = vpop.f32.mrf.mxu0
    %v6619 = vadd.f32 %v6482, %v6618
    %v6620 = vpop.f32.mrf.mxu0
    %v6621 = vadd.f32 %v6484, %v6620
    %6622 = vmatmul.bf16.gmra.mxu0 %v6131
    %v6623 = vpop.f32.mrf.mxu0
    %v6624 = vadd.f32 %v6487, %v6623
    %v6625 = vpop.f32.mrf.mxu0
    %v6626 = vadd.f32 %v6489, %v6625
    %6627 = vmatmul.bf16.gmra.mxu0 %v6132
    %v6628 = vpop.f32.mrf.mxu0
    %v6629 = vadd.f32 %v6492, %v6628
    %v6630 = vpop.f32.mrf.mxu0
    %v6631 = vadd.f32 %v6494, %v6630
    %6632 = vdwg.mxu0
    %v6634 = vperm.slane %v6114, 0
    %v6636 = vadd.f32 %v6554, %v6634
    %v6637 = vadd.f32 %v6556, %v6634
    %v6638 = vadd.f32 %v6559, %v6634
    %v6639 = vadd.f32 %v6561, %v6634
    %v6640 = vadd.f32 %v6564, %v6634
    %v6641 = vadd.f32 %v6566, %v6634
    %v6642 = vadd.f32 %v6569, %v6634
    %v6643 = vadd.f32 %v6571, %v6634
    %v6644 = vadd.f32 %v6574, %v6634
    %v6645 = vadd.f32 %v6576, %v6634
    %v6646 = vadd.f32 %v6579, %v6634
    %v6647 = vadd.f32 %v6581, %v6634
    %v6648 = vadd.f32 %v6584, %v6634
    %v6649 = vadd.f32 %v6586, %v6634
    %v6650 = vadd.f32 %v6589, %v6634
    %v6651 = vadd.f32 %v6591, %v6634
    %v6652 = vadd.f32 %v6594, %v6634
    %v6653 = vadd.f32 %v6596, %v6634
    %v6654 = vadd.f32 %v6599, %v6634
    %v6655 = vadd.f32 %v6601, %v6634
    %v6656 = vadd.f32 %v6604, %v6634
    %v6657 = vadd.f32 %v6606, %v6634
    %v6658 = vadd.f32 %v6609, %v6634
    %v6659 = vadd.f32 %v6611, %v6634
    %v6660 = vadd.f32 %v6614, %v6634
    %v6661 = vadd.f32 %v6616, %v6634
    %v6662 = vadd.f32 %v6619, %v6634
    %v6663 = vadd.f32 %v6621, %v6634
    %v6664 = vadd.f32 %v6624, %v6634
    %v6665 = vadd.f32 %v6626, %v6634
    %v6666 = vadd.f32 %v6629, %v6634
    %v6667 = vadd.f32 %v6631, %v6634
    %v6668 = vadd.f32 %v6636, %v6637
    %v6669 = vadd.f32 %v6668, %v6638
    %v6670 = vadd.f32 %v6669, %v6639
    %v6671 = vadd.f32 %v6670, %v6640
    %v6672 = vadd.f32 %v6671, %v6641
    %v6673 = vadd.f32 %v6672, %v6642
    %v6674 = vadd.f32 %v6673, %v6643
    %v6675 = vadd.f32 %v6674, %v6644
    %v6676 = vadd.f32 %v6675, %v6645
    %v6677 = vadd.f32 %v6676, %v6646
    %v6678 = vadd.f32 %v6677, %v6647
    %v6679 = vadd.f32 %v6678, %v6648
    %v6680 = vadd.f32 %v6679, %v6649
    %v6681 = vadd.f32 %v6680, %v6650
    %v6682 = vadd.f32 %v6681, %v6651
    %v6683 = vadd.f32 %v6682, %v6652
    %v6684 = vadd.f32 %v6683, %v6653
    %v6685 = vadd.f32 %v6684, %v6654
    %v6686 = vadd.f32 %v6685, %v6655
    %v6687 = vadd.f32 %v6686, %v6656
    %v6688 = vadd.f32 %v6687, %v6657
    %v6689 = vadd.f32 %v6688, %v6658
    %v6690 = vadd.f32 %v6689, %v6659
    %v6691 = vadd.f32 %v6690, %v6660
    %v6692 = vadd.f32 %v6691, %v6661
    %v6693 = vadd.f32 %v6692, %v6662
    %v6694 = vadd.f32 %v6693, %v6663
    %v6695 = vadd.f32 %v6694, %v6664
    %v6696 = vadd.f32 %v6695, %v6665
    %v6697 = vadd.f32 %v6696, %v6666
    %v6698 = vadd.f32 %v6697, %v6667
    %v6699 = vrot.slane %v6698, 4
    %v6700 = vadd.f32 %v6698, %v6699
    %v6701 = vrot.slane %v6700, 2
    %v6702 = vadd.f32 %v6700, %v6701
    %v6703 = vrot.slane %v6702, 1
    %v6704 = vadd.f32 %v6702, %v6703
    %v6705 = vmul.f32 %v6704, 0.00390625
    %v6706 = vmul.f32 %v6636, %v6636
    %v6707 = vmul.f32 %v6637, %v6637
    %v6708 = vmul.f32 %v6638, %v6638
    %v6709 = vmul.f32 %v6639, %v6639
    %v6710 = vmul.f32 %v6640, %v6640
    %v6711 = vmul.f32 %v6641, %v6641
    %v6712 = vmul.f32 %v6642, %v6642
    %v6713 = vmul.f32 %v6643, %v6643
    %v6714 = vmul.f32 %v6644, %v6644
    %v6715 = vmul.f32 %v6645, %v6645
    %v6716 = vmul.f32 %v6646, %v6646
    %v6717 = vmul.f32 %v6647, %v6647
    %v6718 = vmul.f32 %v6648, %v6648
    %v6719 = vmul.f32 %v6649, %v6649
    %v6720 = vmul.f32 %v6650, %v6650
    %v6721 = vmul.f32 %v6651, %v6651
    %v6722 = vmul.f32 %v6652, %v6652
    %v6723 = vmul.f32 %v6653, %v6653
    %v6724 = vmul.f32 %v6654, %v6654
    %v6725 = vmul.f32 %v6655, %v6655
    %v6726 = vmul.f32 %v6656, %v6656
    %v6727 = vmul.f32 %v6657, %v6657
    %v6728 = vmul.f32 %v6658, %v6658
    %v6729 = vmul.f32 %v6659, %v6659
    %v6730 = vmul.f32 %v6660, %v6660
    %v6731 = vmul.f32 %v6661, %v6661
    %v6732 = vmul.f32 %v6662, %v6662
    %v6733 = vmul.f32 %v6663, %v6663
    %v6734 = vmul.f32 %v6664, %v6664
    %v6735 = vmul.f32 %v6665, %v6665
    %v6736 = vmul.f32 %v6666, %v6666
    %v6737 = vmul.f32 %v6667, %v6667
    %v6738 = vadd.f32 %v6706, %v6707
    %v6739 = vadd.f32 %v6738, %v6708
    %v6740 = vadd.f32 %v6739, %v6709
    %v6741 = vadd.f32 %v6740, %v6710
    %v6742 = vadd.f32 %v6741, %v6711
    %v6743 = vadd.f32 %v6742, %v6712
    %v6744 = vadd.f32 %v6743, %v6713
    %v6745 = vadd.f32 %v6744, %v6714
    %v6746 = vadd.f32 %v6745, %v6715
    %v6747 = vadd.f32 %v6746, %v6716
    %v6748 = vadd.f32 %v6747, %v6717
    %v6749 = vadd.f32 %v6748, %v6718
    %v6750 = vadd.f32 %v6749, %v6719
    %v6751 = vadd.f32 %v6750, %v6720
    %v6752 = vadd.f32 %v6751, %v6721
    %v6753 = vadd.f32 %v6752, %v6722
    %v6754 = vadd.f32 %v6753, %v6723
    %v6755 = vadd.f32 %v6754, %v6724
    %v6756 = vadd.f32 %v6755, %v6725
    %v6757 = vadd.f32 %v6756, %v6726
    %v6758 = vadd.f32 %v6757, %v6727
    %v6759 = vadd.f32 %v6758, %v6728
    %v6760 = vadd.f32 %v6759, %v6729
    %v6761 = vadd.f32 %v6760, %v6730
    %v6762 = vadd.f32 %v6761, %v6731
    %v6763 = vadd.f32 %v6762, %v6732
    %v6764 = vadd.f32 %v6763, %v6733
    %v6765 = vadd.f32 %v6764, %v6734
    %v6766 = vadd.f32 %v6765, %v6735
    %v6767 = vadd.f32 %v6766, %v6736
    %v6768 = vadd.f32 %v6767, %v6737
    %v6769 = vrot.slane %v6768, 4
    %v6770 = vadd.f32 %v6768, %v6769
    %v6771 = vrot.slane %v6770, 2
    %v6772 = vadd.f32 %v6770, %v6771
    %v6773 = vrot.slane %v6772, 1
    %v6774 = vadd.f32 %v6772, %v6773
    %v6775 = vmul.f32 %v6774, 0.00390625
    %v6776 = vmul.f32 %v6705, %v6705
    %v6777 = vsub.f32 %v6775, %v6776
    %v6778 = vmax.f32 %v6777, 0.0
    %v6779 = vsub.f32 %v6636, %v6705
    %v6780 = vsub.f32 %v6637, %v6705
    %v6781 = vsub.f32 %v6638, %v6705
    %v6782 = vsub.f32 %v6639, %v6705
    %v6783 = vsub.f32 %v6640, %v6705
    %v6784 = vsub.f32 %v6641, %v6705
    %v6785 = vsub.f32 %v6642, %v6705
    %v6786 = vsub.f32 %v6643, %v6705
    %v6787 = vsub.f32 %v6644, %v6705
    %v6788 = vsub.f32 %v6645, %v6705
    %v6789 = vsub.f32 %v6646, %v6705
    %v6790 = vsub.f32 %v6647, %v6705
    %v6791 = vsub.f32 %v6648, %v6705
    %v6792 = vsub.f32 %v6649, %v6705
    %v6793 = vsub.f32 %v6650, %v6705
    %v6794 = vsub.f32 %v6651, %v6705
    %v6795 = vsub.f32 %v6652, %v6705
    %v6796 = vsub.f32 %v6653, %v6705
    %v6797 = vsub.f32 %v6654, %v6705
    %v6798 = vsub.f32 %v6655, %v6705
    %v6799 = vsub.f32 %v6656, %v6705
    %v6800 = vsub.f32 %v6657, %v6705
    %v6801 = vsub.f32 %v6658, %v6705
    %v6802 = vsub.f32 %v6659, %v6705
    %v6803 = vsub.f32 %v6660, %v6705
    %v6804 = vsub.f32 %v6661, %v6705
    %v6805 = vsub.f32 %v6662, %v6705
    %v6806 = vsub.f32 %v6663, %v6705
    %v6807 = vsub.f32 %v6664, %v6705
    %v6808 = vsub.f32 %v6665, %v6705
    %v6809 = vsub.f32 %v6666, %v6705
    %v6810 = vsub.f32 %v6667, %v6705
    %v6811 = vadd.f32 %v6778, 1e-05
    %v6812 = vrsqrt.pop %v6811
    %v6813 = vmul.f32 %v6812, %v6811
    %v6814 = vmul.f32 %v6813, %v6812
    %v6815 = vmul.f32 0.5, %v6814
    %v6816 = vsub.f32 1.5, %v6815
    %v6817 = vmul.f32 %v6812, %v6816
    %vm6818 = vweird.f32 %v6811
    %vm6819 = vweird.f32 %v6812
    %vm6820 = vmor %vm6818, %vm6819
    %v6821 = vsel %vm6820, %v6812, %v6817
    %v6822 = vmul.f32 %v6779, %v6821
    %v6823 = vmul.f32 %v6780, %v6821
    %v6824 = vmul.f32 %v6781, %v6821
    %v6825 = vmul.f32 %v6782, %v6821
    %v6826 = vmul.f32 %v6783, %v6821
    %v6827 = vmul.f32 %v6784, %v6821
    %v6828 = vmul.f32 %v6785, %v6821
    %v6829 = vmul.f32 %v6786, %v6821
    %v6830 = vmul.f32 %v6787, %v6821
    %v6831 = vmul.f32 %v6788, %v6821
    %v6832 = vmul.f32 %v6789, %v6821
    %v6833 = vmul.f32 %v6790, %v6821
    %v6834 = vmul.f32 %v6791, %v6821
    %v6835 = vmul.f32 %v6792, %v6821
    %v6836 = vmul.f32 %v6793, %v6821
    %v6837 = vmul.f32 %v6794, %v6821
    %v6838 = vmul.f32 %v6795, %v6821
    %v6839 = vmul.f32 %v6796, %v6821
    %v6840 = vmul.f32 %v6797, %v6821
    %v6841 = vmul.f32 %v6798, %v6821
    %v6842 = vmul.f32 %v6799, %v6821
    %v6843 = vmul.f32 %v6800, %v6821
    %v6844 = vmul.f32 %v6801, %v6821
    %v6845 = vmul.f32 %v6802, %v6821
    %v6846 = vmul.f32 %v6803, %v6821
    %v6847 = vmul.f32 %v6804, %v6821
    %v6848 = vmul.f32 %v6805, %v6821
    %v6849 = vmul.f32 %v6806, %v6821
    %v6850 = vmul.f32 %v6807, %v6821
    %v6851 = vmul.f32 %v6808, %v6821
    %v6852 = vmul.f32 %v6809, %v6821
    %v6853 = vmul.f32 %v6810, %v6821
    %v6855 = vperm.slane %v6115, 0
    %v6857 = vmul.f32 %v6822, %v6855
    %v6858 = vmul.f32 %v6823, %v6855
    %v6859 = vmul.f32 %v6824, %v6855
    %v6860 = vmul.f32 %v6825, %v6855
    %v6861 = vmul.f32 %v6826, %v6855
    %v6862 = vmul.f32 %v6827, %v6855
    %v6863 = vmul.f32 %v6828, %v6855
    %v6864 = vmul.f32 %v6829, %v6855
    %v6865 = vmul.f32 %v6830, %v6855
    %v6866 = vmul.f32 %v6831, %v6855
    %v6867 = vmul.f32 %v6832, %v6855
    %v6868 = vmul.f32 %v6833, %v6855
    %v6869 = vmul.f32 %v6834, %v6855
    %v6870 = vmul.f32 %v6835, %v6855
    %v6871 = vmul.f32 %v6836, %v6855
    %v6872 = vmul.f32 %v6837, %v6855
    %v6873 = vmul.f32 %v6838, %v6855
    %v6874 = vmul.f32 %v6839, %v6855
    %v6875 = vmul.f32 %v6840, %v6855
    %v6876 = vmul.f32 %v6841, %v6855
    %v6877 = vmul.f32 %v6842, %v6855
    %v6878 = vmul.f32 %v6843, %v6855
    %v6879 = vmul.f32 %v6844, %v6855
    %v6880 = vmul.f32 %v6845, %v6855
    %v6881 = vmul.f32 %v6846, %v6855
    %v6882 = vmul.f32 %v6847, %v6855
    %v6883 = vmul.f32 %v6848, %v6855
    %v6884 = vmul.f32 %v6849, %v6855
    %v6885 = vmul.f32 %v6850, %v6855
    %v6886 = vmul.f32 %v6851, %v6855
    %v6887 = vmul.f32 %v6852, %v6855
    %v6888 = vmul.f32 %v6853, %v6855
    %v6890 = vperm.slane %v6116, 0
    %v6892 = vadd.f32 %v6857, %v6890
    %v6893 = vadd.f32 %v6858, %v6890
    %v6894 = vadd.f32 %v6859, %v6890
    %v6895 = vadd.f32 %v6860, %v6890
    %v6896 = vadd.f32 %v6861, %v6890
    %v6897 = vadd.f32 %v6862, %v6890
    %v6898 = vadd.f32 %v6863, %v6890
    %v6899 = vadd.f32 %v6864, %v6890
    %v6900 = vadd.f32 %v6865, %v6890
    %v6901 = vadd.f32 %v6866, %v6890
    %v6902 = vadd.f32 %v6867, %v6890
    %v6903 = vadd.f32 %v6868, %v6890
    %v6904 = vadd.f32 %v6869, %v6890
    %v6905 = vadd.f32 %v6870, %v6890
    %v6906 = vadd.f32 %v6871, %v6890
    %v6907 = vadd.f32 %v6872, %v6890
    %v6908 = vadd.f32 %v6873, %v6890
    %v6909 = vadd.f32 %v6874, %v6890
    %v6910 = vadd.f32 %v6875, %v6890
    %v6911 = vadd.f32 %v6876, %v6890
    %v6912 = vadd.f32 %v6877, %v6890
    %v6913 = vadd.f32 %v6878, %v6890
    %v6914 = vadd.f32 %v6879, %v6890
    %v6915 = vadd.f32 %v6880, %v6890
    %v6916 = vadd.f32 %v6881, %v6890
    %v6917 = vadd.f32 %v6882, %v6890
    %v6918 = vadd.f32 %v6883, %v6890
    %v6919 = vadd.f32 %v6884, %v6890
    %v6920 = vadd.f32 %v6885, %v6890
    %v6921 = vadd.f32 %v6886, %v6890
    %v6922 = vadd.f32 %v6887, %v6890
    %v6923 = vadd.f32 %v6888, %v6890
    %v6924 = vmax.f32 %v6892, 0.0
    %v6925 = vmax.f32 %v6893, 0.0
    %v6926 = vmax.f32 %v6894, 0.0
    %v6927 = vmax.f32 %v6895, 0.0
    %v6928 = vmax.f32 %v6896, 0.0
    %v6929 = vmax.f32 %v6897, 0.0
    %v6930 = vmax.f32 %v6898, 0.0
    %v6931 = vmax.f32 %v6899, 0.0
    %v6932 = vmax.f32 %v6900, 0.0
    %v6933 = vmax.f32 %v6901, 0.0
    %v6934 = vmax.f32 %v6902, 0.0
    %v6935 = vmax.f32 %v6903, 0.0
    %v6936 = vmax.f32 %v6904, 0.0
    %v6937 = vmax.f32 %v6905, 0.0
    %v6938 = vmax.f32 %v6906, 0.0
    %v6939 = vmax.f32 %v6907, 0.0
    %v6940 = vmax.f32 %v6908, 0.0
    %v6941 = vmax.f32 %v6909, 0.0
    %v6942 = vmax.f32 %v6910, 0.0
    %v6943 = vmax.f32 %v6911, 0.0
    %v6944 = vmax.f32 %v6912, 0.0
    %v6945 = vmax.f32 %v6913, 0.0
    %v6946 = vmax.f32 %v6914, 0.0
    %v6947 = vmax.f32 %v6915, 0.0
    %v6948 = vmax.f32 %v6916, 0.0
    %v6949 = vmax.f32 %v6917, 0.0
    %v6950 = vmax.f32 %v6918, 0.0
    %v6951 = vmax.f32 %v6919, 0.0
    %v6952 = vmax.f32 %v6920, 0.0
    %v6953 = vmax.f32 %v6921, 0.0
    %v6954 = vmax.f32 %v6922, 0.0
    %v6955 = vmax.f32 %v6923, 0.0
    %6956 = vst [vmem:[#allocation38 + $0x10] sm:$0xff] %v6066
    %6957 = vst [vmem:[#allocation38 + $0x28] sm:$0xff] %v6067
    %6958 = vst [vmem:[#allocation38 + $0x40] sm:$0xff] %v6068
    %6959 = vst [vmem:[#allocation38 + $0x58] sm:$0xff] %v6069
    %6960 = vst [vmem:[#allocation38 + $0x70] sm:$0xff] %v6070
    %6961 = vst [vmem:[#allocation38 + $0x88] sm:$0xff] %v6071
    %6962 = vst [vmem:[#allocation38 + $0xa0] sm:$0xff] %v6072
    %6963 = vst [vmem:[#allocation38 + $0xb8] sm:$0xff] %v6073
    %6964 = vst [vmem:[#allocation38 + $0xd0] sm:$0xff] %v6074
    %6965 = vst [vmem:[#allocation38 + $0xe8] sm:$0xff] %v6075
    %6966 = vst [vmem:[#allocation38 + $0x100] sm:$0xff] %v6076
    %6967 = vst [vmem:[#allocation38 + $0x118] sm:$0xff] %v6077
    %6968 = vst [vmem:[#allocation38 + $0x130] sm:$0xff] %v6078
    %6969 = vst [vmem:[#allocation38 + $0x148] sm:$0xff] %v6079
    %6970 = vst [vmem:[#allocation38 + $0x160] sm:$0xff] %v6080
    %6971 = vst [vmem:[#allocation38 + $0x178] sm:$0xff] %v6081
    %6972 = vst [vmem:[#allocation40 + $0x10] sm:$0xff] %v6924
    %6973 = vst [vmem:[#allocation40 + $0x28] sm:$0xff] %v6925
    %6974 = vst [vmem:[#allocation40 + $0x40] sm:$0xff] %v6926
    %6975 = vst [vmem:[#allocation40 + $0x58] sm:$0xff] %v6927
    %6976 = vst [vmem:[#allocation40 + $0x70] sm:$0xff] %v6928
    %6977 = vst [vmem:[#allocation40 + $0x88] sm:$0xff] %v6929
    %6978 = vst [vmem:[#allocation40 + $0xa0] sm:$0xff] %v6930
    %6979 = vst [vmem:[#allocation40 + $0xb8] sm:$0xff] %v6931
    %6980 = vst [vmem:[#allocation40 + $0xd0] sm:$0xff] %v6932
    %6981 = vst [vmem:[#allocation40 + $0xe8] sm:$0xff] %v6933
    %6982 = vst [vmem:[#allocation40 + $0x100] sm:$0xff] %v6934
    %6983 = vst [vmem:[#allocation40 + $0x118] sm:$0xff] %v6935
    %6984 = vst [vmem:[#allocation40 + $0x130] sm:$0xff] %v6936
    %6985 = vst [vmem:[#allocation40 + $0x148] sm:$0xff] %v6937
    %6986 = vst [vmem:[#allocation40 + $0x160] sm:$0xff] %v6938
    %6987 = vst [vmem:[#allocation40 + $0x178] sm:$0xff] %v6939
    %6988 = vst [vmem:[#allocation40 + $0x190] sm:$0xff] %v6940
    %6989 = vst [vmem:[#allocation40 + $0x1a8] sm:$0xff] %v6941
    %6990 = vst [vmem:[#allocation40 + $0x1c0] sm:$0xff] %v6942
    %6991 = vst [vmem:[#allocation40 + $0x1d8] sm:$0xff] %v6943
    %6992 = vst [vmem:[#allocation40 + $0x1f0] sm:$0xff] %v6944
    %6993 = vst [vmem:[#allocation40 + $0x208] sm:$0xff] %v6945
    %6994 = vst [vmem:[#allocation40 + $0x220] sm:$0xff] %v6946
    %6995 = vst [vmem:[#allocation40 + $0x238] sm:$0xff] %v6947
    %6996 = vst [vmem:[#allocation40 + $0x250] sm:$0xff] %v6948
    %6997 = vst [vmem:[#allocation40 + $0x268] sm:$0xff] %v6949
    %6998 = vst [vmem:[#allocation40 + $0x280] sm:$0xff] %v6950
    %6999 = vst [vmem:[#allocation40 + $0x298] sm:$0xff] %v6951
    %7000 = vst [vmem:[#allocation40 + $0x2b0] sm:$0xff] %v6952
    %7001 = vst [vmem:[#allocation40 + $0x2c8] sm:$0xff] %v6953
    %7002 = vst [vmem:[#allocation40 + $0x2e0] sm:$0xff] %v6954
    %7003 = vst [vmem:[#allocation40 + $0x2f8] sm:$0xff] %v6955
    %v7004 = vld [vmem:[#allocation34] sm:$0xf]
    %v7005 = vld [vmem:[#allocation34 + $0x4] sm:$0xf]
    %v7006 = vld [vmem:[#allocation34 + $0x8] sm:$0xf]
    %v7007 = vld [vmem:[#allocation34 + $0xc] sm:$0xf]
    %v7008 = vld [vmem:[#allocation34 + $0x10] sm:$0xf]
    %v7009 = vld [vmem:[#allocation34 + $0x14] sm:$0xf]
    %v7010 = vld [vmem:[#allocation34 + $0x18] sm:$0xf]
    %v7011 = vld [vmem:[#allocation34 + $0x1c] sm:$0xf]
    %v7012 = vld [vmem:[#allocation34 + $0x20] sm:$0xf]
    %v7013 = vld [vmem:[#allocation34 + $0x24] sm:$0xf]
    %v7014 = vld [vmem:[#allocation34 + $0x28] sm:$0xf]
    %v7015 = vld [vmem:[#allocation34 + $0x2c] sm:$0xf]
    %v7016 = vld [vmem:[#allocation34 + $0x30] sm:$0xf]
    %v7017 = vld [vmem:[#allocation34 + $0x34] sm:$0xf]
    %v7018 = vld [vmem:[#allocation34 + $0x38] sm:$0xf]
    %v7019 = vld [vmem:[#allocation34 + $0x3c] sm:$0xf]
    %v7020 = vld [vmem:[#allocation35] sm:$0xf]
    %v7021 = vld [vmem:[#allocation35 + $0x4] sm:$0xf]
    %v7022 = vld [vmem:[#allocation35 + $0x8] sm:$0xf]
    %v7023 = vld [vmem:[#allocation35 + $0xc] sm:$0xf]
    %v7024 = vld [vmem:[#allocation35 + $0x10] sm:$0xf]
    %v7025 = vld [vmem:[#allocation35 + $0x14] sm:$0xf]
    %v7026 = vld [vmem:[#allocation35 + $0x18] sm:$0xf]
    %v7027 = vld [vmem:[#allocation35 + $0x1c] sm:$0xf]
    %v7028 = vld [vmem:[#allocation35 + $0x20] sm:$0xf]
    %v7029 = vld [vmem:[#allocation35 + $0x24] sm:$0xf]
    %v7030 = vld [vmem:[#allocation35 + $0x28] sm:$0xf]
    %v7031 = vld [vmem:[#allocation35 + $0x2c] sm:$0xf]
    %v7032 = vld [vmem:[#allocation35 + $0x30] sm:$0xf]
    %v7033 = vld [vmem:[#allocation35 + $0x34] sm:$0xf]
    %v7034 = vld [vmem:[#allocation35 + $0x38] sm:$0xf]
    %v7035 = vld [vmem:[#allocation35 + $0x3c] sm:$0xf]
    %v7036 = vld [vmem:[%s85] sm:$0x1]
    %v7037 = vpack.c.bf16 %v6067, %v6066
    %v7038 = vpack.c.bf16 %v6069, %v6068
    %v7039 = vpack.c.bf16 %v6071, %v6070
    %v7040 = vpack.c.bf16 %v6073, %v6072
    %v7041 = vpack.c.bf16 %v6075, %v6074
    %v7042 = vpack.c.bf16 %v6077, %v6076
    %v7043 = vpack.c.bf16 %v6079, %v6078
    %v7044 = vpack.c.bf16 %v6081, %v6080
    %7045 = vmatpush.bf16.msra.mxu0 %v7044
    %7046 = vmatpush.bf16.msra.mxu0 %v7043
    %7047 = vmatpush.bf16.msra.mxu0 %v7042
    %7048 = vmatpush.bf16.msra.mxu0 %v7041
    %7049 = vmatpush.bf16.msra.mxu0 %v7040
    %7050 = vmatpush.bf16.msra.mxu0 %v7039
    %7051 = vmatpush.bf16.msra.mxu0 %v7038
    %7052 = vmatpush.bf16.msra.mxu0 %v7037
    %7053 = vmatmul.bf16.gmra.mxu0 %v743
    %v7054 = vpop.f32.mrf.mxu0
    %v7055 = vadd.f32 0.0, %v7054
    %v7056 = vpop.f32.mrf.mxu0
    %v7057 = vadd.f32 0.0, %v7056
    %7058 = vmatmul.bf16.gmra.mxu0 %v745
    %v7059 = vpop.f32.mrf.mxu0
    %v7060 = vadd.f32 0.0, %v7059
    %v7061 = vpop.f32.mrf.mxu0
    %v7062 = vadd.f32 0.0, %v7061
    %7063 = vmatmul.bf16.gmra.mxu0 %v747
    %v7064 = vpop.f32.mrf.mxu0
    %v7065 = vadd.f32 0.0, %v7064
    %v7066 = vpop.f32.mrf.mxu0
    %v7067 = vadd.f32 0.0, %v7066
    %7068 = vmatmul.bf16.gmra.mxu0 %v749
    %v7069 = vpop.f32.mrf.mxu0
    %v7070 = vadd.f32 0.0, %v7069
    %v7071 = vpop.f32.mrf.mxu0
    %v7072 = vadd.f32 0.0, %v7071
    %7073 = vmatmul.bf16.gmra.mxu0 %v751
    %v7074 = vpop.f32.mrf.mxu0
    %v7075 = vadd.f32 0.0, %v7074
    %v7076 = vpop.f32.mrf.mxu0
    %v7077 = vadd.f32 0.0, %v7076
    %7078 = vmatmul.bf16.gmra.mxu0 %v753
    %v7079 = vpop.f32.mrf.mxu0
    %v7080 = vadd.f32 0.0, %v7079
    %v7081 = vpop.f32.mrf.mxu0
    %v7082 = vadd.f32 0.0, %v7081
    %7083 = vmatmul.bf16.gmra.mxu0 %v755
    %v7084 = vpop.f32.mrf.mxu0
    %v7085 = vadd.f32 0.0, %v7084
    %v7086 = vpop.f32.mrf.mxu0
    %v7087 = vadd.f32 0.0, %v7086
    %7088 = vmatmul.bf16.gmra.mxu0 %v757
    %v7089 = vpop.f32.mrf.mxu0
    %v7090 = vadd.f32 0.0, %v7089
    %v7091 = vpop.f32.mrf.mxu0
    %v7092 = vadd.f32 0.0, %v7091
    %7093 = vmatmul.bf16.gmra.mxu0 %v744
    %v7094 = vpop.f32.mrf.mxu0
    %v7095 = vadd.f32 0.0, %v7094
    %v7096 = vpop.f32.mrf.mxu0
    %v7097 = vadd.f32 0.0, %v7096
    %7098 = vmatmul.bf16.gmra.mxu0 %v746
    %v7099 = vpop.f32.mrf.mxu0
    %v7100 = vadd.f32 0.0, %v7099
    %v7101 = vpop.f32.mrf.mxu0
    %v7102 = vadd.f32 0.0, %v7101
    %7103 = vmatmul.bf16.gmra.mxu0 %v748
    %v7104 = vpop.f32.mrf.mxu0
    %v7105 = vadd.f32 0.0, %v7104
    %v7106 = vpop.f32.mrf.mxu0
    %v7107 = vadd.f32 0.0, %v7106
    %7108 = vmatmul.bf16.gmra.mxu0 %v750
    %v7109 = vpop.f32.mrf.mxu0
    %v7110 = vadd.f32 0.0, %v7109
    %v7111 = vpop.f32.mrf.mxu0
    %v7112 = vadd.f32 0.0, %v7111
    %7113 = vmatmul.bf16.gmra.mxu0 %v752
    %v7114 = vpop.f32.mrf.mxu0
    %v7115 = vadd.f32 0.0, %v7114
    %v7116 = vpop.f32.mrf.mxu0
    %v7117 = vadd.f32 0.0, %v7116
    %7118 = vmatmul.bf16.gmra.mxu0 %v754
    %v7119 = vpop.f32.mrf.mxu0
    %v7120 = vadd.f32 0.0, %v7119
    %v7121 = vpop.f32.mrf.mxu0
    %v7122 = vadd.f32 0.0, %v7121
    %7123 = vmatmul.bf16.gmra.mxu0 %v756
    %v7124 = vpop.f32.mrf.mxu0
    %v7125 = vadd.f32 0.0, %v7124
    %v7126 = vpop.f32.mrf.mxu0
    %v7127 = vadd.f32 0.0, %v7126
    %7128 = vmatmul.bf16.gmra.mxu0 %v758
    %v7129 = vpop.f32.mrf.mxu0
    %v7130 = vadd.f32 0.0, %v7129
    %v7131 = vpop.f32.mrf.mxu0
    %v7132 = vadd.f32 0.0, %v7131
    %7133 = vdwg.mxu0
    %v7134 = vmul.f32 %v7055, 0.5
    %v7135 = vmul.f32 %v7057, 0.5
    %v7136 = vmul.f32 %v7060, 0.5
    %v7137 = vmul.f32 %v7062, 0.5
    %v7138 = vmul.f32 %v7065, 0.5
    %v7139 = vmul.f32 %v7067, 0.5
    %v7140 = vmul.f32 %v7070, 0.5
    %v7141 = vmul.f32 %v7072, 0.5
    %v7142 = vmul.f32 %v7075, 0.5
    %v7143 = vmul.f32 %v7077, 0.5
    %v7144 = vmul.f32 %v7080, 0.5
    %v7145 = vmul.f32 %v7082, 0.5
    %v7146 = vmul.f32 %v7085, 0.5
    %v7147 = vmul.f32 %v7087, 0.5
    %v7148 = vmul.f32 %v7090, 0.5
    %v7149 = vmul.f32 %v7092, 0.5
    %v7150 = vmul.f32 %v7095, 0.5
    %v7151 = vmul.f32 %v7097, 0.5
    %v7152 = vmul.f32 %v7100, 0.5
    %v7153 = vmul.f32 %v7102, 0.5
    %v7154 = vmul.f32 %v7105, 0.5
    %v7155 = vmul.f32 %v7107, 0.5
    %v7156 = vmul.f32 %v7110, 0.5
    %v7157 = vmul.f32 %v7112, 0.5
    %v7158 = vmul.f32 %v7115, 0.5
    %v7159 = vmul.f32 %v7117, 0.5
    %v7160 = vmul.f32 %v7120, 0.5
    %v7161 = vmul.f32 %v7122, 0.5
    %v7162 = vmul.f32 %v7125, 0.5
    %v7163 = vmul.f32 %v7127, 0.5
    %v7164 = vmul.f32 %v7130, 0.5
    %v7165 = vmul.f32 %v7132, 0.5
    %v7166 = vpack.c.bf16 %v6925, %v6924
    %v7167 = vpack.c.bf16 %v6927, %v6926
    %v7168 = vpack.c.bf16 %v6929, %v6928
    %v7169 = vpack.c.bf16 %v6931, %v6930
    %v7170 = vpack.c.bf16 %v6933, %v6932
    %v7171 = vpack.c.bf16 %v6935, %v6934
    %v7172 = vpack.c.bf16 %v6937, %v6936
    %v7173 = vpack.c.bf16 %v6939, %v6938
    %v7174 = vpack.c.bf16 %v6941, %v6940
    %v7175 = vpack.c.bf16 %v6943, %v6942
    %v7176 = vpack.c.bf16 %v6945, %v6944
    %v7177 = vpack.c.bf16 %v6947, %v6946
    %v7178 = vpack.c.bf16 %v6949, %v6948
    %v7179 = vpack.c.bf16 %v6951, %v6950
    %v7180 = vpack.c.bf16 %v6953, %v6952
    %v7181 = vpack.c.bf16 %v6955, %v6954
    %v7182 = vpack.c.bf16 %v7135, %v7134
    %v7183 = vpack.c.bf16 %v7137, %v7136
    %v7184 = vpack.c.bf16 %v7139, %v7138
    %v7185 = vpack.c.bf16 %v7141, %v7140
    %v7186 = vpack.c.bf16 %v7143, %v7142
    %v7187 = vpack.c.bf16 %v7145, %v7144
    %v7188 = vpack.c.bf16 %v7147, %v7146
    %v7189 = vpack.c.bf16 %v7149, %v7148
    %v7190 = vpack.c.bf16 %v7151, %v7150
    %v7191 = vpack.c.bf16 %v7153, %v7152
    %v7192 = vpack.c.bf16 %v7155, %v7154
    %v7193 = vpack.c.bf16 %v7157, %v7156
    %v7194 = vpack.c.bf16 %v7159, %v7158
    %v7195 = vpack.c.bf16 %v7161, %v7160
    %v7196 = vpack.c.bf16 %v7163, %v7162
    %v7197 = vpack.c.bf16 %v7165, %v7164
    %v7214 = vunpack.c.l.b16 %v7020
    %v7215 = vunpack.c.l.b16 %v7021
    %v7216 = vunpack.c.l.b16 %v7022
    %v7217 = vunpack.c.l.b16 %v7023
    %v7218 = vunpack.c.l.b16 %v7024
    %v7219 = vunpack.c.l.b16 %v7025
    %v7220 = vunpack.c.l.b16 %v7026
    %v7221 = vunpack.c.l.b16 %v7027
    %v7222 = vunpack.c.l.b16 %v7028
    %v7223 = vunpack.c.l.b16 %v7029
    %v7224 = vunpack.c.l.b16 %v7030
    %v7225 = vunpack.c.l.b16 %v7031
    %v7226 = vunpack.c.l.b16 %v7032
    %v7227 = vunpack.c.l.b16 %v7033
    %v7228 = vunpack.c.l.b16 %v7034
    %v7229 = vunpack.c.l.b16 %v7035
    %v7230 = vpack.c.b16 %v7215, %v7214
    %v7231 = vpack.c.b16 %v7217, %v7216
    %v7232 = vpack.c.b16 %v7219, %v7218
    %v7233 = vpack.c.b16 %v7221, %v7220
    %v7234 = vpack.c.b16 %v7223, %v7222
    %v7235 = vpack.c.b16 %v7225, %v7224
    %v7236 = vpack.c.b16 %v7227, %v7226
    %v7237 = vpack.c.b16 %v7229, %v7228
    %7246 = vmatpush.bf16.msra.mxu0 %v7237
    %7247 = vmatpush.bf16.msra.mxu0 %v7236
    %7248 = vmatpush.bf16.msra.mxu0 %v7235
    %7249 = vmatpush.bf16.msra.mxu0 %v7234
    %7250 = vmatpush.bf16.msra.mxu0 %v7233
    %7251 = vmatpush.bf16.msra.mxu0 %v7232
    %7252 = vmatpush.bf16.msra.mxu0 %v7231
    %7253 = vmatpush.bf16.msra.mxu0 %v7230
    %7254 = vmatmul.bf16.gmra.mxu0 %v7182
    %v7255 = vpop.f32.mrf.mxu0
    %v7256 = vadd.f32 0.0, %v7255
    %v7257 = vpop.f32.mrf.mxu0
    %v7258 = vadd.f32 0.0, %v7257
    %7259 = vmatmul.bf16.gmra.mxu0 %v7183
    %v7260 = vpop.f32.mrf.mxu0
    %v7261 = vadd.f32 0.0, %v7260
    %v7262 = vpop.f32.mrf.mxu0
    %v7263 = vadd.f32 0.0, %v7262
    %7264 = vmatmul.bf16.gmra.mxu0 %v7184
    %v7265 = vpop.f32.mrf.mxu0
    %v7266 = vadd.f32 0.0, %v7265
    %v7267 = vpop.f32.mrf.mxu0
    %v7268 = vadd.f32 0.0, %v7267
    %7269 = vmatmul.bf16.gmra.mxu0 %v7185
    %v7270 = vpop.f32.mrf.mxu0
    %v7271 = vadd.f32 0.0, %v7270
    %v7272 = vpop.f32.mrf.mxu0
    %v7273 = vadd.f32 0.0, %v7272
    %7274 = vmatmul.bf16.gmra.mxu0 %v7186
    %v7275 = vpop.f32.mrf.mxu0
    %v7276 = vadd.f32 0.0, %v7275
    %v7277 = vpop.f32.mrf.mxu0
    %v7278 = vadd.f32 0.0, %v7277
    %7279 = vmatmul.bf16.gmra.mxu0 %v7187
    %v7280 = vpop.f32.mrf.mxu0
    %v7281 = vadd.f32 0.0, %v7280
    %v7282 = vpop.f32.mrf.mxu0
    %v7283 = vadd.f32 0.0, %v7282
    %7284 = vmatmul.bf16.gmra.mxu0 %v7188
    %v7285 = vpop.f32.mrf.mxu0
    %v7286 = vadd.f32 0.0, %v7285
    %v7287 = vpop.f32.mrf.mxu0
    %v7288 = vadd.f32 0.0, %v7287
    %7289 = vmatmul.bf16.gmra.mxu0 %v7189
    %v7290 = vpop.f32.mrf.mxu0
    %v7291 = vadd.f32 0.0, %v7290
    %v7292 = vpop.f32.mrf.mxu0
    %v7293 = vadd.f32 0.0, %v7292
    %7294 = vmatmul.bf16.gmra.mxu0 %v7190
    %v7295 = vpop.f32.mrf.mxu0
    %v7296 = vadd.f32 0.0, %v7295
    %v7297 = vpop.f32.mrf.mxu0
    %v7298 = vadd.f32 0.0, %v7297
    %7299 = vmatmul.bf16.gmra.mxu0 %v7191
    %v7300 = vpop.f32.mrf.mxu0
    %v7301 = vadd.f32 0.0, %v7300
    %v7302 = vpop.f32.mrf.mxu0
    %v7303 = vadd.f32 0.0, %v7302
    %7304 = vmatmul.bf16.gmra.mxu0 %v7192
    %v7305 = vpop.f32.mrf.mxu0
    %v7306 = vadd.f32 0.0, %v7305
    %v7307 = vpop.f32.mrf.mxu0
    %v7308 = vadd.f32 0.0, %v7307
    %7309 = vmatmul.bf16.gmra.mxu0 %v7193
    %v7310 = vpop.f32.mrf.mxu0
    %v7311 = vadd.f32 0.0, %v7310
    %v7312 = vpop.f32.mrf.mxu0
    %v7313 = vadd.f32 0.0, %v7312
    %7314 = vmatmul.bf16.gmra.mxu0 %v7194
    %v7315 = vpop.f32.mrf.mxu0
    %v7316 = vadd.f32 0.0, %v7315
    %v7317 = vpop.f32.mrf.mxu0
    %v7318 = vadd.f32 0.0, %v7317
    %7319 = vmatmul.bf16.gmra.mxu0 %v7195
    %v7320 = vpop.f32.mrf.mxu0
    %v7321 = vadd.f32 0.0, %v7320
    %v7322 = vpop.f32.mrf.mxu0
    %v7323 = vadd.f32 0.0, %v7322
    %7324 = vmatmul.bf16.gmra.mxu0 %v7196
    %v7325 = vpop.f32.mrf.mxu0
    %v7326 = vadd.f32 0.0, %v7325
    %v7327 = vpop.f32.mrf.mxu0
    %v7328 = vadd.f32 0.0, %v7327
    %7329 = vmatmul.bf16.gmra.mxu0 %v7197
    %v7330 = vpop.f32.mrf.mxu0
    %v7331 = vadd.f32 0.0, %v7330
    %v7332 = vpop.f32.mrf.mxu0
    %v7333 = vadd.f32 0.0, %v7332
    %7334 = vdwg.mxu0
    %v7351 = vunpack.c.l.b16 %v7004
    %v7352 = vunpack.c.l.b16 %v7005
    %v7353 = vunpack.c.l.b16 %v7006
    %v7354 = vunpack.c.l.b16 %v7007
    %v7355 = vunpack.c.l.b16 %v7008
    %v7356 = vunpack.c.l.b16 %v7009
    %v7357 = vunpack.c.l.b16 %v7010
    %v7358 = vunpack.c.l.b16 %v7011
    %v7359 = vunpack.c.l.b16 %v7012
    %v7360 = vunpack.c.l.b16 %v7013
    %v7361 = vunpack.c.l.b16 %v7014
    %v7362 = vunpack.c.l.b16 %v7015
    %v7363 = vunpack.c.l.b16 %v7016
    %v7364 = vunpack.c.l.b16 %v7017
    %v7365 = vunpack.c.l.b16 %v7018
    %v7366 = vunpack.c.l.b16 %v7019
    %v7367 = vpack.c.b16 %v7352, %v7351
    %v7368 = vpack.c.b16 %v7354, %v7353
    %v7369 = vpack.c.b16 %v7356, %v7355
    %v7370 = vpack.c.b16 %v7358, %v7357
    %v7371 = vpack.c.b16 %v7360, %v7359
    %v7372 = vpack.c.b16 %v7362, %v7361
    %v7373 = vpack.c.b16 %v7364, %v7363
    %v7374 = vpack.c.b16 %v7366, %v7365
    %7383 = vmatpush.bf16.msra.mxu0 %v7374
    %7384 = vmatpush.bf16.msra.mxu0 %v7373
    %7385 = vmatpush.bf16.msra.mxu0 %v7372
    %7386 = vmatpush.bf16.msra.mxu0 %v7371
    %7387 = vmatpush.bf16.msra.mxu0 %v7370
    %7388 = vmatpush.bf16.msra.mxu0 %v7369
    %7389 = vmatpush.bf16.msra.mxu0 %v7368
    %7390 = vmatpush.bf16.msra.mxu0 %v7367
    %7391 = vmatmul.bf16.gmra.mxu0 %v7166
    %v7392 = vpop.f32.mrf.mxu0
    %v7393 = vadd.f32 %v7256, %v7392
    %v7394 = vpop.f32.mrf.mxu0
    %v7395 = vadd.f32 %v7258, %v7394
    %7396 = vmatmul.bf16.gmra.mxu0 %v7167
    %v7397 = vpop.f32.mrf.mxu0
    %v7398 = vadd.f32 %v7261, %v7397
    %v7399 = vpop.f32.mrf.mxu0
    %v7400 = vadd.f32 %v7263, %v7399
    %7401 = vmatmul.bf16.gmra.mxu0 %v7168
    %v7402 = vpop.f32.mrf.mxu0
    %v7403 = vadd.f32 %v7266, %v7402
    %v7404 = vpop.f32.mrf.mxu0
    %v7405 = vadd.f32 %v7268, %v7404
    %7406 = vmatmul.bf16.gmra.mxu0 %v7169
    %v7407 = vpop.f32.mrf.mxu0
    %v7408 = vadd.f32 %v7271, %v7407
    %v7409 = vpop.f32.mrf.mxu0
    %v7410 = vadd.f32 %v7273, %v7409
    %7411 = vmatmul.bf16.gmra.mxu0 %v7170
    %v7412 = vpop.f32.mrf.mxu0
    %v7413 = vadd.f32 %v7276, %v7412
    %v7414 = vpop.f32.mrf.mxu0
    %v7415 = vadd.f32 %v7278, %v7414
    %7416 = vmatmul.bf16.gmra.mxu0 %v7171
    %v7417 = vpop.f32.mrf.mxu0
    %v7418 = vadd.f32 %v7281, %v7417
    %v7419 = vpop.f32.mrf.mxu0
    %v7420 = vadd.f32 %v7283, %v7419
    %7421 = vmatmul.bf16.gmra.mxu0 %v7172
    %v7422 = vpop.f32.mrf.mxu0
    %v7423 = vadd.f32 %v7286, %v7422
    %v7424 = vpop.f32.mrf.mxu0
    %v7425 = vadd.f32 %v7288, %v7424
    %7426 = vmatmul.bf16.gmra.mxu0 %v7173
    %v7427 = vpop.f32.mrf.mxu0
    %v7428 = vadd.f32 %v7291, %v7427
    %v7429 = vpop.f32.mrf.mxu0
    %v7430 = vadd.f32 %v7293, %v7429
    %7431 = vmatmul.bf16.gmra.mxu0 %v7174
    %v7432 = vpop.f32.mrf.mxu0
    %v7433 = vadd.f32 %v7296, %v7432
    %v7434 = vpop.f32.mrf.mxu0
    %v7435 = vadd.f32 %v7298, %v7434
    %7436 = vmatmul.bf16.gmra.mxu0 %v7175
    %v7437 = vpop.f32.mrf.mxu0
    %v7438 = vadd.f32 %v7301, %v7437
    %v7439 = vpop.f32.mrf.mxu0
    %v7440 = vadd.f32 %v7303, %v7439
    %7441 = vmatmul.bf16.gmra.mxu0 %v7176
    %v7442 = vpop.f32.mrf.mxu0
    %v7443 = vadd.f32 %v7306, %v7442
    %v7444 = vpop.f32.mrf.mxu0
    %v7445 = vadd.f32 %v7308, %v7444
    %7446 = vmatmul.bf16.gmra.mxu0 %v7177
    %v7447 = vpop.f32.mrf.mxu0
    %v7448 = vadd.f32 %v7311, %v7447
    %v7449 = vpop.f32.mrf.mxu0
    %v7450 = vadd.f32 %v7313, %v7449
    %7451 = vmatmul.bf16.gmra.mxu0 %v7178
    %v7452 = vpop.f32.mrf.mxu0
    %v7453 = vadd.f32 %v7316, %v7452
    %v7454 = vpop.f32.mrf.mxu0
    %v7455 = vadd.f32 %v7318, %v7454
    %7456 = vmatmul.bf16.gmra.mxu0 %v7179
    %v7457 = vpop.f32.mrf.mxu0
    %v7458 = vadd.f32 %v7321, %v7457
    %v7459 = vpop.f32.mrf.mxu0
    %v7460 = vadd.f32 %v7323, %v7459
    %7461 = vmatmul.bf16.gmra.mxu0 %v7180
    %v7462 = vpop.f32.mrf.mxu0
    %v7463 = vadd.f32 %v7326, %v7462
    %v7464 = vpop.f32.mrf.mxu0
    %v7465 = vadd.f32 %v7328, %v7464
    %7466 = vmatmul.bf16.gmra.mxu0 %v7181
    %v7467 = vpop.f32.mrf.mxu0
    %v7468 = vadd.f32 %v7331, %v7467
    %v7469 = vpop.f32.mrf.mxu0
    %v7470 = vadd.f32 %v7333, %v7469
    %7471 = vdwg.mxu0
    %v7473 = vperm.slane %v7036, 0
    %v7475 = vadd.f32 %v7393, %v7473
    %v7476 = vadd.f32 %v7395, %v7473
    %v7477 = vadd.f32 %v7398, %v7473
    %v7478 = vadd.f32 %v7400, %v7473
    %v7479 = vadd.f32 %v7403, %v7473
    %v7480 = vadd.f32 %v7405, %v7473
    %v7481 = vadd.f32 %v7408, %v7473
    %v7482 = vadd.f32 %v7410, %v7473
    %v7483 = vadd.f32 %v7413, %v7473
    %v7484 = vadd.f32 %v7415, %v7473
    %v7485 = vadd.f32 %v7418, %v7473
    %v7486 = vadd.f32 %v7420, %v7473
    %v7487 = vadd.f32 %v7423, %v7473
    %v7488 = vadd.f32 %v7425, %v7473
    %v7489 = vadd.f32 %v7428, %v7473
    %v7490 = vadd.f32 %v7430, %v7473
    %v7491 = vadd.f32 %v7433, %v7473
    %v7492 = vadd.f32 %v7435, %v7473
    %v7493 = vadd.f32 %v7438, %v7473
    %v7494 = vadd.f32 %v7440, %v7473
    %v7495 = vadd.f32 %v7443, %v7473
    %v7496 = vadd.f32 %v7445, %v7473
    %v7497 = vadd.f32 %v7448, %v7473
    %v7498 = vadd.f32 %v7450, %v7473
    %v7499 = vadd.f32 %v7453, %v7473
    %v7500 = vadd.f32 %v7455, %v7473
    %v7501 = vadd.f32 %v7458, %v7473
    %v7502 = vadd.f32 %v7460, %v7473
    %v7503 = vadd.f32 %v7463, %v7473
    %v7504 = vadd.f32 %v7465, %v7473
    %v7505 = vadd.f32 %v7468, %v7473
    %v7506 = vadd.f32 %v7470, %v7473
    %7507 = vst [vmem:[#allocation37] sm:$0xff] %v7475
    %7508 = vst [vmem:[#allocation37 + $0x8] sm:$0xff] %v7476
    %7509 = vst [vmem:[#allocation37 + $0x10] sm:$0xff] %v7477
    %7510 = vst [vmem:[#allocation37 + $0x18] sm:$0xff] %v7478
    %7511 = vst [vmem:[#allocation37 + $0x20] sm:$0xff] %v7479
    %7512 = vst [vmem:[#allocation37 + $0x28] sm:$0xff] %v7480
    %7513 = vst [vmem:[#allocation37 + $0x30] sm:$0xff] %v7481
    %7514 = vst [vmem:[#allocation37 + $0x38] sm:$0xff] %v7482
    %7515 = vst [vmem:[#allocation37 + $0x40] sm:$0xff] %v7483
    %7516 = vst [vmem:[#allocation37 + $0x48] sm:$0xff] %v7484
    %7517 = vst [vmem:[#allocation37 + $0x50] sm:$0xff] %v7485
    %7518 = vst [vmem:[#allocation37 + $0x58] sm:$0xff] %v7486
    %7519 = vst [vmem:[#allocation37 + $0x60] sm:$0xff] %v7487
    %7520 = vst [vmem:[#allocation37 + $0x68] sm:$0xff] %v7488
    %7521 = vst [vmem:[#allocation37 + $0x70] sm:$0xff] %v7489
    %7522 = vst [vmem:[#allocation37 + $0x78] sm:$0xff] %v7490
    %7523 = vst [vmem:[#allocation37 + $0x80] sm:$0xff] %v7491
    %7524 = vst [vmem:[#allocation37 + $0x88] sm:$0xff] %v7492
    %7525 = vst [vmem:[#allocation37 + $0x90] sm:$0xff] %v7493
    %7526 = vst [vmem:[#allocation37 + $0x98] sm:$0xff] %v7494
    %7527 = vst [vmem:[#allocation37 + $0xa0] sm:$0xff] %v7495
    %7528 = vst [vmem:[#allocation37 + $0xa8] sm:$0xff] %v7496
    %7529 = vst [vmem:[#allocation37 + $0xb0] sm:$0xff] %v7497
    %7530 = vst [vmem:[#allocation37 + $0xb8] sm:$0xff] %v7498
    %7531 = vst [vmem:[#allocation37 + $0xc0] sm:$0xff] %v7499
    %7532 = vst [vmem:[#allocation37 + $0xc8] sm:$0xff] %v7500
    %7533 = vst [vmem:[#allocation37 + $0xd0] sm:$0xff] %v7501
    %7534 = vst [vmem:[#allocation37 + $0xd8] sm:$0xff] %v7502
    %7535 = vst [vmem:[#allocation37 + $0xe0] sm:$0xff] %v7503
    %7536 = vst [vmem:[#allocation37 + $0xe8] sm:$0xff] %v7504
    %7537 = vst [vmem:[#allocation37 + $0xf0] sm:$0xff] %v7505
    %7538 = vst [vmem:[#allocation37 + $0xf8] sm:$0xff] %v7506
    // Predicated region
    $region262: #{tpu_custom_call.1} parent=1 // pred_check
      _
    $region263: #{tpu_custom_call.1} parent=1 // pred_check_branch
      %7540 = sbr.rel (0) target = $region265
    $region264: #{tpu_custom_call.1} parent=1 // pred_region
      %7542 = vsyncadd [#allocation4], 0
      %s7543 = sshll.u32 [#allocation37], 4
      %s7544 = int_to_ptr.vmem [resolvable:$true] %s7543
      %s7545 = sshll.u32 %s87, 4
      %s7546 = int_to_ptr.hbm [resolvable:$true] %s7545
      %7551 = dma.vmem_to_hbm [thread:$0]  %s7544, 4096, %s7546, [#allocation4], 128, 128, 8
    $region265: #{tpu_custom_call.1} parent=1 // pred_fallthru
      _
    // Predicated region
    $region266: #{tpu_custom_call.1} parent=1 // pred_check
      _
    $region267: #{tpu_custom_call.1} parent=1 // pred_check_branch
      %7553 = sbr.rel (0) target = $region269
    $region268: #{tpu_custom_call.1} parent=1 // pred_region
      %7555 = vsyncadd [#allocation39], 0
      %s7556 = sshll.u32 [#allocation38], 4
      %s7557 = int_to_ptr.vmem [resolvable:$true] %s7556
      %s7558 = sshll.u32 %s89, 4
      %s7559 = int_to_ptr.hbm [resolvable:$true] %s7558
      %7564 = dma.vmem_to_hbm [thread:$0]  %s7557, 6144, %s7559, [#allocation39], 384, 384, 24
    $region269: #{tpu_custom_call.1} parent=1 // pred_fallthru
      _
    // Predicated region
    $region270: #{tpu_custom_call.1} parent=1 // pred_check
      _
    $region271: #{tpu_custom_call.1} parent=1 // pred_check_branch
      %7566 = sbr.rel (0) target = $region273
    $region272: #{tpu_custom_call.1} parent=1 // pred_region
      %7568 = vsyncadd [#allocation39], 0
      %s7569 = sshll.u32 [#allocation40], 4
      %s7570 = int_to_ptr.vmem [resolvable:$true] %s7569
      %s7571 = sshll.u32 %s91, 4
      %s7572 = int_to_ptr.hbm [resolvable:$true] %s7571
      %7577 = dma.vmem_to_hbm [thread:$0]  %s7570, 12288, %s7572, [#allocation39], 384, 384, 24
    $region273: #{tpu_custom_call.1} parent=1 // pred_fallthru
      _
    // Predicated region
    $region274: #{tpu_custom_call.1} parent=1 // pred_check
      _
    $region275: #{tpu_custom_call.1} parent=1 // pred_check_branch
      %7579 = sbr.rel (0) target = $region277
    $region276: #{tpu_custom_call.1} parent=1 // pred_region
      %7581 = dma.done [#allocation4], 4096
    $region277: #{tpu_custom_call.1} parent=1 // pred_fallthru
      _
    // Predicated region
    $region278: #{tpu_custom_call.1} parent=1 // pred_check
      _
    $region279: #{tpu_custom_call.1} parent=1 // pred_check_branch
      %7583 = sbr.rel (0) target = $region281
    $region280: #{tpu_custom_call.1} parent=1 // pred_region
      %7585 = dma.done [#allocation39], 6144
    $region281: #{tpu_custom_call.1} parent=1 // pred_fallthru
      _
    // Predicated region
    $region282: #{tpu_custom_call.1} parent=1 // pred_check
      _
    $region283: #{tpu_custom_call.1} parent=1 // pred_check_branch
      %7587 = sbr.rel (0) target = $region285
    $region284: #{tpu_custom_call.1} parent=1 // pred_region
      %7589 = dma.done [#allocation39], 12288
    $region285: #{tpu_custom_call.1} parent=1 // pred_fallthru
      _
    %7590 = vsyncpa [#allocation3], 1
    %7591 = vsyncpa [#allocation6], 1
    %7592 = vsyncpa [#allocation9], 1
    %7593 = vsyncpa [#allocation12], 1
    %7594 = vsyncpa [#allocation15], 1
    %7595 = vsyncpa [#allocation18], 1
    %7596 = vsyncpa [#allocation21], 1
    %7597 = vsyncpa [#allocation24], 1
    %7598 = vsyncpa [#allocation27], 1
    %7599 = vsyncpa [#allocation30], 1
    %7600 = vsyncpa [#allocation33], 1
    %7601 = vsyncpa [#allocation36], 1
    %7602 = vsyncpa [#allocation4], 1
    %7603 = vsyncpa [#allocation39], 1

</llo_original>
